<compile_context>
chip_gen: v5e
topology: v5e:2x2
jax: 0.10.0
libtpu: 0.0.40
codegen_flags: <defaults>
</compile_context>

<pallas_src>
import functools

import jax
import jax.numpy as jnp
from jax.experimental import pallas as pl
from jax.experimental.pallas import tpu as pltpu

LANES = 128
_VMEM_LIMIT_BYTES = 32 * 1024 * 1024


def _round_up(x, m):
    return (x + m - 1) // m * m


# ------------------------------ fused conv-block kernel ------------------------------ #

def _make_conv_block_kernel(H, W, Cin, Cout, nc_pad=None):
    """Kernel for one image: conv3x3(pad=1) + BN(eval) + ReLU + maxpool2 (+ optional fc)."""
    Wp = W + 2                 # padded row pitch (left/right halo)
    HWp = H * Wp               # conv rows computed per image (cols >= W are discarded)
    Ho, Wo = H // 2, W // 2

    def conv_bn_relu(x_ref, w_ref, scale_ref, bias_ref, acc_ref):
        # implicit im2col: accumulate 9 shifted tap matmuls (bf16 MXU, f32 accumulate)
        for t in range(9):
            kh, kw = divmod(t, 3)
            xs = x_ref[pl.ds(kh * Wp + kw, HWp), :]                         # (HWp, Cin)
            prod = jnp.dot(xs, w_ref[t], preferred_element_type=jnp.float32)
            if t == 0:
                acc_ref[...] = prod
            else:
                acc_ref[...] += prod
        # folded BatchNorm (eval) + ReLU, f32, in place in VMEM
        acc_ref[...] = jnp.maximum(acc_ref[...] * scale_ref[...] + bias_ref[...], 0.0)

    def pooled_row(acc_ref, ho):
        # 2x2 max-pool of conv rows (2ho, 2ho+1) via strided VMEM reads
        r0 = (2 * ho) * Wp
        r1 = (2 * ho + 1) * Wp
        c00 = acc_ref[pl.ds(r0 + 0, Wo, 2), :]
        c01 = acc_ref[pl.ds(r0 + 1, Wo, 2), :]
        c10 = acc_ref[pl.ds(r1 + 0, Wo, 2), :]
        c11 = acc_ref[pl.ds(r1 + 1, Wo, 2), :]
        return jnp.maximum(jnp.maximum(c00, c01), jnp.maximum(c10, c11))    # (Wo, Cout) f32

    if nc_pad is None:
        def kernel(x_ref, w_ref, scale_ref, bias_ref, o_ref, acc_ref):
            conv_bn_relu(x_ref, w_ref, scale_ref, bias_ref, acc_ref)
            for ho in range(Ho):
                o_ref[ho, :, :] = pooled_row(acc_ref, ho).astype(o_ref.dtype)
        return kernel

    def kernel_fc(x_ref, w_ref, scale_ref, bias_ref, fcw_ref, fcb_ref, o_ref, acc_ref):
        conv_bn_relu(x_ref, w_ref, scale_ref, bias_ref, acc_ref)
        logits = jnp.zeros((1, nc_pad), jnp.float32)
        for ho in range(Ho):
            pr = pooled_row(acc_ref, ho).astype(jnp.bfloat16)               # (Wo, Cout)
            for wo in range(Wo):
                logits = logits + jnp.dot(pr[wo:wo + 1, :], fcw_ref[ho, wo],
                                          preferred_element_type=jnp.float32)
        o_ref[...] = logits + fcb_ref[...]

    return kernel_fc


def _fused_conv_block(x_nhwc, blk, fc=None):
    """x_nhwc: (N, H, W, Cin) bf16.  blk: dict(w9, scale, bias).
    fc=None        -> returns pooled (N, H//2, W//2, Cout) bf16.
    fc=(fcw, fcb)  -> returns (N, 1, nc_pad) f32 logits (fc folded into the epilogue)."""
    N, H, W, Cin = x_nhwc.shape
    Cout = blk["w9"].shape[-1]
    Wp = W + 2
    Ho, Wo = H // 2, W // 2
    L = (H + 3) * Wp          # 1 top / 2 bottom halo rows keep all 9 tap slices in-bounds

    # halo-pad once (1x activation copy), flatten (h, w) into rows; channels stay lanes
    xpad = jnp.pad(x_nhwc, ((0, 0), (1, 2), (1, 1), (0, 0)))
    x2 = xpad.reshape(N, L, Cin)

    in_specs = [
        pl.BlockSpec((None, L, Cin), lambda i: (i, 0, 0)),       # one image per grid step
        pl.BlockSpec((9, Cin, Cout), lambda i: (0, 0, 0)),       # weights, replicated
        pl.BlockSpec((1, Cout), lambda i: (0, 0)),               # folded BN scale
        pl.BlockSpec((1, Cout), lambda i: (0, 0)),               # folded BN bias
    ]
    args = [x2, blk["w9"], blk["scale"], blk["bias"]]
    flops = 2 * N * H * Wp * 9 * Cin * Cout
    bytes_accessed = x2.size * 2 + blk["w9"].size * 2 + 2 * Cout * 4

    if fc is None:
        kernel = _make_conv_block_kernel(H, W, Cin, Cout)
        out_shape = jax.ShapeDtypeStruct((N, Ho, Wo, Cout), jnp.bfloat16)
        out_specs = pl.BlockSpec((None, Ho, Wo, Cout), lambda i: (i, 0, 0, 0))
        bytes_accessed += N * Ho * Wo * Cout * 2
    else:
        fcw, fcb = fc
        Hf, Wf, _, nc_pad = fcw.shape
        assert (Hf, Wf) == (Ho, Wo), "fc weight layout must match pooled feature map"
        kernel = _make_conv_block_kernel(H, W, Cin, Cout, nc_pad=nc_pad)
        in_specs += [
            pl.BlockSpec((Hf, Wf, Cout, nc_pad), lambda i: (0, 0, 0, 0)),
            pl.BlockSpec((1, nc_pad), lambda i: (0, 0)),
        ]
        args += [fcw, fcb]
        out_shape = jax.ShapeDtypeStruct((N, 1, nc_pad), jnp.float32)
        out_specs = pl.BlockSpec((None, 1, nc_pad), lambda i: (i, 0, 0))
        flops += 2 * N * Hf * Wf * Cout * nc_pad
        bytes_accessed += fcw.size * 2 + N * nc_pad * 4

    return pl.pallas_call(
        kernel,
        out_shape=out_shape,
        grid=(N,),
        in_specs=in_specs,
        out_specs=out_specs,
        scratch_shapes=[pltpu.VMEM((H * Wp, Cout), jnp.float32)],
        compiler_params=pltpu.CompilerParams(
            dimension_semantics=("parallel",),
            vmem_limit_bytes=_VMEM_LIMIT_BYTES),
        cost_estimate=pl.CostEstimate(flops=int(flops), transcendentals=0,
                                      bytes_accessed=int(bytes_accessed)),
    )(*args)


# ----------------------------- forward + hoisted param prep -------------------------- #

def prepare_params(params, final_hw):
    """Once-per-model preprocessing (hoisted out of the per-forward path):
    fold BN into an affine, reshape conv weights to (9, Cin, Cout) bf16,
    permute / lane-pad the fc weight to (Hf, Wf, 64, nc_pad) bf16."""
    eps = 1e-5
    blocks = []
    for blk in params["blocks"]:
        w = blk["w"]                                   # (3, 3, Cin, Cout) f32, HWIO
        cin, cout = w.shape[2], w.shape[3]
        scale = blk["gamma"] / jnp.sqrt(blk["var"] + eps)
        bias = blk["beta"] - blk["mean"] * scale
        blocks.append(dict(
            w9=w.reshape(9, cin, cout).astype(jnp.bfloat16),
            scale=scale.reshape(1, cout).astype(jnp.float32),
            bias=bias.reshape(1, cout).astype(jnp.float32),
        ))
    hidden = params["blocks"][-1]["w"].shape[-1]
    feat_dim, nc = params["fc_w"].shape
    Hf, Wf = final_hw
    assert feat_dim == hidden * Hf * Wf
    nc_pad = _round_up(nc, LANES)
    # PyTorch flattens NCHW -> feature order (c, hf, wf); permute to (hf, wf, c, nc)
    fcw = params["fc_w"].reshape(hidden, Hf, Wf, nc).transpose(1, 2, 0, 3)
    fcw = jnp.pad(fcw, ((0, 0), (0, 0), (0, 0), (0, nc_pad - nc))).astype(jnp.bfloat16)
    fcb = jnp.pad(params["fc_b"].reshape(1, nc),
                  ((0, 0), (0, nc_pad - nc))).astype(jnp.float32)
    return dict(blocks=blocks, fcw=fcw, fcb=fcb)


def upper_forward(x_nchw, prep, n_classes):
    """Upper.forward(x) == ProtonetCNN(x).  x_nchw: (N, 3, H, W) float32."""
    x = jnp.transpose(x_nchw, (0, 2, 3, 1)).astype(jnp.bfloat16)   # NCHW -> NHWC, bf16
    for blk in prep["blocks"][:-1]:
        x = _fused_conv_block(x, blk)
    out = _fused_conv_block(x, prep["blocks"][-1], fc=(prep["fcw"], prep["fcb"]))
    return out.reshape(out.shape[0], -1)[:, :n_classes]


# ------------------------------ param init (deterministic) --------------------------- #

def init_params(key, n_classes, in_ch=3, hidden=64, feat_dim=None):
    keys = jax.random.split(key, 16)
    blocks = []
    cin = in_ch
    ki = 0
    for _ in range(4):
        w = 0.1 * jax.random.normal(keys[ki], (3, 3, cin, hidden), jnp.float32); ki += 1
        gamma = 1.0 + 0.05 * jax.random.normal(keys[ki], (hidden,), jnp.float32); ki += 1
        beta = 0.05 * jax.random.normal(keys[ki], (hidden,), jnp.float32); ki += 1
        mean = jnp.zeros((hidden,), jnp.float32)
        var = jnp.ones((hidden,), jnp.float32)
        blocks.append(dict(w=w, gamma=gamma, beta=beta, mean=mean, var=var))
        cin = hidden
    fc_w = 0.1 * jax.random.normal(keys[ki], (feat_dim, n_classes), jnp.float32); ki += 1
    fc_b = 0.01 * jax.random.normal(keys[ki], (n_classes,), jnp.float32)
    return dict(blocks=blocks, fc_w=fc_w, fc_b=fc_b)


# ------------------------------ pure-JAX reference check ----------------------------- #

def _reference_forward(x_nchw, params, mirror_bf16=False):
    """XLA reference.  mirror_bf16=True rounds every MXU operand the same way the
    Pallas kernels do (bf16 operands / intermediate storage, f32 accumulate)."""
    cast = (lambda v: v.astype(jnp.bfloat16).astype(jnp.float32)) if mirror_bf16 \
        else (lambda v: v)
    hi = jax.lax.Precision.HIGHEST
    x = cast(jnp.transpose(x_nchw, (0, 2, 3, 1)))
    for blk in params["blocks"]:
        y = jax.lax.conv_general_dilated(
            x, cast(blk["w"]), window_strides=(1, 1), padding="SAME",
            dimension_numbers=("NHWC", "HWIO", "NHWC"), precision=hi)
        scale = blk["gamma"] / jnp.sqrt(blk["var"] + 1e-5)
        y = y * scale + (blk["beta"] - blk["mean"] * scale)
        y = jnp.maximum(y, 0.0)
        x = cast(jax.lax.reduce_window(y, -jnp.inf, jax.lax.max,
                                       (1, 2, 2, 1), (1, 2, 2, 1), "VALID"))
    feats = jnp.transpose(x, (0, 3, 1, 2)).reshape(x.shape[0], -1)
    return jnp.dot(feats, cast(params["fc_w"]), precision=hi) + params["fc_b"]


# ------------------------------------------ main ------------------------------------- #

if __name__ == "__main__":
    key = jax.random.PRNGKey(0)
    k_x, k_p = jax.random.split(key)

    N, C, H, W = 2, 3, 16, 16          # 16 -> 8 -> 4 -> 2 -> 1 after 4 max-pools
    n_classes = 8
    x = jax.random.normal(k_x, (N, C, H, W), jnp.float32)

    Hf, Wf = H // 16, W // 16
    feat_dim = 64 * Hf * Wf
    params = init_params(k_p, n_classes, in_ch=C, hidden=64, feat_dim=feat_dim)
    prep = prepare_params(params, (Hf, Wf))

    fwd = jax.jit(functools.partial(upper_forward, n_classes=n_classes))
    out = jax.block_until_ready(fwd(x, prep))
    assert out.shape == (N, n_classes), out.shape

    # tight check vs a reference that mirrors the kernel's bf16 operand rounding
    ref_bf16 = _reference_forward(x, params, mirror_bf16=True)
    assert jnp.allclose(out, ref_bf16, rtol=5e-3, atol=5e-3), "mismatch vs bf16-mirror ref"

    # loose sanity check vs the pure-f32 PyTorch-equivalent math (bf16 MXU operands)
    ref_f32 = _reference_forward(x, params, mirror_bf16=False)
    err = float(jnp.max(jnp.abs(out - ref_f32)))
    ref_scale = float(jnp.max(jnp.abs(ref_f32)))
    assert err <= 0.1 * ref_scale + 1e-2, (err, ref_scale)

    print("KERNEL_OK")
</pallas_src>

<mosaic_0001>
module attributes {stable_mosaic.version = 11 : i64} {
  func.func @kernel(%arg0: i32, %arg1: memref<1x342x3xbf16, #tpu.memory_space<vmem>>, %arg2: memref<9x3x64xbf16, #tpu.memory_space<vmem>>, %arg3: memref<1x64xf32, #tpu.memory_space<vmem>>, %arg4: memref<1x64xf32, #tpu.memory_space<vmem>>, %arg5: memref<1x8x8x64xbf16, #tpu.memory_space<vmem>>, %arg6: memref<288x64xf32, #tpu.memory_space<vmem>>) attributes {dimension_semantics = [#tpu.dimension_semantics<parallel>], iteration_bounds = array<i64: 2>, scalar_prefetch = 0 : i64, scratch_operands = 1 : i64, tpu.core_type = #tpu.core_type<tc>, window_params = [{transform_indices = @transform_0, window_bounds = array<i64: 1, 342, 3>}, {pipeline_mode = #tpu.pipeline_mode<synchronous>, transform_indices = @transform_1, window_bounds = array<i64: 9, 3, 64>}, {pipeline_mode = #tpu.pipeline_mode<synchronous>, transform_indices = @transform_2, window_bounds = array<i64: 1, 64>}, {pipeline_mode = #tpu.pipeline_mode<synchronous>, transform_indices = @transform_3, window_bounds = array<i64: 1, 64>}, {transform_indices = @transform_4, window_bounds = array<i64: 1, 8, 8, 64>}]} {
    %c0 = arith.constant 0 : index
    %c0_0 = arith.constant 0 : index
    %c0_1 = arith.constant 0 : index
    %0 = vector.load %arg1[%c0, %c0_0, %c0_1] : memref<1x342x3xbf16, #tpu.memory_space<vmem>>, vector<1x288x3xbf16>
    %1 = vector.shape_cast %0 : vector<1x288x3xbf16> to vector<288x3xbf16>
    %c0_2 = arith.constant 0 : index
    %c0_3 = arith.constant 0 : index
    %c0_4 = arith.constant 0 : index
    %2 = vector.load %arg2[%c0_2, %c0_3, %c0_4] : memref<9x3x64xbf16, #tpu.memory_space<vmem>>, vector<1x3x64xbf16>
    %3 = vector.shape_cast %2 : vector<1x3x64xbf16> to vector<3x64xbf16>
    %cst = arith.constant dense<0.000000e+00> : vector<288x64xf32>
    %4 = tpu.matmul %1, %3, %cst {dimension_numbers = #tpu.dot_dimension_numbers<[1], [0], [0], [1], [0, 0, 1, 1], [], []>} : vector<288x3xbf16>, vector<3x64xbf16>, vector<288x64xf32> -> vector<288x64xf32>
    %c0_5 = arith.constant 0 : index
    %c0_6 = arith.constant 0 : index
    %5 = vector.load %arg6[%c0_5, %c0_6] : memref<288x64xf32, #tpu.memory_space<vmem>>, vector<288x64xf32>
    tpu.vector_store %arg6[%c0_5, %c0_6], %4 {strides = array<i32>} : memref<288x64xf32, #tpu.memory_space<vmem>>, vector<288x64xf32>,
    %c0_7 = arith.constant 0 : index
    %c1 = arith.constant 1 : index
    %c0_8 = arith.constant 0 : index
    %6 = vector.load %arg1[%c0_7, %c1, %c0_8] : memref<1x342x3xbf16, #tpu.memory_space<vmem>>, vector<1x288x3xbf16>
    %7 = vector.shape_cast %6 : vector<1x288x3xbf16> to vector<288x3xbf16>
    %c1_9 = arith.constant 1 : index
    %c0_10 = arith.constant 0 : index
    %c0_11 = arith.constant 0 : index
    %8 = vector.load %arg2[%c1_9, %c0_10, %c0_11] : memref<9x3x64xbf16, #tpu.memory_space<vmem>>, vector<1x3x64xbf16>
    %9 = vector.shape_cast %8 : vector<1x3x64xbf16> to vector<3x64xbf16>
    %cst_12 = arith.constant dense<0.000000e+00> : vector<288x64xf32>
    %10 = tpu.matmul %7, %9, %cst_12 {dimension_numbers = #tpu.dot_dimension_numbers<[1], [0], [0], [1], [0, 0, 1, 1], [], []>} : vector<288x3xbf16>, vector<3x64xbf16>, vector<288x64xf32> -> vector<288x64xf32>
    %c0_13 = arith.constant 0 : index
    %c0_14 = arith.constant 0 : index
    %11 = vector.load %arg6[%c0_13, %c0_14] : memref<288x64xf32, #tpu.memory_space<vmem>>, vector<288x64xf32>
    %12 = arith.addf %11, %10 : vector<288x64xf32>
    %c0_15 = arith.constant 0 : index
    %c0_16 = arith.constant 0 : index
    %13 = vector.load %arg6[%c0_15, %c0_16] : memref<288x64xf32, #tpu.memory_space<vmem>>, vector<288x64xf32>
    tpu.vector_store %arg6[%c0_15, %c0_16], %12 {strides = array<i32>} : memref<288x64xf32, #tpu.memory_space<vmem>>, vector<288x64xf32>,
    %c0_17 = arith.constant 0 : index
    %c2 = arith.constant 2 : index
    %c0_18 = arith.constant 0 : index
    %14 = vector.load %arg1[%c0_17, %c2, %c0_18] : memref<1x342x3xbf16, #tpu.memory_space<vmem>>, vector<1x288x3xbf16>
    %15 = vector.shape_cast %14 : vector<1x288x3xbf16> to vector<288x3xbf16>
    %c2_19 = arith.constant 2 : index
    %c0_20 = arith.constant 0 : index
    %c0_21 = arith.constant 0 : index
    %16 = vector.load %arg2[%c2_19, %c0_20, %c0_21] : memref<9x3x64xbf16, #tpu.memory_space<vmem>>, vector<1x3x64xbf16>
    %17 = vector.shape_cast %16 : vector<1x3x64xbf16> to vector<3x64xbf16>
    %cst_22 = arith.constant dense<0.000000e+00> : vector<288x64xf32>
    %18 = tpu.matmul %15, %17, %cst_22 {dimension_numbers = #tpu.dot_dimension_numbers<[1], [0], [0], [1], [0, 0, 1, 1], [], []>} : vector<288x3xbf16>, vector<3x64xbf16>, vector<288x64xf32> -> vector<288x64xf32>
    %c0_23 = arith.constant 0 : index
    %c0_24 = arith.constant 0 : index
    %19 = vector.load %arg6[%c0_23, %c0_24] : memref<288x64xf32, #tpu.memory_space<vmem>>, vector<288x64xf32>
    %20 = arith.addf %19, %18 : vector<288x64xf32>
    %c0_25 = arith.constant 0 : index
    %c0_26 = arith.constant 0 : index
    %21 = vector.load %arg6[%c0_25, %c0_26] : memref<288x64xf32, #tpu.memory_space<vmem>>, vector<288x64xf32>
    tpu.vector_store %arg6[%c0_25, %c0_26], %20 {strides = array<i32>} : memref<288x64xf32, #tpu.memory_space<vmem>>, vector<288x64xf32>,
    %c0_27 = arith.constant 0 : index
    %c18 = arith.constant 18 : index
    %c0_28 = arith.constant 0 : index
    %22 = vector.load %arg1[%c0_27, %c18, %c0_28] : memref<1x342x3xbf16, #tpu.memory_space<vmem>>, vector<1x288x3xbf16>
    %23 = vector.shape_cast %22 : vector<1x288x3xbf16> to vector<288x3xbf16>
    %c3 = arith.constant 3 : index
    %c0_29 = arith.constant 0 : index
    %c0_30 = arith.constant 0 : index
    %24 = vector.load %arg2[%c3, %c0_29, %c0_30] : memref<9x3x64xbf16, #tpu.memory_space<vmem>>, vector<1x3x64xbf16>
    %25 = vector.shape_cast %24 : vector<1x3x64xbf16> to vector<3x64xbf16>
    %cst_31 = arith.constant dense<0.000000e+00> : vector<288x64xf32>
    %26 = tpu.matmul %23, %25, %cst_31 {dimension_numbers = #tpu.dot_dimension_numbers<[1], [0], [0], [1], [0, 0, 1, 1], [], []>} : vector<288x3xbf16>, vector<3x64xbf16>, vector<288x64xf32> -> vector<288x64xf32>
    %c0_32 = arith.constant 0 : index
    %c0_33 = arith.constant 0 : index
    %27 = vector.load %arg6[%c0_32, %c0_33] : memref<288x64xf32, #tpu.memory_space<vmem>>, vector<288x64xf32>
    %28 = arith.addf %27, %26 : vector<288x64xf32>
    %c0_34 = arith.constant 0 : index
    %c0_35 = arith.constant 0 : index
    %29 = vector.load %arg6[%c0_34, %c0_35] : memref<288x64xf32, #tpu.memory_space<vmem>>, vector<288x64xf32>
    tpu.vector_store %arg6[%c0_34, %c0_35], %28 {strides = array<i32>} : memref<288x64xf32, #tpu.memory_space<vmem>>, vector<288x64xf32>,
    %c0_36 = arith.constant 0 : index
    %c19 = arith.constant 19 : index
    %c0_37 = arith.constant 0 : index
    %30 = vector.load %arg1[%c0_36, %c19, %c0_37] : memref<1x342x3xbf16, #tpu.memory_space<vmem>>, vector<1x288x3xbf16>
    %31 = vector.shape_cast %30 : vector<1x288x3xbf16> to vector<288x3xbf16>
    %c4 = arith.constant 4 : index
    %c0_38 = arith.constant 0 : index
    %c0_39 = arith.constant 0 : index
    %32 = vector.load %arg2[%c4, %c0_38, %c0_39] : memref<9x3x64xbf16, #tpu.memory_space<vmem>>, vector<1x3x64xbf16>
    %33 = vector.shape_cast %32 : vector<1x3x64xbf16> to vector<3x64xbf16>
    %cst_40 = arith.constant dense<0.000000e+00> : vector<288x64xf32>
    %34 = tpu.matmul %31, %33, %cst_40 {dimension_numbers = #tpu.dot_dimension_numbers<[1], [0], [0], [1], [0, 0, 1, 1], [], []>} : vector<288x3xbf16>, vector<3x64xbf16>, vector<288x64xf32> -> vector<288x64xf32>
    %c0_41 = arith.constant 0 : index
    %c0_42 = arith.constant 0 : index
    %35 = vector.load %arg6[%c0_41, %c0_42] : memref<288x64xf32, #tpu.memory_space<vmem>>, vector<288x64xf32>
    %36 = arith.addf %35, %34 : vector<288x64xf32>
    %c0_43 = arith.constant 0 : index
    %c0_44 = arith.constant 0 : index
    %37 = vector.load %arg6[%c0_43, %c0_44] : memref<288x64xf32, #tpu.memory_space<vmem>>, vector<288x64xf32>
    tpu.vector_store %arg6[%c0_43, %c0_44], %36 {strides = array<i32>} : memref<288x64xf32, #tpu.memory_space<vmem>>, vector<288x64xf32>,
    %c0_45 = arith.constant 0 : index
    %c20 = arith.constant 20 : index
    %c0_46 = arith.constant 0 : index
    %38 = vector.load %arg1[%c0_45, %c20, %c0_46] : memref<1x342x3xbf16, #tpu.memory_space<vmem>>, vector<1x288x3xbf16>
    %39 = vector.shape_cast %38 : vector<1x288x3xbf16> to vector<288x3xbf16>
    %c5 = arith.constant 5 : index
    %c0_47 = arith.constant 0 : index
    %c0_48 = arith.constant 0 : index
    %40 = vector.load %arg2[%c5, %c0_47, %c0_48] : memref<9x3x64xbf16, #tpu.memory_space<vmem>>, vector<1x3x64xbf16>
    %41 = vector.shape_cast %40 : vector<1x3x64xbf16> to vector<3x64xbf16>
    %cst_49 = arith.constant dense<0.000000e+00> : vector<288x64xf32>
    %42 = tpu.matmul %39, %41, %cst_49 {dimension_numbers = #tpu.dot_dimension_numbers<[1], [0], [0], [1], [0, 0, 1, 1], [], []>} : vector<288x3xbf16>, vector<3x64xbf16>, vector<288x64xf32> -> vector<288x64xf32>
    %c0_50 = arith.constant 0 : index
    %c0_51 = arith.constant 0 : index
    %43 = vector.load %arg6[%c0_50, %c0_51] : memref<288x64xf32, #tpu.memory_space<vmem>>, vector<288x64xf32>
    %44 = arith.addf %43, %42 : vector<288x64xf32>
    %c0_52 = arith.constant 0 : index
    %c0_53 = arith.constant 0 : index
    %45 = vector.load %arg6[%c0_52, %c0_53] : memref<288x64xf32, #tpu.memory_space<vmem>>, vector<288x64xf32>
    tpu.vector_store %arg6[%c0_52, %c0_53], %44 {strides = array<i32>} : memref<288x64xf32, #tpu.memory_space<vmem>>, vector<288x64xf32>,
    %c0_54 = arith.constant 0 : index
    %c36 = arith.constant 36 : index
    %c0_55 = arith.constant 0 : index
    %46 = vector.load %arg1[%c0_54, %c36, %c0_55] : memref<1x342x3xbf16, #tpu.memory_space<vmem>>, vector<1x288x3xbf16>
    %47 = vector.shape_cast %46 : vector<1x288x3xbf16> to vector<288x3xbf16>
    %c6 = arith.constant 6 : index
    %c0_56 = arith.constant 0 : index
    %c0_57 = arith.constant 0 : index
    %48 = vector.load %arg2[%c6, %c0_56, %c0_57] : memref<9x3x64xbf16, #tpu.memory_space<vmem>>, vector<1x3x64xbf16>
    %49 = vector.shape_cast %48 : vector<1x3x64xbf16> to vector<3x64xbf16>
    %cst_58 = arith.constant dense<0.000000e+00> : vector<288x64xf32>
    %50 = tpu.matmul %47, %49, %cst_58 {dimension_numbers = #tpu.dot_dimension_numbers<[1], [0], [0], [1], [0, 0, 1, 1], [], []>} : vector<288x3xbf16>, vector<3x64xbf16>, vector<288x64xf32> -> vector<288x64xf32>
    %c0_59 = arith.constant 0 : index
    %c0_60 = arith.constant 0 : index
    %51 = vector.load %arg6[%c0_59, %c0_60] : memref<288x64xf32, #tpu.memory_space<vmem>>, vector<288x64xf32>
    %52 = arith.addf %51, %50 : vector<288x64xf32>
    %c0_61 = arith.constant 0 : index
    %c0_62 = arith.constant 0 : index
    %53 = vector.load %arg6[%c0_61, %c0_62] : memref<288x64xf32, #tpu.memory_space<vmem>>, vector<288x64xf32>
    tpu.vector_store %arg6[%c0_61, %c0_62], %52 {strides = array<i32>} : memref<288x64xf32, #tpu.memory_space<vmem>>, vector<288x64xf32>,
    %c0_63 = arith.constant 0 : index
    %c37 = arith.constant 37 : index
    %c0_64 = arith.constant 0 : index
    %54 = vector.load %arg1[%c0_63, %c37, %c0_64] : memref<1x342x3xbf16, #tpu.memory_space<vmem>>, vector<1x288x3xbf16>
    %55 = vector.shape_cast %54 : vector<1x288x3xbf16> to vector<288x3xbf16>
    %c7 = arith.constant 7 : index
    %c0_65 = arith.constant 0 : index
    %c0_66 = arith.constant 0 : index
    %56 = vector.load %arg2[%c7, %c0_65, %c0_66] : memref<9x3x64xbf16, #tpu.memory_space<vmem>>, vector<1x3x64xbf16>
    %57 = vector.shape_cast %56 : vector<1x3x64xbf16> to vector<3x64xbf16>
    %cst_67 = arith.constant dense<0.000000e+00> : vector<288x64xf32>
    %58 = tpu.matmul %55, %57, %cst_67 {dimension_numbers = #tpu.dot_dimension_numbers<[1], [0], [0], [1], [0, 0, 1, 1], [], []>} : vector<288x3xbf16>, vector<3x64xbf16>, vector<288x64xf32> -> vector<288x64xf32>
    %c0_68 = arith.constant 0 : index
    %c0_69 = arith.constant 0 : index
    %59 = vector.load %arg6[%c0_68, %c0_69] : memref<288x64xf32, #tpu.memory_space<vmem>>, vector<288x64xf32>
    %60 = arith.addf %59, %58 : vector<288x64xf32>
    %c0_70 = arith.constant 0 : index
    %c0_71 = arith.constant 0 : index
    %61 = vector.load %arg6[%c0_70, %c0_71] : memref<288x64xf32, #tpu.memory_space<vmem>>, vector<288x64xf32>
    tpu.vector_store %arg6[%c0_70, %c0_71], %60 {strides = array<i32>} : memref<288x64xf32, #tpu.memory_space<vmem>>, vector<288x64xf32>,
    %c0_72 = arith.constant 0 : index
    %c38 = arith.constant 38 : index
    %c0_73 = arith.constant 0 : index
    %62 = vector.load %arg1[%c0_72, %c38, %c0_73] : memref<1x342x3xbf16, #tpu.memory_space<vmem>>, vector<1x288x3xbf16>
    %63 = vector.shape_cast %62 : vector<1x288x3xbf16> to vector<288x3xbf16>
    %c8 = arith.constant 8 : index
    %c0_74 = arith.constant 0 : index
    %c0_75 = arith.constant 0 : index
    %64 = vector.load %arg2[%c8, %c0_74, %c0_75] : memref<9x3x64xbf16, #tpu.memory_space<vmem>>, vector<1x3x64xbf16>
    %65 = vector.shape_cast %64 : vector<1x3x64xbf16> to vector<3x64xbf16>
    %cst_76 = arith.constant dense<0.000000e+00> : vector<288x64xf32>
    %66 = tpu.matmul %63, %65, %cst_76 {dimension_numbers = #tpu.dot_dimension_numbers<[1], [0], [0], [1], [0, 0, 1, 1], [], []>} : vector<288x3xbf16>, vector<3x64xbf16>, vector<288x64xf32> -> vector<288x64xf32>
    %c0_77 = arith.constant 0 : index
    %c0_78 = arith.constant 0 : index
    %67 = vector.load %arg6[%c0_77, %c0_78] : memref<288x64xf32, #tpu.memory_space<vmem>>, vector<288x64xf32>
    %68 = arith.addf %67, %66 : vector<288x64xf32>
    %c0_79 = arith.constant 0 : index
    %c0_80 = arith.constant 0 : index
    %69 = vector.load %arg6[%c0_79, %c0_80] : memref<288x64xf32, #tpu.memory_space<vmem>>, vector<288x64xf32>
    tpu.vector_store %arg6[%c0_79, %c0_80], %68 {strides = array<i32>} : memref<288x64xf32, #tpu.memory_space<vmem>>, vector<288x64xf32>,
    %c0_81 = arith.constant 0 : index
    %c0_82 = arith.constant 0 : index
    %70 = vector.load %arg6[%c0_81, %c0_82] : memref<288x64xf32, #tpu.memory_space<vmem>>, vector<288x64xf32>
    %c0_83 = arith.constant 0 : index
    %c0_84 = arith.constant 0 : index
    %71 = vector.load %arg3[%c0_83, %c0_84] : memref<1x64xf32, #tpu.memory_space<vmem>>, vector<1x64xf32>
    %72 = vector.broadcast %71 : vector<1x64xf32> to vector<288x64xf32>
    %73 = arith.mulf %70, %72 : vector<288x64xf32>
    %c0_85 = arith.constant 0 : index
    %c0_86 = arith.constant 0 : index
    %74 = vector.load %arg4[%c0_85, %c0_86] : memref<1x64xf32, #tpu.memory_space<vmem>>, vector<1x64xf32>
    %75 = vector.broadcast %74 : vector<1x64xf32> to vector<288x64xf32>
    %76 = arith.addf %73, %75 : vector<288x64xf32>
    %cst_87 = arith.constant 0.000000e+00 : f32
    %77 = vector.broadcast %cst_87 : f32 to vector<288x64xf32>
    %78 = arith.maximumf %76, %77 : vector<288x64xf32>
    %c0_88 = arith.constant 0 : index
    %c0_89 = arith.constant 0 : index
    %79 = vector.load %arg6[%c0_88, %c0_89] : memref<288x64xf32, #tpu.memory_space<vmem>>, vector<288x64xf32>
    tpu.vector_store %arg6[%c0_88, %c0_89], %78 {strides = array<i32>} : memref<288x64xf32, #tpu.memory_space<vmem>>, vector<288x64xf32>,
    %c0_90 = arith.constant 0 : index
    %c0_91 = arith.constant 0 : index
    %80 = tpu.strided_load %arg6[%c0_90, %c0_91] {strides = array<i32: 2, 1>} : memref<288x64xf32, #tpu.memory_space<vmem>>, vector<8x64xf32>
    %c1_92 = arith.constant 1 : index
    %c0_93 = arith.constant 0 : index
    %81 = tpu.strided_load %arg6[%c1_92, %c0_93] {strides = array<i32: 2, 1>} : memref<288x64xf32, #tpu.memory_space<vmem>>, vector<8x64xf32>
    %c18_94 = arith.constant 18 : index
    %c0_95 = arith.constant 0 : index
    %82 = tpu.strided_load %arg6[%c18_94, %c0_95] {strides = array<i32: 2, 1>} : memref<288x64xf32, #tpu.memory_space<vmem>>, vector<8x64xf32>
    %c19_96 = arith.constant 19 : index
    %c0_97 = arith.constant 0 : index
    %83 = tpu.strided_load %arg6[%c19_96, %c0_97] {strides = array<i32: 2, 1>} : memref<288x64xf32, #tpu.memory_space<vmem>>, vector<8x64xf32>
    %84 = arith.maximumf %80, %81 : vector<8x64xf32>
    %85 = arith.maximumf %82, %83 : vector<8x64xf32>
    %86 = arith.maximumf %84, %85 : vector<8x64xf32>
    %87 = arith.truncf %86 : vector<8x64xf32> to vector<8x64xbf16>
    %c0_98 = arith.constant 0 : index
    %c0_99 = arith.constant 0 : index
    %c0_100 = arith.constant 0 : index
    %c0_101 = arith.constant 0 : index
    %88 = vector.load %arg5[%c0_98, %c0_99, %c0_100, %c0_101] : memref<1x8x8x64xbf16, #tpu.memory_space<vmem>>, vector<1x1x8x64xbf16>
    %89 = vector.shape_cast %88 : vector<1x1x8x64xbf16> to vector<8x64xbf16>
    %90 = vector.shape_cast %87 : vector<8x64xbf16> to vector<1x1x8x64xbf16>
    tpu.vector_store %arg5[%c0_98, %c0_99, %c0_100, %c0_101], %90 {strides = array<i32>} : memref<1x8x8x64xbf16, #tpu.memory_space<vmem>>, vector<1x1x8x64xbf16>,
    %c36_102 = arith.constant 36 : index
    %c0_103 = arith.constant 0 : index
    %91 = tpu.strided_load %arg6[%c36_102, %c0_103] {strides = array<i32: 2, 1>} : memref<288x64xf32, #tpu.memory_space<vmem>>, vector<8x64xf32>
    %c37_104 = arith.constant 37 : index
    %c0_105 = arith.constant 0 : index
    %92 = tpu.strided_load %arg6[%c37_104, %c0_105] {strides = array<i32: 2, 1>} : memref<288x64xf32, #tpu.memory_space<vmem>>, vector<8x64xf32>
    %c54 = arith.constant 54 : index
    %c0_106 = arith.constant 0 : index
    %93 = tpu.strided_load %arg6[%c54, %c0_106] {strides = array<i32: 2, 1>} : memref<288x64xf32, #tpu.memory_space<vmem>>, vector<8x64xf32>
    %c55 = arith.constant 55 : index
    %c0_107 = arith.constant 0 : index
    %94 = tpu.strided_load %arg6[%c55, %c0_107] {strides = array<i32: 2, 1>} : memref<288x64xf32, #tpu.memory_space<vmem>>, vector<8x64xf32>
    %95 = arith.maximumf %91, %92 : vector<8x64xf32>
    %96 = arith.maximumf %93, %94 : vector<8x64xf32>
    %97 = arith.maximumf %95, %96 : vector<8x64xf32>
    %98 = arith.truncf %97 : vector<8x64xf32> to vector<8x64xbf16>
    %c0_108 = arith.constant 0 : index
    %c1_109 = arith.constant 1 : index
    %c0_110 = arith.constant 0 : index
    %c0_111 = arith.constant 0 : index
    %99 = vector.load %arg5[%c0_108, %c1_109, %c0_110, %c0_111] : memref<1x8x8x64xbf16, #tpu.memory_space<vmem>>, vector<1x1x8x64xbf16>
    %100 = vector.shape_cast %99 : vector<1x1x8x64xbf16> to vector<8x64xbf16>
    %101 = vector.shape_cast %98 : vector<8x64xbf16> to vector<1x1x8x64xbf16>
    tpu.vector_store %arg5[%c0_108, %c1_109, %c0_110, %c0_111], %101 {strides = array<i32>} : memref<1x8x8x64xbf16, #tpu.memory_space<vmem>>, vector<1x1x8x64xbf16>,
    %c72 = arith.constant 72 : index
    %c0_112 = arith.constant 0 : index
    %102 = tpu.strided_load %arg6[%c72, %c0_112] {strides = array<i32: 2, 1>} : memref<288x64xf32, #tpu.memory_space<vmem>>, vector<8x64xf32>
    %c73 = arith.constant 73 : index
    %c0_113 = arith.constant 0 : index
    %103 = tpu.strided_load %arg6[%c73, %c0_113] {strides = array<i32: 2, 1>} : memref<288x64xf32, #tpu.memory_space<vmem>>, vector<8x64xf32>
    %c90 = arith.constant 90 : index
    %c0_114 = arith.constant 0 : index
    %104 = tpu.strided_load %arg6[%c90, %c0_114] {strides = array<i32: 2, 1>} : memref<288x64xf32, #tpu.memory_space<vmem>>, vector<8x64xf32>
    %c91 = arith.constant 91 : index
    %c0_115 = arith.constant 0 : index
    %105 = tpu.strided_load %arg6[%c91, %c0_115] {strides = array<i32: 2, 1>} : memref<288x64xf32, #tpu.memory_space<vmem>>, vector<8x64xf32>
    %106 = arith.maximumf %102, %103 : vector<8x64xf32>
    %107 = arith.maximumf %104, %105 : vector<8x64xf32>
    %108 = arith.maximumf %106, %107 : vector<8x64xf32>
    %109 = arith.truncf %108 : vector<8x64xf32> to vector<8x64xbf16>
    %c0_116 = arith.constant 0 : index
    %c2_117 = arith.constant 2 : index
    %c0_118 = arith.constant 0 : index
    %c0_119 = arith.constant 0 : index
    %110 = vector.load %arg5[%c0_116, %c2_117, %c0_118, %c0_119] : memref<1x8x8x64xbf16, #tpu.memory_space<vmem>>, vector<1x1x8x64xbf16>
    %111 = vector.shape_cast %110 : vector<1x1x8x64xbf16> to vector<8x64xbf16>
    %112 = vector.shape_cast %109 : vector<8x64xbf16> to vector<1x1x8x64xbf16>
    tpu.vector_store %arg5[%c0_116, %c2_117, %c0_118, %c0_119], %112 {strides = array<i32>} : memref<1x8x8x64xbf16, #tpu.memory_space<vmem>>, vector<1x1x8x64xbf16>,
    %c108 = arith.constant 108 : index
    %c0_120 = arith.constant 0 : index
    %113 = tpu.strided_load %arg6[%c108, %c0_120] {strides = array<i32: 2, 1>} : memref<288x64xf32, #tpu.memory_space<vmem>>, vector<8x64xf32>
    %c109 = arith.constant 109 : index
    %c0_121 = arith.constant 0 : index
    %114 = tpu.strided_load %arg6[%c109, %c0_121] {strides = array<i32: 2, 1>} : memref<288x64xf32, #tpu.memory_space<vmem>>, vector<8x64xf32>
    %c126 = arith.constant 126 : index
    %c0_122 = arith.constant 0 : index
    %115 = tpu.strided_load %arg6[%c126, %c0_122] {strides = array<i32: 2, 1>} : memref<288x64xf32, #tpu.memory_space<vmem>>, vector<8x64xf32>
    %c127 = arith.constant 127 : index
    %c0_123 = arith.constant 0 : index
    %116 = tpu.strided_load %arg6[%c127, %c0_123] {strides = array<i32: 2, 1>} : memref<288x64xf32, #tpu.memory_space<vmem>>, vector<8x64xf32>
    %117 = arith.maximumf %113, %114 : vector<8x64xf32>
    %118 = arith.maximumf %115, %116 : vector<8x64xf32>
    %119 = arith.maximumf %117, %118 : vector<8x64xf32>
    %120 = arith.truncf %119 : vector<8x64xf32> to vector<8x64xbf16>
    %c0_124 = arith.constant 0 : index
    %c3_125 = arith.constant 3 : index
    %c0_126 = arith.constant 0 : index
    %c0_127 = arith.constant 0 : index
    %121 = vector.load %arg5[%c0_124, %c3_125, %c0_126, %c0_127] : memref<1x8x8x64xbf16, #tpu.memory_space<vmem>>, vector<1x1x8x64xbf16>
    %122 = vector.shape_cast %121 : vector<1x1x8x64xbf16> to vector<8x64xbf16>
    %123 = vector.shape_cast %120 : vector<8x64xbf16> to vector<1x1x8x64xbf16>
    tpu.vector_store %arg5[%c0_124, %c3_125, %c0_126, %c0_127], %123 {strides = array<i32>} : memref<1x8x8x64xbf16, #tpu.memory_space<vmem>>, vector<1x1x8x64xbf16>,
    %c144 = arith.constant 144 : index
    %c0_128 = arith.constant 0 : index
    %124 = tpu.strided_load %arg6[%c144, %c0_128] {strides = array<i32: 2, 1>} : memref<288x64xf32, #tpu.memory_space<vmem>>, vector<8x64xf32>
    %c145 = arith.constant 145 : index
    %c0_129 = arith.constant 0 : index
    %125 = tpu.strided_load %arg6[%c145, %c0_129] {strides = array<i32: 2, 1>} : memref<288x64xf32, #tpu.memory_space<vmem>>, vector<8x64xf32>
    %c162 = arith.constant 162 : index
    %c0_130 = arith.constant 0 : index
    %126 = tpu.strided_load %arg6[%c162, %c0_130] {strides = array<i32: 2, 1>} : memref<288x64xf32, #tpu.memory_space<vmem>>, vector<8x64xf32>
    %c163 = arith.constant 163 : index
    %c0_131 = arith.constant 0 : index
    %127 = tpu.strided_load %arg6[%c163, %c0_131] {strides = array<i32: 2, 1>} : memref<288x64xf32, #tpu.memory_space<vmem>>, vector<8x64xf32>
    %128 = arith.maximumf %124, %125 : vector<8x64xf32>
    %129 = arith.maximumf %126, %127 : vector<8x64xf32>
    %130 = arith.maximumf %128, %129 : vector<8x64xf32>
    %131 = arith.truncf %130 : vector<8x64xf32> to vector<8x64xbf16>
    %c0_132 = arith.constant 0 : index
    %c4_133 = arith.constant 4 : index
    %c0_134 = arith.constant 0 : index
    %c0_135 = arith.constant 0 : index
    %132 = vector.load %arg5[%c0_132, %c4_133, %c0_134, %c0_135] : memref<1x8x8x64xbf16, #tpu.memory_space<vmem>>, vector<1x1x8x64xbf16>
    %133 = vector.shape_cast %132 : vector<1x1x8x64xbf16> to vector<8x64xbf16>
    %134 = vector.shape_cast %131 : vector<8x64xbf16> to vector<1x1x8x64xbf16>
    tpu.vector_store %arg5[%c0_132, %c4_133, %c0_134, %c0_135], %134 {strides = array<i32>} : memref<1x8x8x64xbf16, #tpu.memory_space<vmem>>, vector<1x1x8x64xbf16>,
    %c180 = arith.constant 180 : index
    %c0_136 = arith.constant 0 : index
    %135 = tpu.strided_load %arg6[%c180, %c0_136] {strides = array<i32: 2, 1>} : memref<288x64xf32, #tpu.memory_space<vmem>>, vector<8x64xf32>
    %c181 = arith.constant 181 : index
    %c0_137 = arith.constant 0 : index
    %136 = tpu.strided_load %arg6[%c181, %c0_137] {strides = array<i32: 2, 1>} : memref<288x64xf32, #tpu.memory_space<vmem>>, vector<8x64xf32>
    %c198 = arith.constant 198 : index
    %c0_138 = arith.constant 0 : index
    %137 = tpu.strided_load %arg6[%c198, %c0_138] {strides = array<i32: 2, 1>} : memref<288x64xf32, #tpu.memory_space<vmem>>, vector<8x64xf32>
    %c199 = arith.constant 199 : index
    %c0_139 = arith.constant 0 : index
    %138 = tpu.strided_load %arg6[%c199, %c0_139] {strides = array<i32: 2, 1>} : memref<288x64xf32, #tpu.memory_space<vmem>>, vector<8x64xf32>
    %139 = arith.maximumf %135, %136 : vector<8x64xf32>
    %140 = arith.maximumf %137, %138 : vector<8x64xf32>
    %141 = arith.maximumf %139, %140 : vector<8x64xf32>
    %142 = arith.truncf %141 : vector<8x64xf32> to vector<8x64xbf16>
    %c0_140 = arith.constant 0 : index
    %c5_141 = arith.constant 5 : index
    %c0_142 = arith.constant 0 : index
    %c0_143 = arith.constant 0 : index
    %143 = vector.load %arg5[%c0_140, %c5_141, %c0_142, %c0_143] : memref<1x8x8x64xbf16, #tpu.memory_space<vmem>>, vector<1x1x8x64xbf16>
    %144 = vector.shape_cast %143 : vector<1x1x8x64xbf16> to vector<8x64xbf16>
    %145 = vector.shape_cast %142 : vector<8x64xbf16> to vector<1x1x8x64xbf16>
    tpu.vector_store %arg5[%c0_140, %c5_141, %c0_142, %c0_143], %145 {strides = array<i32>} : memref<1x8x8x64xbf16, #tpu.memory_space<vmem>>, vector<1x1x8x64xbf16>,
    %c216 = arith.constant 216 : index
    %c0_144 = arith.constant 0 : index
    %146 = tpu.strided_load %arg6[%c216, %c0_144] {strides = array<i32: 2, 1>} : memref<288x64xf32, #tpu.memory_space<vmem>>, vector<8x64xf32>
    %c217 = arith.constant 217 : index
    %c0_145 = arith.constant 0 : index
    %147 = tpu.strided_load %arg6[%c217, %c0_145] {strides = array<i32: 2, 1>} : memref<288x64xf32, #tpu.memory_space<vmem>>, vector<8x64xf32>
    %c234 = arith.constant 234 : index
    %c0_146 = arith.constant 0 : index
    %148 = tpu.strided_load %arg6[%c234, %c0_146] {strides = array<i32: 2, 1>} : memref<288x64xf32, #tpu.memory_space<vmem>>, vector<8x64xf32>
    %c235 = arith.constant 235 : index
    %c0_147 = arith.constant 0 : index
    %149 = tpu.strided_load %arg6[%c235, %c0_147] {strides = array<i32: 2, 1>} : memref<288x64xf32, #tpu.memory_space<vmem>>, vector<8x64xf32>
    %150 = arith.maximumf %146, %147 : vector<8x64xf32>
    %151 = arith.maximumf %148, %149 : vector<8x64xf32>
    %152 = arith.maximumf %150, %151 : vector<8x64xf32>
    %153 = arith.truncf %152 : vector<8x64xf32> to vector<8x64xbf16>
    %c0_148 = arith.constant 0 : index
    %c6_149 = arith.constant 6 : index
    %c0_150 = arith.constant 0 : index
    %c0_151 = arith.constant 0 : index
    %154 = vector.load %arg5[%c0_148, %c6_149, %c0_150, %c0_151] : memref<1x8x8x64xbf16, #tpu.memory_space<vmem>>, vector<1x1x8x64xbf16>
    %155 = vector.shape_cast %154 : vector<1x1x8x64xbf16> to vector<8x64xbf16>
    %156 = vector.shape_cast %153 : vector<8x64xbf16> to vector<1x1x8x64xbf16>
    tpu.vector_store %arg5[%c0_148, %c6_149, %c0_150, %c0_151], %156 {strides = array<i32>} : memref<1x8x8x64xbf16, #tpu.memory_space<vmem>>, vector<1x1x8x64xbf16>,
    %c252 = arith.constant 252 : index
    %c0_152 = arith.constant 0 : index
    %157 = tpu.strided_load %arg6[%c252, %c0_152] {strides = array<i32: 2, 1>} : memref<288x64xf32, #tpu.memory_space<vmem>>, vector<8x64xf32>
    %c253 = arith.constant 253 : index
    %c0_153 = arith.constant 0 : index
    %158 = tpu.strided_load %arg6[%c253, %c0_153] {strides = array<i32: 2, 1>} : memref<288x64xf32, #tpu.memory_space<vmem>>, vector<8x64xf32>
    %c270 = arith.constant 270 : index
    %c0_154 = arith.constant 0 : index
    %159 = tpu.strided_load %arg6[%c270, %c0_154] {strides = array<i32: 2, 1>} : memref<288x64xf32, #tpu.memory_space<vmem>>, vector<8x64xf32>
    %c271 = arith.constant 271 : index
    %c0_155 = arith.constant 0 : index
    %160 = tpu.strided_load %arg6[%c271, %c0_155] {strides = array<i32: 2, 1>} : memref<288x64xf32, #tpu.memory_space<vmem>>, vector<8x64xf32>
    %161 = arith.maximumf %157, %158 : vector<8x64xf32>
    %162 = arith.maximumf %159, %160 : vector<8x64xf32>
    %163 = arith.maximumf %161, %162 : vector<8x64xf32>
    %164 = arith.truncf %163 : vector<8x64xf32> to vector<8x64xbf16>
    %c0_156 = arith.constant 0 : index
    %c7_157 = arith.constant 7 : index
    %c0_158 = arith.constant 0 : index
    %c0_159 = arith.constant 0 : index
    %165 = vector.load %arg5[%c0_156, %c7_157, %c0_158, %c0_159] : memref<1x8x8x64xbf16, #tpu.memory_space<vmem>>, vector<1x1x8x64xbf16>
    %166 = vector.shape_cast %165 : vector<1x1x8x64xbf16> to vector<8x64xbf16>
    %167 = vector.shape_cast %164 : vector<8x64xbf16> to vector<1x1x8x64xbf16>
    tpu.vector_store %arg5[%c0_156, %c7_157, %c0_158, %c0_159], %167 {strides = array<i32>} : memref<1x8x8x64xbf16, #tpu.memory_space<vmem>>, vector<1x1x8x64xbf16>,
    return
  }
  func.func @transform_0(%arg0: i32) -> (i32, i32, i32) {
    %c0_i32 = arith.constant 0 : i32
    %c0_i32_0 = arith.constant 0 : i32
    %c0_i32_1 = arith.constant 0 : i32
    return %arg0, %c0_i32, %c0_i32_0 : i32, i32, i32
  }
  func.func @transform_1(%arg0: i32) -> (i32, i32, i32) {
    %c0_i32 = arith.constant 0 : i32
    %c0_i32_0 = arith.constant 0 : i32
    %c0_i32_1 = arith.constant 0 : i32
    %c0_i32_2 = arith.constant 0 : i32
    return %c0_i32, %c0_i32_0, %c0_i32_1 : i32, i32, i32
  }
  func.func @transform_2(%arg0: i32) -> (i32, i32) {
    %c0_i32 = arith.constant 0 : i32
    %c0_i32_0 = arith.constant 0 : i32
    %c0_i32_1 = arith.constant 0 : i32
    return %c0_i32, %c0_i32_0 : i32, i32
  }
  func.func @transform_3(%arg0: i32) -> (i32, i32) {
    %c0_i32 = arith.constant 0 : i32
    %c0_i32_0 = arith.constant 0 : i32
    %c0_i32_1 = arith.constant 0 : i32
    return %c0_i32, %c0_i32_0 : i32, i32
  }
  func.func @transform_4(%arg0: i32) -> (i32, i32, i32, i32) {
    %c0_i32 = arith.constant 0 : i32
    %c0_i32_0 = arith.constant 0 : i32
    %c0_i32_1 = arith.constant 0 : i32
    %c0_i32_2 = arith.constant 0 : i32
    return %arg0, %c0_i32, %c0_i32_0, %c0_i32_1 : i32, i32, i32, i32
  }
}

module attributes {stable_mosaic.version = 11 : i64} {
  func.func @kernel(%arg0: i32, %arg1: memref<1x110x64xbf16, #tpu.memory_space<vmem>>, %arg2: memref<9x64x64xbf16, #tpu.memory_space<vmem>>, %arg3: memref<1x64xf32, #tpu.memory_space<vmem>>, %arg4: memref<1x64xf32, #tpu.memory_space<vmem>>, %arg5: memref<1x4x4x64xbf16, #tpu.memory_space<vmem>>, %arg6: memref<80x64xf32, #tpu.memory_space<vmem>>) attributes {dimension_semantics = [#tpu.dimension_semantics<parallel>], iteration_bounds = array<i64: 2>, scalar_prefetch = 0 : i64, scratch_operands = 1 : i64, tpu.core_type = #tpu.core_type<tc>, window_params = [{transform_indices = @transform_0, window_bounds = array<i64: 1, 110, 64>}, {pipeline_mode = #tpu.pipeline_mode<synchronous>, transform_indices = @transform_1, window_bounds = array<i64: 9, 64, 64>}, {pipeline_mode = #tpu.pipeline_mode<synchronous>, transform_indices = @transform_2, window_bounds = array<i64: 1, 64>}, {pipeline_mode = #tpu.pipeline_mode<synchronous>, transform_indices = @transform_3, window_bounds = array<i64: 1, 64>}, {transform_indices = @transform_4, window_bounds = array<i64: 1, 4, 4, 64>}]} {
    %c0 = arith.constant 0 : index
    %c0_0 = arith.constant 0 : index
    %c0_1 = arith.constant 0 : index
    %0 = vector.load %arg1[%c0, %c0_0, %c0_1] : memref<1x110x64xbf16, #tpu.memory_space<vmem>>, vector<1x80x64xbf16>
    %1 = vector.shape_cast %0 : vector<1x80x64xbf16> to vector<80x64xbf16>
    %c0_2 = arith.constant 0 : index
    %c0_3 = arith.constant 0 : index
    %c0_4 = arith.constant 0 : index
    %2 = vector.load %arg2[%c0_2, %c0_3, %c0_4] : memref<9x64x64xbf16, #tpu.memory_space<vmem>>, vector<1x64x64xbf16>
    %3 = vector.shape_cast %2 : vector<1x64x64xbf16> to vector<64x64xbf16>
    %cst = arith.constant dense<0.000000e+00> : vector<80x64xf32>
    %4 = tpu.matmul %1, %3, %cst {dimension_numbers = #tpu.dot_dimension_numbers<[1], [0], [0], [1], [0, 0, 1, 1], [], []>} : vector<80x64xbf16>, vector<64x64xbf16>, vector<80x64xf32> -> vector<80x64xf32>
    %c0_5 = arith.constant 0 : index
    %c0_6 = arith.constant 0 : index
    %5 = vector.load %arg6[%c0_5, %c0_6] : memref<80x64xf32, #tpu.memory_space<vmem>>, vector<80x64xf32>
    tpu.vector_store %arg6[%c0_5, %c0_6], %4 {strides = array<i32>} : memref<80x64xf32, #tpu.memory_space<vmem>>, vector<80x64xf32>,
    %c0_7 = arith.constant 0 : index
    %c1 = arith.constant 1 : index
    %c0_8 = arith.constant 0 : index
    %6 = vector.load %arg1[%c0_7, %c1, %c0_8] : memref<1x110x64xbf16, #tpu.memory_space<vmem>>, vector<1x80x64xbf16>
    %7 = vector.shape_cast %6 : vector<1x80x64xbf16> to vector<80x64xbf16>
    %c1_9 = arith.constant 1 : index
    %c0_10 = arith.constant 0 : index
    %c0_11 = arith.constant 0 : index
    %8 = vector.load %arg2[%c1_9, %c0_10, %c0_11] : memref<9x64x64xbf16, #tpu.memory_space<vmem>>, vector<1x64x64xbf16>
    %9 = vector.shape_cast %8 : vector<1x64x64xbf16> to vector<64x64xbf16>
    %cst_12 = arith.constant dense<0.000000e+00> : vector<80x64xf32>
    %10 = tpu.matmul %7, %9, %cst_12 {dimension_numbers = #tpu.dot_dimension_numbers<[1], [0], [0], [1], [0, 0, 1, 1], [], []>} : vector<80x64xbf16>, vector<64x64xbf16>, vector<80x64xf32> -> vector<80x64xf32>
    %c0_13 = arith.constant 0 : index
    %c0_14 = arith.constant 0 : index
    %11 = vector.load %arg6[%c0_13, %c0_14] : memref<80x64xf32, #tpu.memory_space<vmem>>, vector<80x64xf32>
    %12 = arith.addf %11, %10 : vector<80x64xf32>
    %c0_15 = arith.constant 0 : index
    %c0_16 = arith.constant 0 : index
    %13 = vector.load %arg6[%c0_15, %c0_16] : memref<80x64xf32, #tpu.memory_space<vmem>>, vector<80x64xf32>
    tpu.vector_store %arg6[%c0_15, %c0_16], %12 {strides = array<i32>} : memref<80x64xf32, #tpu.memory_space<vmem>>, vector<80x64xf32>,
    %c0_17 = arith.constant 0 : index
    %c2 = arith.constant 2 : index
    %c0_18 = arith.constant 0 : index
    %14 = vector.load %arg1[%c0_17, %c2, %c0_18] : memref<1x110x64xbf16, #tpu.memory_space<vmem>>, vector<1x80x64xbf16>
    %15 = vector.shape_cast %14 : vector<1x80x64xbf16> to vector<80x64xbf16>
    %c2_19 = arith.constant 2 : index
    %c0_20 = arith.constant 0 : index
    %c0_21 = arith.constant 0 : index
    %16 = vector.load %arg2[%c2_19, %c0_20, %c0_21] : memref<9x64x64xbf16, #tpu.memory_space<vmem>>, vector<1x64x64xbf16>
    %17 = vector.shape_cast %16 : vector<1x64x64xbf16> to vector<64x64xbf16>
    %cst_22 = arith.constant dense<0.000000e+00> : vector<80x64xf32>
    %18 = tpu.matmul %15, %17, %cst_22 {dimension_numbers = #tpu.dot_dimension_numbers<[1], [0], [0], [1], [0, 0, 1, 1], [], []>} : vector<80x64xbf16>, vector<64x64xbf16>, vector<80x64xf32> -> vector<80x64xf32>
    %c0_23 = arith.constant 0 : index
    %c0_24 = arith.constant 0 : index
    %19 = vector.load %arg6[%c0_23, %c0_24] : memref<80x64xf32, #tpu.memory_space<vmem>>, vector<80x64xf32>
    %20 = arith.addf %19, %18 : vector<80x64xf32>
    %c0_25 = arith.constant 0 : index
    %c0_26 = arith.constant 0 : index
    %21 = vector.load %arg6[%c0_25, %c0_26] : memref<80x64xf32, #tpu.memory_space<vmem>>, vector<80x64xf32>
    tpu.vector_store %arg6[%c0_25, %c0_26], %20 {strides = array<i32>} : memref<80x64xf32, #tpu.memory_space<vmem>>, vector<80x64xf32>,
    %c0_27 = arith.constant 0 : index
    %c10 = arith.constant 10 : index
    %c0_28 = arith.constant 0 : index
    %22 = vector.load %arg1[%c0_27, %c10, %c0_28] : memref<1x110x64xbf16, #tpu.memory_space<vmem>>, vector<1x80x64xbf16>
    %23 = vector.shape_cast %22 : vector<1x80x64xbf16> to vector<80x64xbf16>
    %c3 = arith.constant 3 : index
    %c0_29 = arith.constant 0 : index
    %c0_30 = arith.constant 0 : index
    %24 = vector.load %arg2[%c3, %c0_29, %c0_30] : memref<9x64x64xbf16, #tpu.memory_space<vmem>>, vector<1x64x64xbf16>
    %25 = vector.shape_cast %24 : vector<1x64x64xbf16> to vector<64x64xbf16>
    %cst_31 = arith.constant dense<0.000000e+00> : vector<80x64xf32>
    %26 = tpu.matmul %23, %25, %cst_31 {dimension_numbers = #tpu.dot_dimension_numbers<[1], [0], [0], [1], [0, 0, 1, 1], [], []>} : vector<80x64xbf16>, vector<64x64xbf16>, vector<80x64xf32> -> vector<80x64xf32>
    %c0_32 = arith.constant 0 : index
    %c0_33 = arith.constant 0 : index
    %27 = vector.load %arg6[%c0_32, %c0_33] : memref<80x64xf32, #tpu.memory_space<vmem>>, vector<80x64xf32>
    %28 = arith.addf %27, %26 : vector<80x64xf32>
    %c0_34 = arith.constant 0 : index
    %c0_35 = arith.constant 0 : index
    %29 = vector.load %arg6[%c0_34, %c0_35] : memref<80x64xf32, #tpu.memory_space<vmem>>, vector<80x64xf32>
    tpu.vector_store %arg6[%c0_34, %c0_35], %28 {strides = array<i32>} : memref<80x64xf32, #tpu.memory_space<vmem>>, vector<80x64xf32>,
    %c0_36 = arith.constant 0 : index
    %c11 = arith.constant 11 : index
    %c0_37 = arith.constant 0 : index
    %30 = vector.load %arg1[%c0_36, %c11, %c0_37] : memref<1x110x64xbf16, #tpu.memory_space<vmem>>, vector<1x80x64xbf16>
    %31 = vector.shape_cast %30 : vector<1x80x64xbf16> to vector<80x64xbf16>
    %c4 = arith.constant 4 : index
    %c0_38 = arith.constant 0 : index
    %c0_39 = arith.constant 0 : index
    %32 = vector.load %arg2[%c4, %c0_38, %c0_39] : memref<9x64x64xbf16, #tpu.memory_space<vmem>>, vector<1x64x64xbf16>
    %33 = vector.shape_cast %32 : vector<1x64x64xbf16> to vector<64x64xbf16>
    %cst_40 = arith.constant dense<0.000000e+00> : vector<80x64xf32>
    %34 = tpu.matmul %31, %33, %cst_40 {dimension_numbers = #tpu.dot_dimension_numbers<[1], [0], [0], [1], [0, 0, 1, 1], [], []>} : vector<80x64xbf16>, vector<64x64xbf16>, vector<80x64xf32> -> vector<80x64xf32>
    %c0_41 = arith.constant 0 : index
    %c0_42 = arith.constant 0 : index
    %35 = vector.load %arg6[%c0_41, %c0_42] : memref<80x64xf32, #tpu.memory_space<vmem>>, vector<80x64xf32>
    %36 = arith.addf %35, %34 : vector<80x64xf32>
    %c0_43 = arith.constant 0 : index
    %c0_44 = arith.constant 0 : index
    %37 = vector.load %arg6[%c0_43, %c0_44] : memref<80x64xf32, #tpu.memory_space<vmem>>, vector<80x64xf32>
    tpu.vector_store %arg6[%c0_43, %c0_44], %36 {strides = array<i32>} : memref<80x64xf32, #tpu.memory_space<vmem>>, vector<80x64xf32>,
    %c0_45 = arith.constant 0 : index
    %c12 = arith.constant 12 : index
    %c0_46 = arith.constant 0 : index
    %38 = vector.load %arg1[%c0_45, %c12, %c0_46] : memref<1x110x64xbf16, #tpu.memory_space<vmem>>, vector<1x80x64xbf16>
    %39 = vector.shape_cast %38 : vector<1x80x64xbf16> to vector<80x64xbf16>
    %c5 = arith.constant 5 : index
    %c0_47 = arith.constant 0 : index
    %c0_48 = arith.constant 0 : index
    %40 = vector.load %arg2[%c5, %c0_47, %c0_48] : memref<9x64x64xbf16, #tpu.memory_space<vmem>>, vector<1x64x64xbf16>
    %41 = vector.shape_cast %40 : vector<1x64x64xbf16> to vector<64x64xbf16>
    %cst_49 = arith.constant dense<0.000000e+00> : vector<80x64xf32>
    %42 = tpu.matmul %39, %41, %cst_49 {dimension_numbers = #tpu.dot_dimension_numbers<[1], [0], [0], [1], [0, 0, 1, 1], [], []>} : vector<80x64xbf16>, vector<64x64xbf16>, vector<80x64xf32> -> vector<80x64xf32>
    %c0_50 = arith.constant 0 : index
    %c0_51 = arith.constant 0 : index
    %43 = vector.load %arg6[%c0_50, %c0_51] : memref<80x64xf32, #tpu.memory_space<vmem>>, vector<80x64xf32>
    %44 = arith.addf %43, %42 : vector<80x64xf32>
    %c0_52 = arith.constant 0 : index
    %c0_53 = arith.constant 0 : index
    %45 = vector.load %arg6[%c0_52, %c0_53] : memref<80x64xf32, #tpu.memory_space<vmem>>, vector<80x64xf32>
    tpu.vector_store %arg6[%c0_52, %c0_53], %44 {strides = array<i32>} : memref<80x64xf32, #tpu.memory_space<vmem>>, vector<80x64xf32>,
    %c0_54 = arith.constant 0 : index
    %c20 = arith.constant 20 : index
    %c0_55 = arith.constant 0 : index
    %46 = vector.load %arg1[%c0_54, %c20, %c0_55] : memref<1x110x64xbf16, #tpu.memory_space<vmem>>, vector<1x80x64xbf16>
    %47 = vector.shape_cast %46 : vector<1x80x64xbf16> to vector<80x64xbf16>
    %c6 = arith.constant 6 : index
    %c0_56 = arith.constant 0 : index
    %c0_57 = arith.constant 0 : index
    %48 = vector.load %arg2[%c6, %c0_56, %c0_57] : memref<9x64x64xbf16, #tpu.memory_space<vmem>>, vector<1x64x64xbf16>
    %49 = vector.shape_cast %48 : vector<1x64x64xbf16> to vector<64x64xbf16>
    %cst_58 = arith.constant dense<0.000000e+00> : vector<80x64xf32>
    %50 = tpu.matmul %47, %49, %cst_58 {dimension_numbers = #tpu.dot_dimension_numbers<[1], [0], [0], [1], [0, 0, 1, 1], [], []>} : vector<80x64xbf16>, vector<64x64xbf16>, vector<80x64xf32> -> vector<80x64xf32>
    %c0_59 = arith.constant 0 : index
    %c0_60 = arith.constant 0 : index
    %51 = vector.load %arg6[%c0_59, %c0_60] : memref<80x64xf32, #tpu.memory_space<vmem>>, vector<80x64xf32>
    %52 = arith.addf %51, %50 : vector<80x64xf32>
    %c0_61 = arith.constant 0 : index
    %c0_62 = arith.constant 0 : index
    %53 = vector.load %arg6[%c0_61, %c0_62] : memref<80x64xf32, #tpu.memory_space<vmem>>, vector<80x64xf32>
    tpu.vector_store %arg6[%c0_61, %c0_62], %52 {strides = array<i32>} : memref<80x64xf32, #tpu.memory_space<vmem>>, vector<80x64xf32>,
    %c0_63 = arith.constant 0 : index
    %c21 = arith.constant 21 : index
    %c0_64 = arith.constant 0 : index
    %54 = vector.load %arg1[%c0_63, %c21, %c0_64] : memref<1x110x64xbf16, #tpu.memory_space<vmem>>, vector<1x80x64xbf16>
    %55 = vector.shape_cast %54 : vector<1x80x64xbf16> to vector<80x64xbf16>
    %c7 = arith.constant 7 : index
    %c0_65 = arith.constant 0 : index
    %c0_66 = arith.constant 0 : index
    %56 = vector.load %arg2[%c7, %c0_65, %c0_66] : memref<9x64x64xbf16, #tpu.memory_space<vmem>>, vector<1x64x64xbf16>
    %57 = vector.shape_cast %56 : vector<1x64x64xbf16> to vector<64x64xbf16>
    %cst_67 = arith.constant dense<0.000000e+00> : vector<80x64xf32>
    %58 = tpu.matmul %55, %57, %cst_67 {dimension_numbers = #tpu.dot_dimension_numbers<[1], [0], [0], [1], [0, 0, 1, 1], [], []>} : vector<80x64xbf16>, vector<64x64xbf16>, vector<80x64xf32> -> vector<80x64xf32>
    %c0_68 = arith.constant 0 : index
    %c0_69 = arith.constant 0 : index
    %59 = vector.load %arg6[%c0_68, %c0_69] : memref<80x64xf32, #tpu.memory_space<vmem>>, vector<80x64xf32>
    %60 = arith.addf %59, %58 : vector<80x64xf32>
    %c0_70 = arith.constant 0 : index
    %c0_71 = arith.constant 0 : index
    %61 = vector.load %arg6[%c0_70, %c0_71] : memref<80x64xf32, #tpu.memory_space<vmem>>, vector<80x64xf32>
    tpu.vector_store %arg6[%c0_70, %c0_71], %60 {strides = array<i32>} : memref<80x64xf32, #tpu.memory_space<vmem>>, vector<80x64xf32>,
    %c0_72 = arith.constant 0 : index
    %c22 = arith.constant 22 : index
    %c0_73 = arith.constant 0 : index
    %62 = vector.load %arg1[%c0_72, %c22, %c0_73] : memref<1x110x64xbf16, #tpu.memory_space<vmem>>, vector<1x80x64xbf16>
    %63 = vector.shape_cast %62 : vector<1x80x64xbf16> to vector<80x64xbf16>
    %c8 = arith.constant 8 : index
    %c0_74 = arith.constant 0 : index
    %c0_75 = arith.constant 0 : index
    %64 = vector.load %arg2[%c8, %c0_74, %c0_75] : memref<9x64x64xbf16, #tpu.memory_space<vmem>>, vector<1x64x64xbf16>
    %65 = vector.shape_cast %64 : vector<1x64x64xbf16> to vector<64x64xbf16>
    %cst_76 = arith.constant dense<0.000000e+00> : vector<80x64xf32>
    %66 = tpu.matmul %63, %65, %cst_76 {dimension_numbers = #tpu.dot_dimension_numbers<[1], [0], [0], [1], [0, 0, 1, 1], [], []>} : vector<80x64xbf16>, vector<64x64xbf16>, vector<80x64xf32> -> vector<80x64xf32>
    %c0_77 = arith.constant 0 : index
    %c0_78 = arith.constant 0 : index
    %67 = vector.load %arg6[%c0_77, %c0_78] : memref<80x64xf32, #tpu.memory_space<vmem>>, vector<80x64xf32>
    %68 = arith.addf %67, %66 : vector<80x64xf32>
    %c0_79 = arith.constant 0 : index
    %c0_80 = arith.constant 0 : index
    %69 = vector.load %arg6[%c0_79, %c0_80] : memref<80x64xf32, #tpu.memory_space<vmem>>, vector<80x64xf32>
    tpu.vector_store %arg6[%c0_79, %c0_80], %68 {strides = array<i32>} : memref<80x64xf32, #tpu.memory_space<vmem>>, vector<80x64xf32>,
    %c0_81 = arith.constant 0 : index
    %c0_82 = arith.constant 0 : index
    %70 = vector.load %arg6[%c0_81, %c0_82] : memref<80x64xf32, #tpu.memory_space<vmem>>, vector<80x64xf32>
    %c0_83 = arith.constant 0 : index
    %c0_84 = arith.constant 0 : index
    %71 = vector.load %arg3[%c0_83, %c0_84] : memref<1x64xf32, #tpu.memory_space<vmem>>, vector<1x64xf32>
    %72 = vector.broadcast %71 : vector<1x64xf32> to vector<80x64xf32>
    %73 = arith.mulf %70, %72 : vector<80x64xf32>
    %c0_85 = arith.constant 0 : index
    %c0_86 = arith.constant 0 : index
    %74 = vector.load %arg4[%c0_85, %c0_86] : memref<1x64xf32, #tpu.memory_space<vmem>>, vector<1x64xf32>
    %75 = vector.broadcast %74 : vector<1x64xf32> to vector<80x64xf32>
    %76 = arith.addf %73, %75 : vector<80x64xf32>
    %cst_87 = arith.constant 0.000000e+00 : f32
    %77 = vector.broadcast %cst_87 : f32 to vector<80x64xf32>
    %78 = arith.maximumf %76, %77 : vector<80x64xf32>
    %c0_88 = arith.constant 0 : index
    %c0_89 = arith.constant 0 : index
    %79 = vector.load %arg6[%c0_88, %c0_89] : memref<80x64xf32, #tpu.memory_space<vmem>>, vector<80x64xf32>
    tpu.vector_store %arg6[%c0_88, %c0_89], %78 {strides = array<i32>} : memref<80x64xf32, #tpu.memory_space<vmem>>, vector<80x64xf32>,
    %c0_90 = arith.constant 0 : index
    %c0_91 = arith.constant 0 : index
    %80 = tpu.strided_load %arg6[%c0_90, %c0_91] {strides = array<i32: 2, 1>} : memref<80x64xf32, #tpu.memory_space<vmem>>, vector<4x64xf32>
    %c1_92 = arith.constant 1 : index
    %c0_93 = arith.constant 0 : index
    %81 = tpu.strided_load %arg6[%c1_92, %c0_93] {strides = array<i32: 2, 1>} : memref<80x64xf32, #tpu.memory_space<vmem>>, vector<4x64xf32>
    %c10_94 = arith.constant 10 : index
    %c0_95 = arith.constant 0 : index
    %82 = tpu.strided_load %arg6[%c10_94, %c0_95] {strides = array<i32: 2, 1>} : memref<80x64xf32, #tpu.memory_space<vmem>>, vector<4x64xf32>
    %c11_96 = arith.constant 11 : index
    %c0_97 = arith.constant 0 : index
    %83 = tpu.strided_load %arg6[%c11_96, %c0_97] {strides = array<i32: 2, 1>} : memref<80x64xf32, #tpu.memory_space<vmem>>, vector<4x64xf32>
    %84 = arith.maximumf %80, %81 : vector<4x64xf32>
    %85 = arith.maximumf %82, %83 : vector<4x64xf32>
    %86 = arith.maximumf %84, %85 : vector<4x64xf32>
    %87 = arith.truncf %86 : vector<4x64xf32> to vector<4x64xbf16>
    %c0_98 = arith.constant 0 : index
    %c0_99 = arith.constant 0 : index
    %c0_100 = arith.constant 0 : index
    %c0_101 = arith.constant 0 : index
    %88 = vector.load %arg5[%c0_98, %c0_99, %c0_100, %c0_101] : memref<1x4x4x64xbf16, #tpu.memory_space<vmem>>, vector<1x1x4x64xbf16>
    %89 = vector.shape_cast %88 : vector<1x1x4x64xbf16> to vector<4x64xbf16>
    %90 = vector.shape_cast %87 : vector<4x64xbf16> to vector<1x1x4x64xbf16>
    tpu.vector_store %arg5[%c0_98, %c0_99, %c0_100, %c0_101], %90 {strides = array<i32>} : memref<1x4x4x64xbf16, #tpu.memory_space<vmem>>, vector<1x1x4x64xbf16>,
    %c20_102 = arith.constant 20 : index
    %c0_103 = arith.constant 0 : index
    %91 = tpu.strided_load %arg6[%c20_102, %c0_103] {strides = array<i32: 2, 1>} : memref<80x64xf32, #tpu.memory_space<vmem>>, vector<4x64xf32>
    %c21_104 = arith.constant 21 : index
    %c0_105 = arith.constant 0 : index
    %92 = tpu.strided_load %arg6[%c21_104, %c0_105] {strides = array<i32: 2, 1>} : memref<80x64xf32, #tpu.memory_space<vmem>>, vector<4x64xf32>
    %c30 = arith.constant 30 : index
    %c0_106 = arith.constant 0 : index
    %93 = tpu.strided_load %arg6[%c30, %c0_106] {strides = array<i32: 2, 1>} : memref<80x64xf32, #tpu.memory_space<vmem>>, vector<4x64xf32>
    %c31 = arith.constant 31 : index
    %c0_107 = arith.constant 0 : index
    %94 = tpu.strided_load %arg6[%c31, %c0_107] {strides = array<i32: 2, 1>} : memref<80x64xf32, #tpu.memory_space<vmem>>, vector<4x64xf32>
    %95 = arith.maximumf %91, %92 : vector<4x64xf32>
    %96 = arith.maximumf %93, %94 : vector<4x64xf32>
    %97 = arith.maximumf %95, %96 : vector<4x64xf32>
    %98 = arith.truncf %97 : vector<4x64xf32> to vector<4x64xbf16>
    %c0_108 = arith.constant 0 : index
    %c1_109 = arith.constant 1 : index
    %c0_110 = arith.constant 0 : index
    %c0_111 = arith.constant 0 : index
    %99 = vector.load %arg5[%c0_108, %c1_109, %c0_110, %c0_111] : memref<1x4x4x64xbf16, #tpu.memory_space<vmem>>, vector<1x1x4x64xbf16>
    %100 = vector.shape_cast %99 : vector<1x1x4x64xbf16> to vector<4x64xbf16>
    %101 = vector.shape_cast %98 : vector<4x64xbf16> to vector<1x1x4x64xbf16>
    tpu.vector_store %arg5[%c0_108, %c1_109, %c0_110, %c0_111], %101 {strides = array<i32>} : memref<1x4x4x64xbf16, #tpu.memory_space<vmem>>, vector<1x1x4x64xbf16>,
    %c40 = arith.constant 40 : index
    %c0_112 = arith.constant 0 : index
    %102 = tpu.strided_load %arg6[%c40, %c0_112] {strides = array<i32: 2, 1>} : memref<80x64xf32, #tpu.memory_space<vmem>>, vector<4x64xf32>
    %c41 = arith.constant 41 : index
    %c0_113 = arith.constant 0 : index
    %103 = tpu.strided_load %arg6[%c41, %c0_113] {strides = array<i32: 2, 1>} : memref<80x64xf32, #tpu.memory_space<vmem>>, vector<4x64xf32>
    %c50 = arith.constant 50 : index
    %c0_114 = arith.constant 0 : index
    %104 = tpu.strided_load %arg6[%c50, %c0_114] {strides = array<i32: 2, 1>} : memref<80x64xf32, #tpu.memory_space<vmem>>, vector<4x64xf32>
    %c51 = arith.constant 51 : index
    %c0_115 = arith.constant 0 : index
    %105 = tpu.strided_load %arg6[%c51, %c0_115] {strides = array<i32: 2, 1>} : memref<80x64xf32, #tpu.memory_space<vmem>>, vector<4x64xf32>
    %106 = arith.maximumf %102, %103 : vector<4x64xf32>
    %107 = arith.maximumf %104, %105 : vector<4x64xf32>
    %108 = arith.maximumf %106, %107 : vector<4x64xf32>
    %109 = arith.truncf %108 : vector<4x64xf32> to vector<4x64xbf16>
    %c0_116 = arith.constant 0 : index
    %c2_117 = arith.constant 2 : index
    %c0_118 = arith.constant 0 : index
    %c0_119 = arith.constant 0 : index
    %110 = vector.load %arg5[%c0_116, %c2_117, %c0_118, %c0_119] : memref<1x4x4x64xbf16, #tpu.memory_space<vmem>>, vector<1x1x4x64xbf16>
    %111 = vector.shape_cast %110 : vector<1x1x4x64xbf16> to vector<4x64xbf16>
    %112 = vector.shape_cast %109 : vector<4x64xbf16> to vector<1x1x4x64xbf16>
    tpu.vector_store %arg5[%c0_116, %c2_117, %c0_118, %c0_119], %112 {strides = array<i32>} : memref<1x4x4x64xbf16, #tpu.memory_space<vmem>>, vector<1x1x4x64xbf16>,
    %c60 = arith.constant 60 : index
    %c0_120 = arith.constant 0 : index
    %113 = tpu.strided_load %arg6[%c60, %c0_120] {strides = array<i32: 2, 1>} : memref<80x64xf32, #tpu.memory_space<vmem>>, vector<4x64xf32>
    %c61 = arith.constant 61 : index
    %c0_121 = arith.constant 0 : index
    %114 = tpu.strided_load %arg6[%c61, %c0_121] {strides = array<i32: 2, 1>} : memref<80x64xf32, #tpu.memory_space<vmem>>, vector<4x64xf32>
    %c70 = arith.constant 70 : index
    %c0_122 = arith.constant 0 : index
    %115 = tpu.strided_load %arg6[%c70, %c0_122] {strides = array<i32: 2, 1>} : memref<80x64xf32, #tpu.memory_space<vmem>>, vector<4x64xf32>
    %c71 = arith.constant 71 : index
    %c0_123 = arith.constant 0 : index
    %116 = tpu.strided_load %arg6[%c71, %c0_123] {strides = array<i32: 2, 1>} : memref<80x64xf32, #tpu.memory_space<vmem>>, vector<4x64xf32>
    %117 = arith.maximumf %113, %114 : vector<4x64xf32>
    %118 = arith.maximumf %115, %116 : vector<4x64xf32>
    %119 = arith.maximumf %117, %118 : vector<4x64xf32>
    %120 = arith.truncf %119 : vector<4x64xf32> to vector<4x64xbf16>
    %c0_124 = arith.constant 0 : index
    %c3_125 = arith.constant 3 : index
    %c0_126 = arith.constant 0 : index
    %c0_127 = arith.constant 0 : index
    %121 = vector.load %arg5[%c0_124, %c3_125, %c0_126, %c0_127] : memref<1x4x4x64xbf16, #tpu.memory_space<vmem>>, vector<1x1x4x64xbf16>
    %122 = vector.shape_cast %121 : vector<1x1x4x64xbf16> to vector<4x64xbf16>
    %123 = vector.shape_cast %120 : vector<4x64xbf16> to vector<1x1x4x64xbf16>
    tpu.vector_store %arg5[%c0_124, %c3_125, %c0_126, %c0_127], %123 {strides = array<i32>} : memref<1x4x4x64xbf16, #tpu.memory_space<vmem>>, vector<1x1x4x64xbf16>,
    return
  }
  func.func @transform_0(%arg0: i32) -> (i32, i32, i32) {
    %c0_i32 = arith.constant 0 : i32
    %c0_i32_0 = arith.constant 0 : i32
    %c0_i32_1 = arith.constant 0 : i32
    return %arg0, %c0_i32, %c0_i32_0 : i32, i32, i32
  }
  func.func @transform_1(%arg0: i32) -> (i32, i32, i32) {
    %c0_i32 = arith.constant 0 : i32
    %c0_i32_0 = arith.constant 0 : i32
    %c0_i32_1 = arith.constant 0 : i32
    %c0_i32_2 = arith.constant 0 : i32
    return %c0_i32, %c0_i32_0, %c0_i32_1 : i32, i32, i32
  }
  func.func @transform_2(%arg0: i32) -> (i32, i32) {
    %c0_i32 = arith.constant 0 : i32
    %c0_i32_0 = arith.constant 0 : i32
    %c0_i32_1 = arith.constant 0 : i32
    return %c0_i32, %c0_i32_0 : i32, i32
  }
  func.func @transform_3(%arg0: i32) -> (i32, i32) {
    %c0_i32 = arith.constant 0 : i32
    %c0_i32_0 = arith.constant 0 : i32
    %c0_i32_1 = arith.constant 0 : i32
    return %c0_i32, %c0_i32_0 : i32, i32
  }
  func.func @transform_4(%arg0: i32) -> (i32, i32, i32, i32) {
    %c0_i32 = arith.constant 0 : i32
    %c0_i32_0 = arith.constant 0 : i32
    %c0_i32_1 = arith.constant 0 : i32
    %c0_i32_2 = arith.constant 0 : i32
    return %arg0, %c0_i32, %c0_i32_0, %c0_i32_1 : i32, i32, i32, i32
  }
}

module attributes {stable_mosaic.version = 11 : i64} {
  func.func @kernel(%arg0: i32, %arg1: memref<1x42x64xbf16, #tpu.memory_space<vmem>>, %arg2: memref<9x64x64xbf16, #tpu.memory_space<vmem>>, %arg3: memref<1x64xf32, #tpu.memory_space<vmem>>, %arg4: memref<1x64xf32, #tpu.memory_space<vmem>>, %arg5: memref<1x2x2x64xbf16, #tpu.memory_space<vmem>>, %arg6: memref<24x64xf32, #tpu.memory_space<vmem>>) attributes {dimension_semantics = [#tpu.dimension_semantics<parallel>], iteration_bounds = array<i64: 2>, scalar_prefetch = 0 : i64, scratch_operands = 1 : i64, tpu.core_type = #tpu.core_type<tc>, window_params = [{transform_indices = @transform_0, window_bounds = array<i64: 1, 42, 64>}, {pipeline_mode = #tpu.pipeline_mode<synchronous>, transform_indices = @transform_1, window_bounds = array<i64: 9, 64, 64>}, {pipeline_mode = #tpu.pipeline_mode<synchronous>, transform_indices = @transform_2, window_bounds = array<i64: 1, 64>}, {pipeline_mode = #tpu.pipeline_mode<synchronous>, transform_indices = @transform_3, window_bounds = array<i64: 1, 64>}, {transform_indices = @transform_4, window_bounds = array<i64: 1, 2, 2, 64>}]} {
    %c0 = arith.constant 0 : index
    %c0_0 = arith.constant 0 : index
    %c0_1 = arith.constant 0 : index
    %0 = vector.load %arg1[%c0, %c0_0, %c0_1] : memref<1x42x64xbf16, #tpu.memory_space<vmem>>, vector<1x24x64xbf16>
    %1 = vector.shape_cast %0 : vector<1x24x64xbf16> to vector<24x64xbf16>
    %c0_2 = arith.constant 0 : index
    %c0_3 = arith.constant 0 : index
    %c0_4 = arith.constant 0 : index
    %2 = vector.load %arg2[%c0_2, %c0_3, %c0_4] : memref<9x64x64xbf16, #tpu.memory_space<vmem>>, vector<1x64x64xbf16>
    %3 = vector.shape_cast %2 : vector<1x64x64xbf16> to vector<64x64xbf16>
    %cst = arith.constant dense<0.000000e+00> : vector<24x64xf32>
    %4 = tpu.matmul %1, %3, %cst {dimension_numbers = #tpu.dot_dimension_numbers<[1], [0], [0], [1], [0, 0, 1, 1], [], []>} : vector<24x64xbf16>, vector<64x64xbf16>, vector<24x64xf32> -> vector<24x64xf32>
    %c0_5 = arith.constant 0 : index
    %c0_6 = arith.constant 0 : index
    %5 = vector.load %arg6[%c0_5, %c0_6] : memref<24x64xf32, #tpu.memory_space<vmem>>, vector<24x64xf32>
    tpu.vector_store %arg6[%c0_5, %c0_6], %4 {strides = array<i32>} : memref<24x64xf32, #tpu.memory_space<vmem>>, vector<24x64xf32>,
    %c0_7 = arith.constant 0 : index
    %c1 = arith.constant 1 : index
    %c0_8 = arith.constant 0 : index
    %6 = vector.load %arg1[%c0_7, %c1, %c0_8] : memref<1x42x64xbf16, #tpu.memory_space<vmem>>, vector<1x24x64xbf16>
    %7 = vector.shape_cast %6 : vector<1x24x64xbf16> to vector<24x64xbf16>
    %c1_9 = arith.constant 1 : index
    %c0_10 = arith.constant 0 : index
    %c0_11 = arith.constant 0 : index
    %8 = vector.load %arg2[%c1_9, %c0_10, %c0_11] : memref<9x64x64xbf16, #tpu.memory_space<vmem>>, vector<1x64x64xbf16>
    %9 = vector.shape_cast %8 : vector<1x64x64xbf16> to vector<64x64xbf16>
    %cst_12 = arith.constant dense<0.000000e+00> : vector<24x64xf32>
    %10 = tpu.matmul %7, %9, %cst_12 {dimension_numbers = #tpu.dot_dimension_numbers<[1], [0], [0], [1], [0, 0, 1, 1], [], []>} : vector<24x64xbf16>, vector<64x64xbf16>, vector<24x64xf32> -> vector<24x64xf32>
    %c0_13 = arith.constant 0 : index
    %c0_14 = arith.constant 0 : index
    %11 = vector.load %arg6[%c0_13, %c0_14] : memref<24x64xf32, #tpu.memory_space<vmem>>, vector<24x64xf32>
    %12 = arith.addf %11, %10 : vector<24x64xf32>
    %c0_15 = arith.constant 0 : index
    %c0_16 = arith.constant 0 : index
    %13 = vector.load %arg6[%c0_15, %c0_16] : memref<24x64xf32, #tpu.memory_space<vmem>>, vector<24x64xf32>
    tpu.vector_store %arg6[%c0_15, %c0_16], %12 {strides = array<i32>} : memref<24x64xf32, #tpu.memory_space<vmem>>, vector<24x64xf32>,
    %c0_17 = arith.constant 0 : index
    %c2 = arith.constant 2 : index
    %c0_18 = arith.constant 0 : index
    %14 = vector.load %arg1[%c0_17, %c2, %c0_18] : memref<1x42x64xbf16, #tpu.memory_space<vmem>>, vector<1x24x64xbf16>
    %15 = vector.shape_cast %14 : vector<1x24x64xbf16> to vector<24x64xbf16>
    %c2_19 = arith.constant 2 : index
    %c0_20 = arith.constant 0 : index
    %c0_21 = arith.constant 0 : index
    %16 = vector.load %arg2[%c2_19, %c0_20, %c0_21] : memref<9x64x64xbf16, #tpu.memory_space<vmem>>, vector<1x64x64xbf16>
    %17 = vector.shape_cast %16 : vector<1x64x64xbf16> to vector<64x64xbf16>
    %cst_22 = arith.constant dense<0.000000e+00> : vector<24x64xf32>
    %18 = tpu.matmul %15, %17, %cst_22 {dimension_numbers = #tpu.dot_dimension_numbers<[1], [0], [0], [1], [0, 0, 1, 1], [], []>} : vector<24x64xbf16>, vector<64x64xbf16>, vector<24x64xf32> -> vector<24x64xf32>
    %c0_23 = arith.constant 0 : index
    %c0_24 = arith.constant 0 : index
    %19 = vector.load %arg6[%c0_23, %c0_24] : memref<24x64xf32, #tpu.memory_space<vmem>>, vector<24x64xf32>
    %20 = arith.addf %19, %18 : vector<24x64xf32>
    %c0_25 = arith.constant 0 : index
    %c0_26 = arith.constant 0 : index
    %21 = vector.load %arg6[%c0_25, %c0_26] : memref<24x64xf32, #tpu.memory_space<vmem>>, vector<24x64xf32>
    tpu.vector_store %arg6[%c0_25, %c0_26], %20 {strides = array<i32>} : memref<24x64xf32, #tpu.memory_space<vmem>>, vector<24x64xf32>,
    %c0_27 = arith.constant 0 : index
    %c6 = arith.constant 6 : index
    %c0_28 = arith.constant 0 : index
    %22 = vector.load %arg1[%c0_27, %c6, %c0_28] : memref<1x42x64xbf16, #tpu.memory_space<vmem>>, vector<1x24x64xbf16>
    %23 = vector.shape_cast %22 : vector<1x24x64xbf16> to vector<24x64xbf16>
    %c3 = arith.constant 3 : index
    %c0_29 = arith.constant 0 : index
    %c0_30 = arith.constant 0 : index
    %24 = vector.load %arg2[%c3, %c0_29, %c0_30] : memref<9x64x64xbf16, #tpu.memory_space<vmem>>, vector<1x64x64xbf16>
    %25 = vector.shape_cast %24 : vector<1x64x64xbf16> to vector<64x64xbf16>
    %cst_31 = arith.constant dense<0.000000e+00> : vector<24x64xf32>
    %26 = tpu.matmul %23, %25, %cst_31 {dimension_numbers = #tpu.dot_dimension_numbers<[1], [0], [0], [1], [0, 0, 1, 1], [], []>} : vector<24x64xbf16>, vector<64x64xbf16>, vector<24x64xf32> -> vector<24x64xf32>
    %c0_32 = arith.constant 0 : index
    %c0_33 = arith.constant 0 : index
    %27 = vector.load %arg6[%c0_32, %c0_33] : memref<24x64xf32, #tpu.memory_space<vmem>>, vector<24x64xf32>
    %28 = arith.addf %27, %26 : vector<24x64xf32>
    %c0_34 = arith.constant 0 : index
    %c0_35 = arith.constant 0 : index
    %29 = vector.load %arg6[%c0_34, %c0_35] : memref<24x64xf32, #tpu.memory_space<vmem>>, vector<24x64xf32>
    tpu.vector_store %arg6[%c0_34, %c0_35], %28 {strides = array<i32>} : memref<24x64xf32, #tpu.memory_space<vmem>>, vector<24x64xf32>,
    %c0_36 = arith.constant 0 : index
    %c7 = arith.constant 7 : index
    %c0_37 = arith.constant 0 : index
    %30 = vector.load %arg1[%c0_36, %c7, %c0_37] : memref<1x42x64xbf16, #tpu.memory_space<vmem>>, vector<1x24x64xbf16>
    %31 = vector.shape_cast %30 : vector<1x24x64xbf16> to vector<24x64xbf16>
    %c4 = arith.constant 4 : index
    %c0_38 = arith.constant 0 : index
    %c0_39 = arith.constant 0 : index
    %32 = vector.load %arg2[%c4, %c0_38, %c0_39] : memref<9x64x64xbf16, #tpu.memory_space<vmem>>, vector<1x64x64xbf16>
    %33 = vector.shape_cast %32 : vector<1x64x64xbf16> to vector<64x64xbf16>
    %cst_40 = arith.constant dense<0.000000e+00> : vector<24x64xf32>
    %34 = tpu.matmul %31, %33, %cst_40 {dimension_numbers = #tpu.dot_dimension_numbers<[1], [0], [0], [1], [0, 0, 1, 1], [], []>} : vector<24x64xbf16>, vector<64x64xbf16>, vector<24x64xf32> -> vector<24x64xf32>
    %c0_41 = arith.constant 0 : index
    %c0_42 = arith.constant 0 : index
    %35 = vector.load %arg6[%c0_41, %c0_42] : memref<24x64xf32, #tpu.memory_space<vmem>>, vector<24x64xf32>
    %36 = arith.addf %35, %34 : vector<24x64xf32>
    %c0_43 = arith.constant 0 : index
    %c0_44 = arith.constant 0 : index
    %37 = vector.load %arg6[%c0_43, %c0_44] : memref<24x64xf32, #tpu.memory_space<vmem>>, vector<24x64xf32>
    tpu.vector_store %arg6[%c0_43, %c0_44], %36 {strides = array<i32>} : memref<24x64xf32, #tpu.memory_space<vmem>>, vector<24x64xf32>,
    %c0_45 = arith.constant 0 : index
    %c8 = arith.constant 8 : index
    %c0_46 = arith.constant 0 : index
    %38 = vector.load %arg1[%c0_45, %c8, %c0_46] : memref<1x42x64xbf16, #tpu.memory_space<vmem>>, vector<1x24x64xbf16>
    %39 = vector.shape_cast %38 : vector<1x24x64xbf16> to vector<24x64xbf16>
    %c5 = arith.constant 5 : index
    %c0_47 = arith.constant 0 : index
    %c0_48 = arith.constant 0 : index
    %40 = vector.load %arg2[%c5, %c0_47, %c0_48] : memref<9x64x64xbf16, #tpu.memory_space<vmem>>, vector<1x64x64xbf16>
    %41 = vector.shape_cast %40 : vector<1x64x64xbf16> to vector<64x64xbf16>
    %cst_49 = arith.constant dense<0.000000e+00> : vector<24x64xf32>
    %42 = tpu.matmul %39, %41, %cst_49 {dimension_numbers = #tpu.dot_dimension_numbers<[1], [0], [0], [1], [0, 0, 1, 1], [], []>} : vector<24x64xbf16>, vector<64x64xbf16>, vector<24x64xf32> -> vector<24x64xf32>
    %c0_50 = arith.constant 0 : index
    %c0_51 = arith.constant 0 : index
    %43 = vector.load %arg6[%c0_50, %c0_51] : memref<24x64xf32, #tpu.memory_space<vmem>>, vector<24x64xf32>
    %44 = arith.addf %43, %42 : vector<24x64xf32>
    %c0_52 = arith.constant 0 : index
    %c0_53 = arith.constant 0 : index
    %45 = vector.load %arg6[%c0_52, %c0_53] : memref<24x64xf32, #tpu.memory_space<vmem>>, vector<24x64xf32>
    tpu.vector_store %arg6[%c0_52, %c0_53], %44 {strides = array<i32>} : memref<24x64xf32, #tpu.memory_space<vmem>>, vector<24x64xf32>,
    %c0_54 = arith.constant 0 : index
    %c12 = arith.constant 12 : index
    %c0_55 = arith.constant 0 : index
    %46 = vector.load %arg1[%c0_54, %c12, %c0_55] : memref<1x42x64xbf16, #tpu.memory_space<vmem>>, vector<1x24x64xbf16>
    %47 = vector.shape_cast %46 : vector<1x24x64xbf16> to vector<24x64xbf16>
    %c6_56 = arith.constant 6 : index
    %c0_57 = arith.constant 0 : index
    %c0_58 = arith.constant 0 : index
    %48 = vector.load %arg2[%c6_56, %c0_57, %c0_58] : memref<9x64x64xbf16, #tpu.memory_space<vmem>>, vector<1x64x64xbf16>
    %49 = vector.shape_cast %48 : vector<1x64x64xbf16> to vector<64x64xbf16>
    %cst_59 = arith.constant dense<0.000000e+00> : vector<24x64xf32>
    %50 = tpu.matmul %47, %49, %cst_59 {dimension_numbers = #tpu.dot_dimension_numbers<[1], [0], [0], [1], [0, 0, 1, 1], [], []>} : vector<24x64xbf16>, vector<64x64xbf16>, vector<24x64xf32> -> vector<24x64xf32>
    %c0_60 = arith.constant 0 : index
    %c0_61 = arith.constant 0 : index
    %51 = vector.load %arg6[%c0_60, %c0_61] : memref<24x64xf32, #tpu.memory_space<vmem>>, vector<24x64xf32>
    %52 = arith.addf %51, %50 : vector<24x64xf32>
    %c0_62 = arith.constant 0 : index
    %c0_63 = arith.constant 0 : index
    %53 = vector.load %arg6[%c0_62, %c0_63] : memref<24x64xf32, #tpu.memory_space<vmem>>, vector<24x64xf32>
    tpu.vector_store %arg6[%c0_62, %c0_63], %52 {strides = array<i32>} : memref<24x64xf32, #tpu.memory_space<vmem>>, vector<24x64xf32>,
    %c0_64 = arith.constant 0 : index
    %c13 = arith.constant 13 : index
    %c0_65 = arith.constant 0 : index
    %54 = vector.load %arg1[%c0_64, %c13, %c0_65] : memref<1x42x64xbf16, #tpu.memory_space<vmem>>, vector<1x24x64xbf16>
    %55 = vector.shape_cast %54 : vector<1x24x64xbf16> to vector<24x64xbf16>
    %c7_66 = arith.constant 7 : index
    %c0_67 = arith.constant 0 : index
    %c0_68 = arith.constant 0 : index
    %56 = vector.load %arg2[%c7_66, %c0_67, %c0_68] : memref<9x64x64xbf16, #tpu.memory_space<vmem>>, vector<1x64x64xbf16>
    %57 = vector.shape_cast %56 : vector<1x64x64xbf16> to vector<64x64xbf16>
    %cst_69 = arith.constant dense<0.000000e+00> : vector<24x64xf32>
    %58 = tpu.matmul %55, %57, %cst_69 {dimension_numbers = #tpu.dot_dimension_numbers<[1], [0], [0], [1], [0, 0, 1, 1], [], []>} : vector<24x64xbf16>, vector<64x64xbf16>, vector<24x64xf32> -> vector<24x64xf32>
    %c0_70 = arith.constant 0 : index
    %c0_71 = arith.constant 0 : index
    %59 = vector.load %arg6[%c0_70, %c0_71] : memref<24x64xf32, #tpu.memory_space<vmem>>, vector<24x64xf32>
    %60 = arith.addf %59, %58 : vector<24x64xf32>
    %c0_72 = arith.constant 0 : index
    %c0_73 = arith.constant 0 : index
    %61 = vector.load %arg6[%c0_72, %c0_73] : memref<24x64xf32, #tpu.memory_space<vmem>>, vector<24x64xf32>
    tpu.vector_store %arg6[%c0_72, %c0_73], %60 {strides = array<i32>} : memref<24x64xf32, #tpu.memory_space<vmem>>, vector<24x64xf32>,
    %c0_74 = arith.constant 0 : index
    %c14 = arith.constant 14 : index
    %c0_75 = arith.constant 0 : index
    %62 = vector.load %arg1[%c0_74, %c14, %c0_75] : memref<1x42x64xbf16, #tpu.memory_space<vmem>>, vector<1x24x64xbf16>
    %63 = vector.shape_cast %62 : vector<1x24x64xbf16> to vector<24x64xbf16>
    %c8_76 = arith.constant 8 : index
    %c0_77 = arith.constant 0 : index
    %c0_78 = arith.constant 0 : index
    %64 = vector.load %arg2[%c8_76, %c0_77, %c0_78] : memref<9x64x64xbf16, #tpu.memory_space<vmem>>, vector<1x64x64xbf16>
    %65 = vector.shape_cast %64 : vector<1x64x64xbf16> to vector<64x64xbf16>
    %cst_79 = arith.constant dense<0.000000e+00> : vector<24x64xf32>
    %66 = tpu.matmul %63, %65, %cst_79 {dimension_numbers = #tpu.dot_dimension_numbers<[1], [0], [0], [1], [0, 0, 1, 1], [], []>} : vector<24x64xbf16>, vector<64x64xbf16>, vector<24x64xf32> -> vector<24x64xf32>
    %c0_80 = arith.constant 0 : index
    %c0_81 = arith.constant 0 : index
    %67 = vector.load %arg6[%c0_80, %c0_81] : memref<24x64xf32, #tpu.memory_space<vmem>>, vector<24x64xf32>
    %68 = arith.addf %67, %66 : vector<24x64xf32>
    %c0_82 = arith.constant 0 : index
    %c0_83 = arith.constant 0 : index
    %69 = vector.load %arg6[%c0_82, %c0_83] : memref<24x64xf32, #tpu.memory_space<vmem>>, vector<24x64xf32>
    tpu.vector_store %arg6[%c0_82, %c0_83], %68 {strides = array<i32>} : memref<24x64xf32, #tpu.memory_space<vmem>>, vector<24x64xf32>,
    %c0_84 = arith.constant 0 : index
    %c0_85 = arith.constant 0 : index
    %70 = vector.load %arg6[%c0_84, %c0_85] : memref<24x64xf32, #tpu.memory_space<vmem>>, vector<24x64xf32>
    %c0_86 = arith.constant 0 : index
    %c0_87 = arith.constant 0 : index
    %71 = vector.load %arg3[%c0_86, %c0_87] : memref<1x64xf32, #tpu.memory_space<vmem>>, vector<1x64xf32>
    %72 = vector.broadcast %71 : vector<1x64xf32> to vector<24x64xf32>
    %73 = arith.mulf %70, %72 : vector<24x64xf32>
    %c0_88 = arith.constant 0 : index
    %c0_89 = arith.constant 0 : index
    %74 = vector.load %arg4[%c0_88, %c0_89] : memref<1x64xf32, #tpu.memory_space<vmem>>, vector<1x64xf32>
    %75 = vector.broadcast %74 : vector<1x64xf32> to vector<24x64xf32>
    %76 = arith.addf %73, %75 : vector<24x64xf32>
    %cst_90 = arith.constant 0.000000e+00 : f32
    %77 = vector.broadcast %cst_90 : f32 to vector<24x64xf32>
    %78 = arith.maximumf %76, %77 : vector<24x64xf32>
    %c0_91 = arith.constant 0 : index
    %c0_92 = arith.constant 0 : index
    %79 = vector.load %arg6[%c0_91, %c0_92] : memref<24x64xf32, #tpu.memory_space<vmem>>, vector<24x64xf32>
    tpu.vector_store %arg6[%c0_91, %c0_92], %78 {strides = array<i32>} : memref<24x64xf32, #tpu.memory_space<vmem>>, vector<24x64xf32>,
    %c0_93 = arith.constant 0 : index
    %c0_94 = arith.constant 0 : index
    %80 = tpu.strided_load %arg6[%c0_93, %c0_94] {strides = array<i32: 2, 1>} : memref<24x64xf32, #tpu.memory_space<vmem>>, vector<2x64xf32>
    %c1_95 = arith.constant 1 : index
    %c0_96 = arith.constant 0 : index
    %81 = tpu.strided_load %arg6[%c1_95, %c0_96] {strides = array<i32: 2, 1>} : memref<24x64xf32, #tpu.memory_space<vmem>>, vector<2x64xf32>
    %c6_97 = arith.constant 6 : index
    %c0_98 = arith.constant 0 : index
    %82 = tpu.strided_load %arg6[%c6_97, %c0_98] {strides = array<i32: 2, 1>} : memref<24x64xf32, #tpu.memory_space<vmem>>, vector<2x64xf32>
    %c7_99 = arith.constant 7 : index
    %c0_100 = arith.constant 0 : index
    %83 = tpu.strided_load %arg6[%c7_99, %c0_100] {strides = array<i32: 2, 1>} : memref<24x64xf32, #tpu.memory_space<vmem>>, vector<2x64xf32>
    %84 = arith.maximumf %80, %81 : vector<2x64xf32>
    %85 = arith.maximumf %82, %83 : vector<2x64xf32>
    %86 = arith.maximumf %84, %85 : vector<2x64xf32>
    %87 = arith.truncf %86 : vector<2x64xf32> to vector<2x64xbf16>
    %c0_101 = arith.constant 0 : index
    %c0_102 = arith.constant 0 : index
    %c0_103 = arith.constant 0 : index
    %c0_104 = arith.constant 0 : index
    %88 = vector.load %arg5[%c0_101, %c0_102, %c0_103, %c0_104] : memref<1x2x2x64xbf16, #tpu.memory_space<vmem>>, vector<1x1x2x64xbf16>
    %89 = vector.shape_cast %88 : vector<1x1x2x64xbf16> to vector<2x64xbf16>
    %90 = vector.shape_cast %87 : vector<2x64xbf16> to vector<1x1x2x64xbf16>
    tpu.vector_store %arg5[%c0_101, %c0_102, %c0_103, %c0_104], %90 {strides = array<i32>} : memref<1x2x2x64xbf16, #tpu.memory_space<vmem>>, vector<1x1x2x64xbf16>,
    %c12_105 = arith.constant 12 : index
    %c0_106 = arith.constant 0 : index
    %91 = tpu.strided_load %arg6[%c12_105, %c0_106] {strides = array<i32: 2, 1>} : memref<24x64xf32, #tpu.memory_space<vmem>>, vector<2x64xf32>
    %c13_107 = arith.constant 13 : index
    %c0_108 = arith.constant 0 : index
    %92 = tpu.strided_load %arg6[%c13_107, %c0_108] {strides = array<i32: 2, 1>} : memref<24x64xf32, #tpu.memory_space<vmem>>, vector<2x64xf32>
    %c18 = arith.constant 18 : index
    %c0_109 = arith.constant 0 : index
    %93 = tpu.strided_load %arg6[%c18, %c0_109] {strides = array<i32: 2, 1>} : memref<24x64xf32, #tpu.memory_space<vmem>>, vector<2x64xf32>
    %c19 = arith.constant 19 : index
    %c0_110 = arith.constant 0 : index
    %94 = tpu.strided_load %arg6[%c19, %c0_110] {strides = array<i32: 2, 1>} : memref<24x64xf32, #tpu.memory_space<vmem>>, vector<2x64xf32>
    %95 = arith.maximumf %91, %92 : vector<2x64xf32>
    %96 = arith.maximumf %93, %94 : vector<2x64xf32>
    %97 = arith.maximumf %95, %96 : vector<2x64xf32>
    %98 = arith.truncf %97 : vector<2x64xf32> to vector<2x64xbf16>
    %c0_111 = arith.constant 0 : index
    %c1_112 = arith.constant 1 : index
    %c0_113 = arith.constant 0 : index
    %c0_114 = arith.constant 0 : index
    %99 = vector.load %arg5[%c0_111, %c1_112, %c0_113, %c0_114] : memref<1x2x2x64xbf16, #tpu.memory_space<vmem>>, vector<1x1x2x64xbf16>
    %100 = vector.shape_cast %99 : vector<1x1x2x64xbf16> to vector<2x64xbf16>
    %101 = vector.shape_cast %98 : vector<2x64xbf16> to vector<1x1x2x64xbf16>
    tpu.vector_store %arg5[%c0_111, %c1_112, %c0_113, %c0_114], %101 {strides = array<i32>} : memref<1x2x2x64xbf16, #tpu.memory_space<vmem>>, vector<1x1x2x64xbf16>,
    return
  }
  func.func @transform_0(%arg0: i32) -> (i32, i32, i32) {
    %c0_i32 = arith.constant 0 : i32
    %c0_i32_0 = arith.constant 0 : i32
    %c0_i32_1 = arith.constant 0 : i32
    return %arg0, %c0_i32, %c0_i32_0 : i32, i32, i32
  }
  func.func @transform_1(%arg0: i32) -> (i32, i32, i32) {
    %c0_i32 = arith.constant 0 : i32
    %c0_i32_0 = arith.constant 0 : i32
    %c0_i32_1 = arith.constant 0 : i32
    %c0_i32_2 = arith.constant 0 : i32
    return %c0_i32, %c0_i32_0, %c0_i32_1 : i32, i32, i32
  }
  func.func @transform_2(%arg0: i32) -> (i32, i32) {
    %c0_i32 = arith.constant 0 : i32
    %c0_i32_0 = arith.constant 0 : i32
    %c0_i32_1 = arith.constant 0 : i32
    return %c0_i32, %c0_i32_0 : i32, i32
  }
  func.func @transform_3(%arg0: i32) -> (i32, i32) {
    %c0_i32 = arith.constant 0 : i32
    %c0_i32_0 = arith.constant 0 : i32
    %c0_i32_1 = arith.constant 0 : i32
    return %c0_i32, %c0_i32_0 : i32, i32
  }
  func.func @transform_4(%arg0: i32) -> (i32, i32, i32, i32) {
    %c0_i32 = arith.constant 0 : i32
    %c0_i32_0 = arith.constant 0 : i32
    %c0_i32_1 = arith.constant 0 : i32
    %c0_i32_2 = arith.constant 0 : i32
    return %arg0, %c0_i32, %c0_i32_0, %c0_i32_1 : i32, i32, i32, i32
  }
}

module attributes {stable_mosaic.version = 11 : i64} {
  func.func @kernel_fc(%arg0: i32, %arg1: memref<1x20x64xbf16, #tpu.memory_space<vmem>>, %arg2: memref<9x64x64xbf16, #tpu.memory_space<vmem>>, %arg3: memref<1x64xf32, #tpu.memory_space<vmem>>, %arg4: memref<1x64xf32, #tpu.memory_space<vmem>>, %arg5: memref<1x1x64x128xbf16, #tpu.memory_space<vmem>>, %arg6: memref<1x128xf32, #tpu.memory_space<vmem>>, %arg7: memref<1x1x128xf32, #tpu.memory_space<vmem>>, %arg8: memref<8x64xf32, #tpu.memory_space<vmem>>) attributes {dimension_semantics = [#tpu.dimension_semantics<parallel>], iteration_bounds = array<i64: 2>, scalar_prefetch = 0 : i64, scratch_operands = 1 : i64, tpu.core_type = #tpu.core_type<tc>, window_params = [{transform_indices = @transform_0, window_bounds = array<i64: 1, 20, 64>}, {pipeline_mode = #tpu.pipeline_mode<synchronous>, transform_indices = @transform_1, window_bounds = array<i64: 9, 64, 64>}, {pipeline_mode = #tpu.pipeline_mode<synchronous>, transform_indices = @transform_2, window_bounds = array<i64: 1, 64>}, {pipeline_mode = #tpu.pipeline_mode<synchronous>, transform_indices = @transform_3, window_bounds = array<i64: 1, 64>}, {pipeline_mode = #tpu.pipeline_mode<synchronous>, transform_indices = @transform_4, window_bounds = array<i64: 1, 1, 64, 128>}, {pipeline_mode = #tpu.pipeline_mode<synchronous>, transform_indices = @transform_5, window_bounds = array<i64: 1, 128>}, {transform_indices = @transform_6, window_bounds = array<i64: 1, 1, 128>}]} {
    %c0 = arith.constant 0 : index
    %c0_0 = arith.constant 0 : index
    %c0_1 = arith.constant 0 : index
    %0 = vector.load %arg1[%c0, %c0_0, %c0_1] : memref<1x20x64xbf16, #tpu.memory_space<vmem>>, vector<1x8x64xbf16>
    %1 = vector.shape_cast %0 : vector<1x8x64xbf16> to vector<8x64xbf16>
    %c0_2 = arith.constant 0 : index
    %c0_3 = arith.constant 0 : index
    %c0_4 = arith.constant 0 : index
    %2 = vector.load %arg2[%c0_2, %c0_3, %c0_4] : memref<9x64x64xbf16, #tpu.memory_space<vmem>>, vector<1x64x64xbf16>
    %3 = vector.shape_cast %2 : vector<1x64x64xbf16> to vector<64x64xbf16>
    %cst = arith.constant dense<0.000000e+00> : vector<8x64xf32>
    %4 = tpu.matmul %1, %3, %cst {dimension_numbers = #tpu.dot_dimension_numbers<[1], [0], [0], [1], [0, 0, 1, 1], [], []>} : vector<8x64xbf16>, vector<64x64xbf16>, vector<8x64xf32> -> vector<8x64xf32>
    %c0_5 = arith.constant 0 : index
    %c0_6 = arith.constant 0 : index
    %5 = vector.load %arg8[%c0_5, %c0_6] : memref<8x64xf32, #tpu.memory_space<vmem>>, vector<8x64xf32>
    tpu.vector_store %arg8[%c0_5, %c0_6], %4 {strides = array<i32>} : memref<8x64xf32, #tpu.memory_space<vmem>>, vector<8x64xf32>,
    %c0_7 = arith.constant 0 : index
    %c1 = arith.constant 1 : index
    %c0_8 = arith.constant 0 : index
    %6 = vector.load %arg1[%c0_7, %c1, %c0_8] : memref<1x20x64xbf16, #tpu.memory_space<vmem>>, vector<1x8x64xbf16>
    %7 = vector.shape_cast %6 : vector<1x8x64xbf16> to vector<8x64xbf16>
    %c1_9 = arith.constant 1 : index
    %c0_10 = arith.constant 0 : index
    %c0_11 = arith.constant 0 : index
    %8 = vector.load %arg2[%c1_9, %c0_10, %c0_11] : memref<9x64x64xbf16, #tpu.memory_space<vmem>>, vector<1x64x64xbf16>
    %9 = vector.shape_cast %8 : vector<1x64x64xbf16> to vector<64x64xbf16>
    %cst_12 = arith.constant dense<0.000000e+00> : vector<8x64xf32>
    %10 = tpu.matmul %7, %9, %cst_12 {dimension_numbers = #tpu.dot_dimension_numbers<[1], [0], [0], [1], [0, 0, 1, 1], [], []>} : vector<8x64xbf16>, vector<64x64xbf16>, vector<8x64xf32> -> vector<8x64xf32>
    %c0_13 = arith.constant 0 : index
    %c0_14 = arith.constant 0 : index
    %11 = vector.load %arg8[%c0_13, %c0_14] : memref<8x64xf32, #tpu.memory_space<vmem>>, vector<8x64xf32>
    %12 = arith.addf %11, %10 : vector<8x64xf32>
    %c0_15 = arith.constant 0 : index
    %c0_16 = arith.constant 0 : index
    %13 = vector.load %arg8[%c0_15, %c0_16] : memref<8x64xf32, #tpu.memory_space<vmem>>, vector<8x64xf32>
    tpu.vector_store %arg8[%c0_15, %c0_16], %12 {strides = array<i32>} : memref<8x64xf32, #tpu.memory_space<vmem>>, vector<8x64xf32>,
    %c0_17 = arith.constant 0 : index
    %c2 = arith.constant 2 : index
    %c0_18 = arith.constant 0 : index
    %14 = vector.load %arg1[%c0_17, %c2, %c0_18] : memref<1x20x64xbf16, #tpu.memory_space<vmem>>, vector<1x8x64xbf16>
    %15 = vector.shape_cast %14 : vector<1x8x64xbf16> to vector<8x64xbf16>
    %c2_19 = arith.constant 2 : index
    %c0_20 = arith.constant 0 : index
    %c0_21 = arith.constant 0 : index
    %16 = vector.load %arg2[%c2_19, %c0_20, %c0_21] : memref<9x64x64xbf16, #tpu.memory_space<vmem>>, vector<1x64x64xbf16>
    %17 = vector.shape_cast %16 : vector<1x64x64xbf16> to vector<64x64xbf16>
    %cst_22 = arith.constant dense<0.000000e+00> : vector<8x64xf32>
    %18 = tpu.matmul %15, %17, %cst_22 {dimension_numbers = #tpu.dot_dimension_numbers<[1], [0], [0], [1], [0, 0, 1, 1], [], []>} : vector<8x64xbf16>, vector<64x64xbf16>, vector<8x64xf32> -> vector<8x64xf32>
    %c0_23 = arith.constant 0 : index
    %c0_24 = arith.constant 0 : index
    %19 = vector.load %arg8[%c0_23, %c0_24] : memref<8x64xf32, #tpu.memory_space<vmem>>, vector<8x64xf32>
    %20 = arith.addf %19, %18 : vector<8x64xf32>
    %c0_25 = arith.constant 0 : index
    %c0_26 = arith.constant 0 : index
    %21 = vector.load %arg8[%c0_25, %c0_26] : memref<8x64xf32, #tpu.memory_space<vmem>>, vector<8x64xf32>
    tpu.vector_store %arg8[%c0_25, %c0_26], %20 {strides = array<i32>} : memref<8x64xf32, #tpu.memory_space<vmem>>, vector<8x64xf32>,
    %c0_27 = arith.constant 0 : index
    %c4 = arith.constant 4 : index
    %c0_28 = arith.constant 0 : index
    %22 = vector.load %arg1[%c0_27, %c4, %c0_28] : memref<1x20x64xbf16, #tpu.memory_space<vmem>>, vector<1x8x64xbf16>
    %23 = vector.shape_cast %22 : vector<1x8x64xbf16> to vector<8x64xbf16>
    %c3 = arith.constant 3 : index
    %c0_29 = arith.constant 0 : index
    %c0_30 = arith.constant 0 : index
    %24 = vector.load %arg2[%c3, %c0_29, %c0_30] : memref<9x64x64xbf16, #tpu.memory_space<vmem>>, vector<1x64x64xbf16>
    %25 = vector.shape_cast %24 : vector<1x64x64xbf16> to vector<64x64xbf16>
    %cst_31 = arith.constant dense<0.000000e+00> : vector<8x64xf32>
    %26 = tpu.matmul %23, %25, %cst_31 {dimension_numbers = #tpu.dot_dimension_numbers<[1], [0], [0], [1], [0, 0, 1, 1], [], []>} : vector<8x64xbf16>, vector<64x64xbf16>, vector<8x64xf32> -> vector<8x64xf32>
    %c0_32 = arith.constant 0 : index
    %c0_33 = arith.constant 0 : index
    %27 = vector.load %arg8[%c0_32, %c0_33] : memref<8x64xf32, #tpu.memory_space<vmem>>, vector<8x64xf32>
    %28 = arith.addf %27, %26 : vector<8x64xf32>
    %c0_34 = arith.constant 0 : index
    %c0_35 = arith.constant 0 : index
    %29 = vector.load %arg8[%c0_34, %c0_35] : memref<8x64xf32, #tpu.memory_space<vmem>>, vector<8x64xf32>
    tpu.vector_store %arg8[%c0_34, %c0_35], %28 {strides = array<i32>} : memref<8x64xf32, #tpu.memory_space<vmem>>, vector<8x64xf32>,
    %c0_36 = arith.constant 0 : index
    %c5 = arith.constant 5 : index
    %c0_37 = arith.constant 0 : index
    %30 = vector.load %arg1[%c0_36, %c5, %c0_37] : memref<1x20x64xbf16, #tpu.memory_space<vmem>>, vector<1x8x64xbf16>
    %31 = vector.shape_cast %30 : vector<1x8x64xbf16> to vector<8x64xbf16>
    %c4_38 = arith.constant 4 : index
    %c0_39 = arith.constant 0 : index
    %c0_40 = arith.constant 0 : index
    %32 = vector.load %arg2[%c4_38, %c0_39, %c0_40] : memref<9x64x64xbf16, #tpu.memory_space<vmem>>, vector<1x64x64xbf16>
    %33 = vector.shape_cast %32 : vector<1x64x64xbf16> to vector<64x64xbf16>
    %cst_41 = arith.constant dense<0.000000e+00> : vector<8x64xf32>
    %34 = tpu.matmul %31, %33, %cst_41 {dimension_numbers = #tpu.dot_dimension_numbers<[1], [0], [0], [1], [0, 0, 1, 1], [], []>} : vector<8x64xbf16>, vector<64x64xbf16>, vector<8x64xf32> -> vector<8x64xf32>
    %c0_42 = arith.constant 0 : index
    %c0_43 = arith.constant 0 : index
    %35 = vector.load %arg8[%c0_42, %c0_43] : memref<8x64xf32, #tpu.memory_space<vmem>>, vector<8x64xf32>
    %36 = arith.addf %35, %34 : vector<8x64xf32>
    %c0_44 = arith.constant 0 : index
    %c0_45 = arith.constant 0 : index
    %37 = vector.load %arg8[%c0_44, %c0_45] : memref<8x64xf32, #tpu.memory_space<vmem>>, vector<8x64xf32>
    tpu.vector_store %arg8[%c0_44, %c0_45], %36 {strides = array<i32>} : memref<8x64xf32, #tpu.memory_space<vmem>>, vector<8x64xf32>,
    %c0_46 = arith.constant 0 : index
    %c6 = arith.constant 6 : index
    %c0_47 = arith.constant 0 : index
    %38 = vector.load %arg1[%c0_46, %c6, %c0_47] : memref<1x20x64xbf16, #tpu.memory_space<vmem>>, vector<1x8x64xbf16>
    %39 = vector.shape_cast %38 : vector<1x8x64xbf16> to vector<8x64xbf16>
    %c5_48 = arith.constant 5 : index
    %c0_49 = arith.constant 0 : index
    %c0_50 = arith.constant 0 : index
    %40 = vector.load %arg2[%c5_48, %c0_49, %c0_50] : memref<9x64x64xbf16, #tpu.memory_space<vmem>>, vector<1x64x64xbf16>
    %41 = vector.shape_cast %40 : vector<1x64x64xbf16> to vector<64x64xbf16>
    %cst_51 = arith.constant dense<0.000000e+00> : vector<8x64xf32>
    %42 = tpu.matmul %39, %41, %cst_51 {dimension_numbers = #tpu.dot_dimension_numbers<[1], [0], [0], [1], [0, 0, 1, 1], [], []>} : vector<8x64xbf16>, vector<64x64xbf16>, vector<8x64xf32> -> vector<8x64xf32>
    %c0_52 = arith.constant 0 : index
    %c0_53 = arith.constant 0 : index
    %43 = vector.load %arg8[%c0_52, %c0_53] : memref<8x64xf32, #tpu.memory_space<vmem>>, vector<8x64xf32>
    %44 = arith.addf %43, %42 : vector<8x64xf32>
    %c0_54 = arith.constant 0 : index
    %c0_55 = arith.constant 0 : index
    %45 = vector.load %arg8[%c0_54, %c0_55] : memref<8x64xf32, #tpu.memory_space<vmem>>, vector<8x64xf32>
    tpu.vector_store %arg8[%c0_54, %c0_55], %44 {strides = array<i32>} : memref<8x64xf32, #tpu.memory_space<vmem>>, vector<8x64xf32>,
    %c0_56 = arith.constant 0 : index
    %c8 = arith.constant 8 : index
    %c0_57 = arith.constant 0 : index
    %46 = vector.load %arg1[%c0_56, %c8, %c0_57] : memref<1x20x64xbf16, #tpu.memory_space<vmem>>, vector<1x8x64xbf16>
    %47 = vector.shape_cast %46 : vector<1x8x64xbf16> to vector<8x64xbf16>
    %c6_58 = arith.constant 6 : index
    %c0_59 = arith.constant 0 : index
    %c0_60 = arith.constant 0 : index
    %48 = vector.load %arg2[%c6_58, %c0_59, %c0_60] : memref<9x64x64xbf16, #tpu.memory_space<vmem>>, vector<1x64x64xbf16>
    %49 = vector.shape_cast %48 : vector<1x64x64xbf16> to vector<64x64xbf16>
    %cst_61 = arith.constant dense<0.000000e+00> : vector<8x64xf32>
    %50 = tpu.matmul %47, %49, %cst_61 {dimension_numbers = #tpu.dot_dimension_numbers<[1], [0], [0], [1], [0, 0, 1, 1], [], []>} : vector<8x64xbf16>, vector<64x64xbf16>, vector<8x64xf32> -> vector<8x64xf32>
    %c0_62 = arith.constant 0 : index
    %c0_63 = arith.constant 0 : index
    %51 = vector.load %arg8[%c0_62, %c0_63] : memref<8x64xf32, #tpu.memory_space<vmem>>, vector<8x64xf32>
    %52 = arith.addf %51, %50 : vector<8x64xf32>
    %c0_64 = arith.constant 0 : index
    %c0_65 = arith.constant 0 : index
    %53 = vector.load %arg8[%c0_64, %c0_65] : memref<8x64xf32, #tpu.memory_space<vmem>>, vector<8x64xf32>
    tpu.vector_store %arg8[%c0_64, %c0_65], %52 {strides = array<i32>} : memref<8x64xf32, #tpu.memory_space<vmem>>, vector<8x64xf32>,
    %c0_66 = arith.constant 0 : index
    %c9 = arith.constant 9 : index
    %c0_67 = arith.constant 0 : index
    %54 = vector.load %arg1[%c0_66, %c9, %c0_67] : memref<1x20x64xbf16, #tpu.memory_space<vmem>>, vector<1x8x64xbf16>
    %55 = vector.shape_cast %54 : vector<1x8x64xbf16> to vector<8x64xbf16>
    %c7 = arith.constant 7 : index
    %c0_68 = arith.constant 0 : index
    %c0_69 = arith.constant 0 : index
    %56 = vector.load %arg2[%c7, %c0_68, %c0_69] : memref<9x64x64xbf16, #tpu.memory_space<vmem>>, vector<1x64x64xbf16>
    %57 = vector.shape_cast %56 : vector<1x64x64xbf16> to vector<64x64xbf16>
    %cst_70 = arith.constant dense<0.000000e+00> : vector<8x64xf32>
    %58 = tpu.matmul %55, %57, %cst_70 {dimension_numbers = #tpu.dot_dimension_numbers<[1], [0], [0], [1], [0, 0, 1, 1], [], []>} : vector<8x64xbf16>, vector<64x64xbf16>, vector<8x64xf32> -> vector<8x64xf32>
    %c0_71 = arith.constant 0 : index
    %c0_72 = arith.constant 0 : index
    %59 = vector.load %arg8[%c0_71, %c0_72] : memref<8x64xf32, #tpu.memory_space<vmem>>, vector<8x64xf32>
    %60 = arith.addf %59, %58 : vector<8x64xf32>
    %c0_73 = arith.constant 0 : index
    %c0_74 = arith.constant 0 : index
    %61 = vector.load %arg8[%c0_73, %c0_74] : memref<8x64xf32, #tpu.memory_space<vmem>>, vector<8x64xf32>
    tpu.vector_store %arg8[%c0_73, %c0_74], %60 {strides = array<i32>} : memref<8x64xf32, #tpu.memory_space<vmem>>, vector<8x64xf32>,
    %c0_75 = arith.constant 0 : index
    %c10 = arith.constant 10 : index
    %c0_76 = arith.constant 0 : index
    %62 = vector.load %arg1[%c0_75, %c10, %c0_76] : memref<1x20x64xbf16, #tpu.memory_space<vmem>>, vector<1x8x64xbf16>
    %63 = vector.shape_cast %62 : vector<1x8x64xbf16> to vector<8x64xbf16>
    %c8_77 = arith.constant 8 : index
    %c0_78 = arith.constant 0 : index
    %c0_79 = arith.constant 0 : index
    %64 = vector.load %arg2[%c8_77, %c0_78, %c0_79] : memref<9x64x64xbf16, #tpu.memory_space<vmem>>, vector<1x64x64xbf16>
    %65 = vector.shape_cast %64 : vector<1x64x64xbf16> to vector<64x64xbf16>
    %cst_80 = arith.constant dense<0.000000e+00> : vector<8x64xf32>
    %66 = tpu.matmul %63, %65, %cst_80 {dimension_numbers = #tpu.dot_dimension_numbers<[1], [0], [0], [1], [0, 0, 1, 1], [], []>} : vector<8x64xbf16>, vector<64x64xbf16>, vector<8x64xf32> -> vector<8x64xf32>
    %c0_81 = arith.constant 0 : index
    %c0_82 = arith.constant 0 : index
    %67 = vector.load %arg8[%c0_81, %c0_82] : memref<8x64xf32, #tpu.memory_space<vmem>>, vector<8x64xf32>
    %68 = arith.addf %67, %66 : vector<8x64xf32>
    %c0_83 = arith.constant 0 : index
    %c0_84 = arith.constant 0 : index
    %69 = vector.load %arg8[%c0_83, %c0_84] : memref<8x64xf32, #tpu.memory_space<vmem>>, vector<8x64xf32>
    tpu.vector_store %arg8[%c0_83, %c0_84], %68 {strides = array<i32>} : memref<8x64xf32, #tpu.memory_space<vmem>>, vector<8x64xf32>,
    %c0_85 = arith.constant 0 : index
    %c0_86 = arith.constant 0 : index
    %70 = vector.load %arg8[%c0_85, %c0_86] : memref<8x64xf32, #tpu.memory_space<vmem>>, vector<8x64xf32>
    %c0_87 = arith.constant 0 : index
    %c0_88 = arith.constant 0 : index
    %71 = vector.load %arg3[%c0_87, %c0_88] : memref<1x64xf32, #tpu.memory_space<vmem>>, vector<1x64xf32>
    %72 = vector.broadcast %71 : vector<1x64xf32> to vector<8x64xf32>
    %73 = arith.mulf %70, %72 : vector<8x64xf32>
    %c0_89 = arith.constant 0 : index
    %c0_90 = arith.constant 0 : index
    %74 = vector.load %arg4[%c0_89, %c0_90] : memref<1x64xf32, #tpu.memory_space<vmem>>, vector<1x64xf32>
    %75 = vector.broadcast %74 : vector<1x64xf32> to vector<8x64xf32>
    %76 = arith.addf %73, %75 : vector<8x64xf32>
    %cst_91 = arith.constant 0.000000e+00 : f32
    %77 = vector.broadcast %cst_91 : f32 to vector<8x64xf32>
    %78 = arith.maximumf %76, %77 : vector<8x64xf32>
    %c0_92 = arith.constant 0 : index
    %c0_93 = arith.constant 0 : index
    %79 = vector.load %arg8[%c0_92, %c0_93] : memref<8x64xf32, #tpu.memory_space<vmem>>, vector<8x64xf32>
    tpu.vector_store %arg8[%c0_92, %c0_93], %78 {strides = array<i32>} : memref<8x64xf32, #tpu.memory_space<vmem>>, vector<8x64xf32>,
    %cst_94 = arith.constant 0.000000e+00 : f32
    %80 = vector.broadcast %cst_94 : f32 to vector<1x128xf32>
    %c0_95 = arith.constant 0 : index
    %c0_96 = arith.constant 0 : index
    %81 = tpu.strided_load %arg8[%c0_95, %c0_96] {strides = array<i32: 2, 1>} : memref<8x64xf32, #tpu.memory_space<vmem>>, vector<1x64xf32>
    %c1_97 = arith.constant 1 : index
    %c0_98 = arith.constant 0 : index
    %82 = tpu.strided_load %arg8[%c1_97, %c0_98] {strides = array<i32: 2, 1>} : memref<8x64xf32, #tpu.memory_space<vmem>>, vector<1x64xf32>
    %c4_99 = arith.constant 4 : index
    %c0_100 = arith.constant 0 : index
    %83 = tpu.strided_load %arg8[%c4_99, %c0_100] {strides = array<i32: 2, 1>} : memref<8x64xf32, #tpu.memory_space<vmem>>, vector<1x64xf32>
    %c5_101 = arith.constant 5 : index
    %c0_102 = arith.constant 0 : index
    %84 = tpu.strided_load %arg8[%c5_101, %c0_102] {strides = array<i32: 2, 1>} : memref<8x64xf32, #tpu.memory_space<vmem>>, vector<1x64xf32>
    %85 = arith.maximumf %81, %82 : vector<1x64xf32>
    %86 = arith.maximumf %83, %84 : vector<1x64xf32>
    %87 = arith.maximumf %85, %86 : vector<1x64xf32>
    %88 = arith.truncf %87 : vector<1x64xf32> to vector<1x64xbf16>
    %c0_103 = arith.constant 0 : index
    %c0_104 = arith.constant 0 : index
    %c0_105 = arith.constant 0 : index
    %c0_106 = arith.constant 0 : index
    %89 = vector.load %arg5[%c0_103, %c0_104, %c0_105, %c0_106] : memref<1x1x64x128xbf16, #tpu.memory_space<vmem>>, vector<1x1x64x128xbf16>
    %90 = vector.shape_cast %89 : vector<1x1x64x128xbf16> to vector<64x128xbf16>
    %cst_107 = arith.constant dense<0.000000e+00> : vector<1x128xf32>
    %91 = tpu.matmul %88, %90, %cst_107 {dimension_numbers = #tpu.dot_dimension_numbers<[1], [0], [0], [1], [0, 0, 1, 1], [], []>} : vector<1x64xbf16>, vector<64x128xbf16>, vector<1x128xf32> -> vector<1x128xf32>
    %92 = arith.addf %80, %91 : vector<1x128xf32>
    %c0_108 = arith.constant 0 : index
    %c0_109 = arith.constant 0 : index
    %93 = vector.load %arg6[%c0_108, %c0_109] : memref<1x128xf32, #tpu.memory_space<vmem>>, vector<1x128xf32>
    %94 = arith.addf %92, %93 : vector<1x128xf32>
    %c0_110 = arith.constant 0 : index
    %c0_111 = arith.constant 0 : index
    %c0_112 = arith.constant 0 : index
    %95 = vector.load %arg7[%c0_110, %c0_111, %c0_112] : memref<1x1x128xf32, #tpu.memory_space<vmem>>, vector<1x1x128xf32>
    %96 = vector.shape_cast %95 : vector<1x1x128xf32> to vector<1x128xf32>
    %97 = vector.shape_cast %94 : vector<1x128xf32> to vector<1x1x128xf32>
    tpu.vector_store %arg7[%c0_110, %c0_111, %c0_112], %97 {strides = array<i32>} : memref<1x1x128xf32, #tpu.memory_space<vmem>>, vector<1x1x128xf32>,
    return
  }
  func.func @transform_0(%arg0: i32) -> (i32, i32, i32) {
    %c0_i32 = arith.constant 0 : i32
    %c0_i32_0 = arith.constant 0 : i32
    %c0_i32_1 = arith.constant 0 : i32
    return %arg0, %c0_i32, %c0_i32_0 : i32, i32, i32
  }
  func.func @transform_1(%arg0: i32) -> (i32, i32, i32) {
    %c0_i32 = arith.constant 0 : i32
    %c0_i32_0 = arith.constant 0 : i32
    %c0_i32_1 = arith.constant 0 : i32
    %c0_i32_2 = arith.constant 0 : i32
    return %c0_i32, %c0_i32_0, %c0_i32_1 : i32, i32, i32
  }
  func.func @transform_2(%arg0: i32) -> (i32, i32) {
    %c0_i32 = arith.constant 0 : i32
    %c0_i32_0 = arith.constant 0 : i32
    %c0_i32_1 = arith.constant 0 : i32
    return %c0_i32, %c0_i32_0 : i32, i32
  }
  func.func @transform_3(%arg0: i32) -> (i32, i32) {
    %c0_i32 = arith.constant 0 : i32
    %c0_i32_0 = arith.constant 0 : i32
    %c0_i32_1 = arith.constant 0 : i32
    return %c0_i32, %c0_i32_0 : i32, i32
  }
  func.func @transform_4(%arg0: i32) -> (i32, i32, i32, i32) {
    %c0_i32 = arith.constant 0 : i32
    %c0_i32_0 = arith.constant 0 : i32
    %c0_i32_1 = arith.constant 0 : i32
    %c0_i32_2 = arith.constant 0 : i32
    %c0_i32_3 = arith.constant 0 : i32
    return %c0_i32, %c0_i32_0, %c0_i32_1, %c0_i32_2 : i32, i32, i32, i32
  }
  func.func @transform_5(%arg0: i32) -> (i32, i32) {
    %c0_i32 = arith.constant 0 : i32
    %c0_i32_0 = arith.constant 0 : i32
    %c0_i32_1 = arith.constant 0 : i32
    return %c0_i32, %c0_i32_0 : i32, i32
  }
  func.func @transform_6(%arg0: i32) -> (i32, i32, i32) {
    %c0_i32 = arith.constant 0 : i32
    %c0_i32_0 = arith.constant 0 : i32
    %c0_i32_1 = arith.constant 0 : i32
    return %arg0, %c0_i32, %c0_i32_0 : i32, i32, i32
  }
}

</mosaic_0001>

<llo_original>
// kernel: upper_forward.6
$region0: #{upper_forward.6}
  #allocation0 [shape = 'u32[]', space=smem, size = 0x4, offset = 0x4, fixed_abs, tag = 'smem constant byte address 0x4 - core index']
  #allocation1 [shape = 'u32[72,128]{1,0:T(1,128)}', space=vmem, size = 0x9000, scoped, tag = 'internal scratch']
  #allocation2 [shape = 'f32[24,64]{1,0:T(8,128)}', space=vmem, size = 0x3000, scoped, tag = 'scratch operand']
  %s0 = inlined_call_operand.vmem [shape: bf16[2,42,64], index: 0, kind: input, shape index: {}]
  %s1 = inlined_call_operand.vmem [shape: bf16[9,64,64], index: 1, kind: input, shape index: {}]
  %s2 = inlined_call_operand.vmem [shape: f32[1,64], index: 2, kind: input, shape index: {}]
  %s3 = inlined_call_operand.vmem [shape: f32[1,64], index: 3, kind: input, shape index: {}]
  %s4 = inlined_call_operand.vmem [shape: bf16[2,2,2,64], index: 4, kind: output, shape index: {}]
  %s5 = sld [smem:[#allocation0]]
  $region49: #{upper_forward.6} parent=0
    _
  %s7 = ssub.s32 1, %s5
  %s8 = scalar_select 0, %s7, %s5
  loop: start=0, step=1, limit=4
  $region2: #{upper_forward.6} parent=0 // loop_pre_header
    _
  $region3: #{upper_forward.6} parent=0 // loop_header
    %s10 = sphi 0, %s14
    %p11 = scmp.ge.s32.totalorder %s10, 4
    %s20 = sphi 0, %s22
    %s23 = sphi 0, %s20
    %s24 = sphi 0, %s23
    %s40 = sphi 0, %s24
    %s44 = sphi 0, %s44
    %s46 = sphi 0, %s44
    %s47 = sphi 0, %s46
    %s61 = sphi 0, %s47
    %s65 = sphi 0, %s65
    %s67 = sphi 0, %s65
    %s68 = sphi 0, %s67
    %s82 = sphi 0, %s68
    %s86 = sphi 0, %s86
    %s88 = sphi 0, %s86
    %s89 = sphi 0, %s88
    %s103 = sphi 0, %s89
    %s109 = sphi 0, %s111
    %s112 = sphi 0, %s109
    %s113 = sphi 0, %s112
    %s129 = sphi 0, %s113
  $region4: #{upper_forward.6} parent=0 // loop_header_branch
    %13 = sbr.rel (%p11) target = $region8
  $region5: #{upper_forward.6} parent=0 // loop_body
    %s15 = ssub.s32 %s10, 1
    %s16 = ssub.s32 %s10, 2
    %s17 = sadd.s32 %s10, 1
    %s18 = ssub.s32 %s10, %s17
    %p19 = scmp.eq.s32.totalorder %s18, 0
    %s21 = sadd.s32 %s20, 1
    %s22 = scalar_select %p19, %s20, %s21
    %p25 = pneg %p19
    %p26 = scmp.eq.s32.totalorder %s10, 1
    %p27 = por %p25, %p26
    %p28 = scmp.ne.s32.totalorder %s20, %s23
    %p29 = scmp.eq.s32.totalorder %s10, 0
    %p30 = por %p28, %p29
    %p31 = scmp.ne.s32.totalorder %s20, %s23
    %p32 = scmp.eq.s32.totalorder %s15, 1
    %p33 = por %p31, %p32
    %p34 = scmp.ne.s32.totalorder %s23, %s24
    %p35 = scmp.eq.s32.totalorder %s15, 0
    %p36 = por %p34, %p35
    %p37 = scmp.ne.s32.totalorder %s23, %s24
    %p38 = scmp.eq.s32.totalorder %s16, 1
    %p39 = por %p37, %p38
    %p41 = scmp.ne.s32.totalorder %s24, %s40
    %p42 = scmp.eq.s32.totalorder %s16, 0
    %p43 = por %p41, %p42
    %s45 = sadd.s32 %s44, 1
    %p48 = scmp.eq.s32.totalorder %s10, 1
    %p49 = scmp.ne.s32.totalorder %s44, %s46
    %p50 = scmp.eq.s32.totalorder %s10, 0
    %p51 = por %p49, %p50
    %p52 = scmp.ne.s32.totalorder %s44, %s46
    %p53 = scmp.eq.s32.totalorder %s15, 1
    %p54 = por %p52, %p53
    %p55 = scmp.ne.s32.totalorder %s46, %s47
    %p56 = scmp.eq.s32.totalorder %s15, 0
    %p57 = por %p55, %p56
    %p58 = scmp.ne.s32.totalorder %s46, %s47
    %p59 = scmp.eq.s32.totalorder %s16, 1
    %p60 = por %p58, %p59
    %p62 = scmp.ne.s32.totalorder %s47, %s61
    %p63 = scmp.eq.s32.totalorder %s16, 0
    %p64 = por %p62, %p63
    %s66 = sadd.s32 %s65, 1
    %p69 = scmp.eq.s32.totalorder %s10, 1
    %p70 = scmp.ne.s32.totalorder %s65, %s67
    %p71 = scmp.eq.s32.totalorder %s10, 0
    %p72 = por %p70, %p71
    %p73 = scmp.ne.s32.totalorder %s65, %s67
    %p74 = scmp.eq.s32.totalorder %s15, 1
    %p75 = por %p73, %p74
    %p76 = scmp.ne.s32.totalorder %s67, %s68
    %p77 = scmp.eq.s32.totalorder %s15, 0
    %p78 = por %p76, %p77
    %p79 = scmp.ne.s32.totalorder %s67, %s68
    %p80 = scmp.eq.s32.totalorder %s16, 1
    %p81 = por %p79, %p80
    %p83 = scmp.ne.s32.totalorder %s68, %s82
    %p84 = scmp.eq.s32.totalorder %s16, 0
    %p85 = por %p83, %p84
    %s87 = sadd.s32 %s86, 1
    %p90 = scmp.eq.s32.totalorder %s10, 1
    %p91 = scmp.ne.s32.totalorder %s86, %s88
    %p92 = scmp.eq.s32.totalorder %s10, 0
    %p93 = por %p91, %p92
    %p94 = scmp.ne.s32.totalorder %s86, %s88
    %p95 = scmp.eq.s32.totalorder %s15, 1
    %p96 = por %p94, %p95
    %p97 = scmp.ne.s32.totalorder %s88, %s89
    %p98 = scmp.eq.s32.totalorder %s15, 0
    %p99 = por %p97, %p98
    %p100 = scmp.ne.s32.totalorder %s88, %s89
    %p101 = scmp.eq.s32.totalorder %s16, 1
    %p102 = por %p100, %p101
    %p104 = scmp.ne.s32.totalorder %s89, %s103
    %p105 = scmp.eq.s32.totalorder %s16, 0
    %p106 = por %p104, %p105
    %s107 = ssub.s32 %s10, %s17
    %p108 = scmp.eq.s32.totalorder %s107, 0
    %s110 = sadd.s32 %s109, 1
    %s111 = scalar_select %p108, %s109, %s110
    %p114 = pneg %p108
    %p115 = scmp.eq.s32.totalorder %s10, 1
    %p116 = por %p114, %p115
    %p117 = scmp.ne.s32.totalorder %s109, %s112
    %p118 = scmp.eq.s32.totalorder %s10, 0
    %p119 = por %p117, %p118
    %p120 = scmp.ne.s32.totalorder %s109, %s112
    %p121 = scmp.eq.s32.totalorder %s15, 1
    %p122 = por %p120, %p121
    %p123 = scmp.ne.s32.totalorder %s112, %s113
    %p124 = scmp.eq.s32.totalorder %s15, 0
    %p125 = por %p123, %p124
    %p126 = scmp.ne.s32.totalorder %s112, %s113
    %p127 = scmp.eq.s32.totalorder %s16, 1
    %p128 = por %p126, %p127
    %p130 = scmp.ne.s32.totalorder %s113, %s129
    %p131 = scmp.eq.s32.totalorder %s16, 0
    %p132 = por %p130, %p131
    %p133 = scmp.le.s32.totalorder 1, %s10
    %p134 = scmp.lt.s32.totalorder %s10, 3
    %p135 = pnand %p133, %p134
    %p136 = pneg %p135
    // Predicated region
    $region9: #{upper_forward.6} parent=5 // pred_check
      _
    $region10: #{upper_forward.6} parent=5 // pred_check_branch
      %138 = sbr.rel (%p135) target = $region12
    $region11: #{upper_forward.6} parent=5 // pred_region
      %s139 = ssub.s32 %s10, 1
      // Predicated region
      $region13: #{upper_forward.6} parent=11 // pred_check
        %p140 = pneg %p57
      $region14: #{upper_forward.6} parent=11 // pred_check_branch
        %142 = sbr.rel (%p140) target = $region16
      $region15: #{upper_forward.6} parent=11 // pred_region
        _
      $region16: #{upper_forward.6} parent=11 // pred_fallthru
        _
      // Predicated region
      $region17: #{upper_forward.6} parent=11 // pred_check
        %p143 = pneg %p78
      $region18: #{upper_forward.6} parent=11 // pred_check_branch
        %145 = sbr.rel (%p143) target = $region20
      $region19: #{upper_forward.6} parent=11 // pred_region
        _
      $region20: #{upper_forward.6} parent=11 // pred_fallthru
        _
      // Predicated region
      $region21: #{upper_forward.6} parent=11 // pred_check
        %p146 = pneg %p99
      $region22: #{upper_forward.6} parent=11 // pred_check_branch
        %148 = sbr.rel (%p146) target = $region24
      $region23: #{upper_forward.6} parent=11 // pred_region
        _
      $region24: #{upper_forward.6} parent=11 // pred_fallthru
        _
    $region12: #{upper_forward.6} parent=5 // pred_fallthru
      _
    %p149 = scmp.lt.s32.totalorder %s10, 2
    // Predicated region
    $region25: #{upper_forward.6} parent=5 // pred_check
      %p150 = pneg %p149
    $region26: #{upper_forward.6} parent=5 // pred_check_branch
      %152 = sbr.rel (%p150) target = $region28
    $region27: #{upper_forward.6} parent=5 // pred_region
      // Predicated region
      $region29: #{upper_forward.6} parent=27 // pred_check
        %p153 = pneg %p30
      $region30: #{upper_forward.6} parent=27 // pred_check_branch
        %155 = sbr.rel (%p153) target = $region32
      $region31: #{upper_forward.6} parent=27 // pred_region
        %p156 = scmp.lt.s32.totalorder %s10, 1
        %s157 = scalar_select %p156, %s10, 1
        %s158 = smul.addr %s157, 6
        %s159 = smul.addr %s158, 4
        %s160 = scalar_lea.vmem %s0, %s159
      $region32: #{upper_forward.6} parent=27 // pred_fallthru
        _
    $region28: #{upper_forward.6} parent=5 // pred_fallthru
      _
    %p161 = scmp.le.s32.totalorder 1, %s10
    %p162 = scmp.lt.s32.totalorder %s10, 3
    %p163 = pnand %p161, %p162
    %p164 = pneg %p163
    // Predicated region
    $region33: #{upper_forward.6} parent=5 // pred_check
      _
    $region34: #{upper_forward.6} parent=5 // pred_check_branch
      %166 = sbr.rel (%p163) target = $region36
    $region35: #{upper_forward.6} parent=5 // pred_region
      %s167 = ssub.s32 %s10, 1
      %p168 = scmp.lt.s32.totalorder %s15, 1
      %s169 = scalar_select %p168, %s15, 1
      %s170 = smul.addr %s169, 6
      %s171 = smul.addr %s170, 4
      %s172 = scalar_lea.vmem %s0, %s171
      %p173 = pneg %p36
      %p174 = pneg %p33
      %p175 = pneg %p57
      %p176 = pneg %p54
      %p177 = pneg %p78
      %p178 = pneg %p75
      %p179 = pneg %p99
      %p180 = pneg %p96
      %p181 = pneg %p125
      %p182 = pneg %p122
      %p183 = scmp.lt.s32.totalorder %s15, 1
      %s184 = scalar_select %p183, %s15, 1
      %s185 = smul.addr %s184, 2
      %s186 = scalar_lea.vmem %s4, %s185
      %p187 = scmp.lt.s32.totalorder %s15, 1
      %s188 = scalar_select %p187, %s15, 1
      %s189 = smul.addr %s188, 6
      %s190 = smul.addr %s189, 4
      %s191 = scalar_lea.vmem %s0, %s190
      %p192 = scmp.lt.s32.totalorder %s15, 1
      %s193 = scalar_select %p192, %s15, 1
      %s194 = smul.addr %s193, 2
      %s195 = scalar_lea.vmem %s4, %s194
      %v197 = vld [vmem:[%s191] sm:$0xf]
      %v198 = vld [vmem:[%s191 + $0x4] sm:$0xf]
      %v199 = vld [vmem:[%s191 + $0x8] sm:$0xf]
      %v200 = vld [vmem:[%s1] sm:$0xf]
      %v201 = vld [vmem:[%s1 + $0x4] sm:$0xf]
      %v202 = vld [vmem:[%s1 + $0x8] sm:$0xf]
      %v203 = vld [vmem:[%s1 + $0xc] sm:$0xf]
      %v204 = vld [vmem:[%s1 + $0x10] sm:$0xf]
      %v205 = vld [vmem:[%s1 + $0x14] sm:$0xf]
      %v206 = vld [vmem:[%s1 + $0x18] sm:$0xf]
      %v207 = vld [vmem:[%s1 + $0x1c] sm:$0xf]
      %v211 = vunpack.c.l.b16 %v197
      %v212 = vunpack.c.l.b16 %v198
      %v213 = vunpack.c.l.b16 %v199
      %v214 = vpack.c.b16 %v212, %v211
      %v215 = vpack.c.b16 %v213, %v213
      %v224 = vunpack.c.l.b16 %v200
      %v225 = vunpack.c.l.b16 %v201
      %v226 = vunpack.c.l.b16 %v202
      %v227 = vunpack.c.l.b16 %v203
      %v228 = vunpack.c.l.b16 %v204
      %v229 = vunpack.c.l.b16 %v205
      %v230 = vunpack.c.l.b16 %v206
      %v231 = vunpack.c.l.b16 %v207
      %v232 = vpack.c.b16 %v225, %v224
      %v233 = vpack.c.b16 %v227, %v226
      %v234 = vpack.c.b16 %v229, %v228
      %v235 = vpack.c.b16 %v231, %v230
      %vm240 = vcmask 523264
      %v242 = vsel %vm240, %v214, 0
      %v245 = vsel %vm240, %v215, 0
      %247 = vmatpush.bf16.msra.mxu0 0
      %248 = vmatpush.bf16.msra.mxu0 0
      %249 = vmatpush.bf16.msra.mxu0 0
      %250 = vmatpush.bf16.msra.mxu0 0
      %251 = vmatpush.bf16.msra.mxu0 %v235
      %252 = vmatpush.bf16.msra.mxu0 %v234
      %253 = vmatpush.bf16.msra.mxu0 %v233
      %254 = vmatpush.bf16.msra.mxu0 %v232
      %255 = vmatmul.bf16.gmra.mxu0 %v242
      %v256 = vpop.f32.mrf.mxu0
      %v257 = vadd.f32 0.0, %v256
      %v258 = vpop.f32.mrf.mxu0
      %v259 = vadd.f32 0.0, %v258
      %260 = vmatmul.bf16.gmra.mxu0 %v245
      %v261 = vpop.f32.mrf.mxu0
      %v262 = vadd.f32 0.0, %v261
      %v263 = vpop.f32.mrf.mxu0
      %264 = vdwg.mxu0
      %265 = vst.msk [vmem:[#allocation2] sm:$0xff] %vm240, %v257
      %266 = vst.msk [vmem:[#allocation2 + $0x8] sm:$0xff] %vm240, %v259
      %267 = vst.msk [vmem:[#allocation2 + $0x10] sm:$0xff] %vm240, %v262
      %v268 = vld [vmem:[%s191] sm:$0xf]
      %v269 = vld [vmem:[%s191 + $0x4] sm:$0xf]
      %v270 = vld [vmem:[%s191 + $0x8] sm:$0xf]
      %v271 = vld [vmem:[%s191 + $0xc] sm:$0x1]
      %s272 = scalar_lea.vmem %s1, 32
      %v273 = vld [vmem:[%s272] sm:$0xf]
      %v274 = vld [vmem:[%s272 + $0x4] sm:$0xf]
      %v275 = vld [vmem:[%s272 + $0x8] sm:$0xf]
      %v276 = vld [vmem:[%s272 + $0xc] sm:$0xf]
      %v277 = vld [vmem:[%s272 + $0x10] sm:$0xf]
      %v278 = vld [vmem:[%s272 + $0x14] sm:$0xf]
      %v279 = vld [vmem:[%s272 + $0x18] sm:$0xf]
      %v280 = vld [vmem:[%s272 + $0x1c] sm:$0xf]
      %v285 = vunpack.c.l.b16 %v268
      %v286 = vunpack.c.l.b16 %v269
      %v287 = vunpack.c.l.b16 %v270
      %v288 = vunpack.c.l.b16 %v271
      %v289 = vpack.c.b16 %v286, %v285
      %v290 = vpack.c.b16 %v288, %v287
      %vm291 = vsmask.f32 7424
      %v293 = vshrl.u32 %v289, 16
      %v295 = vshll.u32 %v289, 16
      %v297 = vrot.slane %v295, 1
      %v298 = vor.u32 %v293, %v297
      %v300 = vshll.u32 %v290, 16
      %v302 = vrot.slane %v300, 1
      %v303 = vsel %vm291, %v298, %v302
      %v304 = vshrl.u32 %v290, 16
      %v306 = vor.u32 %v304, %v302
      %v315 = vunpack.c.l.b16 %v273
      %v316 = vunpack.c.l.b16 %v274
      %v317 = vunpack.c.l.b16 %v275
      %v318 = vunpack.c.l.b16 %v276
      %v319 = vunpack.c.l.b16 %v277
      %v320 = vunpack.c.l.b16 %v278
      %v321 = vunpack.c.l.b16 %v279
      %v322 = vunpack.c.l.b16 %v280
      %v323 = vpack.c.b16 %v316, %v315
      %v324 = vpack.c.b16 %v318, %v317
      %v325 = vpack.c.b16 %v320, %v319
      %v326 = vpack.c.b16 %v322, %v321
      %v332 = vsel %vm240, %v303, 0
      %v335 = vsel %vm240, %v306, 0
      %337 = vmatpush.bf16.msra.mxu0 0
      %338 = vmatpush.bf16.msra.mxu0 0
      %339 = vmatpush.bf16.msra.mxu0 0
      %340 = vmatpush.bf16.msra.mxu0 0
      %341 = vmatpush.bf16.msra.mxu0 %v326
      %342 = vmatpush.bf16.msra.mxu0 %v325
      %343 = vmatpush.bf16.msra.mxu0 %v324
      %344 = vmatpush.bf16.msra.mxu0 %v323
      %345 = vmatmul.bf16.gmra.mxu0 %v332
      %v346 = vpop.f32.mrf.mxu0
      %v347 = vadd.f32 0.0, %v346
      %v348 = vpop.f32.mrf.mxu0
      %v349 = vadd.f32 0.0, %v348
      %350 = vmatmul.bf16.gmra.mxu0 %v335
      %v351 = vpop.f32.mrf.mxu0
      %v352 = vadd.f32 0.0, %v351
      %v353 = vpop.f32.mrf.mxu0
      %354 = vdwg.mxu0
      %v355 = vld [vmem:[#allocation2] sm:$0xff]
      %v356 = vld [vmem:[#allocation2 + $0x8] sm:$0xff]
      %v357 = vld [vmem:[#allocation2 + $0x10] sm:$0xff]
      %v358 = vadd.f32 %v355, %v347
      %v359 = vadd.f32 %v356, %v349
      %v360 = vadd.f32 %v357, %v352
      %361 = vst.msk [vmem:[#allocation2] sm:$0xff] %vm240, %v358
      %362 = vst.msk [vmem:[#allocation2 + $0x8] sm:$0xff] %vm240, %v359
      %363 = vst.msk [vmem:[#allocation2 + $0x10] sm:$0xff] %vm240, %v360
      %v364 = vld [vmem:[%s191] sm:$0xe]
      %v365 = vld [vmem:[%s191 + $0x4] sm:$0xf]
      %v366 = vld [vmem:[%s191 + $0x8] sm:$0xf]
      %v367 = vld [vmem:[%s191 + $0xc] sm:$0x1]
      %s368 = scalar_lea.vmem %s1, 64
      %v369 = vld [vmem:[%s368] sm:$0xf]
      %v370 = vld [vmem:[%s368 + $0x4] sm:$0xf]
      %v371 = vld [vmem:[%s368 + $0x8] sm:$0xf]
      %v372 = vld [vmem:[%s368 + $0xc] sm:$0xf]
      %v373 = vld [vmem:[%s368 + $0x10] sm:$0xf]
      %v374 = vld [vmem:[%s368 + $0x14] sm:$0xf]
      %v375 = vld [vmem:[%s368 + $0x18] sm:$0xf]
      %v376 = vld [vmem:[%s368 + $0x1c] sm:$0xf]
      %v381 = vunpack.c.l.b16 %v364
      %v382 = vunpack.c.l.b16 %v365
      %v383 = vunpack.c.l.b16 %v366
      %v384 = vunpack.c.l.b16 %v367
      %v385 = vpack.c.b16 %v382, %v381
      %v386 = vpack.c.b16 %v384, %v383
      %vm387 = vcmask 1046528
      %v388 = vrot.slane %v385, 1
      %v389 = vrot.slane %v386, 1
      %v390 = vsel %vm387, %v388, %v389
      %v399 = vunpack.c.l.b16 %v369
      %v400 = vunpack.c.l.b16 %v370
      %v401 = vunpack.c.l.b16 %v371
      %v402 = vunpack.c.l.b16 %v372
      %v403 = vunpack.c.l.b16 %v373
      %v404 = vunpack.c.l.b16 %v374
      %v405 = vunpack.c.l.b16 %v375
      %v406 = vunpack.c.l.b16 %v376
      %v407 = vpack.c.b16 %v400, %v399
      %v408 = vpack.c.b16 %v402, %v401
      %v409 = vpack.c.b16 %v404, %v403
      %v410 = vpack.c.b16 %v406, %v405
      %v416 = vsel %vm240, %v390, 0
      %v419 = vsel %vm240, %v389, 0
      %421 = vmatpush.bf16.msra.mxu0 0
      %422 = vmatpush.bf16.msra.mxu0 0
      %423 = vmatpush.bf16.msra.mxu0 0
      %424 = vmatpush.bf16.msra.mxu0 0
      %425 = vmatpush.bf16.msra.mxu0 %v410
      %426 = vmatpush.bf16.msra.mxu0 %v409
      %427 = vmatpush.bf16.msra.mxu0 %v408
      %428 = vmatpush.bf16.msra.mxu0 %v407
      %429 = vmatmul.bf16.gmra.mxu0 %v416
      %v430 = vpop.f32.mrf.mxu0
      %v431 = vadd.f32 0.0, %v430
      %v432 = vpop.f32.mrf.mxu0
      %v433 = vadd.f32 0.0, %v432
      %434 = vmatmul.bf16.gmra.mxu0 %v419
      %v435 = vpop.f32.mrf.mxu0
      %v436 = vadd.f32 0.0, %v435
      %v437 = vpop.f32.mrf.mxu0
      %438 = vdwg.mxu0
      %v439 = vld [vmem:[#allocation2] sm:$0xff]
      %v440 = vld [vmem:[#allocation2 + $0x8] sm:$0xff]
      %v441 = vld [vmem:[#allocation2 + $0x10] sm:$0xff]
      %v442 = vadd.f32 %v439, %v431
      %v443 = vadd.f32 %v440, %v433
      %v444 = vadd.f32 %v441, %v436
      %445 = vst.msk [vmem:[#allocation2] sm:$0xff] %vm240, %v442
      %446 = vst.msk [vmem:[#allocation2 + $0x8] sm:$0xff] %vm240, %v443
      %447 = vst.msk [vmem:[#allocation2 + $0x10] sm:$0xff] %vm240, %v444
      %v448 = vld [vmem:[%s191] sm:$0x8]
      %v449 = vld [vmem:[%s191 + $0x4] sm:$0xf]
      %v450 = vld [vmem:[%s191 + $0x8] sm:$0xf]
      %v451 = vld [vmem:[%s191 + $0xc] sm:$0x7]
      %s452 = scalar_lea.vmem %s1, 96
      %v453 = vld [vmem:[%s452] sm:$0xf]
      %v454 = vld [vmem:[%s452 + $0x4] sm:$0xf]
      %v455 = vld [vmem:[%s452 + $0x8] sm:$0xf]
      %v456 = vld [vmem:[%s452 + $0xc] sm:$0xf]
      %v457 = vld [vmem:[%s452 + $0x10] sm:$0xf]
      %v458 = vld [vmem:[%s452 + $0x14] sm:$0xf]
      %v459 = vld [vmem:[%s452 + $0x18] sm:$0xf]
      %v460 = vld [vmem:[%s452 + $0x1c] sm:$0xf]
      %v465 = vunpack.c.l.b16 %v448
      %v466 = vunpack.c.l.b16 %v449
      %v467 = vunpack.c.l.b16 %v450
      %v468 = vunpack.c.l.b16 %v451
      %v469 = vpack.c.b16 %v466, %v465
      %v470 = vpack.c.b16 %v468, %v467
      %vm471 = vcmask 1044480
      %v472 = vrot.slane %v469, 3
      %v473 = vrot.slane %v470, 3
      %v474 = vsel %vm471, %v472, %v473
      %v483 = vunpack.c.l.b16 %v453
      %v484 = vunpack.c.l.b16 %v454
      %v485 = vunpack.c.l.b16 %v455
      %v486 = vunpack.c.l.b16 %v456
      %v487 = vunpack.c.l.b16 %v457
      %v488 = vunpack.c.l.b16 %v458
      %v489 = vunpack.c.l.b16 %v459
      %v490 = vunpack.c.l.b16 %v460
      %v491 = vpack.c.b16 %v484, %v483
      %v492 = vpack.c.b16 %v486, %v485
      %v493 = vpack.c.b16 %v488, %v487
      %v494 = vpack.c.b16 %v490, %v489
      %v500 = vsel %vm240, %v474, 0
      %v503 = vsel %vm240, %v473, 0
      %505 = vmatpush.bf16.msra.mxu0 0
      %506 = vmatpush.bf16.msra.mxu0 0
      %507 = vmatpush.bf16.msra.mxu0 0
      %508 = vmatpush.bf16.msra.mxu0 0
      %509 = vmatpush.bf16.msra.mxu0 %v494
      %510 = vmatpush.bf16.msra.mxu0 %v493
      %511 = vmatpush.bf16.msra.mxu0 %v492
      %512 = vmatpush.bf16.msra.mxu0 %v491
      %513 = vmatmul.bf16.gmra.mxu0 %v500
      %v514 = vpop.f32.mrf.mxu0
      %v515 = vadd.f32 0.0, %v514
      %v516 = vpop.f32.mrf.mxu0
      %v517 = vadd.f32 0.0, %v516
      %518 = vmatmul.bf16.gmra.mxu0 %v503
      %v519 = vpop.f32.mrf.mxu0
      %v520 = vadd.f32 0.0, %v519
      %v521 = vpop.f32.mrf.mxu0
      %522 = vdwg.mxu0
      %v523 = vld [vmem:[#allocation2] sm:$0xff]
      %v524 = vld [vmem:[#allocation2 + $0x8] sm:$0xff]
      %v525 = vld [vmem:[#allocation2 + $0x10] sm:$0xff]
      %v526 = vadd.f32 %v523, %v515
      %v527 = vadd.f32 %v524, %v517
      %v528 = vadd.f32 %v525, %v520
      %529 = vst.msk [vmem:[#allocation2] sm:$0xff] %vm240, %v526
      %530 = vst.msk [vmem:[#allocation2 + $0x8] sm:$0xff] %vm240, %v527
      %531 = vst.msk [vmem:[#allocation2 + $0x10] sm:$0xff] %vm240, %v528
      %v532 = vld [vmem:[%s191] sm:$0x8]
      %v533 = vld [vmem:[%s191 + $0x4] sm:$0xf]
      %v534 = vld [vmem:[%s191 + $0x8] sm:$0xf]
      %v535 = vld [vmem:[%s191 + $0xc] sm:$0xf]
      %s536 = scalar_lea.vmem %s1, 128
      %v537 = vld [vmem:[%s536] sm:$0xf]
      %v538 = vld [vmem:[%s536 + $0x4] sm:$0xf]
      %v539 = vld [vmem:[%s536 + $0x8] sm:$0xf]
      %v540 = vld [vmem:[%s536 + $0xc] sm:$0xf]
      %v541 = vld [vmem:[%s536 + $0x10] sm:$0xf]
      %v542 = vld [vmem:[%s536 + $0x14] sm:$0xf]
      %v543 = vld [vmem:[%s536 + $0x18] sm:$0xf]
      %v544 = vld [vmem:[%s536 + $0x1c] sm:$0xf]
      %v549 = vunpack.c.l.b16 %v532
      %v550 = vunpack.c.l.b16 %v533
      %v551 = vunpack.c.l.b16 %v534
      %v552 = vunpack.c.l.b16 %v535
      %v553 = vpack.c.b16 %v550, %v549
      %v554 = vpack.c.b16 %v552, %v551
      %vm555 = vsmask.f32 4352
      %v557 = vshrl.u32 %v553, 16
      %v559 = vrot.slane %v557, 3
      %v560 = vshll.u32 %v553, 16
      %v562 = vrot.slane %v560, 4
      %v563 = vor.u32 %v559, %v562
      %v565 = vshrl.u32 %v554, 16
      %v567 = vrot.slane %v565, 3
      %v568 = vshll.u32 %v554, 16
      %v570 = vrot.slane %v568, 4
      %v571 = vor.u32 %v567, %v570
      %v572 = vsel %vm555, %v563, %v571
      %v581 = vunpack.c.l.b16 %v537
      %v582 = vunpack.c.l.b16 %v538
      %v583 = vunpack.c.l.b16 %v539
      %v584 = vunpack.c.l.b16 %v540
      %v585 = vunpack.c.l.b16 %v541
      %v586 = vunpack.c.l.b16 %v542
      %v587 = vunpack.c.l.b16 %v543
      %v588 = vunpack.c.l.b16 %v544
      %v589 = vpack.c.b16 %v582, %v581
      %v590 = vpack.c.b16 %v584, %v583
      %v591 = vpack.c.b16 %v586, %v585
      %v592 = vpack.c.b16 %v588, %v587
      %v598 = vsel %vm240, %v572, 0
      %v601 = vsel %vm240, %v571, 0
      %603 = vmatpush.bf16.msra.mxu0 0
      %604 = vmatpush.bf16.msra.mxu0 0
      %605 = vmatpush.bf16.msra.mxu0 0
      %606 = vmatpush.bf16.msra.mxu0 0
      %607 = vmatpush.bf16.msra.mxu0 %v592
      %608 = vmatpush.bf16.msra.mxu0 %v591
      %609 = vmatpush.bf16.msra.mxu0 %v590
      %610 = vmatpush.bf16.msra.mxu0 %v589
      %611 = vmatmul.bf16.gmra.mxu0 %v598
      %v612 = vpop.f32.mrf.mxu0
      %v613 = vadd.f32 0.0, %v612
      %v614 = vpop.f32.mrf.mxu0
      %v615 = vadd.f32 0.0, %v614
      %616 = vmatmul.bf16.gmra.mxu0 %v601
      %v617 = vpop.f32.mrf.mxu0
      %v618 = vadd.f32 0.0, %v617
      %v619 = vpop.f32.mrf.mxu0
      %620 = vdwg.mxu0
      %v621 = vld [vmem:[#allocation2] sm:$0xff]
      %v622 = vld [vmem:[#allocation2 + $0x8] sm:$0xff]
      %v623 = vld [vmem:[#allocation2 + $0x10] sm:$0xff]
      %v624 = vadd.f32 %v621, %v613
      %v625 = vadd.f32 %v622, %v615
      %v626 = vadd.f32 %v623, %v618
      %627 = vst.msk [vmem:[#allocation2] sm:$0xff] %vm240, %v624
      %628 = vst.msk [vmem:[#allocation2 + $0x8] sm:$0xff] %vm240, %v625
      %629 = vst.msk [vmem:[#allocation2 + $0x10] sm:$0xff] %vm240, %v626
      %v630 = vld [vmem:[%s191 + $0x4] sm:$0xf]
      %v631 = vld [vmem:[%s191 + $0x8] sm:$0xf]
      %v632 = vld [vmem:[%s191 + $0xc] sm:$0xf]
      %s633 = scalar_lea.vmem %s1, 160
      %v634 = vld [vmem:[%s633] sm:$0xf]
      %v635 = vld [vmem:[%s633 + $0x4] sm:$0xf]
      %v636 = vld [vmem:[%s633 + $0x8] sm:$0xf]
      %v637 = vld [vmem:[%s633 + $0xc] sm:$0xf]
      %v638 = vld [vmem:[%s633 + $0x10] sm:$0xf]
      %v639 = vld [vmem:[%s633 + $0x14] sm:$0xf]
      %v640 = vld [vmem:[%s633 + $0x18] sm:$0xf]
      %v641 = vld [vmem:[%s633 + $0x1c] sm:$0xf]
      %v645 = vunpack.c.l.b16 %v630
      %v646 = vunpack.c.l.b16 %v631
      %v647 = vunpack.c.l.b16 %v632
      %v648 = vpack.c.b16 %v646, %v645
      %v649 = vpack.c.b16 %v647, %v647
      %v658 = vunpack.c.l.b16 %v634
      %v659 = vunpack.c.l.b16 %v635
      %v660 = vunpack.c.l.b16 %v636
      %v661 = vunpack.c.l.b16 %v637
      %v662 = vunpack.c.l.b16 %v638
      %v663 = vunpack.c.l.b16 %v639
      %v664 = vunpack.c.l.b16 %v640
      %v665 = vunpack.c.l.b16 %v641
      %v666 = vpack.c.b16 %v659, %v658
      %v667 = vpack.c.b16 %v661, %v660
      %v668 = vpack.c.b16 %v663, %v662
      %v669 = vpack.c.b16 %v665, %v664
      %v675 = vsel %vm240, %v648, 0
      %v678 = vsel %vm240, %v649, 0
      %680 = vmatpush.bf16.msra.mxu0 0
      %681 = vmatpush.bf16.msra.mxu0 0
      %682 = vmatpush.bf16.msra.mxu0 0
      %683 = vmatpush.bf16.msra.mxu0 0
      %684 = vmatpush.bf16.msra.mxu0 %v669
      %685 = vmatpush.bf16.msra.mxu0 %v668
      %686 = vmatpush.bf16.msra.mxu0 %v667
      %687 = vmatpush.bf16.msra.mxu0 %v666
      %688 = vmatmul.bf16.gmra.mxu0 %v675
      %v689 = vpop.f32.mrf.mxu0
      %v690 = vadd.f32 0.0, %v689
      %v691 = vpop.f32.mrf.mxu0
      %v692 = vadd.f32 0.0, %v691
      %693 = vmatmul.bf16.gmra.mxu0 %v678
      %v694 = vpop.f32.mrf.mxu0
      %v695 = vadd.f32 0.0, %v694
      %v696 = vpop.f32.mrf.mxu0
      %697 = vdwg.mxu0
      %v698 = vld [vmem:[#allocation2] sm:$0xff]
      %v699 = vld [vmem:[#allocation2 + $0x8] sm:$0xff]
      %v700 = vld [vmem:[#allocation2 + $0x10] sm:$0xff]
      %v701 = vadd.f32 %v698, %v690
      %v702 = vadd.f32 %v699, %v692
      %v703 = vadd.f32 %v700, %v695
      %704 = vst.msk [vmem:[#allocation2] sm:$0xff] %vm240, %v701
      %705 = vst.msk [vmem:[#allocation2 + $0x8] sm:$0xff] %vm240, %v702
      %706 = vst.msk [vmem:[#allocation2 + $0x10] sm:$0xff] %vm240, %v703
      %v707 = vld [vmem:[%s191 + $0x4] sm:$0xc]
      %v708 = vld [vmem:[%s191 + $0x8] sm:$0xf]
      %v709 = vld [vmem:[%s191 + $0xc] sm:$0xf]
      %v710 = vld [vmem:[%s191 + $0x10] sm:$0x3]
      %s711 = scalar_lea.vmem %s1, 192
      %v712 = vld [vmem:[%s711] sm:$0xf]
      %v713 = vld [vmem:[%s711 + $0x4] sm:$0xf]
      %v714 = vld [vmem:[%s711 + $0x8] sm:$0xf]
      %v715 = vld [vmem:[%s711 + $0xc] sm:$0xf]
      %v716 = vld [vmem:[%s711 + $0x10] sm:$0xf]
      %v717 = vld [vmem:[%s711 + $0x14] sm:$0xf]
      %v718 = vld [vmem:[%s711 + $0x18] sm:$0xf]
      %v719 = vld [vmem:[%s711 + $0x1c] sm:$0xf]
      %v724 = vunpack.c.l.b16 %v707
      %v725 = vunpack.c.l.b16 %v708
      %v726 = vunpack.c.l.b16 %v709
      %v727 = vunpack.c.l.b16 %v710
      %v728 = vpack.c.b16 %v725, %v724
      %v729 = vpack.c.b16 %v727, %v726
      %vm730 = vcmask 1045504
      %v731 = vrot.slane %v728, 2
      %v732 = vrot.slane %v729, 2
      %v733 = vsel %vm730, %v731, %v732
      %v742 = vunpack.c.l.b16 %v712
      %v743 = vunpack.c.l.b16 %v713
      %v744 = vunpack.c.l.b16 %v714
      %v745 = vunpack.c.l.b16 %v715
      %v746 = vunpack.c.l.b16 %v716
      %v747 = vunpack.c.l.b16 %v717
      %v748 = vunpack.c.l.b16 %v718
      %v749 = vunpack.c.l.b16 %v719
      %v750 = vpack.c.b16 %v743, %v742
      %v751 = vpack.c.b16 %v745, %v744
      %v752 = vpack.c.b16 %v747, %v746
      %v753 = vpack.c.b16 %v749, %v748
      %v759 = vsel %vm240, %v733, 0
      %v762 = vsel %vm240, %v732, 0
      %764 = vmatpush.bf16.msra.mxu0 0
      %765 = vmatpush.bf16.msra.mxu0 0
      %766 = vmatpush.bf16.msra.mxu0 0
      %767 = vmatpush.bf16.msra.mxu0 0
      %768 = vmatpush.bf16.msra.mxu0 %v753
      %769 = vmatpush.bf16.msra.mxu0 %v752
      %770 = vmatpush.bf16.msra.mxu0 %v751
      %771 = vmatpush.bf16.msra.mxu0 %v750
      %772 = vmatmul.bf16.gmra.mxu0 %v759
      %v773 = vpop.f32.mrf.mxu0
      %v774 = vadd.f32 0.0, %v773
      %v775 = vpop.f32.mrf.mxu0
      %v776 = vadd.f32 0.0, %v775
      %777 = vmatmul.bf16.gmra.mxu0 %v762
      %v778 = vpop.f32.mrf.mxu0
      %v779 = vadd.f32 0.0, %v778
      %v780 = vpop.f32.mrf.mxu0
      %781 = vdwg.mxu0
      %v782 = vld [vmem:[#allocation2] sm:$0xff]
      %v783 = vld [vmem:[#allocation2 + $0x8] sm:$0xff]
      %v784 = vld [vmem:[#allocation2 + $0x10] sm:$0xff]
      %v785 = vadd.f32 %v782, %v774
      %v786 = vadd.f32 %v783, %v776
      %v787 = vadd.f32 %v784, %v779
      %788 = vst.msk [vmem:[#allocation2] sm:$0xff] %vm240, %v785
      %789 = vst.msk [vmem:[#allocation2 + $0x8] sm:$0xff] %vm240, %v786
      %790 = vst.msk [vmem:[#allocation2 + $0x10] sm:$0xff] %vm240, %v787
      %v791 = vld [vmem:[%s191 + $0x4] sm:$0xc]
      %v792 = vld [vmem:[%s191 + $0x8] sm:$0xf]
      %v793 = vld [vmem:[%s191 + $0xc] sm:$0xf]
      %v794 = vld [vmem:[%s191 + $0x10] sm:$0x7]
      %s795 = scalar_lea.vmem %s1, 224
      %v796 = vld [vmem:[%s795] sm:$0xf]
      %v797 = vld [vmem:[%s795 + $0x4] sm:$0xf]
      %v798 = vld [vmem:[%s795 + $0x8] sm:$0xf]
      %v799 = vld [vmem:[%s795 + $0xc] sm:$0xf]
      %v800 = vld [vmem:[%s795 + $0x10] sm:$0xf]
      %v801 = vld [vmem:[%s795 + $0x14] sm:$0xf]
      %v802 = vld [vmem:[%s795 + $0x18] sm:$0xf]
      %v803 = vld [vmem:[%s795 + $0x1c] sm:$0xf]
      %v808 = vunpack.c.l.b16 %v791
      %v809 = vunpack.c.l.b16 %v792
      %v810 = vunpack.c.l.b16 %v793
      %v811 = vunpack.c.l.b16 %v794
      %v812 = vpack.c.b16 %v809, %v808
      %v813 = vpack.c.b16 %v811, %v810
      %vm814 = vsmask.f32 5376
      %v816 = vshrl.u32 %v812, 16
      %v818 = vrot.slane %v816, 2
      %v819 = vshll.u32 %v812, 16
      %v821 = vrot.slane %v819, 3
      %v822 = vor.u32 %v818, %v821
      %v824 = vshrl.u32 %v813, 16
      %v826 = vrot.slane %v824, 2
      %v827 = vshll.u32 %v813, 16
      %v829 = vrot.slane %v827, 3
      %v830 = vor.u32 %v826, %v829
      %v831 = vsel %vm814, %v822, %v830
      %v840 = vunpack.c.l.b16 %v796
      %v841 = vunpack.c.l.b16 %v797
      %v842 = vunpack.c.l.b16 %v798
      %v843 = vunpack.c.l.b16 %v799
      %v844 = vunpack.c.l.b16 %v800
      %v845 = vunpack.c.l.b16 %v801
      %v846 = vunpack.c.l.b16 %v802
      %v847 = vunpack.c.l.b16 %v803
      %v848 = vpack.c.b16 %v841, %v840
      %v849 = vpack.c.b16 %v843, %v842
      %v850 = vpack.c.b16 %v845, %v844
      %v851 = vpack.c.b16 %v847, %v846
      %v857 = vsel %vm240, %v831, 0
      %v860 = vsel %vm240, %v830, 0
      %862 = vmatpush.bf16.msra.mxu0 0
      %863 = vmatpush.bf16.msra.mxu0 0
      %864 = vmatpush.bf16.msra.mxu0 0
      %865 = vmatpush.bf16.msra.mxu0 0
      %866 = vmatpush.bf16.msra.mxu0 %v851
      %867 = vmatpush.bf16.msra.mxu0 %v850
      %868 = vmatpush.bf16.msra.mxu0 %v849
      %869 = vmatpush.bf16.msra.mxu0 %v848
      %870 = vmatmul.bf16.gmra.mxu0 %v857
      %v871 = vpop.f32.mrf.mxu0
      %v872 = vadd.f32 0.0, %v871
      %v873 = vpop.f32.mrf.mxu0
      %v874 = vadd.f32 0.0, %v873
      %875 = vmatmul.bf16.gmra.mxu0 %v860
      %v876 = vpop.f32.mrf.mxu0
      %v877 = vadd.f32 0.0, %v876
      %v878 = vpop.f32.mrf.mxu0
      %879 = vdwg.mxu0
      %v880 = vld [vmem:[#allocation2] sm:$0xff]
      %v881 = vld [vmem:[#allocation2 + $0x8] sm:$0xff]
      %v882 = vld [vmem:[#allocation2 + $0x10] sm:$0xff]
      %v883 = vadd.f32 %v880, %v872
      %v884 = vadd.f32 %v881, %v874
      %v885 = vadd.f32 %v882, %v877
      %886 = vst.msk [vmem:[#allocation2] sm:$0xff] %vm240, %v883
      %887 = vst.msk [vmem:[#allocation2 + $0x8] sm:$0xff] %vm240, %v884
      %888 = vst.msk [vmem:[#allocation2 + $0x10] sm:$0xff] %vm240, %v885
      %v889 = vld [vmem:[%s191 + $0x4] sm:$0x8]
      %v890 = vld [vmem:[%s191 + $0x8] sm:$0xf]
      %v891 = vld [vmem:[%s191 + $0xc] sm:$0xf]
      %v892 = vld [vmem:[%s191 + $0x10] sm:$0x7]
      %s893 = scalar_lea.vmem %s1, 256
      %v894 = vld [vmem:[%s893] sm:$0xf]
      %v895 = vld [vmem:[%s893 + $0x4] sm:$0xf]
      %v896 = vld [vmem:[%s893 + $0x8] sm:$0xf]
      %v897 = vld [vmem:[%s893 + $0xc] sm:$0xf]
      %v898 = vld [vmem:[%s893 + $0x10] sm:$0xf]
      %v899 = vld [vmem:[%s893 + $0x14] sm:$0xf]
      %v900 = vld [vmem:[%s893 + $0x18] sm:$0xf]
      %v901 = vld [vmem:[%s893 + $0x1c] sm:$0xf]
      %v906 = vunpack.c.l.b16 %v889
      %v907 = vunpack.c.l.b16 %v890
      %v908 = vunpack.c.l.b16 %v891
      %v909 = vunpack.c.l.b16 %v892
      %v910 = vpack.c.b16 %v907, %v906
      %v911 = vpack.c.b16 %v909, %v908
      %v912 = vrot.slane %v910, 3
      %v913 = vrot.slane %v911, 3
      %v914 = vsel %vm471, %v912, %v913
      %v923 = vunpack.c.l.b16 %v894
      %v924 = vunpack.c.l.b16 %v895
      %v925 = vunpack.c.l.b16 %v896
      %v926 = vunpack.c.l.b16 %v897
      %v927 = vunpack.c.l.b16 %v898
      %v928 = vunpack.c.l.b16 %v899
      %v929 = vunpack.c.l.b16 %v900
      %v930 = vunpack.c.l.b16 %v901
      %v931 = vpack.c.b16 %v924, %v923
      %v932 = vpack.c.b16 %v926, %v925
      %v933 = vpack.c.b16 %v928, %v927
      %v934 = vpack.c.b16 %v930, %v929
      %v940 = vsel %vm240, %v914, 0
      %v943 = vsel %vm240, %v913, 0
      %945 = vmatpush.bf16.msra.mxu0 0
      %946 = vmatpush.bf16.msra.mxu0 0
      %947 = vmatpush.bf16.msra.mxu0 0
      %948 = vmatpush.bf16.msra.mxu0 0
      %949 = vmatpush.bf16.msra.mxu0 %v934
      %950 = vmatpush.bf16.msra.mxu0 %v933
      %951 = vmatpush.bf16.msra.mxu0 %v932
      %952 = vmatpush.bf16.msra.mxu0 %v931
      %953 = vmatmul.bf16.gmra.mxu0 %v940
      %v954 = vpop.f32.mrf.mxu0
      %v955 = vadd.f32 0.0, %v954
      %v956 = vpop.f32.mrf.mxu0
      %v957 = vadd.f32 0.0, %v956
      %958 = vmatmul.bf16.gmra.mxu0 %v943
      %v959 = vpop.f32.mrf.mxu0
      %v960 = vadd.f32 0.0, %v959
      %v961 = vpop.f32.mrf.mxu0
      %962 = vdwg.mxu0
      %v963 = vld [vmem:[#allocation2] sm:$0xff]
      %v964 = vld [vmem:[#allocation2 + $0x8] sm:$0xff]
      %v965 = vld [vmem:[#allocation2 + $0x10] sm:$0xff]
      %v966 = vadd.f32 %v963, %v955
      %v967 = vadd.f32 %v964, %v957
      %v968 = vadd.f32 %v965, %v960
      %969 = vst.msk [vmem:[#allocation2] sm:$0xff] %vm240, %v966
      %970 = vst.msk [vmem:[#allocation2 + $0x8] sm:$0xff] %vm240, %v967
      %971 = vst.msk [vmem:[#allocation2 + $0x10] sm:$0xff] %vm240, %v968
      %v972 = vld [vmem:[#allocation2] sm:$0xff]
      %v973 = vld [vmem:[#allocation2 + $0x8] sm:$0xff]
      %v974 = vld [vmem:[#allocation2 + $0x10] sm:$0xff]
      %v975 = vld [vmem:[%s2] sm:$0x1]
      %v977 = vperm.slane %v975, 0
      %v979 = vmul.f32 %v972, %v977
      %v980 = vmul.f32 %v973, %v977
      %v981 = vmul.f32 %v974, %v977
      %v982 = vld [vmem:[%s3] sm:$0x1]
      %v984 = vperm.slane %v982, 0
      %v986 = vadd.f32 %v979, %v984
      %v987 = vadd.f32 %v980, %v984
      %v988 = vadd.f32 %v981, %v984
      %v989 = vmax.f32 %v986, 0.0
      %v990 = vmax.f32 %v987, 0.0
      %v991 = vmax.f32 %v988, 0.0
      %992 = vst.msk [vmem:[#allocation2] sm:$0xff] %vm240, %v989
      %993 = vst.msk [vmem:[#allocation2 + $0x8] sm:$0xff] %vm240, %v990
      %994 = vst.msk [vmem:[#allocation2 + $0x10] sm:$0xff] %vm240, %v991
      %v995 = vld [vmem:[#allocation2] ss:$2 sm:$0x3]
      %s996 = scalar_lea.vmem [#allocation2], 1
      %v997 = vld [vmem:[%s996] ss:$2 sm:$0x3]
      %s998 = scalar_lea.vmem [#allocation2], 6
      %v999 = vld [vmem:[%s998] ss:$2 sm:$0x3]
      %s1000 = scalar_lea.vmem [#allocation2], 7
      %v1001 = vld [vmem:[%s1000] ss:$2 sm:$0x3]
      %v1002 = vmax.f32 %v995, %v997
      %v1003 = vmax.f32 %v999, %v1001
      %v1004 = vmax.f32 %v1002, %v1003
      %v1005 = vpack.c.bf16 %v1004, %v1004
      %vm1006 = vcmask 516096
      %1007 = vst.msk [vmem:[%s195] sm:$0x1] %vm1006, %v1005
      %s1008 = scalar_lea.vmem [#allocation2], 12
      %v1009 = vld [vmem:[%s1008] ss:$2 sm:$0x3]
      %s1010 = scalar_lea.vmem [#allocation2], 13
      %v1011 = vld [vmem:[%s1010] ss:$2 sm:$0x3]
      %s1012 = scalar_lea.vmem [#allocation2], 18
      %v1013 = vld [vmem:[%s1012] ss:$2 sm:$0x3]
      %s1014 = scalar_lea.vmem [#allocation2], 19
      %v1015 = vld [vmem:[%s1014] ss:$2 sm:$0x3]
      %v1016 = vmax.f32 %v1009, %v1011
      %v1017 = vmax.f32 %v1013, %v1015
      %v1018 = vmax.f32 %v1016, %v1017
      %v1019 = vpack.c.bf16 %v1018, %v1018
      %s1020 = scalar_lea.vmem %s195, 1
      %1021 = vst.msk [vmem:[%s1020] sm:$0x1] %vm1006, %v1019
      %p1022 = scmp.lt.s32.totalorder %s15, 1
      %s1023 = scalar_select %p1022, %s15, 1
      %s1024 = smul.addr %s1023, 2
      %s1025 = scalar_lea.vmem %s4, %s1024
      // Predicated region
      $region37: #{upper_forward.6} parent=35 // pred_check
        %p1026 = pneg %p122
      $region38: #{upper_forward.6} parent=35 // pred_check_branch
        %1028 = sbr.rel (%p1026) target = $region40
      $region39: #{upper_forward.6} parent=35 // pred_region
        _
      $region40: #{upper_forward.6} parent=35 // pred_fallthru
        _
    $region36: #{upper_forward.6} parent=5 // pred_fallthru
      _
    %p1029 = scmp.le.s32.totalorder 2, %s10
    // Predicated region
    $region41: #{upper_forward.6} parent=5 // pred_check
      %p1030 = pneg %p1029
    $region42: #{upper_forward.6} parent=5 // pred_check_branch
      %1032 = sbr.rel (%p1030) target = $region44
    $region43: #{upper_forward.6} parent=5 // pred_region
      %s1033 = ssub.s32 %s10, 2
      // Predicated region
      $region45: #{upper_forward.6} parent=43 // pred_check
        %p1034 = pneg %p128
      $region46: #{upper_forward.6} parent=43 // pred_check_branch
        %1036 = sbr.rel (%p1034) target = $region48
      $region47: #{upper_forward.6} parent=43 // pred_region
        %p1037 = scmp.lt.s32.totalorder %s16, 1
        %s1038 = scalar_select %p1037, %s16, 1
        %s1039 = smul.addr %s1038, 2
        %s1040 = scalar_lea.vmem %s4, %s1039
      $region48: #{upper_forward.6} parent=43 // pred_fallthru
        _
    $region44: #{upper_forward.6} parent=5 // pred_fallthru
      _
  $region6: #{upper_forward.6} parent=0 // loop_footer
    %s14 = sadd.s32 1, %s10
  $region7: #{upper_forward.6} parent=0 // loop_footer_branch
    %9 = sbr.rel target = $region3
  $region8: #{upper_forward.6} parent=0 // loop_exit
    _

// kernel: upper_forward.7
$region0: #{upper_forward.7}
  #allocation0 [shape = 'u32[]', space=smem, size = 0x4, offset = 0x4, fixed_abs, tag = 'smem constant byte address 0x4 - core index']
  #allocation1 [shape = 'u32[72,128]{1,0:T(1,128)}', space=vmem, size = 0x9000, scoped, tag = 'internal scratch']
  #allocation2 [shape = 'f32[8,64]{1,0:T(8,128)}', space=vmem, size = 0x1000, scoped, tag = 'scratch operand']
  %s0 = inlined_call_operand.vmem [shape: bf16[2,20,64], index: 0, kind: input, shape index: {}]
  %s1 = inlined_call_operand.vmem [shape: bf16[9,64,64], index: 1, kind: input, shape index: {}]
  %s2 = inlined_call_operand.vmem [shape: f32[1,64], index: 2, kind: input, shape index: {}]
  %s3 = inlined_call_operand.vmem [shape: f32[1,64], index: 3, kind: input, shape index: {}]
  %s4 = inlined_call_operand.vmem [shape: bf16[1,1,64,128], index: 4, kind: input, shape index: {}]
  %s5 = inlined_call_operand.vmem [shape: f32[1,128], index: 5, kind: input, shape index: {}]
  %s6 = inlined_call_operand.hbm [shape: f32[2,1,128], index: 6, kind: output, shape index: {}]
  %s7 = sld [smem:[#allocation0]]
  $region57: #{upper_forward.7} parent=0
    _
  %s9 = ssub.s32 1, %s7
  %s10 = scalar_select 0, %s9, %s7
  $region1: #{upper_forward.7} parent=0
    #allocation3 [shape = 'u8[1024]{0}', space=vmem, size = 0x400, scoped, tag = 'output window, operand 0']
    #allocation4 [shape = 's32[2]{0}', space=sflag, size = 0x8, scoped, tag = 'scoped memory for upper_forward.7']
    %11 = vsyncpa [#allocation4], 0
    %s12 = scalar_lea.sflag [#allocation4], 1
    %13 = vsyncpa %s12, 0
    loop: start=0, step=1, limit=4
    $region2: #{upper_forward.7} parent=1 // loop_pre_header
      _
    $region3: #{upper_forward.7} parent=1 // loop_header
      %s15 = sphi 0, %s19
      %p16 = scmp.ge.s32.totalorder %s15, 4
      %s25 = sphi 0, %s27
      %s28 = sphi 0, %s25
      %s29 = sphi 0, %s28
      %s45 = sphi 0, %s29
      %s49 = sphi 0, %s49
      %s51 = sphi 0, %s49
      %s52 = sphi 0, %s51
      %s66 = sphi 0, %s52
      %s70 = sphi 0, %s70
      %s72 = sphi 0, %s70
      %s73 = sphi 0, %s72
      %s87 = sphi 0, %s73
      %s91 = sphi 0, %s91
      %s93 = sphi 0, %s91
      %s94 = sphi 0, %s93
      %s108 = sphi 0, %s94
      %s112 = sphi 0, %s112
      %s114 = sphi 0, %s112
      %s115 = sphi 0, %s114
      %s129 = sphi 0, %s115
      %s133 = sphi 0, %s133
      %s135 = sphi 0, %s133
      %s136 = sphi 0, %s135
      %s150 = sphi 0, %s136
      %s156 = sphi 0, %s158
      %s159 = sphi 0, %s156
      %s160 = sphi 0, %s159
      %s176 = sphi 0, %s160
    $region4: #{upper_forward.7} parent=1 // loop_header_branch
      %18 = sbr.rel (%p16) target = $region8
    $region5: #{upper_forward.7} parent=1 // loop_body
      %s20 = ssub.s32 %s15, 1
      %s21 = ssub.s32 %s15, 2
      %s22 = sadd.s32 %s15, 1
      %s23 = ssub.s32 %s15, %s22
      %p24 = scmp.eq.s32.totalorder %s23, 0
      %s26 = sadd.s32 %s25, 1
      %s27 = scalar_select %p24, %s25, %s26
      %p30 = pneg %p24
      %p31 = scmp.eq.s32.totalorder %s15, 1
      %p32 = por %p30, %p31
      %p33 = scmp.ne.s32.totalorder %s25, %s28
      %p34 = scmp.eq.s32.totalorder %s15, 0
      %p35 = por %p33, %p34
      %p36 = scmp.ne.s32.totalorder %s25, %s28
      %p37 = scmp.eq.s32.totalorder %s20, 1
      %p38 = por %p36, %p37
      %p39 = scmp.ne.s32.totalorder %s28, %s29
      %p40 = scmp.eq.s32.totalorder %s20, 0
      %p41 = por %p39, %p40
      %p42 = scmp.ne.s32.totalorder %s28, %s29
      %p43 = scmp.eq.s32.totalorder %s21, 1
      %p44 = por %p42, %p43
      %p46 = scmp.ne.s32.totalorder %s29, %s45
      %p47 = scmp.eq.s32.totalorder %s21, 0
      %p48 = por %p46, %p47
      %s50 = sadd.s32 %s49, 1
      %p53 = scmp.eq.s32.totalorder %s15, 1
      %p54 = scmp.ne.s32.totalorder %s49, %s51
      %p55 = scmp.eq.s32.totalorder %s15, 0
      %p56 = por %p54, %p55
      %p57 = scmp.ne.s32.totalorder %s49, %s51
      %p58 = scmp.eq.s32.totalorder %s20, 1
      %p59 = por %p57, %p58
      %p60 = scmp.ne.s32.totalorder %s51, %s52
      %p61 = scmp.eq.s32.totalorder %s20, 0
      %p62 = por %p60, %p61
      %p63 = scmp.ne.s32.totalorder %s51, %s52
      %p64 = scmp.eq.s32.totalorder %s21, 1
      %p65 = por %p63, %p64
      %p67 = scmp.ne.s32.totalorder %s52, %s66
      %p68 = scmp.eq.s32.totalorder %s21, 0
      %p69 = por %p67, %p68
      %s71 = sadd.s32 %s70, 1
      %p74 = scmp.eq.s32.totalorder %s15, 1
      %p75 = scmp.ne.s32.totalorder %s70, %s72
      %p76 = scmp.eq.s32.totalorder %s15, 0
      %p77 = por %p75, %p76
      %p78 = scmp.ne.s32.totalorder %s70, %s72
      %p79 = scmp.eq.s32.totalorder %s20, 1
      %p80 = por %p78, %p79
      %p81 = scmp.ne.s32.totalorder %s72, %s73
      %p82 = scmp.eq.s32.totalorder %s20, 0
      %p83 = por %p81, %p82
      %p84 = scmp.ne.s32.totalorder %s72, %s73
      %p85 = scmp.eq.s32.totalorder %s21, 1
      %p86 = por %p84, %p85
      %p88 = scmp.ne.s32.totalorder %s73, %s87
      %p89 = scmp.eq.s32.totalorder %s21, 0
      %p90 = por %p88, %p89
      %s92 = sadd.s32 %s91, 1
      %p95 = scmp.eq.s32.totalorder %s15, 1
      %p96 = scmp.ne.s32.totalorder %s91, %s93
      %p97 = scmp.eq.s32.totalorder %s15, 0
      %p98 = por %p96, %p97
      %p99 = scmp.ne.s32.totalorder %s91, %s93
      %p100 = scmp.eq.s32.totalorder %s20, 1
      %p101 = por %p99, %p100
      %p102 = scmp.ne.s32.totalorder %s93, %s94
      %p103 = scmp.eq.s32.totalorder %s20, 0
      %p104 = por %p102, %p103
      %p105 = scmp.ne.s32.totalorder %s93, %s94
      %p106 = scmp.eq.s32.totalorder %s21, 1
      %p107 = por %p105, %p106
      %p109 = scmp.ne.s32.totalorder %s94, %s108
      %p110 = scmp.eq.s32.totalorder %s21, 0
      %p111 = por %p109, %p110
      %s113 = sadd.s32 %s112, 1
      %p116 = scmp.eq.s32.totalorder %s15, 1
      %p117 = scmp.ne.s32.totalorder %s112, %s114
      %p118 = scmp.eq.s32.totalorder %s15, 0
      %p119 = por %p117, %p118
      %p120 = scmp.ne.s32.totalorder %s112, %s114
      %p121 = scmp.eq.s32.totalorder %s20, 1
      %p122 = por %p120, %p121
      %p123 = scmp.ne.s32.totalorder %s114, %s115
      %p124 = scmp.eq.s32.totalorder %s20, 0
      %p125 = por %p123, %p124
      %p126 = scmp.ne.s32.totalorder %s114, %s115
      %p127 = scmp.eq.s32.totalorder %s21, 1
      %p128 = por %p126, %p127
      %p130 = scmp.ne.s32.totalorder %s115, %s129
      %p131 = scmp.eq.s32.totalorder %s21, 0
      %p132 = por %p130, %p131
      %s134 = sadd.s32 %s133, 1
      %p137 = scmp.eq.s32.totalorder %s15, 1
      %p138 = scmp.ne.s32.totalorder %s133, %s135
      %p139 = scmp.eq.s32.totalorder %s15, 0
      %p140 = por %p138, %p139
      %p141 = scmp.ne.s32.totalorder %s133, %s135
      %p142 = scmp.eq.s32.totalorder %s20, 1
      %p143 = por %p141, %p142
      %p144 = scmp.ne.s32.totalorder %s135, %s136
      %p145 = scmp.eq.s32.totalorder %s20, 0
      %p146 = por %p144, %p145
      %p147 = scmp.ne.s32.totalorder %s135, %s136
      %p148 = scmp.eq.s32.totalorder %s21, 1
      %p149 = por %p147, %p148
      %p151 = scmp.ne.s32.totalorder %s136, %s150
      %p152 = scmp.eq.s32.totalorder %s21, 0
      %p153 = por %p151, %p152
      %s154 = ssub.s32 %s15, %s22
      %p155 = scmp.eq.s32.totalorder %s154, 0
      %s157 = sadd.s32 %s156, 1
      %s158 = scalar_select %p155, %s156, %s157
      %p161 = pneg %p155
      %p162 = scmp.eq.s32.totalorder %s15, 1
      %p163 = por %p161, %p162
      %p164 = scmp.ne.s32.totalorder %s156, %s159
      %p165 = scmp.eq.s32.totalorder %s15, 0
      %p166 = por %p164, %p165
      %p167 = scmp.ne.s32.totalorder %s156, %s159
      %p168 = scmp.eq.s32.totalorder %s20, 1
      %p169 = por %p167, %p168
      %p170 = scmp.ne.s32.totalorder %s159, %s160
      %p171 = scmp.eq.s32.totalorder %s20, 0
      %p172 = por %p170, %p171
      %p173 = scmp.ne.s32.totalorder %s159, %s160
      %p174 = scmp.eq.s32.totalorder %s21, 1
      %p175 = por %p173, %p174
      %p177 = scmp.ne.s32.totalorder %s160, %s176
      %p178 = scmp.eq.s32.totalorder %s21, 0
      %p179 = por %p177, %p178
      %p180 = scmp.le.s32.totalorder 1, %s15
      %p181 = scmp.lt.s32.totalorder %s15, 3
      %p182 = pnand %p180, %p181
      %p183 = pneg %p182
      // Predicated region
      $region9: #{upper_forward.7} parent=5 // pred_check
        _
      $region10: #{upper_forward.7} parent=5 // pred_check_branch
        %185 = sbr.rel (%p182) target = $region12
      $region11: #{upper_forward.7} parent=5 // pred_region
        %s186 = ssub.s32 %s15, 1
        // Predicated region
        $region13: #{upper_forward.7} parent=11 // pred_check
          %p187 = pneg %p62
        $region14: #{upper_forward.7} parent=11 // pred_check_branch
          %189 = sbr.rel (%p187) target = $region16
        $region15: #{upper_forward.7} parent=11 // pred_region
          _
        $region16: #{upper_forward.7} parent=11 // pred_fallthru
          _
        // Predicated region
        $region17: #{upper_forward.7} parent=11 // pred_check
          %p190 = pneg %p83
        $region18: #{upper_forward.7} parent=11 // pred_check_branch
          %192 = sbr.rel (%p190) target = $region20
        $region19: #{upper_forward.7} parent=11 // pred_region
          _
        $region20: #{upper_forward.7} parent=11 // pred_fallthru
          _
        // Predicated region
        $region21: #{upper_forward.7} parent=11 // pred_check
          %p193 = pneg %p104
        $region22: #{upper_forward.7} parent=11 // pred_check_branch
          %195 = sbr.rel (%p193) target = $region24
        $region23: #{upper_forward.7} parent=11 // pred_region
          _
        $region24: #{upper_forward.7} parent=11 // pred_fallthru
          _
        // Predicated region
        $region25: #{upper_forward.7} parent=11 // pred_check
          %p196 = pneg %p125
        $region26: #{upper_forward.7} parent=11 // pred_check_branch
          %198 = sbr.rel (%p196) target = $region28
        $region27: #{upper_forward.7} parent=11 // pred_region
          _
        $region28: #{upper_forward.7} parent=11 // pred_fallthru
          _
        // Predicated region
        $region29: #{upper_forward.7} parent=11 // pred_check
          %p199 = pneg %p146
        $region30: #{upper_forward.7} parent=11 // pred_check_branch
          %201 = sbr.rel (%p199) target = $region32
        $region31: #{upper_forward.7} parent=11 // pred_region
          _
        $region32: #{upper_forward.7} parent=11 // pred_fallthru
          _
      $region12: #{upper_forward.7} parent=5 // pred_fallthru
        _
      %p202 = scmp.lt.s32.totalorder %s15, 2
      // Predicated region
      $region33: #{upper_forward.7} parent=5 // pred_check
        %p203 = pneg %p202
      $region34: #{upper_forward.7} parent=5 // pred_check_branch
        %205 = sbr.rel (%p203) target = $region36
      $region35: #{upper_forward.7} parent=5 // pred_region
        // Predicated region
        $region37: #{upper_forward.7} parent=35 // pred_check
          %p206 = pneg %p35
        $region38: #{upper_forward.7} parent=35 // pred_check_branch
          %208 = sbr.rel (%p206) target = $region40
        $region39: #{upper_forward.7} parent=35 // pred_region
          %p209 = scmp.lt.s32.totalorder %s15, 1
          %s210 = scalar_select %p209, %s15, 1
          %s211 = smul.addr %s210, 3
          %s212 = smul.addr %s211, 4
          %s213 = scalar_lea.vmem %s0, %s212
        $region40: #{upper_forward.7} parent=35 // pred_fallthru
          _
      $region36: #{upper_forward.7} parent=5 // pred_fallthru
        _
      %p214 = scmp.le.s32.totalorder 1, %s15
      %p215 = scmp.lt.s32.totalorder %s15, 3
      %p216 = pnand %p214, %p215
      %p217 = pneg %p216
      // Predicated region
      $region41: #{upper_forward.7} parent=5 // pred_check
        _
      $region42: #{upper_forward.7} parent=5 // pred_check_branch
        %219 = sbr.rel (%p216) target = $region44
      $region43: #{upper_forward.7} parent=5 // pred_region
        %s220 = ssub.s32 %s15, 1
        %p221 = scmp.lt.s32.totalorder %s20, 1
        %s222 = scalar_select %p221, %s20, 1
        %s223 = smul.addr %s222, 3
        %s224 = smul.addr %s223, 4
        %s225 = scalar_lea.vmem %s0, %s224
        %p226 = pneg %p41
        %p227 = pneg %p38
        %p228 = pneg %p62
        %p229 = pneg %p59
        %p230 = pneg %p83
        %p231 = pneg %p80
        %p232 = pneg %p104
        %p233 = pneg %p101
        %p234 = pneg %p125
        %p235 = pneg %p122
        %p236 = pneg %p146
        %p237 = pneg %p143
        %p238 = pneg %p172
        %p239 = pneg %p169
        %s240 = sand.u32 %s159, 1
        %s241 = scalar_lea.sflag [#allocation4], %s240
        %s242 = sand.u32 %s159, 1
        %s243 = scalar_lea.vmem [#allocation3], %s242
        %p244 = scmp.lt.s32.totalorder %s20, 1
        %s245 = scalar_select %p244, %s20, 1
        %s246 = smul.addr %s245, 3
        %s247 = smul.addr %s246, 4
        %s248 = scalar_lea.vmem %s0, %s247
        %v250 = vld [vmem:[%s248] sm:$0xf]
        %v251 = vld [vmem:[%s1] sm:$0xf]
        %v252 = vld [vmem:[%s1 + $0x4] sm:$0xf]
        %v253 = vld [vmem:[%s1 + $0x8] sm:$0xf]
        %v254 = vld [vmem:[%s1 + $0xc] sm:$0xf]
        %v255 = vld [vmem:[%s1 + $0x10] sm:$0xf]
        %v256 = vld [vmem:[%s1 + $0x14] sm:$0xf]
        %v257 = vld [vmem:[%s1 + $0x18] sm:$0xf]
        %v258 = vld [vmem:[%s1 + $0x1c] sm:$0xf]
        %v267 = vunpack.c.l.b16 %v251
        %v268 = vunpack.c.l.b16 %v252
        %v269 = vunpack.c.l.b16 %v253
        %v270 = vunpack.c.l.b16 %v254
        %v271 = vunpack.c.l.b16 %v255
        %v272 = vunpack.c.l.b16 %v256
        %v273 = vunpack.c.l.b16 %v257
        %v274 = vunpack.c.l.b16 %v258
        %v275 = vpack.c.b16 %v268, %v267
        %v276 = vpack.c.b16 %v270, %v269
        %v277 = vpack.c.b16 %v272, %v271
        %v278 = vpack.c.b16 %v274, %v273
        %vm283 = vcmask 523264
        %v285 = vsel %vm283, %v250, 0
        %287 = vmatpush.bf16.msra.mxu0 0
        %288 = vmatpush.bf16.msra.mxu0 0
        %289 = vmatpush.bf16.msra.mxu0 0
        %290 = vmatpush.bf16.msra.mxu0 0
        %291 = vmatpush.bf16.msra.mxu0 %v278
        %292 = vmatpush.bf16.msra.mxu0 %v277
        %293 = vmatpush.bf16.msra.mxu0 %v276
        %294 = vmatpush.bf16.msra.mxu0 %v275
        %295 = vmatmul.bf16.gmra.mxu0 %v285
        %v296 = vpop.f32.mrf.mxu0
        %v297 = vadd.f32 0.0, %v296
        %v298 = vpop.f32.mrf.mxu0
        %299 = vdwg.mxu0
        %300 = vst.msk [vmem:[#allocation2] sm:$0xff] %vm283, %v297
        %v301 = vld [vmem:[%s248] sm:$0xf]
        %v302 = vld [vmem:[%s248 + $0x4] sm:$0x1]
        %s303 = scalar_lea.vmem %s1, 32
        %v304 = vld [vmem:[%s303] sm:$0xf]
        %v305 = vld [vmem:[%s303 + $0x4] sm:$0xf]
        %v306 = vld [vmem:[%s303 + $0x8] sm:$0xf]
        %v307 = vld [vmem:[%s303 + $0xc] sm:$0xf]
        %v308 = vld [vmem:[%s303 + $0x10] sm:$0xf]
        %v309 = vld [vmem:[%s303 + $0x14] sm:$0xf]
        %v310 = vld [vmem:[%s303 + $0x18] sm:$0xf]
        %v311 = vld [vmem:[%s303 + $0x1c] sm:$0xf]
        %v314 = vunpack.c.l.b16 %v301
        %v315 = vunpack.c.l.b16 %v302
        %v316 = vpack.c.b16 %v315, %v314
        %v318 = vshrl.u32 %v316, 16
        %v320 = vshll.u32 %v316, 16
        %v322 = vrot.slane %v320, 1
        %v323 = vor.u32 %v318, %v322
        %v332 = vunpack.c.l.b16 %v304
        %v333 = vunpack.c.l.b16 %v305
        %v334 = vunpack.c.l.b16 %v306
        %v335 = vunpack.c.l.b16 %v307
        %v336 = vunpack.c.l.b16 %v308
        %v337 = vunpack.c.l.b16 %v309
        %v338 = vunpack.c.l.b16 %v310
        %v339 = vunpack.c.l.b16 %v311
        %v340 = vpack.c.b16 %v333, %v332
        %v341 = vpack.c.b16 %v335, %v334
        %v342 = vpack.c.b16 %v337, %v336
        %v343 = vpack.c.b16 %v339, %v338
        %v349 = vsel %vm283, %v323, 0
        %351 = vmatpush.bf16.msra.mxu0 0
        %352 = vmatpush.bf16.msra.mxu0 0
        %353 = vmatpush.bf16.msra.mxu0 0
        %354 = vmatpush.bf16.msra.mxu0 0
        %355 = vmatpush.bf16.msra.mxu0 %v343
        %356 = vmatpush.bf16.msra.mxu0 %v342
        %357 = vmatpush.bf16.msra.mxu0 %v341
        %358 = vmatpush.bf16.msra.mxu0 %v340
        %359 = vmatmul.bf16.gmra.mxu0 %v349
        %v360 = vpop.f32.mrf.mxu0
        %v361 = vadd.f32 0.0, %v360
        %v362 = vpop.f32.mrf.mxu0
        %363 = vdwg.mxu0
        %v364 = vld [vmem:[#allocation2] sm:$0xff]
        %v365 = vadd.f32 %v364, %v361
        %366 = vst.msk [vmem:[#allocation2] sm:$0xff] %vm283, %v365
        %v367 = vld [vmem:[%s248] sm:$0xe]
        %v368 = vld [vmem:[%s248 + $0x4] sm:$0x1]
        %s369 = scalar_lea.vmem %s1, 64
        %v370 = vld [vmem:[%s369] sm:$0xf]
        %v371 = vld [vmem:[%s369 + $0x4] sm:$0xf]
        %v372 = vld [vmem:[%s369 + $0x8] sm:$0xf]
        %v373 = vld [vmem:[%s369 + $0xc] sm:$0xf]
        %v374 = vld [vmem:[%s369 + $0x10] sm:$0xf]
        %v375 = vld [vmem:[%s369 + $0x14] sm:$0xf]
        %v376 = vld [vmem:[%s369 + $0x18] sm:$0xf]
        %v377 = vld [vmem:[%s369 + $0x1c] sm:$0xf]
        %v380 = vunpack.c.l.b16 %v367
        %v381 = vunpack.c.l.b16 %v368
        %v382 = vpack.c.b16 %v381, %v380
        %v383 = vrot.slane %v382, 1
        %v392 = vunpack.c.l.b16 %v370
        %v393 = vunpack.c.l.b16 %v371
        %v394 = vunpack.c.l.b16 %v372
        %v395 = vunpack.c.l.b16 %v373
        %v396 = vunpack.c.l.b16 %v374
        %v397 = vunpack.c.l.b16 %v375
        %v398 = vunpack.c.l.b16 %v376
        %v399 = vunpack.c.l.b16 %v377
        %v400 = vpack.c.b16 %v393, %v392
        %v401 = vpack.c.b16 %v395, %v394
        %v402 = vpack.c.b16 %v397, %v396
        %v403 = vpack.c.b16 %v399, %v398
        %v409 = vsel %vm283, %v383, 0
        %411 = vmatpush.bf16.msra.mxu0 0
        %412 = vmatpush.bf16.msra.mxu0 0
        %413 = vmatpush.bf16.msra.mxu0 0
        %414 = vmatpush.bf16.msra.mxu0 0
        %415 = vmatpush.bf16.msra.mxu0 %v403
        %416 = vmatpush.bf16.msra.mxu0 %v402
        %417 = vmatpush.bf16.msra.mxu0 %v401
        %418 = vmatpush.bf16.msra.mxu0 %v400
        %419 = vmatmul.bf16.gmra.mxu0 %v409
        %v420 = vpop.f32.mrf.mxu0
        %v421 = vadd.f32 0.0, %v420
        %v422 = vpop.f32.mrf.mxu0
        %423 = vdwg.mxu0
        %v424 = vld [vmem:[#allocation2] sm:$0xff]
        %v425 = vadd.f32 %v424, %v421
        %426 = vst.msk [vmem:[#allocation2] sm:$0xff] %vm283, %v425
        %v427 = vld [vmem:[%s248] sm:$0xc]
        %v428 = vld [vmem:[%s248 + $0x4] sm:$0x3]
        %s429 = scalar_lea.vmem %s1, 96
        %v430 = vld [vmem:[%s429] sm:$0xf]
        %v431 = vld [vmem:[%s429 + $0x4] sm:$0xf]
        %v432 = vld [vmem:[%s429 + $0x8] sm:$0xf]
        %v433 = vld [vmem:[%s429 + $0xc] sm:$0xf]
        %v434 = vld [vmem:[%s429 + $0x10] sm:$0xf]
        %v435 = vld [vmem:[%s429 + $0x14] sm:$0xf]
        %v436 = vld [vmem:[%s429 + $0x18] sm:$0xf]
        %v437 = vld [vmem:[%s429 + $0x1c] sm:$0xf]
        %v440 = vunpack.c.l.b16 %v427
        %v441 = vunpack.c.l.b16 %v428
        %v442 = vpack.c.b16 %v441, %v440
        %v443 = vrot.slane %v442, 2
        %v452 = vunpack.c.l.b16 %v430
        %v453 = vunpack.c.l.b16 %v431
        %v454 = vunpack.c.l.b16 %v432
        %v455 = vunpack.c.l.b16 %v433
        %v456 = vunpack.c.l.b16 %v434
        %v457 = vunpack.c.l.b16 %v435
        %v458 = vunpack.c.l.b16 %v436
        %v459 = vunpack.c.l.b16 %v437
        %v460 = vpack.c.b16 %v453, %v452
        %v461 = vpack.c.b16 %v455, %v454
        %v462 = vpack.c.b16 %v457, %v456
        %v463 = vpack.c.b16 %v459, %v458
        %v469 = vsel %vm283, %v443, 0
        %471 = vmatpush.bf16.msra.mxu0 0
        %472 = vmatpush.bf16.msra.mxu0 0
        %473 = vmatpush.bf16.msra.mxu0 0
        %474 = vmatpush.bf16.msra.mxu0 0
        %475 = vmatpush.bf16.msra.mxu0 %v463
        %476 = vmatpush.bf16.msra.mxu0 %v462
        %477 = vmatpush.bf16.msra.mxu0 %v461
        %478 = vmatpush.bf16.msra.mxu0 %v460
        %479 = vmatmul.bf16.gmra.mxu0 %v469
        %v480 = vpop.f32.mrf.mxu0
        %v481 = vadd.f32 0.0, %v480
        %v482 = vpop.f32.mrf.mxu0
        %483 = vdwg.mxu0
        %v484 = vld [vmem:[#allocation2] sm:$0xff]
        %v485 = vadd.f32 %v484, %v481
        %486 = vst.msk [vmem:[#allocation2] sm:$0xff] %vm283, %v485
        %v487 = vld [vmem:[%s248] sm:$0xc]
        %v488 = vld [vmem:[%s248 + $0x4] sm:$0x7]
        %s489 = scalar_lea.vmem %s1, 128
        %v490 = vld [vmem:[%s489] sm:$0xf]
        %v491 = vld [vmem:[%s489 + $0x4] sm:$0xf]
        %v492 = vld [vmem:[%s489 + $0x8] sm:$0xf]
        %v493 = vld [vmem:[%s489 + $0xc] sm:$0xf]
        %v494 = vld [vmem:[%s489 + $0x10] sm:$0xf]
        %v495 = vld [vmem:[%s489 + $0x14] sm:$0xf]
        %v496 = vld [vmem:[%s489 + $0x18] sm:$0xf]
        %v497 = vld [vmem:[%s489 + $0x1c] sm:$0xf]
        %v500 = vunpack.c.l.b16 %v487
        %v501 = vunpack.c.l.b16 %v488
        %v502 = vpack.c.b16 %v501, %v500
        %v504 = vshrl.u32 %v502, 16
        %v506 = vrot.slane %v504, 2
        %v507 = vshll.u32 %v502, 16
        %v509 = vrot.slane %v507, 3
        %v510 = vor.u32 %v506, %v509
        %v519 = vunpack.c.l.b16 %v490
        %v520 = vunpack.c.l.b16 %v491
        %v521 = vunpack.c.l.b16 %v492
        %v522 = vunpack.c.l.b16 %v493
        %v523 = vunpack.c.l.b16 %v494
        %v524 = vunpack.c.l.b16 %v495
        %v525 = vunpack.c.l.b16 %v496
        %v526 = vunpack.c.l.b16 %v497
        %v527 = vpack.c.b16 %v520, %v519
        %v528 = vpack.c.b16 %v522, %v521
        %v529 = vpack.c.b16 %v524, %v523
        %v530 = vpack.c.b16 %v526, %v525
        %v536 = vsel %vm283, %v510, 0
        %538 = vmatpush.bf16.msra.mxu0 0
        %539 = vmatpush.bf16.msra.mxu0 0
        %540 = vmatpush.bf16.msra.mxu0 0
        %541 = vmatpush.bf16.msra.mxu0 0
        %542 = vmatpush.bf16.msra.mxu0 %v530
        %543 = vmatpush.bf16.msra.mxu0 %v529
        %544 = vmatpush.bf16.msra.mxu0 %v528
        %545 = vmatpush.bf16.msra.mxu0 %v527
        %546 = vmatmul.bf16.gmra.mxu0 %v536
        %v547 = vpop.f32.mrf.mxu0
        %v548 = vadd.f32 0.0, %v547
        %v549 = vpop.f32.mrf.mxu0
        %550 = vdwg.mxu0
        %v551 = vld [vmem:[#allocation2] sm:$0xff]
        %v552 = vadd.f32 %v551, %v548
        %553 = vst.msk [vmem:[#allocation2] sm:$0xff] %vm283, %v552
        %v554 = vld [vmem:[%s248] sm:$0x8]
        %v555 = vld [vmem:[%s248 + $0x4] sm:$0x7]
        %s556 = scalar_lea.vmem %s1, 160
        %v557 = vld [vmem:[%s556] sm:$0xf]
        %v558 = vld [vmem:[%s556 + $0x4] sm:$0xf]
        %v559 = vld [vmem:[%s556 + $0x8] sm:$0xf]
        %v560 = vld [vmem:[%s556 + $0xc] sm:$0xf]
        %v561 = vld [vmem:[%s556 + $0x10] sm:$0xf]
        %v562 = vld [vmem:[%s556 + $0x14] sm:$0xf]
        %v563 = vld [vmem:[%s556 + $0x18] sm:$0xf]
        %v564 = vld [vmem:[%s556 + $0x1c] sm:$0xf]
        %v567 = vunpack.c.l.b16 %v554
        %v568 = vunpack.c.l.b16 %v555
        %v569 = vpack.c.b16 %v568, %v567
        %v570 = vrot.slane %v569, 3
        %v579 = vunpack.c.l.b16 %v557
        %v580 = vunpack.c.l.b16 %v558
        %v581 = vunpack.c.l.b16 %v559
        %v582 = vunpack.c.l.b16 %v560
        %v583 = vunpack.c.l.b16 %v561
        %v584 = vunpack.c.l.b16 %v562
        %v585 = vunpack.c.l.b16 %v563
        %v586 = vunpack.c.l.b16 %v564
        %v587 = vpack.c.b16 %v580, %v579
        %v588 = vpack.c.b16 %v582, %v581
        %v589 = vpack.c.b16 %v584, %v583
        %v590 = vpack.c.b16 %v586, %v585
        %v596 = vsel %vm283, %v570, 0
        %598 = vmatpush.bf16.msra.mxu0 0
        %599 = vmatpush.bf16.msra.mxu0 0
        %600 = vmatpush.bf16.msra.mxu0 0
        %601 = vmatpush.bf16.msra.mxu0 0
        %602 = vmatpush.bf16.msra.mxu0 %v590
        %603 = vmatpush.bf16.msra.mxu0 %v589
        %604 = vmatpush.bf16.msra.mxu0 %v588
        %605 = vmatpush.bf16.msra.mxu0 %v587
        %606 = vmatmul.bf16.gmra.mxu0 %v596
        %v607 = vpop.f32.mrf.mxu0
        %v608 = vadd.f32 0.0, %v607
        %v609 = vpop.f32.mrf.mxu0
        %610 = vdwg.mxu0
        %v611 = vld [vmem:[#allocation2] sm:$0xff]
        %v612 = vadd.f32 %v611, %v608
        %613 = vst.msk [vmem:[#allocation2] sm:$0xff] %vm283, %v612
        %v614 = vld [vmem:[%s248 + $0x4] sm:$0xf]
        %s615 = scalar_lea.vmem %s1, 192
        %v616 = vld [vmem:[%s615] sm:$0xf]
        %v617 = vld [vmem:[%s615 + $0x4] sm:$0xf]
        %v618 = vld [vmem:[%s615 + $0x8] sm:$0xf]
        %v619 = vld [vmem:[%s615 + $0xc] sm:$0xf]
        %v620 = vld [vmem:[%s615 + $0x10] sm:$0xf]
        %v621 = vld [vmem:[%s615 + $0x14] sm:$0xf]
        %v622 = vld [vmem:[%s615 + $0x18] sm:$0xf]
        %v623 = vld [vmem:[%s615 + $0x1c] sm:$0xf]
        %v632 = vunpack.c.l.b16 %v616
        %v633 = vunpack.c.l.b16 %v617
        %v634 = vunpack.c.l.b16 %v618
        %v635 = vunpack.c.l.b16 %v619
        %v636 = vunpack.c.l.b16 %v620
        %v637 = vunpack.c.l.b16 %v621
        %v638 = vunpack.c.l.b16 %v622
        %v639 = vunpack.c.l.b16 %v623
        %v640 = vpack.c.b16 %v633, %v632
        %v641 = vpack.c.b16 %v635, %v634
        %v642 = vpack.c.b16 %v637, %v636
        %v643 = vpack.c.b16 %v639, %v638
        %v649 = vsel %vm283, %v614, 0
        %651 = vmatpush.bf16.msra.mxu0 0
        %652 = vmatpush.bf16.msra.mxu0 0
        %653 = vmatpush.bf16.msra.mxu0 0
        %654 = vmatpush.bf16.msra.mxu0 0
        %655 = vmatpush.bf16.msra.mxu0 %v643
        %656 = vmatpush.bf16.msra.mxu0 %v642
        %657 = vmatpush.bf16.msra.mxu0 %v641
        %658 = vmatpush.bf16.msra.mxu0 %v640
        %659 = vmatmul.bf16.gmra.mxu0 %v649
        %v660 = vpop.f32.mrf.mxu0
        %v661 = vadd.f32 0.0, %v660
        %v662 = vpop.f32.mrf.mxu0
        %663 = vdwg.mxu0
        %v664 = vld [vmem:[#allocation2] sm:$0xff]
        %v665 = vadd.f32 %v664, %v661
        %666 = vst.msk [vmem:[#allocation2] sm:$0xff] %vm283, %v665
        %v667 = vld [vmem:[%s248 + $0x4] sm:$0xf]
        %v668 = vld [vmem:[%s248 + $0x8] sm:$0x1]
        %s669 = scalar_lea.vmem %s1, 224
        %v670 = vld [vmem:[%s669] sm:$0xf]
        %v671 = vld [vmem:[%s669 + $0x4] sm:$0xf]
        %v672 = vld [vmem:[%s669 + $0x8] sm:$0xf]
        %v673 = vld [vmem:[%s669 + $0xc] sm:$0xf]
        %v674 = vld [vmem:[%s669 + $0x10] sm:$0xf]
        %v675 = vld [vmem:[%s669 + $0x14] sm:$0xf]
        %v676 = vld [vmem:[%s669 + $0x18] sm:$0xf]
        %v677 = vld [vmem:[%s669 + $0x1c] sm:$0xf]
        %v680 = vunpack.c.l.b16 %v667
        %v681 = vunpack.c.l.b16 %v668
        %v682 = vpack.c.b16 %v681, %v680
        %v684 = vshrl.u32 %v682, 16
        %v686 = vshll.u32 %v682, 16
        %v688 = vrot.slane %v686, 1
        %v689 = vor.u32 %v684, %v688
        %v698 = vunpack.c.l.b16 %v670
        %v699 = vunpack.c.l.b16 %v671
        %v700 = vunpack.c.l.b16 %v672
        %v701 = vunpack.c.l.b16 %v673
        %v702 = vunpack.c.l.b16 %v674
        %v703 = vunpack.c.l.b16 %v675
        %v704 = vunpack.c.l.b16 %v676
        %v705 = vunpack.c.l.b16 %v677
        %v706 = vpack.c.b16 %v699, %v698
        %v707 = vpack.c.b16 %v701, %v700
        %v708 = vpack.c.b16 %v703, %v702
        %v709 = vpack.c.b16 %v705, %v704
        %v715 = vsel %vm283, %v689, 0
        %717 = vmatpush.bf16.msra.mxu0 0
        %718 = vmatpush.bf16.msra.mxu0 0
        %719 = vmatpush.bf16.msra.mxu0 0
        %720 = vmatpush.bf16.msra.mxu0 0
        %721 = vmatpush.bf16.msra.mxu0 %v709
        %722 = vmatpush.bf16.msra.mxu0 %v708
        %723 = vmatpush.bf16.msra.mxu0 %v707
        %724 = vmatpush.bf16.msra.mxu0 %v706
        %725 = vmatmul.bf16.gmra.mxu0 %v715
        %v726 = vpop.f32.mrf.mxu0
        %v727 = vadd.f32 0.0, %v726
        %v728 = vpop.f32.mrf.mxu0
        %729 = vdwg.mxu0
        %v730 = vld [vmem:[#allocation2] sm:$0xff]
        %v731 = vadd.f32 %v730, %v727
        %732 = vst.msk [vmem:[#allocation2] sm:$0xff] %vm283, %v731
        %v733 = vld [vmem:[%s248 + $0x4] sm:$0xe]
        %v734 = vld [vmem:[%s248 + $0x8] sm:$0x1]
        %s735 = scalar_lea.vmem %s1, 256
        %v736 = vld [vmem:[%s735] sm:$0xf]
        %v737 = vld [vmem:[%s735 + $0x4] sm:$0xf]
        %v738 = vld [vmem:[%s735 + $0x8] sm:$0xf]
        %v739 = vld [vmem:[%s735 + $0xc] sm:$0xf]
        %v740 = vld [vmem:[%s735 + $0x10] sm:$0xf]
        %v741 = vld [vmem:[%s735 + $0x14] sm:$0xf]
        %v742 = vld [vmem:[%s735 + $0x18] sm:$0xf]
        %v743 = vld [vmem:[%s735 + $0x1c] sm:$0xf]
        %v746 = vunpack.c.l.b16 %v733
        %v747 = vunpack.c.l.b16 %v734
        %v748 = vpack.c.b16 %v747, %v746
        %v749 = vrot.slane %v748, 1
        %v758 = vunpack.c.l.b16 %v736
        %v759 = vunpack.c.l.b16 %v737
        %v760 = vunpack.c.l.b16 %v738
        %v761 = vunpack.c.l.b16 %v739
        %v762 = vunpack.c.l.b16 %v740
        %v763 = vunpack.c.l.b16 %v741
        %v764 = vunpack.c.l.b16 %v742
        %v765 = vunpack.c.l.b16 %v743
        %v766 = vpack.c.b16 %v759, %v758
        %v767 = vpack.c.b16 %v761, %v760
        %v768 = vpack.c.b16 %v763, %v762
        %v769 = vpack.c.b16 %v765, %v764
        %v775 = vsel %vm283, %v749, 0
        %777 = vmatpush.bf16.msra.mxu0 0
        %778 = vmatpush.bf16.msra.mxu0 0
        %779 = vmatpush.bf16.msra.mxu0 0
        %780 = vmatpush.bf16.msra.mxu0 0
        %781 = vmatpush.bf16.msra.mxu0 %v769
        %782 = vmatpush.bf16.msra.mxu0 %v768
        %783 = vmatpush.bf16.msra.mxu0 %v767
        %784 = vmatpush.bf16.msra.mxu0 %v766
        %785 = vmatmul.bf16.gmra.mxu0 %v775
        %v786 = vpop.f32.mrf.mxu0
        %v787 = vadd.f32 0.0, %v786
        %v788 = vpop.f32.mrf.mxu0
        %789 = vdwg.mxu0
        %v790 = vld [vmem:[#allocation2] sm:$0xff]
        %v791 = vadd.f32 %v790, %v787
        %792 = vst.msk [vmem:[#allocation2] sm:$0xff] %vm283, %v791
        %v793 = vld [vmem:[#allocation2] sm:$0xff]
        %v794 = vld [vmem:[%s2] sm:$0x1]
        %v796 = vperm.slane %v794, 0
        %v798 = vmul.f32 %v793, %v796
        %v799 = vld [vmem:[%s3] sm:$0x1]
        %v801 = vperm.slane %v799, 0
        %v803 = vadd.f32 %v798, %v801
        %v804 = vmax.f32 %v803, 0.0
        %805 = vst.msk [vmem:[#allocation2] sm:$0xff] %vm283, %v804
        %v806 = vld [vmem:[#allocation2] ss:$2 sm:$0x1]
        %s807 = scalar_lea.vmem [#allocation2], 1
        %v808 = vld [vmem:[%s807] ss:$2 sm:$0x1]
        %s809 = scalar_lea.vmem [#allocation2], 4
        %v810 = vld [vmem:[%s809] ss:$2 sm:$0x1]
        %s811 = scalar_lea.vmem [#allocation2], 5
        %v812 = vld [vmem:[%s811] ss:$2 sm:$0x1]
        %v813 = vmax.f32 %v806, %v808
        %v814 = vmax.f32 %v810, %v812
        %v815 = vmax.f32 %v813, %v814
        %v816 = vpack.c.bf16 %v815, %v815
        %v817 = vld [vmem:[%s4] sm:$0xf]
        %v818 = vld [vmem:[%s4 + $0x4] sm:$0xf]
        %v819 = vld [vmem:[%s4 + $0x8] sm:$0xf]
        %v820 = vld [vmem:[%s4 + $0xc] sm:$0xf]
        %v821 = vld [vmem:[%s4 + $0x10] sm:$0xf]
        %v822 = vld [vmem:[%s4 + $0x14] sm:$0xf]
        %v823 = vld [vmem:[%s4 + $0x18] sm:$0xf]
        %v824 = vld [vmem:[%s4 + $0x1c] sm:$0xf]
        %v825 = vld [vmem:[%s5] sm:$0x1]
        %v834 = vunpack.c.l.b16 %v817
        %v835 = vunpack.c.l.b16 %v818
        %v836 = vunpack.c.l.b16 %v819
        %v837 = vunpack.c.l.b16 %v820
        %v838 = vunpack.c.l.b16 %v821
        %v839 = vunpack.c.l.b16 %v822
        %v840 = vunpack.c.l.b16 %v823
        %v841 = vunpack.c.l.b16 %v824
        %v842 = vpack.c.b16 %v835, %v834
        %v843 = vpack.c.b16 %v837, %v836
        %v844 = vpack.c.b16 %v839, %v838
        %v845 = vpack.c.b16 %v841, %v840
        %v851 = vsel %vm283, %v816, 0
        %853 = vmatpush.bf16.msra.mxu0 0
        %854 = vmatpush.bf16.msra.mxu0 0
        %855 = vmatpush.bf16.msra.mxu0 0
        %856 = vmatpush.bf16.msra.mxu0 0
        %857 = vmatpush.bf16.msra.mxu0 %v845
        %858 = vmatpush.bf16.msra.mxu0 %v844
        %859 = vmatpush.bf16.msra.mxu0 %v843
        %860 = vmatpush.bf16.msra.mxu0 %v842
        %861 = vmatmul.bf16.gmra.mxu0 %v851
        %v862 = vpop.f32.mrf.mxu0
        %v863 = vadd.f32 %v825, %v862
        %v864 = vpop.f32.mrf.mxu0
        %865 = vdwg.mxu0
        %866 = vst [vmem:[%s243] sm:$0x1] %v863
        %s867 = sand.u32 %s159, 1
        %s868 = scalar_lea.sflag [#allocation4], %s867
        %s869 = sand.u32 %s159, 1
        %s870 = scalar_lea.vmem [#allocation3], %s869
        // Predicated region
        $region45: #{upper_forward.7} parent=43 // pred_check
          %p871 = pneg %p169
        $region46: #{upper_forward.7} parent=43 // pred_check_branch
          %873 = sbr.rel (%p871) target = $region48
        $region47: #{upper_forward.7} parent=43 // pred_region
          %875 = vsyncadd %s868, 0
          %s876 = scalar_lea.hbm %s6, %s20
          %s878 = sshll.u32 %s870, 4
          %s879 = int_to_ptr.vmem [resolvable:$true] %s878
          %s880 = sshll.u32 %s876, 4
          %s881 = int_to_ptr.hbm [resolvable:$true] %s880
          %883 = dma.vmem_to_hbm [thread:$0]  %s879, 16, %s881, %s868
        $region48: #{upper_forward.7} parent=43 // pred_fallthru
          _
      $region44: #{upper_forward.7} parent=5 // pred_fallthru
        _
      %p884 = scmp.le.s32.totalorder 2, %s15
      // Predicated region
      $region49: #{upper_forward.7} parent=5 // pred_check
        %p885 = pneg %p884
      $region50: #{upper_forward.7} parent=5 // pred_check_branch
        %887 = sbr.rel (%p885) target = $region52
      $region51: #{upper_forward.7} parent=5 // pred_region
        %s888 = ssub.s32 %s15, 2
        // Predicated region
        $region53: #{upper_forward.7} parent=51 // pred_check
          %p889 = pneg %p175
        $region54: #{upper_forward.7} parent=51 // pred_check_branch
          %891 = sbr.rel (%p889) target = $region56
        $region55: #{upper_forward.7} parent=51 // pred_region
          %s892 = sand.u32 %s160, 1
          %s893 = scalar_lea.sflag [#allocation4], %s892
          %s894 = sand.u32 %s160, 1
          %s895 = scalar_lea.vmem [#allocation3], %s894
          %897 = dma.done %s893, 16
        $region56: #{upper_forward.7} parent=51 // pred_fallthru
          _
      $region52: #{upper_forward.7} parent=5 // pred_fallthru
        _
    $region6: #{upper_forward.7} parent=1 // loop_footer
      %s19 = sadd.s32 1, %s15
    $region7: #{upper_forward.7} parent=1 // loop_footer_branch
      %14 = sbr.rel target = $region3
    $region8: #{upper_forward.7} parent=1 // loop_exit
      _
    %898 = vsyncpa [#allocation4], 1
    %s899 = scalar_lea.sflag [#allocation4], 1
    %900 = vsyncpa %s899, 1

// kernel: upper_forward.5
$region0: #{upper_forward.5}
  #allocation0 [shape = 'u32[]', space=smem, size = 0x4, offset = 0x4, fixed_abs, tag = 'smem constant byte address 0x4 - core index']
  #allocation1 [shape = 'u32[72,128]{1,0:T(1,128)}', space=vmem, size = 0x9000, scoped, tag = 'internal scratch']
  #allocation2 [shape = 'f32[80,64]{1,0:T(8,128)}', space=vmem, size = 0xa000, scoped, tag = 'scratch operand']
  %s0 = inlined_call_operand.vmem [shape: bf16[2,110,64], index: 0, kind: input, shape index: {}]
  %s1 = inlined_call_operand.vmem [shape: bf16[9,64,64], index: 1, kind: input, shape index: {}]
  %s2 = inlined_call_operand.vmem [shape: f32[1,64], index: 2, kind: input, shape index: {}]
  %s3 = inlined_call_operand.vmem [shape: f32[1,64], index: 3, kind: input, shape index: {}]
  %s4 = inlined_call_operand.vmem [shape: bf16[2,4,4,64], index: 4, kind: output, shape index: {}]
  %s5 = sld [smem:[#allocation0]]
  $region49: #{upper_forward.5} parent=0
    _
  %s7 = ssub.s32 1, %s5
  %s8 = scalar_select 0, %s7, %s5
  loop: start=0, step=1, limit=4
  $region2: #{upper_forward.5} parent=0 // loop_pre_header
    _
  $region3: #{upper_forward.5} parent=0 // loop_header
    %s10 = sphi 0, %s14
    %p11 = scmp.ge.s32.totalorder %s10, 4
    %s20 = sphi 0, %s22
    %s23 = sphi 0, %s20
    %s24 = sphi 0, %s23
    %s40 = sphi 0, %s24
    %s44 = sphi 0, %s44
    %s46 = sphi 0, %s44
    %s47 = sphi 0, %s46
    %s61 = sphi 0, %s47
    %s65 = sphi 0, %s65
    %s67 = sphi 0, %s65
    %s68 = sphi 0, %s67
    %s82 = sphi 0, %s68
    %s86 = sphi 0, %s86
    %s88 = sphi 0, %s86
    %s89 = sphi 0, %s88
    %s103 = sphi 0, %s89
    %s109 = sphi 0, %s111
    %s112 = sphi 0, %s109
    %s113 = sphi 0, %s112
    %s129 = sphi 0, %s113
  $region4: #{upper_forward.5} parent=0 // loop_header_branch
    %13 = sbr.rel (%p11) target = $region8
  $region5: #{upper_forward.5} parent=0 // loop_body
    %s15 = ssub.s32 %s10, 1
    %s16 = ssub.s32 %s10, 2
    %s17 = sadd.s32 %s10, 1
    %s18 = ssub.s32 %s10, %s17
    %p19 = scmp.eq.s32.totalorder %s18, 0
    %s21 = sadd.s32 %s20, 1
    %s22 = scalar_select %p19, %s20, %s21
    %p25 = pneg %p19
    %p26 = scmp.eq.s32.totalorder %s10, 1
    %p27 = por %p25, %p26
    %p28 = scmp.ne.s32.totalorder %s20, %s23
    %p29 = scmp.eq.s32.totalorder %s10, 0
    %p30 = por %p28, %p29
    %p31 = scmp.ne.s32.totalorder %s20, %s23
    %p32 = scmp.eq.s32.totalorder %s15, 1
    %p33 = por %p31, %p32
    %p34 = scmp.ne.s32.totalorder %s23, %s24
    %p35 = scmp.eq.s32.totalorder %s15, 0
    %p36 = por %p34, %p35
    %p37 = scmp.ne.s32.totalorder %s23, %s24
    %p38 = scmp.eq.s32.totalorder %s16, 1
    %p39 = por %p37, %p38
    %p41 = scmp.ne.s32.totalorder %s24, %s40
    %p42 = scmp.eq.s32.totalorder %s16, 0
    %p43 = por %p41, %p42
    %s45 = sadd.s32 %s44, 1
    %p48 = scmp.eq.s32.totalorder %s10, 1
    %p49 = scmp.ne.s32.totalorder %s44, %s46
    %p50 = scmp.eq.s32.totalorder %s10, 0
    %p51 = por %p49, %p50
    %p52 = scmp.ne.s32.totalorder %s44, %s46
    %p53 = scmp.eq.s32.totalorder %s15, 1
    %p54 = por %p52, %p53
    %p55 = scmp.ne.s32.totalorder %s46, %s47
    %p56 = scmp.eq.s32.totalorder %s15, 0
    %p57 = por %p55, %p56
    %p58 = scmp.ne.s32.totalorder %s46, %s47
    %p59 = scmp.eq.s32.totalorder %s16, 1
    %p60 = por %p58, %p59
    %p62 = scmp.ne.s32.totalorder %s47, %s61
    %p63 = scmp.eq.s32.totalorder %s16, 0
    %p64 = por %p62, %p63
    %s66 = sadd.s32 %s65, 1
    %p69 = scmp.eq.s32.totalorder %s10, 1
    %p70 = scmp.ne.s32.totalorder %s65, %s67
    %p71 = scmp.eq.s32.totalorder %s10, 0
    %p72 = por %p70, %p71
    %p73 = scmp.ne.s32.totalorder %s65, %s67
    %p74 = scmp.eq.s32.totalorder %s15, 1
    %p75 = por %p73, %p74
    %p76 = scmp.ne.s32.totalorder %s67, %s68
    %p77 = scmp.eq.s32.totalorder %s15, 0
    %p78 = por %p76, %p77
    %p79 = scmp.ne.s32.totalorder %s67, %s68
    %p80 = scmp.eq.s32.totalorder %s16, 1
    %p81 = por %p79, %p80
    %p83 = scmp.ne.s32.totalorder %s68, %s82
    %p84 = scmp.eq.s32.totalorder %s16, 0
    %p85 = por %p83, %p84
    %s87 = sadd.s32 %s86, 1
    %p90 = scmp.eq.s32.totalorder %s10, 1
    %p91 = scmp.ne.s32.totalorder %s86, %s88
    %p92 = scmp.eq.s32.totalorder %s10, 0
    %p93 = por %p91, %p92
    %p94 = scmp.ne.s32.totalorder %s86, %s88
    %p95 = scmp.eq.s32.totalorder %s15, 1
    %p96 = por %p94, %p95
    %p97 = scmp.ne.s32.totalorder %s88, %s89
    %p98 = scmp.eq.s32.totalorder %s15, 0
    %p99 = por %p97, %p98
    %p100 = scmp.ne.s32.totalorder %s88, %s89
    %p101 = scmp.eq.s32.totalorder %s16, 1
    %p102 = por %p100, %p101
    %p104 = scmp.ne.s32.totalorder %s89, %s103
    %p105 = scmp.eq.s32.totalorder %s16, 0
    %p106 = por %p104, %p105
    %s107 = ssub.s32 %s10, %s17
    %p108 = scmp.eq.s32.totalorder %s107, 0
    %s110 = sadd.s32 %s109, 1
    %s111 = scalar_select %p108, %s109, %s110
    %p114 = pneg %p108
    %p115 = scmp.eq.s32.totalorder %s10, 1
    %p116 = por %p114, %p115
    %p117 = scmp.ne.s32.totalorder %s109, %s112
    %p118 = scmp.eq.s32.totalorder %s10, 0
    %p119 = por %p117, %p118
    %p120 = scmp.ne.s32.totalorder %s109, %s112
    %p121 = scmp.eq.s32.totalorder %s15, 1
    %p122 = por %p120, %p121
    %p123 = scmp.ne.s32.totalorder %s112, %s113
    %p124 = scmp.eq.s32.totalorder %s15, 0
    %p125 = por %p123, %p124
    %p126 = scmp.ne.s32.totalorder %s112, %s113
    %p127 = scmp.eq.s32.totalorder %s16, 1
    %p128 = por %p126, %p127
    %p130 = scmp.ne.s32.totalorder %s113, %s129
    %p131 = scmp.eq.s32.totalorder %s16, 0
    %p132 = por %p130, %p131
    %p133 = scmp.le.s32.totalorder 1, %s10
    %p134 = scmp.lt.s32.totalorder %s10, 3
    %p135 = pnand %p133, %p134
    %p136 = pneg %p135
    // Predicated region
    $region9: #{upper_forward.5} parent=5 // pred_check
      _
    $region10: #{upper_forward.5} parent=5 // pred_check_branch
      %138 = sbr.rel (%p135) target = $region12
    $region11: #{upper_forward.5} parent=5 // pred_region
      %s139 = ssub.s32 %s10, 1
      // Predicated region
      $region13: #{upper_forward.5} parent=11 // pred_check
        %p140 = pneg %p57
      $region14: #{upper_forward.5} parent=11 // pred_check_branch
        %142 = sbr.rel (%p140) target = $region16
      $region15: #{upper_forward.5} parent=11 // pred_region
        _
      $region16: #{upper_forward.5} parent=11 // pred_fallthru
        _
      // Predicated region
      $region17: #{upper_forward.5} parent=11 // pred_check
        %p143 = pneg %p78
      $region18: #{upper_forward.5} parent=11 // pred_check_branch
        %145 = sbr.rel (%p143) target = $region20
      $region19: #{upper_forward.5} parent=11 // pred_region
        _
      $region20: #{upper_forward.5} parent=11 // pred_fallthru
        _
      // Predicated region
      $region21: #{upper_forward.5} parent=11 // pred_check
        %p146 = pneg %p99
      $region22: #{upper_forward.5} parent=11 // pred_check_branch
        %148 = sbr.rel (%p146) target = $region24
      $region23: #{upper_forward.5} parent=11 // pred_region
        _
      $region24: #{upper_forward.5} parent=11 // pred_fallthru
        _
    $region12: #{upper_forward.5} parent=5 // pred_fallthru
      _
    %p149 = scmp.lt.s32.totalorder %s10, 2
    // Predicated region
    $region25: #{upper_forward.5} parent=5 // pred_check
      %p150 = pneg %p149
    $region26: #{upper_forward.5} parent=5 // pred_check_branch
      %152 = sbr.rel (%p150) target = $region28
    $region27: #{upper_forward.5} parent=5 // pred_region
      // Predicated region
      $region29: #{upper_forward.5} parent=27 // pred_check
        %p153 = pneg %p30
      $region30: #{upper_forward.5} parent=27 // pred_check_branch
        %155 = sbr.rel (%p153) target = $region32
      $region31: #{upper_forward.5} parent=27 // pred_region
        %p156 = scmp.lt.s32.totalorder %s10, 1
        %s157 = scalar_select %p156, %s10, 1
        %s158 = smul.addr %s157, 14
        %s159 = smul.addr %s158, 4
        %s160 = scalar_lea.vmem %s0, %s159
      $region32: #{upper_forward.5} parent=27 // pred_fallthru
        _
    $region28: #{upper_forward.5} parent=5 // pred_fallthru
      _
    %p161 = scmp.le.s32.totalorder 1, %s10
    %p162 = scmp.lt.s32.totalorder %s10, 3
    %p163 = pnand %p161, %p162
    %p164 = pneg %p163
    // Predicated region
    $region33: #{upper_forward.5} parent=5 // pred_check
      _
    $region34: #{upper_forward.5} parent=5 // pred_check_branch
      %166 = sbr.rel (%p163) target = $region36
    $region35: #{upper_forward.5} parent=5 // pred_region
      %s167 = ssub.s32 %s10, 1
      %p168 = scmp.lt.s32.totalorder %s15, 1
      %s169 = scalar_select %p168, %s15, 1
      %s170 = smul.addr %s169, 14
      %s171 = smul.addr %s170, 4
      %s172 = scalar_lea.vmem %s0, %s171
      %p173 = pneg %p36
      %p174 = pneg %p33
      %p175 = pneg %p57
      %p176 = pneg %p54
      %p177 = pneg %p78
      %p178 = pneg %p75
      %p179 = pneg %p99
      %p180 = pneg %p96
      %p181 = pneg %p125
      %p182 = pneg %p122
      %p183 = scmp.lt.s32.totalorder %s15, 1
      %s184 = scalar_select %p183, %s15, 1
      %s185 = smul.addr %s184, 4
      %s186 = smul.addr %s185, 2
      %s187 = scalar_lea.vmem %s4, %s186
      %p188 = scmp.lt.s32.totalorder %s15, 1
      %s189 = scalar_select %p188, %s15, 1
      %s190 = smul.addr %s189, 14
      %s191 = smul.addr %s190, 4
      %s192 = scalar_lea.vmem %s0, %s191
      %p193 = scmp.lt.s32.totalorder %s15, 1
      %s194 = scalar_select %p193, %s15, 1
      %s195 = smul.addr %s194, 4
      %s196 = smul.addr %s195, 2
      %s197 = scalar_lea.vmem %s4, %s196
      %v199 = vld [vmem:[%s192] sm:$0xf]
      %v200 = vld [vmem:[%s192 + $0x4] sm:$0xf]
      %v201 = vld [vmem:[%s192 + $0x8] sm:$0xf]
      %v202 = vld [vmem:[%s192 + $0xc] sm:$0xf]
      %v203 = vld [vmem:[%s192 + $0x10] sm:$0xf]
      %v204 = vld [vmem:[%s192 + $0x14] sm:$0xf]
      %v205 = vld [vmem:[%s192 + $0x18] sm:$0xf]
      %v206 = vld [vmem:[%s192 + $0x1c] sm:$0xf]
      %v207 = vld [vmem:[%s192 + $0x20] sm:$0xf]
      %v208 = vld [vmem:[%s192 + $0x24] sm:$0xf]
      %v209 = vld [vmem:[%s1] sm:$0xf]
      %v210 = vld [vmem:[%s1 + $0x4] sm:$0xf]
      %v211 = vld [vmem:[%s1 + $0x8] sm:$0xf]
      %v212 = vld [vmem:[%s1 + $0xc] sm:$0xf]
      %v213 = vld [vmem:[%s1 + $0x10] sm:$0xf]
      %v214 = vld [vmem:[%s1 + $0x14] sm:$0xf]
      %v215 = vld [vmem:[%s1 + $0x18] sm:$0xf]
      %v216 = vld [vmem:[%s1 + $0x1c] sm:$0xf]
      %v227 = vunpack.c.l.b16 %v199
      %v228 = vunpack.c.l.b16 %v200
      %v229 = vunpack.c.l.b16 %v201
      %v230 = vunpack.c.l.b16 %v202
      %v231 = vunpack.c.l.b16 %v203
      %v232 = vunpack.c.l.b16 %v204
      %v233 = vunpack.c.l.b16 %v205
      %v234 = vunpack.c.l.b16 %v206
      %v235 = vunpack.c.l.b16 %v207
      %v236 = vunpack.c.l.b16 %v208
      %v237 = vpack.c.b16 %v228, %v227
      %v238 = vpack.c.b16 %v230, %v229
      %v239 = vpack.c.b16 %v232, %v231
      %v240 = vpack.c.b16 %v234, %v233
      %v241 = vpack.c.b16 %v236, %v235
      %v250 = vunpack.c.l.b16 %v209
      %v251 = vunpack.c.l.b16 %v210
      %v252 = vunpack.c.l.b16 %v211
      %v253 = vunpack.c.l.b16 %v212
      %v254 = vunpack.c.l.b16 %v213
      %v255 = vunpack.c.l.b16 %v214
      %v256 = vunpack.c.l.b16 %v215
      %v257 = vunpack.c.l.b16 %v216
      %v258 = vpack.c.b16 %v251, %v250
      %v259 = vpack.c.b16 %v253, %v252
      %v260 = vpack.c.b16 %v255, %v254
      %v261 = vpack.c.b16 %v257, %v256
      %vm266 = vcmask 523264
      %v268 = vsel %vm266, %v237, 0
      %v271 = vsel %vm266, %v238, 0
      %v274 = vsel %vm266, %v239, 0
      %v277 = vsel %vm266, %v240, 0
      %v280 = vsel %vm266, %v241, 0
      %282 = vmatpush.bf16.msra.mxu0 0
      %283 = vmatpush.bf16.msra.mxu0 0
      %284 = vmatpush.bf16.msra.mxu0 0
      %285 = vmatpush.bf16.msra.mxu0 0
      %286 = vmatpush.bf16.msra.mxu0 %v261
      %287 = vmatpush.bf16.msra.mxu0 %v260
      %288 = vmatpush.bf16.msra.mxu0 %v259
      %289 = vmatpush.bf16.msra.mxu0 %v258
      %290 = vmatmul.bf16.gmra.mxu0 %v268
      %v291 = vpop.f32.mrf.mxu0
      %v292 = vadd.f32 0.0, %v291
      %v293 = vpop.f32.mrf.mxu0
      %v294 = vadd.f32 0.0, %v293
      %295 = vmatmul.bf16.gmra.mxu0 %v271
      %v296 = vpop.f32.mrf.mxu0
      %v297 = vadd.f32 0.0, %v296
      %v298 = vpop.f32.mrf.mxu0
      %v299 = vadd.f32 0.0, %v298
      %300 = vmatmul.bf16.gmra.mxu0 %v274
      %v301 = vpop.f32.mrf.mxu0
      %v302 = vadd.f32 0.0, %v301
      %v303 = vpop.f32.mrf.mxu0
      %v304 = vadd.f32 0.0, %v303
      %305 = vmatmul.bf16.gmra.mxu0 %v277
      %v306 = vpop.f32.mrf.mxu0
      %v307 = vadd.f32 0.0, %v306
      %v308 = vpop.f32.mrf.mxu0
      %v309 = vadd.f32 0.0, %v308
      %310 = vmatmul.bf16.gmra.mxu0 %v280
      %v311 = vpop.f32.mrf.mxu0
      %v312 = vadd.f32 0.0, %v311
      %v313 = vpop.f32.mrf.mxu0
      %v314 = vadd.f32 0.0, %v313
      %315 = vdwg.mxu0
      %316 = vst.msk [vmem:[#allocation2] sm:$0xff] %vm266, %v292
      %317 = vst.msk [vmem:[#allocation2 + $0x8] sm:$0xff] %vm266, %v294
      %318 = vst.msk [vmem:[#allocation2 + $0x10] sm:$0xff] %vm266, %v297
      %319 = vst.msk [vmem:[#allocation2 + $0x18] sm:$0xff] %vm266, %v299
      %320 = vst.msk [vmem:[#allocation2 + $0x20] sm:$0xff] %vm266, %v302
      %321 = vst.msk [vmem:[#allocation2 + $0x28] sm:$0xff] %vm266, %v304
      %322 = vst.msk [vmem:[#allocation2 + $0x30] sm:$0xff] %vm266, %v307
      %323 = vst.msk [vmem:[#allocation2 + $0x38] sm:$0xff] %vm266, %v309
      %324 = vst.msk [vmem:[#allocation2 + $0x40] sm:$0xff] %vm266, %v312
      %325 = vst.msk [vmem:[#allocation2 + $0x48] sm:$0xff] %vm266, %v314
      %v326 = vld [vmem:[%s192] sm:$0xf]
      %v327 = vld [vmem:[%s192 + $0x4] sm:$0xf]
      %v328 = vld [vmem:[%s192 + $0x8] sm:$0xf]
      %v329 = vld [vmem:[%s192 + $0xc] sm:$0xf]
      %v330 = vld [vmem:[%s192 + $0x10] sm:$0xf]
      %v331 = vld [vmem:[%s192 + $0x14] sm:$0xf]
      %v332 = vld [vmem:[%s192 + $0x18] sm:$0xf]
      %v333 = vld [vmem:[%s192 + $0x1c] sm:$0xf]
      %v334 = vld [vmem:[%s192 + $0x20] sm:$0xf]
      %v335 = vld [vmem:[%s192 + $0x24] sm:$0xf]
      %v336 = vld [vmem:[%s192 + $0x28] sm:$0x1]
      %s337 = scalar_lea.vmem %s1, 32
      %v338 = vld [vmem:[%s337] sm:$0xf]
      %v339 = vld [vmem:[%s337 + $0x4] sm:$0xf]
      %v340 = vld [vmem:[%s337 + $0x8] sm:$0xf]
      %v341 = vld [vmem:[%s337 + $0xc] sm:$0xf]
      %v342 = vld [vmem:[%s337 + $0x10] sm:$0xf]
      %v343 = vld [vmem:[%s337 + $0x14] sm:$0xf]
      %v344 = vld [vmem:[%s337 + $0x18] sm:$0xf]
      %v345 = vld [vmem:[%s337 + $0x1c] sm:$0xf]
      %v357 = vunpack.c.l.b16 %v326
      %v358 = vunpack.c.l.b16 %v327
      %v359 = vunpack.c.l.b16 %v328
      %v360 = vunpack.c.l.b16 %v329
      %v361 = vunpack.c.l.b16 %v330
      %v362 = vunpack.c.l.b16 %v331
      %v363 = vunpack.c.l.b16 %v332
      %v364 = vunpack.c.l.b16 %v333
      %v365 = vunpack.c.l.b16 %v334
      %v366 = vunpack.c.l.b16 %v335
      %v367 = vunpack.c.l.b16 %v336
      %v368 = vpack.c.b16 %v358, %v357
      %v369 = vpack.c.b16 %v360, %v359
      %v370 = vpack.c.b16 %v362, %v361
      %v371 = vpack.c.b16 %v364, %v363
      %v372 = vpack.c.b16 %v366, %v365
      %v373 = vpack.c.b16 %v367, %v367
      %vm374 = vsmask.f32 7424
      %v376 = vshrl.u32 %v368, 16
      %v378 = vshll.u32 %v368, 16
      %v380 = vrot.slane %v378, 1
      %v381 = vor.u32 %v376, %v380
      %v383 = vshll.u32 %v369, 16
      %v385 = vrot.slane %v383, 1
      %v386 = vsel %vm374, %v381, %v385
      %v387 = vshrl.u32 %v369, 16
      %v389 = vor.u32 %v387, %v385
      %v391 = vshll.u32 %v370, 16
      %v393 = vrot.slane %v391, 1
      %v394 = vsel %vm374, %v389, %v393
      %v395 = vshrl.u32 %v370, 16
      %v397 = vor.u32 %v395, %v393
      %v399 = vshll.u32 %v371, 16
      %v401 = vrot.slane %v399, 1
      %v402 = vsel %vm374, %v397, %v401
      %v403 = vshrl.u32 %v371, 16
      %v405 = vor.u32 %v403, %v401
      %v407 = vshll.u32 %v372, 16
      %v409 = vrot.slane %v407, 1
      %v410 = vsel %vm374, %v405, %v409
      %v411 = vshrl.u32 %v372, 16
      %v413 = vor.u32 %v411, %v409
      %v415 = vshll.u32 %v373, 16
      %v417 = vrot.slane %v415, 1
      %v418 = vsel %vm374, %v413, %v417
      %v427 = vunpack.c.l.b16 %v338
      %v428 = vunpack.c.l.b16 %v339
      %v429 = vunpack.c.l.b16 %v340
      %v430 = vunpack.c.l.b16 %v341
      %v431 = vunpack.c.l.b16 %v342
      %v432 = vunpack.c.l.b16 %v343
      %v433 = vunpack.c.l.b16 %v344
      %v434 = vunpack.c.l.b16 %v345
      %v435 = vpack.c.b16 %v428, %v427
      %v436 = vpack.c.b16 %v430, %v429
      %v437 = vpack.c.b16 %v432, %v431
      %v438 = vpack.c.b16 %v434, %v433
      %v444 = vsel %vm266, %v386, 0
      %v447 = vsel %vm266, %v394, 0
      %v450 = vsel %vm266, %v402, 0
      %v453 = vsel %vm266, %v410, 0
      %v456 = vsel %vm266, %v418, 0
      %458 = vmatpush.bf16.msra.mxu0 0
      %459 = vmatpush.bf16.msra.mxu0 0
      %460 = vmatpush.bf16.msra.mxu0 0
      %461 = vmatpush.bf16.msra.mxu0 0
      %462 = vmatpush.bf16.msra.mxu0 %v438
      %463 = vmatpush.bf16.msra.mxu0 %v437
      %464 = vmatpush.bf16.msra.mxu0 %v436
      %465 = vmatpush.bf16.msra.mxu0 %v435
      %466 = vmatmul.bf16.gmra.mxu0 %v444
      %v467 = vpop.f32.mrf.mxu0
      %v468 = vadd.f32 0.0, %v467
      %v469 = vpop.f32.mrf.mxu0
      %v470 = vadd.f32 0.0, %v469
      %471 = vmatmul.bf16.gmra.mxu0 %v447
      %v472 = vpop.f32.mrf.mxu0
      %v473 = vadd.f32 0.0, %v472
      %v474 = vpop.f32.mrf.mxu0
      %v475 = vadd.f32 0.0, %v474
      %476 = vmatmul.bf16.gmra.mxu0 %v450
      %v477 = vpop.f32.mrf.mxu0
      %v478 = vadd.f32 0.0, %v477
      %v479 = vpop.f32.mrf.mxu0
      %v480 = vadd.f32 0.0, %v479
      %481 = vmatmul.bf16.gmra.mxu0 %v453
      %v482 = vpop.f32.mrf.mxu0
      %v483 = vadd.f32 0.0, %v482
      %v484 = vpop.f32.mrf.mxu0
      %v485 = vadd.f32 0.0, %v484
      %486 = vmatmul.bf16.gmra.mxu0 %v456
      %v487 = vpop.f32.mrf.mxu0
      %v488 = vadd.f32 0.0, %v487
      %v489 = vpop.f32.mrf.mxu0
      %v490 = vadd.f32 0.0, %v489
      %491 = vdwg.mxu0
      %v492 = vld [vmem:[#allocation2] sm:$0xff]
      %v493 = vld [vmem:[#allocation2 + $0x8] sm:$0xff]
      %v494 = vld [vmem:[#allocation2 + $0x10] sm:$0xff]
      %v495 = vld [vmem:[#allocation2 + $0x18] sm:$0xff]
      %v496 = vld [vmem:[#allocation2 + $0x20] sm:$0xff]
      %v497 = vld [vmem:[#allocation2 + $0x28] sm:$0xff]
      %v498 = vld [vmem:[#allocation2 + $0x30] sm:$0xff]
      %v499 = vld [vmem:[#allocation2 + $0x38] sm:$0xff]
      %v500 = vld [vmem:[#allocation2 + $0x40] sm:$0xff]
      %v501 = vld [vmem:[#allocation2 + $0x48] sm:$0xff]
      %v502 = vadd.f32 %v492, %v468
      %v503 = vadd.f32 %v493, %v470
      %v504 = vadd.f32 %v494, %v473
      %v505 = vadd.f32 %v495, %v475
      %v506 = vadd.f32 %v496, %v478
      %v507 = vadd.f32 %v497, %v480
      %v508 = vadd.f32 %v498, %v483
      %v509 = vadd.f32 %v499, %v485
      %v510 = vadd.f32 %v500, %v488
      %v511 = vadd.f32 %v501, %v490
      %512 = vst.msk [vmem:[#allocation2] sm:$0xff] %vm266, %v502
      %513 = vst.msk [vmem:[#allocation2 + $0x8] sm:$0xff] %vm266, %v503
      %514 = vst.msk [vmem:[#allocation2 + $0x10] sm:$0xff] %vm266, %v504
      %515 = vst.msk [vmem:[#allocation2 + $0x18] sm:$0xff] %vm266, %v505
      %516 = vst.msk [vmem:[#allocation2 + $0x20] sm:$0xff] %vm266, %v506
      %517 = vst.msk [vmem:[#allocation2 + $0x28] sm:$0xff] %vm266, %v507
      %518 = vst.msk [vmem:[#allocation2 + $0x30] sm:$0xff] %vm266, %v508
      %519 = vst.msk [vmem:[#allocation2 + $0x38] sm:$0xff] %vm266, %v509
      %520 = vst.msk [vmem:[#allocation2 + $0x40] sm:$0xff] %vm266, %v510
      %521 = vst.msk [vmem:[#allocation2 + $0x48] sm:$0xff] %vm266, %v511
      %v522 = vld [vmem:[%s192] sm:$0xe]
      %v523 = vld [vmem:[%s192 + $0x4] sm:$0xf]
      %v524 = vld [vmem:[%s192 + $0x8] sm:$0xf]
      %v525 = vld [vmem:[%s192 + $0xc] sm:$0xf]
      %v526 = vld [vmem:[%s192 + $0x10] sm:$0xf]
      %v527 = vld [vmem:[%s192 + $0x14] sm:$0xf]
      %v528 = vld [vmem:[%s192 + $0x18] sm:$0xf]
      %v529 = vld [vmem:[%s192 + $0x1c] sm:$0xf]
      %v530 = vld [vmem:[%s192 + $0x20] sm:$0xf]
      %v531 = vld [vmem:[%s192 + $0x24] sm:$0xf]
      %v532 = vld [vmem:[%s192 + $0x28] sm:$0x1]
      %s533 = scalar_lea.vmem %s1, 64
      %v534 = vld [vmem:[%s533] sm:$0xf]
      %v535 = vld [vmem:[%s533 + $0x4] sm:$0xf]
      %v536 = vld [vmem:[%s533 + $0x8] sm:$0xf]
      %v537 = vld [vmem:[%s533 + $0xc] sm:$0xf]
      %v538 = vld [vmem:[%s533 + $0x10] sm:$0xf]
      %v539 = vld [vmem:[%s533 + $0x14] sm:$0xf]
      %v540 = vld [vmem:[%s533 + $0x18] sm:$0xf]
      %v541 = vld [vmem:[%s533 + $0x1c] sm:$0xf]
      %v553 = vunpack.c.l.b16 %v522
      %v554 = vunpack.c.l.b16 %v523
      %v555 = vunpack.c.l.b16 %v524
      %v556 = vunpack.c.l.b16 %v525
      %v557 = vunpack.c.l.b16 %v526
      %v558 = vunpack.c.l.b16 %v527
      %v559 = vunpack.c.l.b16 %v528
      %v560 = vunpack.c.l.b16 %v529
      %v561 = vunpack.c.l.b16 %v530
      %v562 = vunpack.c.l.b16 %v531
      %v563 = vunpack.c.l.b16 %v532
      %v564 = vpack.c.b16 %v554, %v553
      %v565 = vpack.c.b16 %v556, %v555
      %v566 = vpack.c.b16 %v558, %v557
      %v567 = vpack.c.b16 %v560, %v559
      %v568 = vpack.c.b16 %v562, %v561
      %v569 = vpack.c.b16 %v563, %v563
      %vm570 = vcmask 1046528
      %v571 = vrot.slane %v564, 1
      %v572 = vrot.slane %v565, 1
      %v573 = vsel %vm570, %v571, %v572
      %v574 = vrot.slane %v566, 1
      %v575 = vsel %vm570, %v572, %v574
      %v576 = vrot.slane %v567, 1
      %v577 = vsel %vm570, %v574, %v576
      %v578 = vrot.slane %v568, 1
      %v579 = vsel %vm570, %v576, %v578
      %v580 = vrot.slane %v569, 1
      %v581 = vsel %vm570, %v578, %v580
      %v590 = vunpack.c.l.b16 %v534
      %v591 = vunpack.c.l.b16 %v535
      %v592 = vunpack.c.l.b16 %v536
      %v593 = vunpack.c.l.b16 %v537
      %v594 = vunpack.c.l.b16 %v538
      %v595 = vunpack.c.l.b16 %v539
      %v596 = vunpack.c.l.b16 %v540
      %v597 = vunpack.c.l.b16 %v541
      %v598 = vpack.c.b16 %v591, %v590
      %v599 = vpack.c.b16 %v593, %v592
      %v600 = vpack.c.b16 %v595, %v594
      %v601 = vpack.c.b16 %v597, %v596
      %v607 = vsel %vm266, %v573, 0
      %v610 = vsel %vm266, %v575, 0
      %v613 = vsel %vm266, %v577, 0
      %v616 = vsel %vm266, %v579, 0
      %v619 = vsel %vm266, %v581, 0
      %621 = vmatpush.bf16.msra.mxu0 0
      %622 = vmatpush.bf16.msra.mxu0 0
      %623 = vmatpush.bf16.msra.mxu0 0
      %624 = vmatpush.bf16.msra.mxu0 0
      %625 = vmatpush.bf16.msra.mxu0 %v601
      %626 = vmatpush.bf16.msra.mxu0 %v600
      %627 = vmatpush.bf16.msra.mxu0 %v599
      %628 = vmatpush.bf16.msra.mxu0 %v598
      %629 = vmatmul.bf16.gmra.mxu0 %v607
      %v630 = vpop.f32.mrf.mxu0
      %v631 = vadd.f32 0.0, %v630
      %v632 = vpop.f32.mrf.mxu0
      %v633 = vadd.f32 0.0, %v632
      %634 = vmatmul.bf16.gmra.mxu0 %v610
      %v635 = vpop.f32.mrf.mxu0
      %v636 = vadd.f32 0.0, %v635
      %v637 = vpop.f32.mrf.mxu0
      %v638 = vadd.f32 0.0, %v637
      %639 = vmatmul.bf16.gmra.mxu0 %v613
      %v640 = vpop.f32.mrf.mxu0
      %v641 = vadd.f32 0.0, %v640
      %v642 = vpop.f32.mrf.mxu0
      %v643 = vadd.f32 0.0, %v642
      %644 = vmatmul.bf16.gmra.mxu0 %v616
      %v645 = vpop.f32.mrf.mxu0
      %v646 = vadd.f32 0.0, %v645
      %v647 = vpop.f32.mrf.mxu0
      %v648 = vadd.f32 0.0, %v647
      %649 = vmatmul.bf16.gmra.mxu0 %v619
      %v650 = vpop.f32.mrf.mxu0
      %v651 = vadd.f32 0.0, %v650
      %v652 = vpop.f32.mrf.mxu0
      %v653 = vadd.f32 0.0, %v652
      %654 = vdwg.mxu0
      %v655 = vld [vmem:[#allocation2] sm:$0xff]
      %v656 = vld [vmem:[#allocation2 + $0x8] sm:$0xff]
      %v657 = vld [vmem:[#allocation2 + $0x10] sm:$0xff]
      %v658 = vld [vmem:[#allocation2 + $0x18] sm:$0xff]
      %v659 = vld [vmem:[#allocation2 + $0x20] sm:$0xff]
      %v660 = vld [vmem:[#allocation2 + $0x28] sm:$0xff]
      %v661 = vld [vmem:[#allocation2 + $0x30] sm:$0xff]
      %v662 = vld [vmem:[#allocation2 + $0x38] sm:$0xff]
      %v663 = vld [vmem:[#allocation2 + $0x40] sm:$0xff]
      %v664 = vld [vmem:[#allocation2 + $0x48] sm:$0xff]
      %v665 = vadd.f32 %v655, %v631
      %v666 = vadd.f32 %v656, %v633
      %v667 = vadd.f32 %v657, %v636
      %v668 = vadd.f32 %v658, %v638
      %v669 = vadd.f32 %v659, %v641
      %v670 = vadd.f32 %v660, %v643
      %v671 = vadd.f32 %v661, %v646
      %v672 = vadd.f32 %v662, %v648
      %v673 = vadd.f32 %v663, %v651
      %v674 = vadd.f32 %v664, %v653
      %675 = vst.msk [vmem:[#allocation2] sm:$0xff] %vm266, %v665
      %676 = vst.msk [vmem:[#allocation2 + $0x8] sm:$0xff] %vm266, %v666
      %677 = vst.msk [vmem:[#allocation2 + $0x10] sm:$0xff] %vm266, %v667
      %678 = vst.msk [vmem:[#allocation2 + $0x18] sm:$0xff] %vm266, %v668
      %679 = vst.msk [vmem:[#allocation2 + $0x20] sm:$0xff] %vm266, %v669
      %680 = vst.msk [vmem:[#allocation2 + $0x28] sm:$0xff] %vm266, %v670
      %681 = vst.msk [vmem:[#allocation2 + $0x30] sm:$0xff] %vm266, %v671
      %682 = vst.msk [vmem:[#allocation2 + $0x38] sm:$0xff] %vm266, %v672
      %683 = vst.msk [vmem:[#allocation2 + $0x40] sm:$0xff] %vm266, %v673
      %684 = vst.msk [vmem:[#allocation2 + $0x48] sm:$0xff] %vm266, %v674
      %v685 = vld [vmem:[%s192 + $0x4] sm:$0xe]
      %v686 = vld [vmem:[%s192 + $0x8] sm:$0xf]
      %v687 = vld [vmem:[%s192 + $0xc] sm:$0xf]
      %v688 = vld [vmem:[%s192 + $0x10] sm:$0xf]
      %v689 = vld [vmem:[%s192 + $0x14] sm:$0xf]
      %v690 = vld [vmem:[%s192 + $0x18] sm:$0xf]
      %v691 = vld [vmem:[%s192 + $0x1c] sm:$0xf]
      %v692 = vld [vmem:[%s192 + $0x20] sm:$0xf]
      %v693 = vld [vmem:[%s192 + $0x24] sm:$0xf]
      %v694 = vld [vmem:[%s192 + $0x28] sm:$0xf]
      %v695 = vld [vmem:[%s192 + $0x2c] sm:$0x1]
      %s696 = scalar_lea.vmem %s1, 96
      %v697 = vld [vmem:[%s696] sm:$0xf]
      %v698 = vld [vmem:[%s696 + $0x4] sm:$0xf]
      %v699 = vld [vmem:[%s696 + $0x8] sm:$0xf]
      %v700 = vld [vmem:[%s696 + $0xc] sm:$0xf]
      %v701 = vld [vmem:[%s696 + $0x10] sm:$0xf]
      %v702 = vld [vmem:[%s696 + $0x14] sm:$0xf]
      %v703 = vld [vmem:[%s696 + $0x18] sm:$0xf]
      %v704 = vld [vmem:[%s696 + $0x1c] sm:$0xf]
      %v716 = vunpack.c.l.b16 %v685
      %v717 = vunpack.c.l.b16 %v686
      %v718 = vunpack.c.l.b16 %v687
      %v719 = vunpack.c.l.b16 %v688
      %v720 = vunpack.c.l.b16 %v689
      %v721 = vunpack.c.l.b16 %v690
      %v722 = vunpack.c.l.b16 %v691
      %v723 = vunpack.c.l.b16 %v692
      %v724 = vunpack.c.l.b16 %v693
      %v725 = vunpack.c.l.b16 %v694
      %v726 = vunpack.c.l.b16 %v695
      %v727 = vpack.c.b16 %v717, %v716
      %v728 = vpack.c.b16 %v719, %v718
      %v729 = vpack.c.b16 %v721, %v720
      %v730 = vpack.c.b16 %v723, %v722
      %v731 = vpack.c.b16 %v725, %v724
      %v732 = vpack.c.b16 %v726, %v726
      %v733 = vrot.slane %v727, 1
      %v734 = vrot.slane %v728, 1
      %v735 = vsel %vm570, %v733, %v734
      %v736 = vrot.slane %v729, 1
      %v737 = vsel %vm570, %v734, %v736
      %v738 = vrot.slane %v730, 1
      %v739 = vsel %vm570, %v736, %v738
      %v740 = vrot.slane %v731, 1
      %v741 = vsel %vm570, %v738, %v740
      %v742 = vrot.slane %v732, 1
      %v743 = vsel %vm570, %v740, %v742
      %v752 = vunpack.c.l.b16 %v697
      %v753 = vunpack.c.l.b16 %v698
      %v754 = vunpack.c.l.b16 %v699
      %v755 = vunpack.c.l.b16 %v700
      %v756 = vunpack.c.l.b16 %v701
      %v757 = vunpack.c.l.b16 %v702
      %v758 = vunpack.c.l.b16 %v703
      %v759 = vunpack.c.l.b16 %v704
      %v760 = vpack.c.b16 %v753, %v752
      %v761 = vpack.c.b16 %v755, %v754
      %v762 = vpack.c.b16 %v757, %v756
      %v763 = vpack.c.b16 %v759, %v758
      %v769 = vsel %vm266, %v735, 0
      %v772 = vsel %vm266, %v737, 0
      %v775 = vsel %vm266, %v739, 0
      %v778 = vsel %vm266, %v741, 0
      %v781 = vsel %vm266, %v743, 0
      %783 = vmatpush.bf16.msra.mxu0 0
      %784 = vmatpush.bf16.msra.mxu0 0
      %785 = vmatpush.bf16.msra.mxu0 0
      %786 = vmatpush.bf16.msra.mxu0 0
      %787 = vmatpush.bf16.msra.mxu0 %v763
      %788 = vmatpush.bf16.msra.mxu0 %v762
      %789 = vmatpush.bf16.msra.mxu0 %v761
      %790 = vmatpush.bf16.msra.mxu0 %v760
      %791 = vmatmul.bf16.gmra.mxu0 %v769
      %v792 = vpop.f32.mrf.mxu0
      %v793 = vadd.f32 0.0, %v792
      %v794 = vpop.f32.mrf.mxu0
      %v795 = vadd.f32 0.0, %v794
      %796 = vmatmul.bf16.gmra.mxu0 %v772
      %v797 = vpop.f32.mrf.mxu0
      %v798 = vadd.f32 0.0, %v797
      %v799 = vpop.f32.mrf.mxu0
      %v800 = vadd.f32 0.0, %v799
      %801 = vmatmul.bf16.gmra.mxu0 %v775
      %v802 = vpop.f32.mrf.mxu0
      %v803 = vadd.f32 0.0, %v802
      %v804 = vpop.f32.mrf.mxu0
      %v805 = vadd.f32 0.0, %v804
      %806 = vmatmul.bf16.gmra.mxu0 %v778
      %v807 = vpop.f32.mrf.mxu0
      %v808 = vadd.f32 0.0, %v807
      %v809 = vpop.f32.mrf.mxu0
      %v810 = vadd.f32 0.0, %v809
      %811 = vmatmul.bf16.gmra.mxu0 %v781
      %v812 = vpop.f32.mrf.mxu0
      %v813 = vadd.f32 0.0, %v812
      %v814 = vpop.f32.mrf.mxu0
      %v815 = vadd.f32 0.0, %v814
      %816 = vdwg.mxu0
      %v817 = vld [vmem:[#allocation2] sm:$0xff]
      %v818 = vld [vmem:[#allocation2 + $0x8] sm:$0xff]
      %v819 = vld [vmem:[#allocation2 + $0x10] sm:$0xff]
      %v820 = vld [vmem:[#allocation2 + $0x18] sm:$0xff]
      %v821 = vld [vmem:[#allocation2 + $0x20] sm:$0xff]
      %v822 = vld [vmem:[#allocation2 + $0x28] sm:$0xff]
      %v823 = vld [vmem:[#allocation2 + $0x30] sm:$0xff]
      %v824 = vld [vmem:[#allocation2 + $0x38] sm:$0xff]
      %v825 = vld [vmem:[#allocation2 + $0x40] sm:$0xff]
      %v826 = vld [vmem:[#allocation2 + $0x48] sm:$0xff]
      %v827 = vadd.f32 %v817, %v793
      %v828 = vadd.f32 %v818, %v795
      %v829 = vadd.f32 %v819, %v798
      %v830 = vadd.f32 %v820, %v800
      %v831 = vadd.f32 %v821, %v803
      %v832 = vadd.f32 %v822, %v805
      %v833 = vadd.f32 %v823, %v808
      %v834 = vadd.f32 %v824, %v810
      %v835 = vadd.f32 %v825, %v813
      %v836 = vadd.f32 %v826, %v815
      %837 = vst.msk [vmem:[#allocation2] sm:$0xff] %vm266, %v827
      %838 = vst.msk [vmem:[#allocation2 + $0x8] sm:$0xff] %vm266, %v828
      %839 = vst.msk [vmem:[#allocation2 + $0x10] sm:$0xff] %vm266, %v829
      %840 = vst.msk [vmem:[#allocation2 + $0x18] sm:$0xff] %vm266, %v830
      %841 = vst.msk [vmem:[#allocation2 + $0x20] sm:$0xff] %vm266, %v831
      %842 = vst.msk [vmem:[#allocation2 + $0x28] sm:$0xff] %vm266, %v832
      %843 = vst.msk [vmem:[#allocation2 + $0x30] sm:$0xff] %vm266, %v833
      %844 = vst.msk [vmem:[#allocation2 + $0x38] sm:$0xff] %vm266, %v834
      %845 = vst.msk [vmem:[#allocation2 + $0x40] sm:$0xff] %vm266, %v835
      %846 = vst.msk [vmem:[#allocation2 + $0x48] sm:$0xff] %vm266, %v836
      %v847 = vld [vmem:[%s192 + $0x4] sm:$0xe]
      %v848 = vld [vmem:[%s192 + $0x8] sm:$0xf]
      %v849 = vld [vmem:[%s192 + $0xc] sm:$0xf]
      %v850 = vld [vmem:[%s192 + $0x10] sm:$0xf]
      %v851 = vld [vmem:[%s192 + $0x14] sm:$0xf]
      %v852 = vld [vmem:[%s192 + $0x18] sm:$0xf]
      %v853 = vld [vmem:[%s192 + $0x1c] sm:$0xf]
      %v854 = vld [vmem:[%s192 + $0x20] sm:$0xf]
      %v855 = vld [vmem:[%s192 + $0x24] sm:$0xf]
      %v856 = vld [vmem:[%s192 + $0x28] sm:$0xf]
      %v857 = vld [vmem:[%s192 + $0x2c] sm:$0x3]
      %s858 = scalar_lea.vmem %s1, 128
      %v859 = vld [vmem:[%s858] sm:$0xf]
      %v860 = vld [vmem:[%s858 + $0x4] sm:$0xf]
      %v861 = vld [vmem:[%s858 + $0x8] sm:$0xf]
      %v862 = vld [vmem:[%s858 + $0xc] sm:$0xf]
      %v863 = vld [vmem:[%s858 + $0x10] sm:$0xf]
      %v864 = vld [vmem:[%s858 + $0x14] sm:$0xf]
      %v865 = vld [vmem:[%s858 + $0x18] sm:$0xf]
      %v866 = vld [vmem:[%s858 + $0x1c] sm:$0xf]
      %v878 = vunpack.c.l.b16 %v847
      %v879 = vunpack.c.l.b16 %v848
      %v880 = vunpack.c.l.b16 %v849
      %v881 = vunpack.c.l.b16 %v850
      %v882 = vunpack.c.l.b16 %v851
      %v883 = vunpack.c.l.b16 %v852
      %v884 = vunpack.c.l.b16 %v853
      %v885 = vunpack.c.l.b16 %v854
      %v886 = vunpack.c.l.b16 %v855
      %v887 = vunpack.c.l.b16 %v856
      %v888 = vunpack.c.l.b16 %v857
      %v889 = vpack.c.b16 %v879, %v878
      %v890 = vpack.c.b16 %v881, %v880
      %v891 = vpack.c.b16 %v883, %v882
      %v892 = vpack.c.b16 %v885, %v884
      %v893 = vpack.c.b16 %v887, %v886
      %v894 = vpack.c.b16 %v888, %v888
      %vm895 = vsmask.f32 6400
      %v897 = vshrl.u32 %v889, 16
      %v899 = vrot.slane %v897, 1
      %v900 = vshll.u32 %v889, 16
      %v902 = vrot.slane %v900, 2
      %v903 = vor.u32 %v899, %v902
      %v905 = vshrl.u32 %v890, 16
      %v907 = vrot.slane %v905, 1
      %v908 = vshll.u32 %v890, 16
      %v910 = vrot.slane %v908, 2
      %v911 = vor.u32 %v907, %v910
      %v912 = vsel %vm895, %v903, %v911
      %v914 = vshrl.u32 %v891, 16
      %v916 = vrot.slane %v914, 1
      %v917 = vshll.u32 %v891, 16
      %v919 = vrot.slane %v917, 2
      %v920 = vor.u32 %v916, %v919
      %v921 = vsel %vm895, %v911, %v920
      %v923 = vshrl.u32 %v892, 16
      %v925 = vrot.slane %v923, 1
      %v926 = vshll.u32 %v892, 16
      %v928 = vrot.slane %v926, 2
      %v929 = vor.u32 %v925, %v928
      %v930 = vsel %vm895, %v920, %v929
      %v932 = vshrl.u32 %v893, 16
      %v934 = vrot.slane %v932, 1
      %v935 = vshll.u32 %v893, 16
      %v937 = vrot.slane %v935, 2
      %v938 = vor.u32 %v934, %v937
      %v939 = vsel %vm895, %v929, %v938
      %v941 = vshrl.u32 %v894, 16
      %v943 = vrot.slane %v941, 1
      %v944 = vshll.u32 %v894, 16
      %v946 = vrot.slane %v944, 2
      %v947 = vor.u32 %v943, %v946
      %v948 = vsel %vm895, %v938, %v947
      %v957 = vunpack.c.l.b16 %v859
      %v958 = vunpack.c.l.b16 %v860
      %v959 = vunpack.c.l.b16 %v861
      %v960 = vunpack.c.l.b16 %v862
      %v961 = vunpack.c.l.b16 %v863
      %v962 = vunpack.c.l.b16 %v864
      %v963 = vunpack.c.l.b16 %v865
      %v964 = vunpack.c.l.b16 %v866
      %v965 = vpack.c.b16 %v958, %v957
      %v966 = vpack.c.b16 %v960, %v959
      %v967 = vpack.c.b16 %v962, %v961
      %v968 = vpack.c.b16 %v964, %v963
      %v974 = vsel %vm266, %v912, 0
      %v977 = vsel %vm266, %v921, 0
      %v980 = vsel %vm266, %v930, 0
      %v983 = vsel %vm266, %v939, 0
      %v986 = vsel %vm266, %v948, 0
      %988 = vmatpush.bf16.msra.mxu0 0
      %989 = vmatpush.bf16.msra.mxu0 0
      %990 = vmatpush.bf16.msra.mxu0 0
      %991 = vmatpush.bf16.msra.mxu0 0
      %992 = vmatpush.bf16.msra.mxu0 %v968
      %993 = vmatpush.bf16.msra.mxu0 %v967
      %994 = vmatpush.bf16.msra.mxu0 %v966
      %995 = vmatpush.bf16.msra.mxu0 %v965
      %996 = vmatmul.bf16.gmra.mxu0 %v974
      %v997 = vpop.f32.mrf.mxu0
      %v998 = vadd.f32 0.0, %v997
      %v999 = vpop.f32.mrf.mxu0
      %v1000 = vadd.f32 0.0, %v999
      %1001 = vmatmul.bf16.gmra.mxu0 %v977
      %v1002 = vpop.f32.mrf.mxu0
      %v1003 = vadd.f32 0.0, %v1002
      %v1004 = vpop.f32.mrf.mxu0
      %v1005 = vadd.f32 0.0, %v1004
      %1006 = vmatmul.bf16.gmra.mxu0 %v980
      %v1007 = vpop.f32.mrf.mxu0
      %v1008 = vadd.f32 0.0, %v1007
      %v1009 = vpop.f32.mrf.mxu0
      %v1010 = vadd.f32 0.0, %v1009
      %1011 = vmatmul.bf16.gmra.mxu0 %v983
      %v1012 = vpop.f32.mrf.mxu0
      %v1013 = vadd.f32 0.0, %v1012
      %v1014 = vpop.f32.mrf.mxu0
      %v1015 = vadd.f32 0.0, %v1014
      %1016 = vmatmul.bf16.gmra.mxu0 %v986
      %v1017 = vpop.f32.mrf.mxu0
      %v1018 = vadd.f32 0.0, %v1017
      %v1019 = vpop.f32.mrf.mxu0
      %v1020 = vadd.f32 0.0, %v1019
      %1021 = vdwg.mxu0
      %v1022 = vld [vmem:[#allocation2] sm:$0xff]
      %v1023 = vld [vmem:[#allocation2 + $0x8] sm:$0xff]
      %v1024 = vld [vmem:[#allocation2 + $0x10] sm:$0xff]
      %v1025 = vld [vmem:[#allocation2 + $0x18] sm:$0xff]
      %v1026 = vld [vmem:[#allocation2 + $0x20] sm:$0xff]
      %v1027 = vld [vmem:[#allocation2 + $0x28] sm:$0xff]
      %v1028 = vld [vmem:[#allocation2 + $0x30] sm:$0xff]
      %v1029 = vld [vmem:[#allocation2 + $0x38] sm:$0xff]
      %v1030 = vld [vmem:[#allocation2 + $0x40] sm:$0xff]
      %v1031 = vld [vmem:[#allocation2 + $0x48] sm:$0xff]
      %v1032 = vadd.f32 %v1022, %v998
      %v1033 = vadd.f32 %v1023, %v1000
      %v1034 = vadd.f32 %v1024, %v1003
      %v1035 = vadd.f32 %v1025, %v1005
      %v1036 = vadd.f32 %v1026, %v1008
      %v1037 = vadd.f32 %v1027, %v1010
      %v1038 = vadd.f32 %v1028, %v1013
      %v1039 = vadd.f32 %v1029, %v1015
      %v1040 = vadd.f32 %v1030, %v1018
      %v1041 = vadd.f32 %v1031, %v1020
      %1042 = vst.msk [vmem:[#allocation2] sm:$0xff] %vm266, %v1032
      %1043 = vst.msk [vmem:[#allocation2 + $0x8] sm:$0xff] %vm266, %v1033
      %1044 = vst.msk [vmem:[#allocation2 + $0x10] sm:$0xff] %vm266, %v1034
      %1045 = vst.msk [vmem:[#allocation2 + $0x18] sm:$0xff] %vm266, %v1035
      %1046 = vst.msk [vmem:[#allocation2 + $0x20] sm:$0xff] %vm266, %v1036
      %1047 = vst.msk [vmem:[#allocation2 + $0x28] sm:$0xff] %vm266, %v1037
      %1048 = vst.msk [vmem:[#allocation2 + $0x30] sm:$0xff] %vm266, %v1038
      %1049 = vst.msk [vmem:[#allocation2 + $0x38] sm:$0xff] %vm266, %v1039
      %1050 = vst.msk [vmem:[#allocation2 + $0x40] sm:$0xff] %vm266, %v1040
      %1051 = vst.msk [vmem:[#allocation2 + $0x48] sm:$0xff] %vm266, %v1041
      %v1052 = vld [vmem:[%s192 + $0x4] sm:$0xc]
      %v1053 = vld [vmem:[%s192 + $0x8] sm:$0xf]
      %v1054 = vld [vmem:[%s192 + $0xc] sm:$0xf]
      %v1055 = vld [vmem:[%s192 + $0x10] sm:$0xf]
      %v1056 = vld [vmem:[%s192 + $0x14] sm:$0xf]
      %v1057 = vld [vmem:[%s192 + $0x18] sm:$0xf]
      %v1058 = vld [vmem:[%s192 + $0x1c] sm:$0xf]
      %v1059 = vld [vmem:[%s192 + $0x20] sm:$0xf]
      %v1060 = vld [vmem:[%s192 + $0x24] sm:$0xf]
      %v1061 = vld [vmem:[%s192 + $0x28] sm:$0xf]
      %v1062 = vld [vmem:[%s192 + $0x2c] sm:$0x3]
      %s1063 = scalar_lea.vmem %s1, 160
      %v1064 = vld [vmem:[%s1063] sm:$0xf]
      %v1065 = vld [vmem:[%s1063 + $0x4] sm:$0xf]
      %v1066 = vld [vmem:[%s1063 + $0x8] sm:$0xf]
      %v1067 = vld [vmem:[%s1063 + $0xc] sm:$0xf]
      %v1068 = vld [vmem:[%s1063 + $0x10] sm:$0xf]
      %v1069 = vld [vmem:[%s1063 + $0x14] sm:$0xf]
      %v1070 = vld [vmem:[%s1063 + $0x18] sm:$0xf]
      %v1071 = vld [vmem:[%s1063 + $0x1c] sm:$0xf]
      %v1083 = vunpack.c.l.b16 %v1052
      %v1084 = vunpack.c.l.b16 %v1053
      %v1085 = vunpack.c.l.b16 %v1054
      %v1086 = vunpack.c.l.b16 %v1055
      %v1087 = vunpack.c.l.b16 %v1056
      %v1088 = vunpack.c.l.b16 %v1057
      %v1089 = vunpack.c.l.b16 %v1058
      %v1090 = vunpack.c.l.b16 %v1059
      %v1091 = vunpack.c.l.b16 %v1060
      %v1092 = vunpack.c.l.b16 %v1061
      %v1093 = vunpack.c.l.b16 %v1062
      %v1094 = vpack.c.b16 %v1084, %v1083
      %v1095 = vpack.c.b16 %v1086, %v1085
      %v1096 = vpack.c.b16 %v1088, %v1087
      %v1097 = vpack.c.b16 %v1090, %v1089
      %v1098 = vpack.c.b16 %v1092, %v1091
      %v1099 = vpack.c.b16 %v1093, %v1093
      %vm1100 = vcmask 1045504
      %v1101 = vrot.slane %v1094, 2
      %v1102 = vrot.slane %v1095, 2
      %v1103 = vsel %vm1100, %v1101, %v1102
      %v1104 = vrot.slane %v1096, 2
      %v1105 = vsel %vm1100, %v1102, %v1104
      %v1106 = vrot.slane %v1097, 2
      %v1107 = vsel %vm1100, %v1104, %v1106
      %v1108 = vrot.slane %v1098, 2
      %v1109 = vsel %vm1100, %v1106, %v1108
      %v1110 = vrot.slane %v1099, 2
      %v1111 = vsel %vm1100, %v1108, %v1110
      %v1120 = vunpack.c.l.b16 %v1064
      %v1121 = vunpack.c.l.b16 %v1065
      %v1122 = vunpack.c.l.b16 %v1066
      %v1123 = vunpack.c.l.b16 %v1067
      %v1124 = vunpack.c.l.b16 %v1068
      %v1125 = vunpack.c.l.b16 %v1069
      %v1126 = vunpack.c.l.b16 %v1070
      %v1127 = vunpack.c.l.b16 %v1071
      %v1128 = vpack.c.b16 %v1121, %v1120
      %v1129 = vpack.c.b16 %v1123, %v1122
      %v1130 = vpack.c.b16 %v1125, %v1124
      %v1131 = vpack.c.b16 %v1127, %v1126
      %v1137 = vsel %vm266, %v1103, 0
      %v1140 = vsel %vm266, %v1105, 0
      %v1143 = vsel %vm266, %v1107, 0
      %v1146 = vsel %vm266, %v1109, 0
      %v1149 = vsel %vm266, %v1111, 0
      %1151 = vmatpush.bf16.msra.mxu0 0
      %1152 = vmatpush.bf16.msra.mxu0 0
      %1153 = vmatpush.bf16.msra.mxu0 0
      %1154 = vmatpush.bf16.msra.mxu0 0
      %1155 = vmatpush.bf16.msra.mxu0 %v1131
      %1156 = vmatpush.bf16.msra.mxu0 %v1130
      %1157 = vmatpush.bf16.msra.mxu0 %v1129
      %1158 = vmatpush.bf16.msra.mxu0 %v1128
      %1159 = vmatmul.bf16.gmra.mxu0 %v1137
      %v1160 = vpop.f32.mrf.mxu0
      %v1161 = vadd.f32 0.0, %v1160
      %v1162 = vpop.f32.mrf.mxu0
      %v1163 = vadd.f32 0.0, %v1162
      %1164 = vmatmul.bf16.gmra.mxu0 %v1140
      %v1165 = vpop.f32.mrf.mxu0
      %v1166 = vadd.f32 0.0, %v1165
      %v1167 = vpop.f32.mrf.mxu0
      %v1168 = vadd.f32 0.0, %v1167
      %1169 = vmatmul.bf16.gmra.mxu0 %v1143
      %v1170 = vpop.f32.mrf.mxu0
      %v1171 = vadd.f32 0.0, %v1170
      %v1172 = vpop.f32.mrf.mxu0
      %v1173 = vadd.f32 0.0, %v1172
      %1174 = vmatmul.bf16.gmra.mxu0 %v1146
      %v1175 = vpop.f32.mrf.mxu0
      %v1176 = vadd.f32 0.0, %v1175
      %v1177 = vpop.f32.mrf.mxu0
      %v1178 = vadd.f32 0.0, %v1177
      %1179 = vmatmul.bf16.gmra.mxu0 %v1149
      %v1180 = vpop.f32.mrf.mxu0
      %v1181 = vadd.f32 0.0, %v1180
      %v1182 = vpop.f32.mrf.mxu0
      %v1183 = vadd.f32 0.0, %v1182
      %1184 = vdwg.mxu0
      %v1185 = vld [vmem:[#allocation2] sm:$0xff]
      %v1186 = vld [vmem:[#allocation2 + $0x8] sm:$0xff]
      %v1187 = vld [vmem:[#allocation2 + $0x10] sm:$0xff]
      %v1188 = vld [vmem:[#allocation2 + $0x18] sm:$0xff]
      %v1189 = vld [vmem:[#allocation2 + $0x20] sm:$0xff]
      %v1190 = vld [vmem:[#allocation2 + $0x28] sm:$0xff]
      %v1191 = vld [vmem:[#allocation2 + $0x30] sm:$0xff]
      %v1192 = vld [vmem:[#allocation2 + $0x38] sm:$0xff]
      %v1193 = vld [vmem:[#allocation2 + $0x40] sm:$0xff]
      %v1194 = vld [vmem:[#allocation2 + $0x48] sm:$0xff]
      %v1195 = vadd.f32 %v1185, %v1161
      %v1196 = vadd.f32 %v1186, %v1163
      %v1197 = vadd.f32 %v1187, %v1166
      %v1198 = vadd.f32 %v1188, %v1168
      %v1199 = vadd.f32 %v1189, %v1171
      %v1200 = vadd.f32 %v1190, %v1173
      %v1201 = vadd.f32 %v1191, %v1176
      %v1202 = vadd.f32 %v1192, %v1178
      %v1203 = vadd.f32 %v1193, %v1181
      %v1204 = vadd.f32 %v1194, %v1183
      %1205 = vst.msk [vmem:[#allocation2] sm:$0xff] %vm266, %v1195
      %1206 = vst.msk [vmem:[#allocation2 + $0x8] sm:$0xff] %vm266, %v1196
      %1207 = vst.msk [vmem:[#allocation2 + $0x10] sm:$0xff] %vm266, %v1197
      %1208 = vst.msk [vmem:[#allocation2 + $0x18] sm:$0xff] %vm266, %v1198
      %1209 = vst.msk [vmem:[#allocation2 + $0x20] sm:$0xff] %vm266, %v1199
      %1210 = vst.msk [vmem:[#allocation2 + $0x28] sm:$0xff] %vm266, %v1200
      %1211 = vst.msk [vmem:[#allocation2 + $0x30] sm:$0xff] %vm266, %v1201
      %1212 = vst.msk [vmem:[#allocation2 + $0x38] sm:$0xff] %vm266, %v1202
      %1213 = vst.msk [vmem:[#allocation2 + $0x40] sm:$0xff] %vm266, %v1203
      %1214 = vst.msk [vmem:[#allocation2 + $0x48] sm:$0xff] %vm266, %v1204
      %v1215 = vld [vmem:[%s192 + $0x8] sm:$0xc]
      %v1216 = vld [vmem:[%s192 + $0xc] sm:$0xf]
      %v1217 = vld [vmem:[%s192 + $0x10] sm:$0xf]
      %v1218 = vld [vmem:[%s192 + $0x14] sm:$0xf]
      %v1219 = vld [vmem:[%s192 + $0x18] sm:$0xf]
      %v1220 = vld [vmem:[%s192 + $0x1c] sm:$0xf]
      %v1221 = vld [vmem:[%s192 + $0x20] sm:$0xf]
      %v1222 = vld [vmem:[%s192 + $0x24] sm:$0xf]
      %v1223 = vld [vmem:[%s192 + $0x28] sm:$0xf]
      %v1224 = vld [vmem:[%s192 + $0x2c] sm:$0xf]
      %v1225 = vld [vmem:[%s192 + $0x30] sm:$0x3]
      %s1226 = scalar_lea.vmem %s1, 192
      %v1227 = vld [vmem:[%s1226] sm:$0xf]
      %v1228 = vld [vmem:[%s1226 + $0x4] sm:$0xf]
      %v1229 = vld [vmem:[%s1226 + $0x8] sm:$0xf]
      %v1230 = vld [vmem:[%s1226 + $0xc] sm:$0xf]
      %v1231 = vld [vmem:[%s1226 + $0x10] sm:$0xf]
      %v1232 = vld [vmem:[%s1226 + $0x14] sm:$0xf]
      %v1233 = vld [vmem:[%s1226 + $0x18] sm:$0xf]
      %v1234 = vld [vmem:[%s1226 + $0x1c] sm:$0xf]
      %v1246 = vunpack.c.l.b16 %v1215
      %v1247 = vunpack.c.l.b16 %v1216
      %v1248 = vunpack.c.l.b16 %v1217
      %v1249 = vunpack.c.l.b16 %v1218
      %v1250 = vunpack.c.l.b16 %v1219
      %v1251 = vunpack.c.l.b16 %v1220
      %v1252 = vunpack.c.l.b16 %v1221
      %v1253 = vunpack.c.l.b16 %v1222
      %v1254 = vunpack.c.l.b16 %v1223
      %v1255 = vunpack.c.l.b16 %v1224
      %v1256 = vunpack.c.l.b16 %v1225
      %v1257 = vpack.c.b16 %v1247, %v1246
      %v1258 = vpack.c.b16 %v1249, %v1248
      %v1259 = vpack.c.b16 %v1251, %v1250
      %v1260 = vpack.c.b16 %v1253, %v1252
      %v1261 = vpack.c.b16 %v1255, %v1254
      %v1262 = vpack.c.b16 %v1256, %v1256
      %v1263 = vrot.slane %v1257, 2
      %v1264 = vrot.slane %v1258, 2
      %v1265 = vsel %vm1100, %v1263, %v1264
      %v1266 = vrot.slane %v1259, 2
      %v1267 = vsel %vm1100, %v1264, %v1266
      %v1268 = vrot.slane %v1260, 2
      %v1269 = vsel %vm1100, %v1266, %v1268
      %v1270 = vrot.slane %v1261, 2
      %v1271 = vsel %vm1100, %v1268, %v1270
      %v1272 = vrot.slane %v1262, 2
      %v1273 = vsel %vm1100, %v1270, %v1272
      %v1282 = vunpack.c.l.b16 %v1227
      %v1283 = vunpack.c.l.b16 %v1228
      %v1284 = vunpack.c.l.b16 %v1229
      %v1285 = vunpack.c.l.b16 %v1230
      %v1286 = vunpack.c.l.b16 %v1231
      %v1287 = vunpack.c.l.b16 %v1232
      %v1288 = vunpack.c.l.b16 %v1233
      %v1289 = vunpack.c.l.b16 %v1234
      %v1290 = vpack.c.b16 %v1283, %v1282
      %v1291 = vpack.c.b16 %v1285, %v1284
      %v1292 = vpack.c.b16 %v1287, %v1286
      %v1293 = vpack.c.b16 %v1289, %v1288
      %v1299 = vsel %vm266, %v1265, 0
      %v1302 = vsel %vm266, %v1267, 0
      %v1305 = vsel %vm266, %v1269, 0
      %v1308 = vsel %vm266, %v1271, 0
      %v1311 = vsel %vm266, %v1273, 0
      %1313 = vmatpush.bf16.msra.mxu0 0
      %1314 = vmatpush.bf16.msra.mxu0 0
      %1315 = vmatpush.bf16.msra.mxu0 0
      %1316 = vmatpush.bf16.msra.mxu0 0
      %1317 = vmatpush.bf16.msra.mxu0 %v1293
      %1318 = vmatpush.bf16.msra.mxu0 %v1292
      %1319 = vmatpush.bf16.msra.mxu0 %v1291
      %1320 = vmatpush.bf16.msra.mxu0 %v1290
      %1321 = vmatmul.bf16.gmra.mxu0 %v1299
      %v1322 = vpop.f32.mrf.mxu0
      %v1323 = vadd.f32 0.0, %v1322
      %v1324 = vpop.f32.mrf.mxu0
      %v1325 = vadd.f32 0.0, %v1324
      %1326 = vmatmul.bf16.gmra.mxu0 %v1302
      %v1327 = vpop.f32.mrf.mxu0
      %v1328 = vadd.f32 0.0, %v1327
      %v1329 = vpop.f32.mrf.mxu0
      %v1330 = vadd.f32 0.0, %v1329
      %1331 = vmatmul.bf16.gmra.mxu0 %v1305
      %v1332 = vpop.f32.mrf.mxu0
      %v1333 = vadd.f32 0.0, %v1332
      %v1334 = vpop.f32.mrf.mxu0
      %v1335 = vadd.f32 0.0, %v1334
      %1336 = vmatmul.bf16.gmra.mxu0 %v1308
      %v1337 = vpop.f32.mrf.mxu0
      %v1338 = vadd.f32 0.0, %v1337
      %v1339 = vpop.f32.mrf.mxu0
      %v1340 = vadd.f32 0.0, %v1339
      %1341 = vmatmul.bf16.gmra.mxu0 %v1311
      %v1342 = vpop.f32.mrf.mxu0
      %v1343 = vadd.f32 0.0, %v1342
      %v1344 = vpop.f32.mrf.mxu0
      %v1345 = vadd.f32 0.0, %v1344
      %1346 = vdwg.mxu0
      %v1347 = vld [vmem:[#allocation2] sm:$0xff]
      %v1348 = vld [vmem:[#allocation2 + $0x8] sm:$0xff]
      %v1349 = vld [vmem:[#allocation2 + $0x10] sm:$0xff]
      %v1350 = vld [vmem:[#allocation2 + $0x18] sm:$0xff]
      %v1351 = vld [vmem:[#allocation2 + $0x20] sm:$0xff]
      %v1352 = vld [vmem:[#allocation2 + $0x28] sm:$0xff]
      %v1353 = vld [vmem:[#allocation2 + $0x30] sm:$0xff]
      %v1354 = vld [vmem:[#allocation2 + $0x38] sm:$0xff]
      %v1355 = vld [vmem:[#allocation2 + $0x40] sm:$0xff]
      %v1356 = vld [vmem:[#allocation2 + $0x48] sm:$0xff]
      %v1357 = vadd.f32 %v1347, %v1323
      %v1358 = vadd.f32 %v1348, %v1325
      %v1359 = vadd.f32 %v1349, %v1328
      %v1360 = vadd.f32 %v1350, %v1330
      %v1361 = vadd.f32 %v1351, %v1333
      %v1362 = vadd.f32 %v1352, %v1335
      %v1363 = vadd.f32 %v1353, %v1338
      %v1364 = vadd.f32 %v1354, %v1340
      %v1365 = vadd.f32 %v1355, %v1343
      %v1366 = vadd.f32 %v1356, %v1345
      %1367 = vst.msk [vmem:[#allocation2] sm:$0xff] %vm266, %v1357
      %1368 = vst.msk [vmem:[#allocation2 + $0x8] sm:$0xff] %vm266, %v1358
      %1369 = vst.msk [vmem:[#allocation2 + $0x10] sm:$0xff] %vm266, %v1359
      %1370 = vst.msk [vmem:[#allocation2 + $0x18] sm:$0xff] %vm266, %v1360
      %1371 = vst.msk [vmem:[#allocation2 + $0x20] sm:$0xff] %vm266, %v1361
      %1372 = vst.msk [vmem:[#allocation2 + $0x28] sm:$0xff] %vm266, %v1362
      %1373 = vst.msk [vmem:[#allocation2 + $0x30] sm:$0xff] %vm266, %v1363
      %1374 = vst.msk [vmem:[#allocation2 + $0x38] sm:$0xff] %vm266, %v1364
      %1375 = vst.msk [vmem:[#allocation2 + $0x40] sm:$0xff] %vm266, %v1365
      %1376 = vst.msk [vmem:[#allocation2 + $0x48] sm:$0xff] %vm266, %v1366
      %v1377 = vld [vmem:[%s192 + $0x8] sm:$0xc]
      %v1378 = vld [vmem:[%s192 + $0xc] sm:$0xf]
      %v1379 = vld [vmem:[%s192 + $0x10] sm:$0xf]
      %v1380 = vld [vmem:[%s192 + $0x14] sm:$0xf]
      %v1381 = vld [vmem:[%s192 + $0x18] sm:$0xf]
      %v1382 = vld [vmem:[%s192 + $0x1c] sm:$0xf]
      %v1383 = vld [vmem:[%s192 + $0x20] sm:$0xf]
      %v1384 = vld [vmem:[%s192 + $0x24] sm:$0xf]
      %v1385 = vld [vmem:[%s192 + $0x28] sm:$0xf]
      %v1386 = vld [vmem:[%s192 + $0x2c] sm:$0xf]
      %v1387 = vld [vmem:[%s192 + $0x30] sm:$0x7]
      %s1388 = scalar_lea.vmem %s1, 224
      %v1389 = vld [vmem:[%s1388] sm:$0xf]
      %v1390 = vld [vmem:[%s1388 + $0x4] sm:$0xf]
      %v1391 = vld [vmem:[%s1388 + $0x8] sm:$0xf]
      %v1392 = vld [vmem:[%s1388 + $0xc] sm:$0xf]
      %v1393 = vld [vmem:[%s1388 + $0x10] sm:$0xf]
      %v1394 = vld [vmem:[%s1388 + $0x14] sm:$0xf]
      %v1395 = vld [vmem:[%s1388 + $0x18] sm:$0xf]
      %v1396 = vld [vmem:[%s1388 + $0x1c] sm:$0xf]
      %v1408 = vunpack.c.l.b16 %v1377
      %v1409 = vunpack.c.l.b16 %v1378
      %v1410 = vunpack.c.l.b16 %v1379
      %v1411 = vunpack.c.l.b16 %v1380
      %v1412 = vunpack.c.l.b16 %v1381
      %v1413 = vunpack.c.l.b16 %v1382
      %v1414 = vunpack.c.l.b16 %v1383
      %v1415 = vunpack.c.l.b16 %v1384
      %v1416 = vunpack.c.l.b16 %v1385
      %v1417 = vunpack.c.l.b16 %v1386
      %v1418 = vunpack.c.l.b16 %v1387
      %v1419 = vpack.c.b16 %v1409, %v1408
      %v1420 = vpack.c.b16 %v1411, %v1410
      %v1421 = vpack.c.b16 %v1413, %v1412
      %v1422 = vpack.c.b16 %v1415, %v1414
      %v1423 = vpack.c.b16 %v1417, %v1416
      %v1424 = vpack.c.b16 %v1418, %v1418
      %vm1425 = vsmask.f32 5376
      %v1427 = vshrl.u32 %v1419, 16
      %v1429 = vrot.slane %v1427, 2
      %v1430 = vshll.u32 %v1419, 16
      %v1432 = vrot.slane %v1430, 3
      %v1433 = vor.u32 %v1429, %v1432
      %v1435 = vshrl.u32 %v1420, 16
      %v1437 = vrot.slane %v1435, 2
      %v1438 = vshll.u32 %v1420, 16
      %v1440 = vrot.slane %v1438, 3
      %v1441 = vor.u32 %v1437, %v1440
      %v1442 = vsel %vm1425, %v1433, %v1441
      %v1444 = vshrl.u32 %v1421, 16
      %v1446 = vrot.slane %v1444, 2
      %v1447 = vshll.u32 %v1421, 16
      %v1449 = vrot.slane %v1447, 3
      %v1450 = vor.u32 %v1446, %v1449
      %v1451 = vsel %vm1425, %v1441, %v1450
      %v1453 = vshrl.u32 %v1422, 16
      %v1455 = vrot.slane %v1453, 2
      %v1456 = vshll.u32 %v1422, 16
      %v1458 = vrot.slane %v1456, 3
      %v1459 = vor.u32 %v1455, %v1458
      %v1460 = vsel %vm1425, %v1450, %v1459
      %v1462 = vshrl.u32 %v1423, 16
      %v1464 = vrot.slane %v1462, 2
      %v1465 = vshll.u32 %v1423, 16
      %v1467 = vrot.slane %v1465, 3
      %v1468 = vor.u32 %v1464, %v1467
      %v1469 = vsel %vm1425, %v1459, %v1468
      %v1471 = vshrl.u32 %v1424, 16
      %v1473 = vrot.slane %v1471, 2
      %v1474 = vshll.u32 %v1424, 16
      %v1476 = vrot.slane %v1474, 3
      %v1477 = vor.u32 %v1473, %v1476
      %v1478 = vsel %vm1425, %v1468, %v1477
      %v1487 = vunpack.c.l.b16 %v1389
      %v1488 = vunpack.c.l.b16 %v1390
      %v1489 = vunpack.c.l.b16 %v1391
      %v1490 = vunpack.c.l.b16 %v1392
      %v1491 = vunpack.c.l.b16 %v1393
      %v1492 = vunpack.c.l.b16 %v1394
      %v1493 = vunpack.c.l.b16 %v1395
      %v1494 = vunpack.c.l.b16 %v1396
      %v1495 = vpack.c.b16 %v1488, %v1487
      %v1496 = vpack.c.b16 %v1490, %v1489
      %v1497 = vpack.c.b16 %v1492, %v1491
      %v1498 = vpack.c.b16 %v1494, %v1493
      %v1504 = vsel %vm266, %v1442, 0
      %v1507 = vsel %vm266, %v1451, 0
      %v1510 = vsel %vm266, %v1460, 0
      %v1513 = vsel %vm266, %v1469, 0
      %v1516 = vsel %vm266, %v1478, 0
      %1518 = vmatpush.bf16.msra.mxu0 0
      %1519 = vmatpush.bf16.msra.mxu0 0
      %1520 = vmatpush.bf16.msra.mxu0 0
      %1521 = vmatpush.bf16.msra.mxu0 0
      %1522 = vmatpush.bf16.msra.mxu0 %v1498
      %1523 = vmatpush.bf16.msra.mxu0 %v1497
      %1524 = vmatpush.bf16.msra.mxu0 %v1496
      %1525 = vmatpush.bf16.msra.mxu0 %v1495
      %1526 = vmatmul.bf16.gmra.mxu0 %v1504
      %v1527 = vpop.f32.mrf.mxu0
      %v1528 = vadd.f32 0.0, %v1527
      %v1529 = vpop.f32.mrf.mxu0
      %v1530 = vadd.f32 0.0, %v1529
      %1531 = vmatmul.bf16.gmra.mxu0 %v1507
      %v1532 = vpop.f32.mrf.mxu0
      %v1533 = vadd.f32 0.0, %v1532
      %v1534 = vpop.f32.mrf.mxu0
      %v1535 = vadd.f32 0.0, %v1534
      %1536 = vmatmul.bf16.gmra.mxu0 %v1510
      %v1537 = vpop.f32.mrf.mxu0
      %v1538 = vadd.f32 0.0, %v1537
      %v1539 = vpop.f32.mrf.mxu0
      %v1540 = vadd.f32 0.0, %v1539
      %1541 = vmatmul.bf16.gmra.mxu0 %v1513
      %v1542 = vpop.f32.mrf.mxu0
      %v1543 = vadd.f32 0.0, %v1542
      %v1544 = vpop.f32.mrf.mxu0
      %v1545 = vadd.f32 0.0, %v1544
      %1546 = vmatmul.bf16.gmra.mxu0 %v1516
      %v1547 = vpop.f32.mrf.mxu0
      %v1548 = vadd.f32 0.0, %v1547
      %v1549 = vpop.f32.mrf.mxu0
      %v1550 = vadd.f32 0.0, %v1549
      %1551 = vdwg.mxu0
      %v1552 = vld [vmem:[#allocation2] sm:$0xff]
      %v1553 = vld [vmem:[#allocation2 + $0x8] sm:$0xff]
      %v1554 = vld [vmem:[#allocation2 + $0x10] sm:$0xff]
      %v1555 = vld [vmem:[#allocation2 + $0x18] sm:$0xff]
      %v1556 = vld [vmem:[#allocation2 + $0x20] sm:$0xff]
      %v1557 = vld [vmem:[#allocation2 + $0x28] sm:$0xff]
      %v1558 = vld [vmem:[#allocation2 + $0x30] sm:$0xff]
      %v1559 = vld [vmem:[#allocation2 + $0x38] sm:$0xff]
      %v1560 = vld [vmem:[#allocation2 + $0x40] sm:$0xff]
      %v1561 = vld [vmem:[#allocation2 + $0x48] sm:$0xff]
      %v1562 = vadd.f32 %v1552, %v1528
      %v1563 = vadd.f32 %v1553, %v1530
      %v1564 = vadd.f32 %v1554, %v1533
      %v1565 = vadd.f32 %v1555, %v1535
      %v1566 = vadd.f32 %v1556, %v1538
      %v1567 = vadd.f32 %v1557, %v1540
      %v1568 = vadd.f32 %v1558, %v1543
      %v1569 = vadd.f32 %v1559, %v1545
      %v1570 = vadd.f32 %v1560, %v1548
      %v1571 = vadd.f32 %v1561, %v1550
      %1572 = vst.msk [vmem:[#allocation2] sm:$0xff] %vm266, %v1562
      %1573 = vst.msk [vmem:[#allocation2 + $0x8] sm:$0xff] %vm266, %v1563
      %1574 = vst.msk [vmem:[#allocation2 + $0x10] sm:$0xff] %vm266, %v1564
      %1575 = vst.msk [vmem:[#allocation2 + $0x18] sm:$0xff] %vm266, %v1565
      %1576 = vst.msk [vmem:[#allocation2 + $0x20] sm:$0xff] %vm266, %v1566
      %1577 = vst.msk [vmem:[#allocation2 + $0x28] sm:$0xff] %vm266, %v1567
      %1578 = vst.msk [vmem:[#allocation2 + $0x30] sm:$0xff] %vm266, %v1568
      %1579 = vst.msk [vmem:[#allocation2 + $0x38] sm:$0xff] %vm266, %v1569
      %1580 = vst.msk [vmem:[#allocation2 + $0x40] sm:$0xff] %vm266, %v1570
      %1581 = vst.msk [vmem:[#allocation2 + $0x48] sm:$0xff] %vm266, %v1571
      %v1582 = vld [vmem:[%s192 + $0x8] sm:$0x8]
      %v1583 = vld [vmem:[%s192 + $0xc] sm:$0xf]
      %v1584 = vld [vmem:[%s192 + $0x10] sm:$0xf]
      %v1585 = vld [vmem:[%s192 + $0x14] sm:$0xf]
      %v1586 = vld [vmem:[%s192 + $0x18] sm:$0xf]
      %v1587 = vld [vmem:[%s192 + $0x1c] sm:$0xf]
      %v1588 = vld [vmem:[%s192 + $0x20] sm:$0xf]
      %v1589 = vld [vmem:[%s192 + $0x24] sm:$0xf]
      %v1590 = vld [vmem:[%s192 + $0x28] sm:$0xf]
      %v1591 = vld [vmem:[%s192 + $0x2c] sm:$0xf]
      %v1592 = vld [vmem:[%s192 + $0x30] sm:$0x7]
      %s1593 = scalar_lea.vmem %s1, 256
      %v1594 = vld [vmem:[%s1593] sm:$0xf]
      %v1595 = vld [vmem:[%s1593 + $0x4] sm:$0xf]
      %v1596 = vld [vmem:[%s1593 + $0x8] sm:$0xf]
      %v1597 = vld [vmem:[%s1593 + $0xc] sm:$0xf]
      %v1598 = vld [vmem:[%s1593 + $0x10] sm:$0xf]
      %v1599 = vld [vmem:[%s1593 + $0x14] sm:$0xf]
      %v1600 = vld [vmem:[%s1593 + $0x18] sm:$0xf]
      %v1601 = vld [vmem:[%s1593 + $0x1c] sm:$0xf]
      %v1613 = vunpack.c.l.b16 %v1582
      %v1614 = vunpack.c.l.b16 %v1583
      %v1615 = vunpack.c.l.b16 %v1584
      %v1616 = vunpack.c.l.b16 %v1585
      %v1617 = vunpack.c.l.b16 %v1586
      %v1618 = vunpack.c.l.b16 %v1587
      %v1619 = vunpack.c.l.b16 %v1588
      %v1620 = vunpack.c.l.b16 %v1589
      %v1621 = vunpack.c.l.b16 %v1590
      %v1622 = vunpack.c.l.b16 %v1591
      %v1623 = vunpack.c.l.b16 %v1592
      %v1624 = vpack.c.b16 %v1614, %v1613
      %v1625 = vpack.c.b16 %v1616, %v1615
      %v1626 = vpack.c.b16 %v1618, %v1617
      %v1627 = vpack.c.b16 %v1620, %v1619
      %v1628 = vpack.c.b16 %v1622, %v1621
      %v1629 = vpack.c.b16 %v1623, %v1623
      %vm1630 = vcmask 1044480
      %v1631 = vrot.slane %v1624, 3
      %v1632 = vrot.slane %v1625, 3
      %v1633 = vsel %vm1630, %v1631, %v1632
      %v1634 = vrot.slane %v1626, 3
      %v1635 = vsel %vm1630, %v1632, %v1634
      %v1636 = vrot.slane %v1627, 3
      %v1637 = vsel %vm1630, %v1634, %v1636
      %v1638 = vrot.slane %v1628, 3
      %v1639 = vsel %vm1630, %v1636, %v1638
      %v1640 = vrot.slane %v1629, 3
      %v1641 = vsel %vm1630, %v1638, %v1640
      %v1650 = vunpack.c.l.b16 %v1594
      %v1651 = vunpack.c.l.b16 %v1595
      %v1652 = vunpack.c.l.b16 %v1596
      %v1653 = vunpack.c.l.b16 %v1597
      %v1654 = vunpack.c.l.b16 %v1598
      %v1655 = vunpack.c.l.b16 %v1599
      %v1656 = vunpack.c.l.b16 %v1600
      %v1657 = vunpack.c.l.b16 %v1601
      %v1658 = vpack.c.b16 %v1651, %v1650
      %v1659 = vpack.c.b16 %v1653, %v1652
      %v1660 = vpack.c.b16 %v1655, %v1654
      %v1661 = vpack.c.b16 %v1657, %v1656
      %v1667 = vsel %vm266, %v1633, 0
      %v1670 = vsel %vm266, %v1635, 0
      %v1673 = vsel %vm266, %v1637, 0
      %v1676 = vsel %vm266, %v1639, 0
      %v1679 = vsel %vm266, %v1641, 0
      %1681 = vmatpush.bf16.msra.mxu0 0
      %1682 = vmatpush.bf16.msra.mxu0 0
      %1683 = vmatpush.bf16.msra.mxu0 0
      %1684 = vmatpush.bf16.msra.mxu0 0
      %1685 = vmatpush.bf16.msra.mxu0 %v1661
      %1686 = vmatpush.bf16.msra.mxu0 %v1660
      %1687 = vmatpush.bf16.msra.mxu0 %v1659
      %1688 = vmatpush.bf16.msra.mxu0 %v1658
      %1689 = vmatmul.bf16.gmra.mxu0 %v1667
      %v1690 = vpop.f32.mrf.mxu0
      %v1691 = vadd.f32 0.0, %v1690
      %v1692 = vpop.f32.mrf.mxu0
      %v1693 = vadd.f32 0.0, %v1692
      %1694 = vmatmul.bf16.gmra.mxu0 %v1670
      %v1695 = vpop.f32.mrf.mxu0
      %v1696 = vadd.f32 0.0, %v1695
      %v1697 = vpop.f32.mrf.mxu0
      %v1698 = vadd.f32 0.0, %v1697
      %1699 = vmatmul.bf16.gmra.mxu0 %v1673
      %v1700 = vpop.f32.mrf.mxu0
      %v1701 = vadd.f32 0.0, %v1700
      %v1702 = vpop.f32.mrf.mxu0
      %v1703 = vadd.f32 0.0, %v1702
      %1704 = vmatmul.bf16.gmra.mxu0 %v1676
      %v1705 = vpop.f32.mrf.mxu0
      %v1706 = vadd.f32 0.0, %v1705
      %v1707 = vpop.f32.mrf.mxu0
      %v1708 = vadd.f32 0.0, %v1707
      %1709 = vmatmul.bf16.gmra.mxu0 %v1679
      %v1710 = vpop.f32.mrf.mxu0
      %v1711 = vadd.f32 0.0, %v1710
      %v1712 = vpop.f32.mrf.mxu0
      %v1713 = vadd.f32 0.0, %v1712
      %1714 = vdwg.mxu0
      %v1715 = vld [vmem:[#allocation2] sm:$0xff]
      %v1716 = vld [vmem:[#allocation2 + $0x8] sm:$0xff]
      %v1717 = vld [vmem:[#allocation2 + $0x10] sm:$0xff]
      %v1718 = vld [vmem:[#allocation2 + $0x18] sm:$0xff]
      %v1719 = vld [vmem:[#allocation2 + $0x20] sm:$0xff]
      %v1720 = vld [vmem:[#allocation2 + $0x28] sm:$0xff]
      %v1721 = vld [vmem:[#allocation2 + $0x30] sm:$0xff]
      %v1722 = vld [vmem:[#allocation2 + $0x38] sm:$0xff]
      %v1723 = vld [vmem:[#allocation2 + $0x40] sm:$0xff]
      %v1724 = vld [vmem:[#allocation2 + $0x48] sm:$0xff]
      %v1725 = vadd.f32 %v1715, %v1691
      %v1726 = vadd.f32 %v1716, %v1693
      %v1727 = vadd.f32 %v1717, %v1696
      %v1728 = vadd.f32 %v1718, %v1698
      %v1729 = vadd.f32 %v1719, %v1701
      %v1730 = vadd.f32 %v1720, %v1703
      %v1731 = vadd.f32 %v1721, %v1706
      %v1732 = vadd.f32 %v1722, %v1708
      %v1733 = vadd.f32 %v1723, %v1711
      %v1734 = vadd.f32 %v1724, %v1713
      %1735 = vst.msk [vmem:[#allocation2] sm:$0xff] %vm266, %v1725
      %1736 = vst.msk [vmem:[#allocation2 + $0x8] sm:$0xff] %vm266, %v1726
      %1737 = vst.msk [vmem:[#allocation2 + $0x10] sm:$0xff] %vm266, %v1727
      %1738 = vst.msk [vmem:[#allocation2 + $0x18] sm:$0xff] %vm266, %v1728
      %1739 = vst.msk [vmem:[#allocation2 + $0x20] sm:$0xff] %vm266, %v1729
      %1740 = vst.msk [vmem:[#allocation2 + $0x28] sm:$0xff] %vm266, %v1730
      %1741 = vst.msk [vmem:[#allocation2 + $0x30] sm:$0xff] %vm266, %v1731
      %1742 = vst.msk [vmem:[#allocation2 + $0x38] sm:$0xff] %vm266, %v1732
      %1743 = vst.msk [vmem:[#allocation2 + $0x40] sm:$0xff] %vm266, %v1733
      %1744 = vst.msk [vmem:[#allocation2 + $0x48] sm:$0xff] %vm266, %v1734
      %v1745 = vld [vmem:[#allocation2] sm:$0xff]
      %v1746 = vld [vmem:[#allocation2 + $0x8] sm:$0xff]
      %v1747 = vld [vmem:[#allocation2 + $0x10] sm:$0xff]
      %v1748 = vld [vmem:[#allocation2 + $0x18] sm:$0xff]
      %v1749 = vld [vmem:[#allocation2 + $0x20] sm:$0xff]
      %v1750 = vld [vmem:[#allocation2 + $0x28] sm:$0xff]
      %v1751 = vld [vmem:[#allocation2 + $0x30] sm:$0xff]
      %v1752 = vld [vmem:[#allocation2 + $0x38] sm:$0xff]
      %v1753 = vld [vmem:[#allocation2 + $0x40] sm:$0xff]
      %v1754 = vld [vmem:[#allocation2 + $0x48] sm:$0xff]
      %v1755 = vld [vmem:[%s2] sm:$0x1]
      %v1757 = vperm.slane %v1755, 0
      %v1759 = vmul.f32 %v1745, %v1757
      %v1760 = vmul.f32 %v1746, %v1757
      %v1761 = vmul.f32 %v1747, %v1757
      %v1762 = vmul.f32 %v1748, %v1757
      %v1763 = vmul.f32 %v1749, %v1757
      %v1764 = vmul.f32 %v1750, %v1757
      %v1765 = vmul.f32 %v1751, %v1757
      %v1766 = vmul.f32 %v1752, %v1757
      %v1767 = vmul.f32 %v1753, %v1757
      %v1768 = vmul.f32 %v1754, %v1757
      %v1769 = vld [vmem:[%s3] sm:$0x1]
      %v1771 = vperm.slane %v1769, 0
      %v1773 = vadd.f32 %v1759, %v1771
      %v1774 = vadd.f32 %v1760, %v1771
      %v1775 = vadd.f32 %v1761, %v1771
      %v1776 = vadd.f32 %v1762, %v1771
      %v1777 = vadd.f32 %v1763, %v1771
      %v1778 = vadd.f32 %v1764, %v1771
      %v1779 = vadd.f32 %v1765, %v1771
      %v1780 = vadd.f32 %v1766, %v1771
      %v1781 = vadd.f32 %v1767, %v1771
      %v1782 = vadd.f32 %v1768, %v1771
      %v1783 = vmax.f32 %v1773, 0.0
      %v1784 = vmax.f32 %v1774, 0.0
      %v1785 = vmax.f32 %v1775, 0.0
      %v1786 = vmax.f32 %v1776, 0.0
      %v1787 = vmax.f32 %v1777, 0.0
      %v1788 = vmax.f32 %v1778, 0.0
      %v1789 = vmax.f32 %v1779, 0.0
      %v1790 = vmax.f32 %v1780, 0.0
      %v1791 = vmax.f32 %v1781, 0.0
      %v1792 = vmax.f32 %v1782, 0.0
      %1793 = vst.msk [vmem:[#allocation2] sm:$0xff] %vm266, %v1783
      %1794 = vst.msk [vmem:[#allocation2 + $0x8] sm:$0xff] %vm266, %v1784
      %1795 = vst.msk [vmem:[#allocation2 + $0x10] sm:$0xff] %vm266, %v1785
      %1796 = vst.msk [vmem:[#allocation2 + $0x18] sm:$0xff] %vm266, %v1786
      %1797 = vst.msk [vmem:[#allocation2 + $0x20] sm:$0xff] %vm266, %v1787
      %1798 = vst.msk [vmem:[#allocation2 + $0x28] sm:$0xff] %vm266, %v1788
      %1799 = vst.msk [vmem:[#allocation2 + $0x30] sm:$0xff] %vm266, %v1789
      %1800 = vst.msk [vmem:[#allocation2 + $0x38] sm:$0xff] %vm266, %v1790
      %1801 = vst.msk [vmem:[#allocation2 + $0x40] sm:$0xff] %vm266, %v1791
      %1802 = vst.msk [vmem:[#allocation2 + $0x48] sm:$0xff] %vm266, %v1792
      %v1803 = vld [vmem:[#allocation2] ss:$2 sm:$0xf]
      %s1804 = scalar_lea.vmem [#allocation2], 1
      %v1805 = vld [vmem:[%s1804] ss:$2 sm:$0xf]
      %s1806 = scalar_lea.vmem [#allocation2], 10
      %v1807 = vld [vmem:[%s1806] ss:$2 sm:$0xf]
      %s1808 = scalar_lea.vmem [#allocation2], 11
      %v1809 = vld [vmem:[%s1808] ss:$2 sm:$0xf]
      %v1810 = vmax.f32 %v1803, %v1805
      %v1811 = vmax.f32 %v1807, %v1809
      %v1812 = vmax.f32 %v1810, %v1811
      %v1813 = vpack.c.bf16 %v1812, %v1812
      %vm1814 = vcmask 517120
      %1815 = vst.msk [vmem:[%s197] sm:$0x3] %vm1814, %v1813
      %s1816 = scalar_lea.vmem [#allocation2], 20
      %v1817 = vld [vmem:[%s1816] ss:$2 sm:$0xf]
      %s1818 = scalar_lea.vmem [#allocation2], 21
      %v1819 = vld [vmem:[%s1818] ss:$2 sm:$0xf]
      %s1820 = scalar_lea.vmem [#allocation2], 30
      %v1821 = vld [vmem:[%s1820] ss:$2 sm:$0xf]
      %s1822 = scalar_lea.vmem [#allocation2], 31
      %v1823 = vld [vmem:[%s1822] ss:$2 sm:$0xf]
      %v1824 = vmax.f32 %v1817, %v1819
      %v1825 = vmax.f32 %v1821, %v1823
      %v1826 = vmax.f32 %v1824, %v1825
      %v1827 = vpack.c.bf16 %v1826, %v1826
      %s1828 = scalar_lea.vmem %s197, 2
      %1829 = vst.msk [vmem:[%s1828] sm:$0x3] %vm1814, %v1827
      %s1830 = scalar_lea.vmem [#allocation2], 40
      %v1831 = vld [vmem:[%s1830] ss:$2 sm:$0xf]
      %s1832 = scalar_lea.vmem [#allocation2], 41
      %v1833 = vld [vmem:[%s1832] ss:$2 sm:$0xf]
      %s1834 = scalar_lea.vmem [#allocation2], 50
      %v1835 = vld [vmem:[%s1834] ss:$2 sm:$0xf]
      %s1836 = scalar_lea.vmem [#allocation2], 51
      %v1837 = vld [vmem:[%s1836] ss:$2 sm:$0xf]
      %v1838 = vmax.f32 %v1831, %v1833
      %v1839 = vmax.f32 %v1835, %v1837
      %v1840 = vmax.f32 %v1838, %v1839
      %v1841 = vpack.c.bf16 %v1840, %v1840
      %s1842 = scalar_lea.vmem %s197, 4
      %1843 = vst.msk [vmem:[%s1842] sm:$0x3] %vm1814, %v1841
      %s1844 = scalar_lea.vmem [#allocation2], 60
      %v1845 = vld [vmem:[%s1844] ss:$2 sm:$0xf]
      %s1846 = scalar_lea.vmem [#allocation2], 61
      %v1847 = vld [vmem:[%s1846] ss:$2 sm:$0xf]
      %s1848 = scalar_lea.vmem [#allocation2], 70
      %v1849 = vld [vmem:[%s1848] ss:$2 sm:$0xf]
      %s1850 = scalar_lea.vmem [#allocation2], 71
      %v1851 = vld [vmem:[%s1850] ss:$2 sm:$0xf]
      %v1852 = vmax.f32 %v1845, %v1847
      %v1853 = vmax.f32 %v1849, %v1851
      %v1854 = vmax.f32 %v1852, %v1853
      %v1855 = vpack.c.bf16 %v1854, %v1854
      %s1856 = scalar_lea.vmem %s197, 6
      %1857 = vst.msk [vmem:[%s1856] sm:$0x3] %vm1814, %v1855
      %p1858 = scmp.lt.s32.totalorder %s15, 1
      %s1859 = scalar_select %p1858, %s15, 1
      %s1860 = smul.addr %s1859, 4
      %s1861 = smul.addr %s1860, 2
      %s1862 = scalar_lea.vmem %s4, %s1861
      // Predicated region
      $region37: #{upper_forward.5} parent=35 // pred_check
        %p1863 = pneg %p122
      $region38: #{upper_forward.5} parent=35 // pred_check_branch
        %1865 = sbr.rel (%p1863) target = $region40
      $region39: #{upper_forward.5} parent=35 // pred_region
        _
      $region40: #{upper_forward.5} parent=35 // pred_fallthru
        _
    $region36: #{upper_forward.5} parent=5 // pred_fallthru
      _
    %p1866 = scmp.le.s32.totalorder 2, %s10
    // Predicated region
    $region41: #{upper_forward.5} parent=5 // pred_check
      %p1867 = pneg %p1866
    $region42: #{upper_forward.5} parent=5 // pred_check_branch
      %1869 = sbr.rel (%p1867) target = $region44
    $region43: #{upper_forward.5} parent=5 // pred_region
      %s1870 = ssub.s32 %s10, 2
      // Predicated region
      $region45: #{upper_forward.5} parent=43 // pred_check
        %p1871 = pneg %p128
      $region46: #{upper_forward.5} parent=43 // pred_check_branch
        %1873 = sbr.rel (%p1871) target = $region48
      $region47: #{upper_forward.5} parent=43 // pred_region
        %p1874 = scmp.lt.s32.totalorder %s16, 1
        %s1875 = scalar_select %p1874, %s16, 1
        %s1876 = smul.addr %s1875, 4
        %s1877 = smul.addr %s1876, 2
        %s1878 = scalar_lea.vmem %s4, %s1877
      $region48: #{upper_forward.5} parent=43 // pred_fallthru
        _
    $region44: #{upper_forward.5} parent=5 // pred_fallthru
      _
  $region6: #{upper_forward.5} parent=0 // loop_footer
    %s14 = sadd.s32 1, %s10
  $region7: #{upper_forward.5} parent=0 // loop_footer_branch
    %9 = sbr.rel target = $region3
  $region8: #{upper_forward.5} parent=0 // loop_exit
    _

// kernel: upper_forward.4
$region0: #{upper_forward.4}
  #allocation0 [shape = 'u32[]', space=smem, size = 0x4, offset = 0x4, fixed_abs, tag = 'smem constant byte address 0x4 - core index']
  #allocation1 [shape = 'u32[72,128]{1,0:T(1,128)}', space=vmem, size = 0x9000, scoped, tag = 'internal scratch']
  #allocation2 [shape = 'f32[288,64]{1,0:T(8,128)}', space=vmem, size = 0x24000, scoped, tag = 'scratch operand']
  %s0 = inlined_call_operand.vmem [shape: bf16[2,342,3], index: 0, kind: input, shape index: {}]
  %s1 = inlined_call_operand.vmem [shape: bf16[9,3,64], index: 1, kind: input, shape index: {}]
  %s2 = inlined_call_operand.vmem [shape: f32[1,64], index: 2, kind: input, shape index: {}]
  %s3 = inlined_call_operand.vmem [shape: f32[1,64], index: 3, kind: input, shape index: {}]
  %s4 = inlined_call_operand.vmem [shape: bf16[2,8,8,64], index: 4, kind: output, shape index: {}]
  %s5 = sld [smem:[#allocation0]]
  $region49: #{upper_forward.4} parent=0
    _
  %s7 = ssub.s32 1, %s5
  %s8 = scalar_select 0, %s7, %s5
  loop: start=0, step=1, limit=4
  $region2: #{upper_forward.4} parent=0 // loop_pre_header
    _
  $region3: #{upper_forward.4} parent=0 // loop_header
    %s10 = sphi 0, %s14
    %p11 = scmp.ge.s32.totalorder %s10, 4
    %s20 = sphi 0, %s22
    %s23 = sphi 0, %s20
    %s24 = sphi 0, %s23
    %s40 = sphi 0, %s24
    %s44 = sphi 0, %s44
    %s46 = sphi 0, %s44
    %s47 = sphi 0, %s46
    %s61 = sphi 0, %s47
    %s65 = sphi 0, %s65
    %s67 = sphi 0, %s65
    %s68 = sphi 0, %s67
    %s82 = sphi 0, %s68
    %s86 = sphi 0, %s86
    %s88 = sphi 0, %s86
    %s89 = sphi 0, %s88
    %s103 = sphi 0, %s89
    %s109 = sphi 0, %s111
    %s112 = sphi 0, %s109
    %s113 = sphi 0, %s112
    %s129 = sphi 0, %s113
  $region4: #{upper_forward.4} parent=0 // loop_header_branch
    %13 = sbr.rel (%p11) target = $region8
  $region5: #{upper_forward.4} parent=0 // loop_body
    %s15 = ssub.s32 %s10, 1
    %s16 = ssub.s32 %s10, 2
    %s17 = sadd.s32 %s10, 1
    %s18 = ssub.s32 %s10, %s17
    %p19 = scmp.eq.s32.totalorder %s18, 0
    %s21 = sadd.s32 %s20, 1
    %s22 = scalar_select %p19, %s20, %s21
    %p25 = pneg %p19
    %p26 = scmp.eq.s32.totalorder %s10, 1
    %p27 = por %p25, %p26
    %p28 = scmp.ne.s32.totalorder %s20, %s23
    %p29 = scmp.eq.s32.totalorder %s10, 0
    %p30 = por %p28, %p29
    %p31 = scmp.ne.s32.totalorder %s20, %s23
    %p32 = scmp.eq.s32.totalorder %s15, 1
    %p33 = por %p31, %p32
    %p34 = scmp.ne.s32.totalorder %s23, %s24
    %p35 = scmp.eq.s32.totalorder %s15, 0
    %p36 = por %p34, %p35
    %p37 = scmp.ne.s32.totalorder %s23, %s24
    %p38 = scmp.eq.s32.totalorder %s16, 1
    %p39 = por %p37, %p38
    %p41 = scmp.ne.s32.totalorder %s24, %s40
    %p42 = scmp.eq.s32.totalorder %s16, 0
    %p43 = por %p41, %p42
    %s45 = sadd.s32 %s44, 1
    %p48 = scmp.eq.s32.totalorder %s10, 1
    %p49 = scmp.ne.s32.totalorder %s44, %s46
    %p50 = scmp.eq.s32.totalorder %s10, 0
    %p51 = por %p49, %p50
    %p52 = scmp.ne.s32.totalorder %s44, %s46
    %p53 = scmp.eq.s32.totalorder %s15, 1
    %p54 = por %p52, %p53
    %p55 = scmp.ne.s32.totalorder %s46, %s47
    %p56 = scmp.eq.s32.totalorder %s15, 0
    %p57 = por %p55, %p56
    %p58 = scmp.ne.s32.totalorder %s46, %s47
    %p59 = scmp.eq.s32.totalorder %s16, 1
    %p60 = por %p58, %p59
    %p62 = scmp.ne.s32.totalorder %s47, %s61
    %p63 = scmp.eq.s32.totalorder %s16, 0
    %p64 = por %p62, %p63
    %s66 = sadd.s32 %s65, 1
    %p69 = scmp.eq.s32.totalorder %s10, 1
    %p70 = scmp.ne.s32.totalorder %s65, %s67
    %p71 = scmp.eq.s32.totalorder %s10, 0
    %p72 = por %p70, %p71
    %p73 = scmp.ne.s32.totalorder %s65, %s67
    %p74 = scmp.eq.s32.totalorder %s15, 1
    %p75 = por %p73, %p74
    %p76 = scmp.ne.s32.totalorder %s67, %s68
    %p77 = scmp.eq.s32.totalorder %s15, 0
    %p78 = por %p76, %p77
    %p79 = scmp.ne.s32.totalorder %s67, %s68
    %p80 = scmp.eq.s32.totalorder %s16, 1
    %p81 = por %p79, %p80
    %p83 = scmp.ne.s32.totalorder %s68, %s82
    %p84 = scmp.eq.s32.totalorder %s16, 0
    %p85 = por %p83, %p84
    %s87 = sadd.s32 %s86, 1
    %p90 = scmp.eq.s32.totalorder %s10, 1
    %p91 = scmp.ne.s32.totalorder %s86, %s88
    %p92 = scmp.eq.s32.totalorder %s10, 0
    %p93 = por %p91, %p92
    %p94 = scmp.ne.s32.totalorder %s86, %s88
    %p95 = scmp.eq.s32.totalorder %s15, 1
    %p96 = por %p94, %p95
    %p97 = scmp.ne.s32.totalorder %s88, %s89
    %p98 = scmp.eq.s32.totalorder %s15, 0
    %p99 = por %p97, %p98
    %p100 = scmp.ne.s32.totalorder %s88, %s89
    %p101 = scmp.eq.s32.totalorder %s16, 1
    %p102 = por %p100, %p101
    %p104 = scmp.ne.s32.totalorder %s89, %s103
    %p105 = scmp.eq.s32.totalorder %s16, 0
    %p106 = por %p104, %p105
    %s107 = ssub.s32 %s10, %s17
    %p108 = scmp.eq.s32.totalorder %s107, 0
    %s110 = sadd.s32 %s109, 1
    %s111 = scalar_select %p108, %s109, %s110
    %p114 = pneg %p108
    %p115 = scmp.eq.s32.totalorder %s10, 1
    %p116 = por %p114, %p115
    %p117 = scmp.ne.s32.totalorder %s109, %s112
    %p118 = scmp.eq.s32.totalorder %s10, 0
    %p119 = por %p117, %p118
    %p120 = scmp.ne.s32.totalorder %s109, %s112
    %p121 = scmp.eq.s32.totalorder %s15, 1
    %p122 = por %p120, %p121
    %p123 = scmp.ne.s32.totalorder %s112, %s113
    %p124 = scmp.eq.s32.totalorder %s15, 0
    %p125 = por %p123, %p124
    %p126 = scmp.ne.s32.totalorder %s112, %s113
    %p127 = scmp.eq.s32.totalorder %s16, 1
    %p128 = por %p126, %p127
    %p130 = scmp.ne.s32.totalorder %s113, %s129
    %p131 = scmp.eq.s32.totalorder %s16, 0
    %p132 = por %p130, %p131
    %p133 = scmp.le.s32.totalorder 1, %s10
    %p134 = scmp.lt.s32.totalorder %s10, 3
    %p135 = pnand %p133, %p134
    %p136 = pneg %p135
    // Predicated region
    $region9: #{upper_forward.4} parent=5 // pred_check
      _
    $region10: #{upper_forward.4} parent=5 // pred_check_branch
      %138 = sbr.rel (%p135) target = $region12
    $region11: #{upper_forward.4} parent=5 // pred_region
      %s139 = ssub.s32 %s10, 1
      // Predicated region
      $region13: #{upper_forward.4} parent=11 // pred_check
        %p140 = pneg %p57
      $region14: #{upper_forward.4} parent=11 // pred_check_branch
        %142 = sbr.rel (%p140) target = $region16
      $region15: #{upper_forward.4} parent=11 // pred_region
        _
      $region16: #{upper_forward.4} parent=11 // pred_fallthru
        _
      // Predicated region
      $region17: #{upper_forward.4} parent=11 // pred_check
        %p143 = pneg %p78
      $region18: #{upper_forward.4} parent=11 // pred_check_branch
        %145 = sbr.rel (%p143) target = $region20
      $region19: #{upper_forward.4} parent=11 // pred_region
        _
      $region20: #{upper_forward.4} parent=11 // pred_fallthru
        _
      // Predicated region
      $region21: #{upper_forward.4} parent=11 // pred_check
        %p146 = pneg %p99
      $region22: #{upper_forward.4} parent=11 // pred_check_branch
        %148 = sbr.rel (%p146) target = $region24
      $region23: #{upper_forward.4} parent=11 // pred_region
        _
      $region24: #{upper_forward.4} parent=11 // pred_fallthru
        _
    $region12: #{upper_forward.4} parent=5 // pred_fallthru
      _
    %p149 = scmp.lt.s32.totalorder %s10, 2
    // Predicated region
    $region25: #{upper_forward.4} parent=5 // pred_check
      %p150 = pneg %p149
    $region26: #{upper_forward.4} parent=5 // pred_check_branch
      %152 = sbr.rel (%p150) target = $region28
    $region27: #{upper_forward.4} parent=5 // pred_region
      // Predicated region
      $region29: #{upper_forward.4} parent=27 // pred_check
        %p153 = pneg %p30
      $region30: #{upper_forward.4} parent=27 // pred_check_branch
        %155 = sbr.rel (%p153) target = $region32
      $region31: #{upper_forward.4} parent=27 // pred_region
        %p156 = scmp.lt.s32.totalorder %s10, 1
        %s157 = scalar_select %p156, %s10, 1
        %s158 = smul.addr %s157, 43
        %s159 = smul.addr %s158, 4
        %s160 = scalar_lea.vmem %s0, %s159
      $region32: #{upper_forward.4} parent=27 // pred_fallthru
        _
    $region28: #{upper_forward.4} parent=5 // pred_fallthru
      _
    %p161 = scmp.le.s32.totalorder 1, %s10
    %p162 = scmp.lt.s32.totalorder %s10, 3
    %p163 = pnand %p161, %p162
    %p164 = pneg %p163
    // Predicated region
    $region33: #{upper_forward.4} parent=5 // pred_check
      _
    $region34: #{upper_forward.4} parent=5 // pred_check_branch
      %166 = sbr.rel (%p163) target = $region36
    $region35: #{upper_forward.4} parent=5 // pred_region
      %s167 = ssub.s32 %s10, 1
      %p168 = scmp.lt.s32.totalorder %s15, 1
      %s169 = scalar_select %p168, %s15, 1
      %s170 = smul.addr %s169, 43
      %s171 = smul.addr %s170, 4
      %s172 = scalar_lea.vmem %s0, %s171
      %p173 = pneg %p36
      %p174 = pneg %p33
      %p175 = pneg %p57
      %p176 = pneg %p54
      %p177 = pneg %p78
      %p178 = pneg %p75
      %p179 = pneg %p99
      %p180 = pneg %p96
      %p181 = pneg %p125
      %p182 = pneg %p122
      %p183 = scmp.lt.s32.totalorder %s15, 1
      %s184 = scalar_select %p183, %s15, 1
      %s185 = smul.addr %s184, 8
      %s186 = smul.addr %s185, 4
      %s187 = scalar_lea.vmem %s4, %s186
      %p188 = scmp.lt.s32.totalorder %s15, 1
      %s189 = scalar_select %p188, %s15, 1
      %s190 = smul.addr %s189, 43
      %s191 = smul.addr %s190, 4
      %s192 = scalar_lea.vmem %s0, %s191
      %p193 = scmp.lt.s32.totalorder %s15, 1
      %s194 = scalar_select %p193, %s15, 1
      %s195 = smul.addr %s194, 8
      %s196 = smul.addr %s195, 4
      %s197 = scalar_lea.vmem %s4, %s196
      %v199 = vld [vmem:[%s192] sm:$0xf]
      %v200 = vld [vmem:[%s192 + $0x4] sm:$0xf]
      %v201 = vld [vmem:[%s192 + $0x8] sm:$0xf]
      %v202 = vld [vmem:[%s192 + $0xc] sm:$0xf]
      %v203 = vld [vmem:[%s192 + $0x10] sm:$0xf]
      %v204 = vld [vmem:[%s192 + $0x14] sm:$0xf]
      %v205 = vld [vmem:[%s192 + $0x18] sm:$0xf]
      %v206 = vld [vmem:[%s192 + $0x1c] sm:$0xf]
      %v207 = vld [vmem:[%s192 + $0x20] sm:$0xf]
      %v208 = vld [vmem:[%s192 + $0x24] sm:$0xf]
      %v209 = vld [vmem:[%s192 + $0x28] sm:$0xf]
      %v210 = vld [vmem:[%s192 + $0x2c] sm:$0xf]
      %v211 = vld [vmem:[%s192 + $0x30] sm:$0xf]
      %v212 = vld [vmem:[%s192 + $0x34] sm:$0xf]
      %v213 = vld [vmem:[%s192 + $0x38] sm:$0xf]
      %v214 = vld [vmem:[%s192 + $0x3c] sm:$0xf]
      %v215 = vld [vmem:[%s192 + $0x40] sm:$0xf]
      %v216 = vld [vmem:[%s192 + $0x44] sm:$0xf]
      %v217 = vld [vmem:[%s192 + $0x48] sm:$0xf]
      %v218 = vld [vmem:[%s192 + $0x4c] sm:$0xf]
      %v219 = vld [vmem:[%s192 + $0x50] sm:$0xf]
      %v220 = vld [vmem:[%s192 + $0x54] sm:$0xf]
      %v221 = vld [vmem:[%s192 + $0x58] sm:$0xf]
      %v222 = vld [vmem:[%s192 + $0x5c] sm:$0xf]
      %v223 = vld [vmem:[%s192 + $0x60] sm:$0xf]
      %v224 = vld [vmem:[%s192 + $0x64] sm:$0xf]
      %v225 = vld [vmem:[%s192 + $0x68] sm:$0xf]
      %v226 = vld [vmem:[%s192 + $0x6c] sm:$0xf]
      %v227 = vld [vmem:[%s192 + $0x70] sm:$0xf]
      %v228 = vld [vmem:[%s192 + $0x74] sm:$0xf]
      %v229 = vld [vmem:[%s192 + $0x78] sm:$0xf]
      %v230 = vld [vmem:[%s192 + $0x7c] sm:$0xf]
      %v231 = vld [vmem:[%s192 + $0x80] sm:$0xf]
      %v232 = vld [vmem:[%s192 + $0x84] sm:$0xf]
      %v233 = vld [vmem:[%s192 + $0x88] sm:$0xf]
      %v234 = vld [vmem:[%s192 + $0x8c] sm:$0xf]
      %v235 = vld [vmem:[%s1] sm:$0x3]
      %v272 = vunpack.c.l.b16 %v199
      %v273 = vunpack.c.l.b16 %v200
      %v274 = vunpack.c.l.b16 %v201
      %v275 = vunpack.c.l.b16 %v202
      %v276 = vunpack.c.l.b16 %v203
      %v277 = vunpack.c.l.b16 %v204
      %v278 = vunpack.c.l.b16 %v205
      %v279 = vunpack.c.l.b16 %v206
      %v280 = vunpack.c.l.b16 %v207
      %v281 = vunpack.c.l.b16 %v208
      %v282 = vunpack.c.l.b16 %v209
      %v283 = vunpack.c.l.b16 %v210
      %v284 = vunpack.c.l.b16 %v211
      %v285 = vunpack.c.l.b16 %v212
      %v286 = vunpack.c.l.b16 %v213
      %v287 = vunpack.c.l.b16 %v214
      %v288 = vunpack.c.l.b16 %v215
      %v289 = vunpack.c.l.b16 %v216
      %v290 = vunpack.c.l.b16 %v217
      %v291 = vunpack.c.l.b16 %v218
      %v292 = vunpack.c.l.b16 %v219
      %v293 = vunpack.c.l.b16 %v220
      %v294 = vunpack.c.l.b16 %v221
      %v295 = vunpack.c.l.b16 %v222
      %v296 = vunpack.c.l.b16 %v223
      %v297 = vunpack.c.l.b16 %v224
      %v298 = vunpack.c.l.b16 %v225
      %v299 = vunpack.c.l.b16 %v226
      %v300 = vunpack.c.l.b16 %v227
      %v301 = vunpack.c.l.b16 %v228
      %v302 = vunpack.c.l.b16 %v229
      %v303 = vunpack.c.l.b16 %v230
      %v304 = vunpack.c.l.b16 %v231
      %v305 = vunpack.c.l.b16 %v232
      %v306 = vunpack.c.l.b16 %v233
      %v307 = vunpack.c.l.b16 %v234
      %v308 = vpack.c.b16 %v273, %v272
      %v309 = vpack.c.b16 %v275, %v274
      %v310 = vpack.c.b16 %v277, %v276
      %v311 = vpack.c.b16 %v279, %v278
      %v312 = vpack.c.b16 %v281, %v280
      %v313 = vpack.c.b16 %v283, %v282
      %v314 = vpack.c.b16 %v285, %v284
      %v315 = vpack.c.b16 %v287, %v286
      %v316 = vpack.c.b16 %v289, %v288
      %v317 = vpack.c.b16 %v291, %v290
      %v318 = vpack.c.b16 %v293, %v292
      %v319 = vpack.c.b16 %v295, %v294
      %v320 = vpack.c.b16 %v297, %v296
      %v321 = vpack.c.b16 %v299, %v298
      %v322 = vpack.c.b16 %v301, %v300
      %v323 = vpack.c.b16 %v303, %v302
      %v324 = vpack.c.b16 %v305, %v304
      %v325 = vpack.c.b16 %v307, %v306
      %vm326 = vcmask 23552
      %v328 = vsel %vm326, %v308, 0
      %v331 = vsel %vm326, %v309, 0
      %v334 = vsel %vm326, %v310, 0
      %v337 = vsel %vm326, %v311, 0
      %v340 = vsel %vm326, %v312, 0
      %v343 = vsel %vm326, %v313, 0
      %v346 = vsel %vm326, %v314, 0
      %v349 = vsel %vm326, %v315, 0
      %v352 = vsel %vm326, %v316, 0
      %v355 = vsel %vm326, %v317, 0
      %v358 = vsel %vm326, %v318, 0
      %v361 = vsel %vm326, %v319, 0
      %v364 = vsel %vm326, %v320, 0
      %v367 = vsel %vm326, %v321, 0
      %v370 = vsel %vm326, %v322, 0
      %v373 = vsel %vm326, %v323, 0
      %v376 = vsel %vm326, %v324, 0
      %v379 = vsel %vm326, %v325, 0
      %vm381 = vcmask 1040384
      %vm382 = vcmask 1041408
      %v383 = vsel %vm381, 4294967295, 65535
      %v384 = vsel %vm382, %v383, 0
      %v386 = vand.u32 %v235, %v384
      %388 = vmatpush.bf16.msra.mxu0 0
      %389 = vmatpush.bf16.msra.mxu0 0
      %390 = vmatpush.bf16.msra.mxu0 0
      %391 = vmatpush.bf16.msra.mxu0 0
      %392 = vmatpush.bf16.msra.mxu0 0
      %393 = vmatpush.bf16.msra.mxu0 0
      %394 = vmatpush.bf16.msra.mxu0 0
      %395 = vmatpush.bf16.msra.mxu0 %v386
      %396 = vmatmul.bf16.gmra.mxu0 %v328
      %v397 = vpop.f32.mrf.mxu0
      %v398 = vadd.f32 0.0, %v397
      %v399 = vpop.f32.mrf.mxu0
      %v400 = vadd.f32 0.0, %v399
      %401 = vmatmul.bf16.gmra.mxu0 %v331
      %v402 = vpop.f32.mrf.mxu0
      %v403 = vadd.f32 0.0, %v402
      %v404 = vpop.f32.mrf.mxu0
      %v405 = vadd.f32 0.0, %v404
      %406 = vmatmul.bf16.gmra.mxu0 %v334
      %v407 = vpop.f32.mrf.mxu0
      %v408 = vadd.f32 0.0, %v407
      %v409 = vpop.f32.mrf.mxu0
      %v410 = vadd.f32 0.0, %v409
      %411 = vmatmul.bf16.gmra.mxu0 %v337
      %v412 = vpop.f32.mrf.mxu0
      %v413 = vadd.f32 0.0, %v412
      %v414 = vpop.f32.mrf.mxu0
      %v415 = vadd.f32 0.0, %v414
      %416 = vmatmul.bf16.gmra.mxu0 %v340
      %v417 = vpop.f32.mrf.mxu0
      %v418 = vadd.f32 0.0, %v417
      %v419 = vpop.f32.mrf.mxu0
      %v420 = vadd.f32 0.0, %v419
      %421 = vmatmul.bf16.gmra.mxu0 %v343
      %v422 = vpop.f32.mrf.mxu0
      %v423 = vadd.f32 0.0, %v422
      %v424 = vpop.f32.mrf.mxu0
      %v425 = vadd.f32 0.0, %v424
      %426 = vmatmul.bf16.gmra.mxu0 %v346
      %v427 = vpop.f32.mrf.mxu0
      %v428 = vadd.f32 0.0, %v427
      %v429 = vpop.f32.mrf.mxu0
      %v430 = vadd.f32 0.0, %v429
      %431 = vmatmul.bf16.gmra.mxu0 %v349
      %v432 = vpop.f32.mrf.mxu0
      %v433 = vadd.f32 0.0, %v432
      %v434 = vpop.f32.mrf.mxu0
      %v435 = vadd.f32 0.0, %v434
      %436 = vmatmul.bf16.gmra.mxu0 %v352
      %v437 = vpop.f32.mrf.mxu0
      %v438 = vadd.f32 0.0, %v437
      %v439 = vpop.f32.mrf.mxu0
      %v440 = vadd.f32 0.0, %v439
      %441 = vmatmul.bf16.gmra.mxu0 %v355
      %v442 = vpop.f32.mrf.mxu0
      %v443 = vadd.f32 0.0, %v442
      %v444 = vpop.f32.mrf.mxu0
      %v445 = vadd.f32 0.0, %v444
      %446 = vmatmul.bf16.gmra.mxu0 %v358
      %v447 = vpop.f32.mrf.mxu0
      %v448 = vadd.f32 0.0, %v447
      %v449 = vpop.f32.mrf.mxu0
      %v450 = vadd.f32 0.0, %v449
      %451 = vmatmul.bf16.gmra.mxu0 %v361
      %v452 = vpop.f32.mrf.mxu0
      %v453 = vadd.f32 0.0, %v452
      %v454 = vpop.f32.mrf.mxu0
      %v455 = vadd.f32 0.0, %v454
      %456 = vmatmul.bf16.gmra.mxu0 %v364
      %v457 = vpop.f32.mrf.mxu0
      %v458 = vadd.f32 0.0, %v457
      %v459 = vpop.f32.mrf.mxu0
      %v460 = vadd.f32 0.0, %v459
      %461 = vmatmul.bf16.gmra.mxu0 %v367
      %v462 = vpop.f32.mrf.mxu0
      %v463 = vadd.f32 0.0, %v462
      %v464 = vpop.f32.mrf.mxu0
      %v465 = vadd.f32 0.0, %v464
      %466 = vmatmul.bf16.gmra.mxu0 %v370
      %v467 = vpop.f32.mrf.mxu0
      %v468 = vadd.f32 0.0, %v467
      %v469 = vpop.f32.mrf.mxu0
      %v470 = vadd.f32 0.0, %v469
      %471 = vmatmul.bf16.gmra.mxu0 %v373
      %v472 = vpop.f32.mrf.mxu0
      %v473 = vadd.f32 0.0, %v472
      %v474 = vpop.f32.mrf.mxu0
      %v475 = vadd.f32 0.0, %v474
      %476 = vmatmul.bf16.gmra.mxu0 %v376
      %v477 = vpop.f32.mrf.mxu0
      %v478 = vadd.f32 0.0, %v477
      %v479 = vpop.f32.mrf.mxu0
      %v480 = vadd.f32 0.0, %v479
      %481 = vmatmul.bf16.gmra.mxu0 %v379
      %v482 = vpop.f32.mrf.mxu0
      %v483 = vadd.f32 0.0, %v482
      %v484 = vpop.f32.mrf.mxu0
      %v485 = vadd.f32 0.0, %v484
      %486 = vdwg.mxu0
      %vm487 = vcmask 523264
      %488 = vst.msk [vmem:[#allocation2] sm:$0xff] %vm487, %v398
      %489 = vst.msk [vmem:[#allocation2 + $0x8] sm:$0xff] %vm487, %v400
      %490 = vst.msk [vmem:[#allocation2 + $0x10] sm:$0xff] %vm487, %v403
      %491 = vst.msk [vmem:[#allocation2 + $0x18] sm:$0xff] %vm487, %v405
      %492 = vst.msk [vmem:[#allocation2 + $0x20] sm:$0xff] %vm487, %v408
      %493 = vst.msk [vmem:[#allocation2 + $0x28] sm:$0xff] %vm487, %v410
      %494 = vst.msk [vmem:[#allocation2 + $0x30] sm:$0xff] %vm487, %v413
      %495 = vst.msk [vmem:[#allocation2 + $0x38] sm:$0xff] %vm487, %v415
      %496 = vst.msk [vmem:[#allocation2 + $0x40] sm:$0xff] %vm487, %v418
      %497 = vst.msk [vmem:[#allocation2 + $0x48] sm:$0xff] %vm487, %v420
      %498 = vst.msk [vmem:[#allocation2 + $0x50] sm:$0xff] %vm487, %v423
      %499 = vst.msk [vmem:[#allocation2 + $0x58] sm:$0xff] %vm487, %v425
      %500 = vst.msk [vmem:[#allocation2 + $0x60] sm:$0xff] %vm487, %v428
      %501 = vst.msk [vmem:[#allocation2 + $0x68] sm:$0xff] %vm487, %v430
      %502 = vst.msk [vmem:[#allocation2 + $0x70] sm:$0xff] %vm487, %v433
      %503 = vst.msk [vmem:[#allocation2 + $0x78] sm:$0xff] %vm487, %v435
      %504 = vst.msk [vmem:[#allocation2 + $0x80] sm:$0xff] %vm487, %v438
      %505 = vst.msk [vmem:[#allocation2 + $0x88] sm:$0xff] %vm487, %v440
      %506 = vst.msk [vmem:[#allocation2 + $0x90] sm:$0xff] %vm487, %v443
      %507 = vst.msk [vmem:[#allocation2 + $0x98] sm:$0xff] %vm487, %v445
      %508 = vst.msk [vmem:[#allocation2 + $0xa0] sm:$0xff] %vm487, %v448
      %509 = vst.msk [vmem:[#allocation2 + $0xa8] sm:$0xff] %vm487, %v450
      %510 = vst.msk [vmem:[#allocation2 + $0xb0] sm:$0xff] %vm487, %v453
      %511 = vst.msk [vmem:[#allocation2 + $0xb8] sm:$0xff] %vm487, %v455
      %512 = vst.msk [vmem:[#allocation2 + $0xc0] sm:$0xff] %vm487, %v458
      %513 = vst.msk [vmem:[#allocation2 + $0xc8] sm:$0xff] %vm487, %v460
      %514 = vst.msk [vmem:[#allocation2 + $0xd0] sm:$0xff] %vm487, %v463
      %515 = vst.msk [vmem:[#allocation2 + $0xd8] sm:$0xff] %vm487, %v465
      %516 = vst.msk [vmem:[#allocation2 + $0xe0] sm:$0xff] %vm487, %v468
      %517 = vst.msk [vmem:[#allocation2 + $0xe8] sm:$0xff] %vm487, %v470
      %518 = vst.msk [vmem:[#allocation2 + $0xf0] sm:$0xff] %vm487, %v473
      %519 = vst.msk [vmem:[#allocation2 + $0xf8] sm:$0xff] %vm487, %v475
      %520 = vst.msk [vmem:[#allocation2 + $0x100] sm:$0xff] %vm487, %v478
      %521 = vst.msk [vmem:[#allocation2 + $0x108] sm:$0xff] %vm487, %v480
      %522 = vst.msk [vmem:[#allocation2 + $0x110] sm:$0xff] %vm487, %v483
      %523 = vst.msk [vmem:[#allocation2 + $0x118] sm:$0xff] %vm487, %v485
      %v524 = vld [vmem:[%s192] sm:$0xf]
      %v525 = vld [vmem:[%s192 + $0x4] sm:$0xf]
      %v526 = vld [vmem:[%s192 + $0x8] sm:$0xf]
      %v527 = vld [vmem:[%s192 + $0xc] sm:$0xf]
      %v528 = vld [vmem:[%s192 + $0x10] sm:$0xf]
      %v529 = vld [vmem:[%s192 + $0x14] sm:$0xf]
      %v530 = vld [vmem:[%s192 + $0x18] sm:$0xf]
      %v531 = vld [vmem:[%s192 + $0x1c] sm:$0xf]
      %v532 = vld [vmem:[%s192 + $0x20] sm:$0xf]
      %v533 = vld [vmem:[%s192 + $0x24] sm:$0xf]
      %v534 = vld [vmem:[%s192 + $0x28] sm:$0xf]
      %v535 = vld [vmem:[%s192 + $0x2c] sm:$0xf]
      %v536 = vld [vmem:[%s192 + $0x30] sm:$0xf]
      %v537 = vld [vmem:[%s192 + $0x34] sm:$0xf]
      %v538 = vld [vmem:[%s192 + $0x38] sm:$0xf]
      %v539 = vld [vmem:[%s192 + $0x3c] sm:$0xf]
      %v540 = vld [vmem:[%s192 + $0x40] sm:$0xf]
      %v541 = vld [vmem:[%s192 + $0x44] sm:$0xf]
      %v542 = vld [vmem:[%s192 + $0x48] sm:$0xf]
      %v543 = vld [vmem:[%s192 + $0x4c] sm:$0xf]
      %v544 = vld [vmem:[%s192 + $0x50] sm:$0xf]
      %v545 = vld [vmem:[%s192 + $0x54] sm:$0xf]
      %v546 = vld [vmem:[%s192 + $0x58] sm:$0xf]
      %v547 = vld [vmem:[%s192 + $0x5c] sm:$0xf]
      %v548 = vld [vmem:[%s192 + $0x60] sm:$0xf]
      %v549 = vld [vmem:[%s192 + $0x64] sm:$0xf]
      %v550 = vld [vmem:[%s192 + $0x68] sm:$0xf]
      %v551 = vld [vmem:[%s192 + $0x6c] sm:$0xf]
      %v552 = vld [vmem:[%s192 + $0x70] sm:$0xf]
      %v553 = vld [vmem:[%s192 + $0x74] sm:$0xf]
      %v554 = vld [vmem:[%s192 + $0x78] sm:$0xf]
      %v555 = vld [vmem:[%s192 + $0x7c] sm:$0xf]
      %v556 = vld [vmem:[%s192 + $0x80] sm:$0xf]
      %v557 = vld [vmem:[%s192 + $0x84] sm:$0xf]
      %v558 = vld [vmem:[%s192 + $0x88] sm:$0xf]
      %v559 = vld [vmem:[%s192 + $0x8c] sm:$0xf]
      %v560 = vld [vmem:[%s192 + $0x90] sm:$0x1]
      %s561 = scalar_lea.vmem %s1, 2
      %v562 = vld [vmem:[%s561] sm:$0x3]
      %v600 = vunpack.c.l.b16 %v524
      %v601 = vunpack.c.l.b16 %v525
      %v602 = vunpack.c.l.b16 %v526
      %v603 = vunpack.c.l.b16 %v527
      %v604 = vunpack.c.l.b16 %v528
      %v605 = vunpack.c.l.b16 %v529
      %v606 = vunpack.c.l.b16 %v530
      %v607 = vunpack.c.l.b16 %v531
      %v608 = vunpack.c.l.b16 %v532
      %v609 = vunpack.c.l.b16 %v533
      %v610 = vunpack.c.l.b16 %v534
      %v611 = vunpack.c.l.b16 %v535
      %v612 = vunpack.c.l.b16 %v536
      %v613 = vunpack.c.l.b16 %v537
      %v614 = vunpack.c.l.b16 %v538
      %v615 = vunpack.c.l.b16 %v539
      %v616 = vunpack.c.l.b16 %v540
      %v617 = vunpack.c.l.b16 %v541
      %v618 = vunpack.c.l.b16 %v542
      %v619 = vunpack.c.l.b16 %v543
      %v620 = vunpack.c.l.b16 %v544
      %v621 = vunpack.c.l.b16 %v545
      %v622 = vunpack.c.l.b16 %v546
      %v623 = vunpack.c.l.b16 %v547
      %v624 = vunpack.c.l.b16 %v548
      %v625 = vunpack.c.l.b16 %v549
      %v626 = vunpack.c.l.b16 %v550
      %v627 = vunpack.c.l.b16 %v551
      %v628 = vunpack.c.l.b16 %v552
      %v629 = vunpack.c.l.b16 %v553
      %v630 = vunpack.c.l.b16 %v554
      %v631 = vunpack.c.l.b16 %v555
      %v632 = vunpack.c.l.b16 %v556
      %v633 = vunpack.c.l.b16 %v557
      %v634 = vunpack.c.l.b16 %v558
      %v635 = vunpack.c.l.b16 %v559
      %v636 = vunpack.c.l.b16 %v560
      %v637 = vpack.c.b16 %v601, %v600
      %v638 = vpack.c.b16 %v603, %v602
      %v639 = vpack.c.b16 %v605, %v604
      %v640 = vpack.c.b16 %v607, %v606
      %v641 = vpack.c.b16 %v609, %v608
      %v642 = vpack.c.b16 %v611, %v610
      %v643 = vpack.c.b16 %v613, %v612
      %v644 = vpack.c.b16 %v615, %v614
      %v645 = vpack.c.b16 %v617, %v616
      %v646 = vpack.c.b16 %v619, %v618
      %v647 = vpack.c.b16 %v621, %v620
      %v648 = vpack.c.b16 %v623, %v622
      %v649 = vpack.c.b16 %v625, %v624
      %v650 = vpack.c.b16 %v627, %v626
      %v651 = vpack.c.b16 %v629, %v628
      %v652 = vpack.c.b16 %v631, %v630
      %v653 = vpack.c.b16 %v633, %v632
      %v654 = vpack.c.b16 %v635, %v634
      %v655 = vpack.c.b16 %v636, %v636
      %vm656 = vsmask.f32 7424
      %v658 = vshrl.u32 %v637, 16
      %v660 = vshll.u32 %v637, 16
      %v662 = vrot.slane %v660, 1
      %v663 = vor.u32 %v658, %v662
      %v665 = vshll.u32 %v638, 16
      %v667 = vrot.slane %v665, 1
      %v668 = vsel %vm656, %v663, %v667
      %v669 = vshrl.u32 %v638, 16
      %v671 = vor.u32 %v669, %v667
      %v673 = vshll.u32 %v639, 16
      %v675 = vrot.slane %v673, 1
      %v676 = vsel %vm656, %v671, %v675
      %v677 = vshrl.u32 %v639, 16
      %v679 = vor.u32 %v677, %v675
      %v681 = vshll.u32 %v640, 16
      %v683 = vrot.slane %v681, 1
      %v684 = vsel %vm656, %v679, %v683
      %v685 = vshrl.u32 %v640, 16
      %v687 = vor.u32 %v685, %v683
      %v689 = vshll.u32 %v641, 16
      %v691 = vrot.slane %v689, 1
      %v692 = vsel %vm656, %v687, %v691
      %v693 = vshrl.u32 %v641, 16
      %v695 = vor.u32 %v693, %v691
      %v697 = vshll.u32 %v642, 16
      %v699 = vrot.slane %v697, 1
      %v700 = vsel %vm656, %v695, %v699
      %v701 = vshrl.u32 %v642, 16
      %v703 = vor.u32 %v701, %v699
      %v705 = vshll.u32 %v643, 16
      %v707 = vrot.slane %v705, 1
      %v708 = vsel %vm656, %v703, %v707
      %v709 = vshrl.u32 %v643, 16
      %v711 = vor.u32 %v709, %v707
      %v713 = vshll.u32 %v644, 16
      %v715 = vrot.slane %v713, 1
      %v716 = vsel %vm656, %v711, %v715
      %v717 = vshrl.u32 %v644, 16
      %v719 = vor.u32 %v717, %v715
      %v721 = vshll.u32 %v645, 16
      %v723 = vrot.slane %v721, 1
      %v724 = vsel %vm656, %v719, %v723
      %v725 = vshrl.u32 %v645, 16
      %v727 = vor.u32 %v725, %v723
      %v729 = vshll.u32 %v646, 16
      %v731 = vrot.slane %v729, 1
      %v732 = vsel %vm656, %v727, %v731
      %v733 = vshrl.u32 %v646, 16
      %v735 = vor.u32 %v733, %v731
      %v737 = vshll.u32 %v647, 16
      %v739 = vrot.slane %v737, 1
      %v740 = vsel %vm656, %v735, %v739
      %v741 = vshrl.u32 %v647, 16
      %v743 = vor.u32 %v741, %v739
      %v745 = vshll.u32 %v648, 16
      %v747 = vrot.slane %v745, 1
      %v748 = vsel %vm656, %v743, %v747
      %v749 = vshrl.u32 %v648, 16
      %v751 = vor.u32 %v749, %v747
      %v753 = vshll.u32 %v649, 16
      %v755 = vrot.slane %v753, 1
      %v756 = vsel %vm656, %v751, %v755
      %v757 = vshrl.u32 %v649, 16
      %v759 = vor.u32 %v757, %v755
      %v761 = vshll.u32 %v650, 16
      %v763 = vrot.slane %v761, 1
      %v764 = vsel %vm656, %v759, %v763
      %v765 = vshrl.u32 %v650, 16
      %v767 = vor.u32 %v765, %v763
      %v769 = vshll.u32 %v651, 16
      %v771 = vrot.slane %v769, 1
      %v772 = vsel %vm656, %v767, %v771
      %v773 = vshrl.u32 %v651, 16
      %v775 = vor.u32 %v773, %v771
      %v777 = vshll.u32 %v652, 16
      %v779 = vrot.slane %v777, 1
      %v780 = vsel %vm656, %v775, %v779
      %v781 = vshrl.u32 %v652, 16
      %v783 = vor.u32 %v781, %v779
      %v785 = vshll.u32 %v653, 16
      %v787 = vrot.slane %v785, 1
      %v788 = vsel %vm656, %v783, %v787
      %v789 = vshrl.u32 %v653, 16
      %v791 = vor.u32 %v789, %v787
      %v793 = vshll.u32 %v654, 16
      %v795 = vrot.slane %v793, 1
      %v796 = vsel %vm656, %v791, %v795
      %v797 = vshrl.u32 %v654, 16
      %v799 = vor.u32 %v797, %v795
      %v801 = vshll.u32 %v655, 16
      %v803 = vrot.slane %v801, 1
      %v804 = vsel %vm656, %v799, %v803
      %v806 = vsel %vm326, %v668, 0
      %v809 = vsel %vm326, %v676, 0
      %v812 = vsel %vm326, %v684, 0
      %v815 = vsel %vm326, %v692, 0
      %v818 = vsel %vm326, %v700, 0
      %v821 = vsel %vm326, %v708, 0
      %v824 = vsel %vm326, %v716, 0
      %v827 = vsel %vm326, %v724, 0
      %v830 = vsel %vm326, %v732, 0
      %v833 = vsel %vm326, %v740, 0
      %v836 = vsel %vm326, %v748, 0
      %v839 = vsel %vm326, %v756, 0
      %v842 = vsel %vm326, %v764, 0
      %v845 = vsel %vm326, %v772, 0
      %v848 = vsel %vm326, %v780, 0
      %v851 = vsel %vm326, %v788, 0
      %v854 = vsel %vm326, %v796, 0
      %v857 = vsel %vm326, %v804, 0
      %v860 = vand.u32 %v562, %v384
      %862 = vmatpush.bf16.msra.mxu0 0
      %863 = vmatpush.bf16.msra.mxu0 0
      %864 = vmatpush.bf16.msra.mxu0 0
      %865 = vmatpush.bf16.msra.mxu0 0
      %866 = vmatpush.bf16.msra.mxu0 0
      %867 = vmatpush.bf16.msra.mxu0 0
      %868 = vmatpush.bf16.msra.mxu0 0
      %869 = vmatpush.bf16.msra.mxu0 %v860
      %870 = vmatmul.bf16.gmra.mxu0 %v806
      %v871 = vpop.f32.mrf.mxu0
      %v872 = vadd.f32 0.0, %v871
      %v873 = vpop.f32.mrf.mxu0
      %v874 = vadd.f32 0.0, %v873
      %875 = vmatmul.bf16.gmra.mxu0 %v809
      %v876 = vpop.f32.mrf.mxu0
      %v877 = vadd.f32 0.0, %v876
      %v878 = vpop.f32.mrf.mxu0
      %v879 = vadd.f32 0.0, %v878
      %880 = vmatmul.bf16.gmra.mxu0 %v812
      %v881 = vpop.f32.mrf.mxu0
      %v882 = vadd.f32 0.0, %v881
      %v883 = vpop.f32.mrf.mxu0
      %v884 = vadd.f32 0.0, %v883
      %885 = vmatmul.bf16.gmra.mxu0 %v815
      %v886 = vpop.f32.mrf.mxu0
      %v887 = vadd.f32 0.0, %v886
      %v888 = vpop.f32.mrf.mxu0
      %v889 = vadd.f32 0.0, %v888
      %890 = vmatmul.bf16.gmra.mxu0 %v818
      %v891 = vpop.f32.mrf.mxu0
      %v892 = vadd.f32 0.0, %v891
      %v893 = vpop.f32.mrf.mxu0
      %v894 = vadd.f32 0.0, %v893
      %895 = vmatmul.bf16.gmra.mxu0 %v821
      %v896 = vpop.f32.mrf.mxu0
      %v897 = vadd.f32 0.0, %v896
      %v898 = vpop.f32.mrf.mxu0
      %v899 = vadd.f32 0.0, %v898
      %900 = vmatmul.bf16.gmra.mxu0 %v824
      %v901 = vpop.f32.mrf.mxu0
      %v902 = vadd.f32 0.0, %v901
      %v903 = vpop.f32.mrf.mxu0
      %v904 = vadd.f32 0.0, %v903
      %905 = vmatmul.bf16.gmra.mxu0 %v827
      %v906 = vpop.f32.mrf.mxu0
      %v907 = vadd.f32 0.0, %v906
      %v908 = vpop.f32.mrf.mxu0
      %v909 = vadd.f32 0.0, %v908
      %910 = vmatmul.bf16.gmra.mxu0 %v830
      %v911 = vpop.f32.mrf.mxu0
      %v912 = vadd.f32 0.0, %v911
      %v913 = vpop.f32.mrf.mxu0
      %v914 = vadd.f32 0.0, %v913
      %915 = vmatmul.bf16.gmra.mxu0 %v833
      %v916 = vpop.f32.mrf.mxu0
      %v917 = vadd.f32 0.0, %v916
      %v918 = vpop.f32.mrf.mxu0
      %v919 = vadd.f32 0.0, %v918
      %920 = vmatmul.bf16.gmra.mxu0 %v836
      %v921 = vpop.f32.mrf.mxu0
      %v922 = vadd.f32 0.0, %v921
      %v923 = vpop.f32.mrf.mxu0
      %v924 = vadd.f32 0.0, %v923
      %925 = vmatmul.bf16.gmra.mxu0 %v839
      %v926 = vpop.f32.mrf.mxu0
      %v927 = vadd.f32 0.0, %v926
      %v928 = vpop.f32.mrf.mxu0
      %v929 = vadd.f32 0.0, %v928
      %930 = vmatmul.bf16.gmra.mxu0 %v842
      %v931 = vpop.f32.mrf.mxu0
      %v932 = vadd.f32 0.0, %v931
      %v933 = vpop.f32.mrf.mxu0
      %v934 = vadd.f32 0.0, %v933
      %935 = vmatmul.bf16.gmra.mxu0 %v845
      %v936 = vpop.f32.mrf.mxu0
      %v937 = vadd.f32 0.0, %v936
      %v938 = vpop.f32.mrf.mxu0
      %v939 = vadd.f32 0.0, %v938
      %940 = vmatmul.bf16.gmra.mxu0 %v848
      %v941 = vpop.f32.mrf.mxu0
      %v942 = vadd.f32 0.0, %v941
      %v943 = vpop.f32.mrf.mxu0
      %v944 = vadd.f32 0.0, %v943
      %945 = vmatmul.bf16.gmra.mxu0 %v851
      %v946 = vpop.f32.mrf.mxu0
      %v947 = vadd.f32 0.0, %v946
      %v948 = vpop.f32.mrf.mxu0
      %v949 = vadd.f32 0.0, %v948
      %950 = vmatmul.bf16.gmra.mxu0 %v854
      %v951 = vpop.f32.mrf.mxu0
      %v952 = vadd.f32 0.0, %v951
      %v953 = vpop.f32.mrf.mxu0
      %v954 = vadd.f32 0.0, %v953
      %955 = vmatmul.bf16.gmra.mxu0 %v857
      %v956 = vpop.f32.mrf.mxu0
      %v957 = vadd.f32 0.0, %v956
      %v958 = vpop.f32.mrf.mxu0
      %v959 = vadd.f32 0.0, %v958
      %960 = vdwg.mxu0
      %v961 = vld [vmem:[#allocation2] sm:$0xff]
      %v962 = vld [vmem:[#allocation2 + $0x8] sm:$0xff]
      %v963 = vld [vmem:[#allocation2 + $0x10] sm:$0xff]
      %v964 = vld [vmem:[#allocation2 + $0x18] sm:$0xff]
      %v965 = vld [vmem:[#allocation2 + $0x20] sm:$0xff]
      %v966 = vld [vmem:[#allocation2 + $0x28] sm:$0xff]
      %v967 = vld [vmem:[#allocation2 + $0x30] sm:$0xff]
      %v968 = vld [vmem:[#allocation2 + $0x38] sm:$0xff]
      %v969 = vld [vmem:[#allocation2 + $0x40] sm:$0xff]
      %v970 = vld [vmem:[#allocation2 + $0x48] sm:$0xff]
      %v971 = vld [vmem:[#allocation2 + $0x50] sm:$0xff]
      %v972 = vld [vmem:[#allocation2 + $0x58] sm:$0xff]
      %v973 = vld [vmem:[#allocation2 + $0x60] sm:$0xff]
      %v974 = vld [vmem:[#allocation2 + $0x68] sm:$0xff]
      %v975 = vld [vmem:[#allocation2 + $0x70] sm:$0xff]
      %v976 = vld [vmem:[#allocation2 + $0x78] sm:$0xff]
      %v977 = vld [vmem:[#allocation2 + $0x80] sm:$0xff]
      %v978 = vld [vmem:[#allocation2 + $0x88] sm:$0xff]
      %v979 = vld [vmem:[#allocation2 + $0x90] sm:$0xff]
      %v980 = vld [vmem:[#allocation2 + $0x98] sm:$0xff]
      %v981 = vld [vmem:[#allocation2 + $0xa0] sm:$0xff]
      %v982 = vld [vmem:[#allocation2 + $0xa8] sm:$0xff]
      %v983 = vld [vmem:[#allocation2 + $0xb0] sm:$0xff]
      %v984 = vld [vmem:[#allocation2 + $0xb8] sm:$0xff]
      %v985 = vld [vmem:[#allocation2 + $0xc0] sm:$0xff]
      %v986 = vld [vmem:[#allocation2 + $0xc8] sm:$0xff]
      %v987 = vld [vmem:[#allocation2 + $0xd0] sm:$0xff]
      %v988 = vld [vmem:[#allocation2 + $0xd8] sm:$0xff]
      %v989 = vld [vmem:[#allocation2 + $0xe0] sm:$0xff]
      %v990 = vld [vmem:[#allocation2 + $0xe8] sm:$0xff]
      %v991 = vld [vmem:[#allocation2 + $0xf0] sm:$0xff]
      %v992 = vld [vmem:[#allocation2 + $0xf8] sm:$0xff]
      %v993 = vld [vmem:[#allocation2 + $0x100] sm:$0xff]
      %v994 = vld [vmem:[#allocation2 + $0x108] sm:$0xff]
      %v995 = vld [vmem:[#allocation2 + $0x110] sm:$0xff]
      %v996 = vld [vmem:[#allocation2 + $0x118] sm:$0xff]
      %v997 = vadd.f32 %v961, %v872
      %v998 = vadd.f32 %v962, %v874
      %v999 = vadd.f32 %v963, %v877
      %v1000 = vadd.f32 %v964, %v879
      %v1001 = vadd.f32 %v965, %v882
      %v1002 = vadd.f32 %v966, %v884
      %v1003 = vadd.f32 %v967, %v887
      %v1004 = vadd.f32 %v968, %v889
      %v1005 = vadd.f32 %v969, %v892
      %v1006 = vadd.f32 %v970, %v894
      %v1007 = vadd.f32 %v971, %v897
      %v1008 = vadd.f32 %v972, %v899
      %v1009 = vadd.f32 %v973, %v902
      %v1010 = vadd.f32 %v974, %v904
      %v1011 = vadd.f32 %v975, %v907
      %v1012 = vadd.f32 %v976, %v909
      %v1013 = vadd.f32 %v977, %v912
      %v1014 = vadd.f32 %v978, %v914
      %v1015 = vadd.f32 %v979, %v917
      %v1016 = vadd.f32 %v980, %v919
      %v1017 = vadd.f32 %v981, %v922
      %v1018 = vadd.f32 %v982, %v924
      %v1019 = vadd.f32 %v983, %v927
      %v1020 = vadd.f32 %v984, %v929
      %v1021 = vadd.f32 %v985, %v932
      %v1022 = vadd.f32 %v986, %v934
      %v1023 = vadd.f32 %v987, %v937
      %v1024 = vadd.f32 %v988, %v939
      %v1025 = vadd.f32 %v989, %v942
      %v1026 = vadd.f32 %v990, %v944
      %v1027 = vadd.f32 %v991, %v947
      %v1028 = vadd.f32 %v992, %v949
      %v1029 = vadd.f32 %v993, %v952
      %v1030 = vadd.f32 %v994, %v954
      %v1031 = vadd.f32 %v995, %v957
      %v1032 = vadd.f32 %v996, %v959
      %1033 = vst.msk [vmem:[#allocation2] sm:$0xff] %vm487, %v997
      %1034 = vst.msk [vmem:[#allocation2 + $0x8] sm:$0xff] %vm487, %v998
      %1035 = vst.msk [vmem:[#allocation2 + $0x10] sm:$0xff] %vm487, %v999
      %1036 = vst.msk [vmem:[#allocation2 + $0x18] sm:$0xff] %vm487, %v1000
      %1037 = vst.msk [vmem:[#allocation2 + $0x20] sm:$0xff] %vm487, %v1001
      %1038 = vst.msk [vmem:[#allocation2 + $0x28] sm:$0xff] %vm487, %v1002
      %1039 = vst.msk [vmem:[#allocation2 + $0x30] sm:$0xff] %vm487, %v1003
      %1040 = vst.msk [vmem:[#allocation2 + $0x38] sm:$0xff] %vm487, %v1004
      %1041 = vst.msk [vmem:[#allocation2 + $0x40] sm:$0xff] %vm487, %v1005
      %1042 = vst.msk [vmem:[#allocation2 + $0x48] sm:$0xff] %vm487, %v1006
      %1043 = vst.msk [vmem:[#allocation2 + $0x50] sm:$0xff] %vm487, %v1007
      %1044 = vst.msk [vmem:[#allocation2 + $0x58] sm:$0xff] %vm487, %v1008
      %1045 = vst.msk [vmem:[#allocation2 + $0x60] sm:$0xff] %vm487, %v1009
      %1046 = vst.msk [vmem:[#allocation2 + $0x68] sm:$0xff] %vm487, %v1010
      %1047 = vst.msk [vmem:[#allocation2 + $0x70] sm:$0xff] %vm487, %v1011
      %1048 = vst.msk [vmem:[#allocation2 + $0x78] sm:$0xff] %vm487, %v1012
      %1049 = vst.msk [vmem:[#allocation2 + $0x80] sm:$0xff] %vm487, %v1013
      %1050 = vst.msk [vmem:[#allocation2 + $0x88] sm:$0xff] %vm487, %v1014
      %1051 = vst.msk [vmem:[#allocation2 + $0x90] sm:$0xff] %vm487, %v1015
      %1052 = vst.msk [vmem:[#allocation2 + $0x98] sm:$0xff] %vm487, %v1016
      %1053 = vst.msk [vmem:[#allocation2 + $0xa0] sm:$0xff] %vm487, %v1017
      %1054 = vst.msk [vmem:[#allocation2 + $0xa8] sm:$0xff] %vm487, %v1018
      %1055 = vst.msk [vmem:[#allocation2 + $0xb0] sm:$0xff] %vm487, %v1019
      %1056 = vst.msk [vmem:[#allocation2 + $0xb8] sm:$0xff] %vm487, %v1020
      %1057 = vst.msk [vmem:[#allocation2 + $0xc0] sm:$0xff] %vm487, %v1021
      %1058 = vst.msk [vmem:[#allocation2 + $0xc8] sm:$0xff] %vm487, %v1022
      %1059 = vst.msk [vmem:[#allocation2 + $0xd0] sm:$0xff] %vm487, %v1023
      %1060 = vst.msk [vmem:[#allocation2 + $0xd8] sm:$0xff] %vm487, %v1024
      %1061 = vst.msk [vmem:[#allocation2 + $0xe0] sm:$0xff] %vm487, %v1025
      %1062 = vst.msk [vmem:[#allocation2 + $0xe8] sm:$0xff] %vm487, %v1026
      %1063 = vst.msk [vmem:[#allocation2 + $0xf0] sm:$0xff] %vm487, %v1027
      %1064 = vst.msk [vmem:[#allocation2 + $0xf8] sm:$0xff] %vm487, %v1028
      %1065 = vst.msk [vmem:[#allocation2 + $0x100] sm:$0xff] %vm487, %v1029
      %1066 = vst.msk [vmem:[#allocation2 + $0x108] sm:$0xff] %vm487, %v1030
      %1067 = vst.msk [vmem:[#allocation2 + $0x110] sm:$0xff] %vm487, %v1031
      %1068 = vst.msk [vmem:[#allocation2 + $0x118] sm:$0xff] %vm487, %v1032
      %v1069 = vld [vmem:[%s192] sm:$0xe]
      %v1070 = vld [vmem:[%s192 + $0x4] sm:$0xf]
      %v1071 = vld [vmem:[%s192 + $0x8] sm:$0xf]
      %v1072 = vld [vmem:[%s192 + $0xc] sm:$0xf]
      %v1073 = vld [vmem:[%s192 + $0x10] sm:$0xf]
      %v1074 = vld [vmem:[%s192 + $0x14] sm:$0xf]
      %v1075 = vld [vmem:[%s192 + $0x18] sm:$0xf]
      %v1076 = vld [vmem:[%s192 + $0x1c] sm:$0xf]
      %v1077 = vld [vmem:[%s192 + $0x20] sm:$0xf]
      %v1078 = vld [vmem:[%s192 + $0x24] sm:$0xf]
      %v1079 = vld [vmem:[%s192 + $0x28] sm:$0xf]
      %v1080 = vld [vmem:[%s192 + $0x2c] sm:$0xf]
      %v1081 = vld [vmem:[%s192 + $0x30] sm:$0xf]
      %v1082 = vld [vmem:[%s192 + $0x34] sm:$0xf]
      %v1083 = vld [vmem:[%s192 + $0x38] sm:$0xf]
      %v1084 = vld [vmem:[%s192 + $0x3c] sm:$0xf]
      %v1085 = vld [vmem:[%s192 + $0x40] sm:$0xf]
      %v1086 = vld [vmem:[%s192 + $0x44] sm:$0xf]
      %v1087 = vld [vmem:[%s192 + $0x48] sm:$0xf]
      %v1088 = vld [vmem:[%s192 + $0x4c] sm:$0xf]
      %v1089 = vld [vmem:[%s192 + $0x50] sm:$0xf]
      %v1090 = vld [vmem:[%s192 + $0x54] sm:$0xf]
      %v1091 = vld [vmem:[%s192 + $0x58] sm:$0xf]
      %v1092 = vld [vmem:[%s192 + $0x5c] sm:$0xf]
      %v1093 = vld [vmem:[%s192 + $0x60] sm:$0xf]
      %v1094 = vld [vmem:[%s192 + $0x64] sm:$0xf]
      %v1095 = vld [vmem:[%s192 + $0x68] sm:$0xf]
      %v1096 = vld [vmem:[%s192 + $0x6c] sm:$0xf]
      %v1097 = vld [vmem:[%s192 + $0x70] sm:$0xf]
      %v1098 = vld [vmem:[%s192 + $0x74] sm:$0xf]
      %v1099 = vld [vmem:[%s192 + $0x78] sm:$0xf]
      %v1100 = vld [vmem:[%s192 + $0x7c] sm:$0xf]
      %v1101 = vld [vmem:[%s192 + $0x80] sm:$0xf]
      %v1102 = vld [vmem:[%s192 + $0x84] sm:$0xf]
      %v1103 = vld [vmem:[%s192 + $0x88] sm:$0xf]
      %v1104 = vld [vmem:[%s192 + $0x8c] sm:$0xf]
      %v1105 = vld [vmem:[%s192 + $0x90] sm:$0x1]
      %s1106 = scalar_lea.vmem %s1, 4
      %v1107 = vld [vmem:[%s1106] sm:$0x3]
      %v1145 = vunpack.c.l.b16 %v1069
      %v1146 = vunpack.c.l.b16 %v1070
      %v1147 = vunpack.c.l.b16 %v1071
      %v1148 = vunpack.c.l.b16 %v1072
      %v1149 = vunpack.c.l.b16 %v1073
      %v1150 = vunpack.c.l.b16 %v1074
      %v1151 = vunpack.c.l.b16 %v1075
      %v1152 = vunpack.c.l.b16 %v1076
      %v1153 = vunpack.c.l.b16 %v1077
      %v1154 = vunpack.c.l.b16 %v1078
      %v1155 = vunpack.c.l.b16 %v1079
      %v1156 = vunpack.c.l.b16 %v1080
      %v1157 = vunpack.c.l.b16 %v1081
      %v1158 = vunpack.c.l.b16 %v1082
      %v1159 = vunpack.c.l.b16 %v1083
      %v1160 = vunpack.c.l.b16 %v1084
      %v1161 = vunpack.c.l.b16 %v1085
      %v1162 = vunpack.c.l.b16 %v1086
      %v1163 = vunpack.c.l.b16 %v1087
      %v1164 = vunpack.c.l.b16 %v1088
      %v1165 = vunpack.c.l.b16 %v1089
      %v1166 = vunpack.c.l.b16 %v1090
      %v1167 = vunpack.c.l.b16 %v1091
      %v1168 = vunpack.c.l.b16 %v1092
      %v1169 = vunpack.c.l.b16 %v1093
      %v1170 = vunpack.c.l.b16 %v1094
      %v1171 = vunpack.c.l.b16 %v1095
      %v1172 = vunpack.c.l.b16 %v1096
      %v1173 = vunpack.c.l.b16 %v1097
      %v1174 = vunpack.c.l.b16 %v1098
      %v1175 = vunpack.c.l.b16 %v1099
      %v1176 = vunpack.c.l.b16 %v1100
      %v1177 = vunpack.c.l.b16 %v1101
      %v1178 = vunpack.c.l.b16 %v1102
      %v1179 = vunpack.c.l.b16 %v1103
      %v1180 = vunpack.c.l.b16 %v1104
      %v1181 = vunpack.c.l.b16 %v1105
      %v1182 = vpack.c.b16 %v1146, %v1145
      %v1183 = vpack.c.b16 %v1148, %v1147
      %v1184 = vpack.c.b16 %v1150, %v1149
      %v1185 = vpack.c.b16 %v1152, %v1151
      %v1186 = vpack.c.b16 %v1154, %v1153
      %v1187 = vpack.c.b16 %v1156, %v1155
      %v1188 = vpack.c.b16 %v1158, %v1157
      %v1189 = vpack.c.b16 %v1160, %v1159
      %v1190 = vpack.c.b16 %v1162, %v1161
      %v1191 = vpack.c.b16 %v1164, %v1163
      %v1192 = vpack.c.b16 %v1166, %v1165
      %v1193 = vpack.c.b16 %v1168, %v1167
      %v1194 = vpack.c.b16 %v1170, %v1169
      %v1195 = vpack.c.b16 %v1172, %v1171
      %v1196 = vpack.c.b16 %v1174, %v1173
      %v1197 = vpack.c.b16 %v1176, %v1175
      %v1198 = vpack.c.b16 %v1178, %v1177
      %v1199 = vpack.c.b16 %v1180, %v1179
      %v1200 = vpack.c.b16 %v1181, %v1181
      %vm1201 = vcmask 1046528
      %v1202 = vrot.slane %v1182, 1
      %v1203 = vrot.slane %v1183, 1
      %v1204 = vsel %vm1201, %v1202, %v1203
      %v1205 = vrot.slane %v1184, 1
      %v1206 = vsel %vm1201, %v1203, %v1205
      %v1207 = vrot.slane %v1185, 1
      %v1208 = vsel %vm1201, %v1205, %v1207
      %v1209 = vrot.slane %v1186, 1
      %v1210 = vsel %vm1201, %v1207, %v1209
      %v1211 = vrot.slane %v1187, 1
      %v1212 = vsel %vm1201, %v1209, %v1211
      %v1213 = vrot.slane %v1188, 1
      %v1214 = vsel %vm1201, %v1211, %v1213
      %v1215 = vrot.slane %v1189, 1
      %v1216 = vsel %vm1201, %v1213, %v1215
      %v1217 = vrot.slane %v1190, 1
      %v1218 = vsel %vm1201, %v1215, %v1217
      %v1219 = vrot.slane %v1191, 1
      %v1220 = vsel %vm1201, %v1217, %v1219
      %v1221 = vrot.slane %v1192, 1
      %v1222 = vsel %vm1201, %v1219, %v1221
      %v1223 = vrot.slane %v1193, 1
      %v1224 = vsel %vm1201, %v1221, %v1223
      %v1225 = vrot.slane %v1194, 1
      %v1226 = vsel %vm1201, %v1223, %v1225
      %v1227 = vrot.slane %v1195, 1
      %v1228 = vsel %vm1201, %v1225, %v1227
      %v1229 = vrot.slane %v1196, 1
      %v1230 = vsel %vm1201, %v1227, %v1229
      %v1231 = vrot.slane %v1197, 1
      %v1232 = vsel %vm1201, %v1229, %v1231
      %v1233 = vrot.slane %v1198, 1
      %v1234 = vsel %vm1201, %v1231, %v1233
      %v1235 = vrot.slane %v1199, 1
      %v1236 = vsel %vm1201, %v1233, %v1235
      %v1237 = vrot.slane %v1200, 1
      %v1238 = vsel %vm1201, %v1235, %v1237
      %v1240 = vsel %vm326, %v1204, 0
      %v1243 = vsel %vm326, %v1206, 0
      %v1246 = vsel %vm326, %v1208, 0
      %v1249 = vsel %vm326, %v1210, 0
      %v1252 = vsel %vm326, %v1212, 0
      %v1255 = vsel %vm326, %v1214, 0
      %v1258 = vsel %vm326, %v1216, 0
      %v1261 = vsel %vm326, %v1218, 0
      %v1264 = vsel %vm326, %v1220, 0
      %v1267 = vsel %vm326, %v1222, 0
      %v1270 = vsel %vm326, %v1224, 0
      %v1273 = vsel %vm326, %v1226, 0
      %v1276 = vsel %vm326, %v1228, 0
      %v1279 = vsel %vm326, %v1230, 0
      %v1282 = vsel %vm326, %v1232, 0
      %v1285 = vsel %vm326, %v1234, 0
      %v1288 = vsel %vm326, %v1236, 0
      %v1291 = vsel %vm326, %v1238, 0
      %v1294 = vand.u32 %v1107, %v384
      %1296 = vmatpush.bf16.msra.mxu0 0
      %1297 = vmatpush.bf16.msra.mxu0 0
      %1298 = vmatpush.bf16.msra.mxu0 0
      %1299 = vmatpush.bf16.msra.mxu0 0
      %1300 = vmatpush.bf16.msra.mxu0 0
      %1301 = vmatpush.bf16.msra.mxu0 0
      %1302 = vmatpush.bf16.msra.mxu0 0
      %1303 = vmatpush.bf16.msra.mxu0 %v1294
      %1304 = vmatmul.bf16.gmra.mxu0 %v1240
      %v1305 = vpop.f32.mrf.mxu0
      %v1306 = vadd.f32 0.0, %v1305
      %v1307 = vpop.f32.mrf.mxu0
      %v1308 = vadd.f32 0.0, %v1307
      %1309 = vmatmul.bf16.gmra.mxu0 %v1243
      %v1310 = vpop.f32.mrf.mxu0
      %v1311 = vadd.f32 0.0, %v1310
      %v1312 = vpop.f32.mrf.mxu0
      %v1313 = vadd.f32 0.0, %v1312
      %1314 = vmatmul.bf16.gmra.mxu0 %v1246
      %v1315 = vpop.f32.mrf.mxu0
      %v1316 = vadd.f32 0.0, %v1315
      %v1317 = vpop.f32.mrf.mxu0
      %v1318 = vadd.f32 0.0, %v1317
      %1319 = vmatmul.bf16.gmra.mxu0 %v1249
      %v1320 = vpop.f32.mrf.mxu0
      %v1321 = vadd.f32 0.0, %v1320
      %v1322 = vpop.f32.mrf.mxu0
      %v1323 = vadd.f32 0.0, %v1322
      %1324 = vmatmul.bf16.gmra.mxu0 %v1252
      %v1325 = vpop.f32.mrf.mxu0
      %v1326 = vadd.f32 0.0, %v1325
      %v1327 = vpop.f32.mrf.mxu0
      %v1328 = vadd.f32 0.0, %v1327
      %1329 = vmatmul.bf16.gmra.mxu0 %v1255
      %v1330 = vpop.f32.mrf.mxu0
      %v1331 = vadd.f32 0.0, %v1330
      %v1332 = vpop.f32.mrf.mxu0
      %v1333 = vadd.f32 0.0, %v1332
      %1334 = vmatmul.bf16.gmra.mxu0 %v1258
      %v1335 = vpop.f32.mrf.mxu0
      %v1336 = vadd.f32 0.0, %v1335
      %v1337 = vpop.f32.mrf.mxu0
      %v1338 = vadd.f32 0.0, %v1337
      %1339 = vmatmul.bf16.gmra.mxu0 %v1261
      %v1340 = vpop.f32.mrf.mxu0
      %v1341 = vadd.f32 0.0, %v1340
      %v1342 = vpop.f32.mrf.mxu0
      %v1343 = vadd.f32 0.0, %v1342
      %1344 = vmatmul.bf16.gmra.mxu0 %v1264
      %v1345 = vpop.f32.mrf.mxu0
      %v1346 = vadd.f32 0.0, %v1345
      %v1347 = vpop.f32.mrf.mxu0
      %v1348 = vadd.f32 0.0, %v1347
      %1349 = vmatmul.bf16.gmra.mxu0 %v1267
      %v1350 = vpop.f32.mrf.mxu0
      %v1351 = vadd.f32 0.0, %v1350
      %v1352 = vpop.f32.mrf.mxu0
      %v1353 = vadd.f32 0.0, %v1352
      %1354 = vmatmul.bf16.gmra.mxu0 %v1270
      %v1355 = vpop.f32.mrf.mxu0
      %v1356 = vadd.f32 0.0, %v1355
      %v1357 = vpop.f32.mrf.mxu0
      %v1358 = vadd.f32 0.0, %v1357
      %1359 = vmatmul.bf16.gmra.mxu0 %v1273
      %v1360 = vpop.f32.mrf.mxu0
      %v1361 = vadd.f32 0.0, %v1360
      %v1362 = vpop.f32.mrf.mxu0
      %v1363 = vadd.f32 0.0, %v1362
      %1364 = vmatmul.bf16.gmra.mxu0 %v1276
      %v1365 = vpop.f32.mrf.mxu0
      %v1366 = vadd.f32 0.0, %v1365
      %v1367 = vpop.f32.mrf.mxu0
      %v1368 = vadd.f32 0.0, %v1367
      %1369 = vmatmul.bf16.gmra.mxu0 %v1279
      %v1370 = vpop.f32.mrf.mxu0
      %v1371 = vadd.f32 0.0, %v1370
      %v1372 = vpop.f32.mrf.mxu0
      %v1373 = vadd.f32 0.0, %v1372
      %1374 = vmatmul.bf16.gmra.mxu0 %v1282
      %v1375 = vpop.f32.mrf.mxu0
      %v1376 = vadd.f32 0.0, %v1375
      %v1377 = vpop.f32.mrf.mxu0
      %v1378 = vadd.f32 0.0, %v1377
      %1379 = vmatmul.bf16.gmra.mxu0 %v1285
      %v1380 = vpop.f32.mrf.mxu0
      %v1381 = vadd.f32 0.0, %v1380
      %v1382 = vpop.f32.mrf.mxu0
      %v1383 = vadd.f32 0.0, %v1382
      %1384 = vmatmul.bf16.gmra.mxu0 %v1288
      %v1385 = vpop.f32.mrf.mxu0
      %v1386 = vadd.f32 0.0, %v1385
      %v1387 = vpop.f32.mrf.mxu0
      %v1388 = vadd.f32 0.0, %v1387
      %1389 = vmatmul.bf16.gmra.mxu0 %v1291
      %v1390 = vpop.f32.mrf.mxu0
      %v1391 = vadd.f32 0.0, %v1390
      %v1392 = vpop.f32.mrf.mxu0
      %v1393 = vadd.f32 0.0, %v1392
      %1394 = vdwg.mxu0
      %v1395 = vld [vmem:[#allocation2] sm:$0xff]
      %v1396 = vld [vmem:[#allocation2 + $0x8] sm:$0xff]
      %v1397 = vld [vmem:[#allocation2 + $0x10] sm:$0xff]
      %v1398 = vld [vmem:[#allocation2 + $0x18] sm:$0xff]
      %v1399 = vld [vmem:[#allocation2 + $0x20] sm:$0xff]
      %v1400 = vld [vmem:[#allocation2 + $0x28] sm:$0xff]
      %v1401 = vld [vmem:[#allocation2 + $0x30] sm:$0xff]
      %v1402 = vld [vmem:[#allocation2 + $0x38] sm:$0xff]
      %v1403 = vld [vmem:[#allocation2 + $0x40] sm:$0xff]
      %v1404 = vld [vmem:[#allocation2 + $0x48] sm:$0xff]
      %v1405 = vld [vmem:[#allocation2 + $0x50] sm:$0xff]
      %v1406 = vld [vmem:[#allocation2 + $0x58] sm:$0xff]
      %v1407 = vld [vmem:[#allocation2 + $0x60] sm:$0xff]
      %v1408 = vld [vmem:[#allocation2 + $0x68] sm:$0xff]
      %v1409 = vld [vmem:[#allocation2 + $0x70] sm:$0xff]
      %v1410 = vld [vmem:[#allocation2 + $0x78] sm:$0xff]
      %v1411 = vld [vmem:[#allocation2 + $0x80] sm:$0xff]
      %v1412 = vld [vmem:[#allocation2 + $0x88] sm:$0xff]
      %v1413 = vld [vmem:[#allocation2 + $0x90] sm:$0xff]
      %v1414 = vld [vmem:[#allocation2 + $0x98] sm:$0xff]
      %v1415 = vld [vmem:[#allocation2 + $0xa0] sm:$0xff]
      %v1416 = vld [vmem:[#allocation2 + $0xa8] sm:$0xff]
      %v1417 = vld [vmem:[#allocation2 + $0xb0] sm:$0xff]
      %v1418 = vld [vmem:[#allocation2 + $0xb8] sm:$0xff]
      %v1419 = vld [vmem:[#allocation2 + $0xc0] sm:$0xff]
      %v1420 = vld [vmem:[#allocation2 + $0xc8] sm:$0xff]
      %v1421 = vld [vmem:[#allocation2 + $0xd0] sm:$0xff]
      %v1422 = vld [vmem:[#allocation2 + $0xd8] sm:$0xff]
      %v1423 = vld [vmem:[#allocation2 + $0xe0] sm:$0xff]
      %v1424 = vld [vmem:[#allocation2 + $0xe8] sm:$0xff]
      %v1425 = vld [vmem:[#allocation2 + $0xf0] sm:$0xff]
      %v1426 = vld [vmem:[#allocation2 + $0xf8] sm:$0xff]
      %v1427 = vld [vmem:[#allocation2 + $0x100] sm:$0xff]
      %v1428 = vld [vmem:[#allocation2 + $0x108] sm:$0xff]
      %v1429 = vld [vmem:[#allocation2 + $0x110] sm:$0xff]
      %v1430 = vld [vmem:[#allocation2 + $0x118] sm:$0xff]
      %v1431 = vadd.f32 %v1395, %v1306
      %v1432 = vadd.f32 %v1396, %v1308
      %v1433 = vadd.f32 %v1397, %v1311
      %v1434 = vadd.f32 %v1398, %v1313
      %v1435 = vadd.f32 %v1399, %v1316
      %v1436 = vadd.f32 %v1400, %v1318
      %v1437 = vadd.f32 %v1401, %v1321
      %v1438 = vadd.f32 %v1402, %v1323
      %v1439 = vadd.f32 %v1403, %v1326
      %v1440 = vadd.f32 %v1404, %v1328
      %v1441 = vadd.f32 %v1405, %v1331
      %v1442 = vadd.f32 %v1406, %v1333
      %v1443 = vadd.f32 %v1407, %v1336
      %v1444 = vadd.f32 %v1408, %v1338
      %v1445 = vadd.f32 %v1409, %v1341
      %v1446 = vadd.f32 %v1410, %v1343
      %v1447 = vadd.f32 %v1411, %v1346
      %v1448 = vadd.f32 %v1412, %v1348
      %v1449 = vadd.f32 %v1413, %v1351
      %v1450 = vadd.f32 %v1414, %v1353
      %v1451 = vadd.f32 %v1415, %v1356
      %v1452 = vadd.f32 %v1416, %v1358
      %v1453 = vadd.f32 %v1417, %v1361
      %v1454 = vadd.f32 %v1418, %v1363
      %v1455 = vadd.f32 %v1419, %v1366
      %v1456 = vadd.f32 %v1420, %v1368
      %v1457 = vadd.f32 %v1421, %v1371
      %v1458 = vadd.f32 %v1422, %v1373
      %v1459 = vadd.f32 %v1423, %v1376
      %v1460 = vadd.f32 %v1424, %v1378
      %v1461 = vadd.f32 %v1425, %v1381
      %v1462 = vadd.f32 %v1426, %v1383
      %v1463 = vadd.f32 %v1427, %v1386
      %v1464 = vadd.f32 %v1428, %v1388
      %v1465 = vadd.f32 %v1429, %v1391
      %v1466 = vadd.f32 %v1430, %v1393
      %1467 = vst.msk [vmem:[#allocation2] sm:$0xff] %vm487, %v1431
      %1468 = vst.msk [vmem:[#allocation2 + $0x8] sm:$0xff] %vm487, %v1432
      %1469 = vst.msk [vmem:[#allocation2 + $0x10] sm:$0xff] %vm487, %v1433
      %1470 = vst.msk [vmem:[#allocation2 + $0x18] sm:$0xff] %vm487, %v1434
      %1471 = vst.msk [vmem:[#allocation2 + $0x20] sm:$0xff] %vm487, %v1435
      %1472 = vst.msk [vmem:[#allocation2 + $0x28] sm:$0xff] %vm487, %v1436
      %1473 = vst.msk [vmem:[#allocation2 + $0x30] sm:$0xff] %vm487, %v1437
      %1474 = vst.msk [vmem:[#allocation2 + $0x38] sm:$0xff] %vm487, %v1438
      %1475 = vst.msk [vmem:[#allocation2 + $0x40] sm:$0xff] %vm487, %v1439
      %1476 = vst.msk [vmem:[#allocation2 + $0x48] sm:$0xff] %vm487, %v1440
      %1477 = vst.msk [vmem:[#allocation2 + $0x50] sm:$0xff] %vm487, %v1441
      %1478 = vst.msk [vmem:[#allocation2 + $0x58] sm:$0xff] %vm487, %v1442
      %1479 = vst.msk [vmem:[#allocation2 + $0x60] sm:$0xff] %vm487, %v1443
      %1480 = vst.msk [vmem:[#allocation2 + $0x68] sm:$0xff] %vm487, %v1444
      %1481 = vst.msk [vmem:[#allocation2 + $0x70] sm:$0xff] %vm487, %v1445
      %1482 = vst.msk [vmem:[#allocation2 + $0x78] sm:$0xff] %vm487, %v1446
      %1483 = vst.msk [vmem:[#allocation2 + $0x80] sm:$0xff] %vm487, %v1447
      %1484 = vst.msk [vmem:[#allocation2 + $0x88] sm:$0xff] %vm487, %v1448
      %1485 = vst.msk [vmem:[#allocation2 + $0x90] sm:$0xff] %vm487, %v1449
      %1486 = vst.msk [vmem:[#allocation2 + $0x98] sm:$0xff] %vm487, %v1450
      %1487 = vst.msk [vmem:[#allocation2 + $0xa0] sm:$0xff] %vm487, %v1451
      %1488 = vst.msk [vmem:[#allocation2 + $0xa8] sm:$0xff] %vm487, %v1452
      %1489 = vst.msk [vmem:[#allocation2 + $0xb0] sm:$0xff] %vm487, %v1453
      %1490 = vst.msk [vmem:[#allocation2 + $0xb8] sm:$0xff] %vm487, %v1454
      %1491 = vst.msk [vmem:[#allocation2 + $0xc0] sm:$0xff] %vm487, %v1455
      %1492 = vst.msk [vmem:[#allocation2 + $0xc8] sm:$0xff] %vm487, %v1456
      %1493 = vst.msk [vmem:[#allocation2 + $0xd0] sm:$0xff] %vm487, %v1457
      %1494 = vst.msk [vmem:[#allocation2 + $0xd8] sm:$0xff] %vm487, %v1458
      %1495 = vst.msk [vmem:[#allocation2 + $0xe0] sm:$0xff] %vm487, %v1459
      %1496 = vst.msk [vmem:[#allocation2 + $0xe8] sm:$0xff] %vm487, %v1460
      %1497 = vst.msk [vmem:[#allocation2 + $0xf0] sm:$0xff] %vm487, %v1461
      %1498 = vst.msk [vmem:[#allocation2 + $0xf8] sm:$0xff] %vm487, %v1462
      %1499 = vst.msk [vmem:[#allocation2 + $0x100] sm:$0xff] %vm487, %v1463
      %1500 = vst.msk [vmem:[#allocation2 + $0x108] sm:$0xff] %vm487, %v1464
      %1501 = vst.msk [vmem:[#allocation2 + $0x110] sm:$0xff] %vm487, %v1465
      %1502 = vst.msk [vmem:[#allocation2 + $0x118] sm:$0xff] %vm487, %v1466
      %v1503 = vld [vmem:[%s192 + $0x8] sm:$0xe]
      %v1504 = vld [vmem:[%s192 + $0xc] sm:$0xf]
      %v1505 = vld [vmem:[%s192 + $0x10] sm:$0xf]
      %v1506 = vld [vmem:[%s192 + $0x14] sm:$0xf]
      %v1507 = vld [vmem:[%s192 + $0x18] sm:$0xf]
      %v1508 = vld [vmem:[%s192 + $0x1c] sm:$0xf]
      %v1509 = vld [vmem:[%s192 + $0x20] sm:$0xf]
      %v1510 = vld [vmem:[%s192 + $0x24] sm:$0xf]
      %v1511 = vld [vmem:[%s192 + $0x28] sm:$0xf]
      %v1512 = vld [vmem:[%s192 + $0x2c] sm:$0xf]
      %v1513 = vld [vmem:[%s192 + $0x30] sm:$0xf]
      %v1514 = vld [vmem:[%s192 + $0x34] sm:$0xf]
      %v1515 = vld [vmem:[%s192 + $0x38] sm:$0xf]
      %v1516 = vld [vmem:[%s192 + $0x3c] sm:$0xf]
      %v1517 = vld [vmem:[%s192 + $0x40] sm:$0xf]
      %v1518 = vld [vmem:[%s192 + $0x44] sm:$0xf]
      %v1519 = vld [vmem:[%s192 + $0x48] sm:$0xf]
      %v1520 = vld [vmem:[%s192 + $0x4c] sm:$0xf]
      %v1521 = vld [vmem:[%s192 + $0x50] sm:$0xf]
      %v1522 = vld [vmem:[%s192 + $0x54] sm:$0xf]
      %v1523 = vld [vmem:[%s192 + $0x58] sm:$0xf]
      %v1524 = vld [vmem:[%s192 + $0x5c] sm:$0xf]
      %v1525 = vld [vmem:[%s192 + $0x60] sm:$0xf]
      %v1526 = vld [vmem:[%s192 + $0x64] sm:$0xf]
      %v1527 = vld [vmem:[%s192 + $0x68] sm:$0xf]
      %v1528 = vld [vmem:[%s192 + $0x6c] sm:$0xf]
      %v1529 = vld [vmem:[%s192 + $0x70] sm:$0xf]
      %v1530 = vld [vmem:[%s192 + $0x74] sm:$0xf]
      %v1531 = vld [vmem:[%s192 + $0x78] sm:$0xf]
      %v1532 = vld [vmem:[%s192 + $0x7c] sm:$0xf]
      %v1533 = vld [vmem:[%s192 + $0x80] sm:$0xf]
      %v1534 = vld [vmem:[%s192 + $0x84] sm:$0xf]
      %v1535 = vld [vmem:[%s192 + $0x88] sm:$0xf]
      %v1536 = vld [vmem:[%s192 + $0x8c] sm:$0xf]
      %v1537 = vld [vmem:[%s192 + $0x90] sm:$0xf]
      %v1538 = vld [vmem:[%s192 + $0x94] sm:$0xf]
      %v1539 = vld [vmem:[%s192 + $0x98] sm:$0x1]
      %s1540 = scalar_lea.vmem %s1, 6
      %v1541 = vld [vmem:[%s1540] sm:$0x3]
      %v1579 = vunpack.c.l.b16 %v1503
      %v1580 = vunpack.c.l.b16 %v1504
      %v1581 = vunpack.c.l.b16 %v1505
      %v1582 = vunpack.c.l.b16 %v1506
      %v1583 = vunpack.c.l.b16 %v1507
      %v1584 = vunpack.c.l.b16 %v1508
      %v1585 = vunpack.c.l.b16 %v1509
      %v1586 = vunpack.c.l.b16 %v1510
      %v1587 = vunpack.c.l.b16 %v1511
      %v1588 = vunpack.c.l.b16 %v1512
      %v1589 = vunpack.c.l.b16 %v1513
      %v1590 = vunpack.c.l.b16 %v1514
      %v1591 = vunpack.c.l.b16 %v1515
      %v1592 = vunpack.c.l.b16 %v1516
      %v1593 = vunpack.c.l.b16 %v1517
      %v1594 = vunpack.c.l.b16 %v1518
      %v1595 = vunpack.c.l.b16 %v1519
      %v1596 = vunpack.c.l.b16 %v1520
      %v1597 = vunpack.c.l.b16 %v1521
      %v1598 = vunpack.c.l.b16 %v1522
      %v1599 = vunpack.c.l.b16 %v1523
      %v1600 = vunpack.c.l.b16 %v1524
      %v1601 = vunpack.c.l.b16 %v1525
      %v1602 = vunpack.c.l.b16 %v1526
      %v1603 = vunpack.c.l.b16 %v1527
      %v1604 = vunpack.c.l.b16 %v1528
      %v1605 = vunpack.c.l.b16 %v1529
      %v1606 = vunpack.c.l.b16 %v1530
      %v1607 = vunpack.c.l.b16 %v1531
      %v1608 = vunpack.c.l.b16 %v1532
      %v1609 = vunpack.c.l.b16 %v1533
      %v1610 = vunpack.c.l.b16 %v1534
      %v1611 = vunpack.c.l.b16 %v1535
      %v1612 = vunpack.c.l.b16 %v1536
      %v1613 = vunpack.c.l.b16 %v1537
      %v1614 = vunpack.c.l.b16 %v1538
      %v1615 = vunpack.c.l.b16 %v1539
      %v1616 = vpack.c.b16 %v1580, %v1579
      %v1617 = vpack.c.b16 %v1582, %v1581
      %v1618 = vpack.c.b16 %v1584, %v1583
      %v1619 = vpack.c.b16 %v1586, %v1585
      %v1620 = vpack.c.b16 %v1588, %v1587
      %v1621 = vpack.c.b16 %v1590, %v1589
      %v1622 = vpack.c.b16 %v1592, %v1591
      %v1623 = vpack.c.b16 %v1594, %v1593
      %v1624 = vpack.c.b16 %v1596, %v1595
      %v1625 = vpack.c.b16 %v1598, %v1597
      %v1626 = vpack.c.b16 %v1600, %v1599
      %v1627 = vpack.c.b16 %v1602, %v1601
      %v1628 = vpack.c.b16 %v1604, %v1603
      %v1629 = vpack.c.b16 %v1606, %v1605
      %v1630 = vpack.c.b16 %v1608, %v1607
      %v1631 = vpack.c.b16 %v1610, %v1609
      %v1632 = vpack.c.b16 %v1612, %v1611
      %v1633 = vpack.c.b16 %v1614, %v1613
      %v1634 = vpack.c.b16 %v1615, %v1615
      %v1635 = vrot.slane %v1616, 1
      %v1636 = vrot.slane %v1617, 1
      %v1637 = vsel %vm1201, %v1635, %v1636
      %v1638 = vrot.slane %v1618, 1
      %v1639 = vsel %vm1201, %v1636, %v1638
      %v1640 = vrot.slane %v1619, 1
      %v1641 = vsel %vm1201, %v1638, %v1640
      %v1642 = vrot.slane %v1620, 1
      %v1643 = vsel %vm1201, %v1640, %v1642
      %v1644 = vrot.slane %v1621, 1
      %v1645 = vsel %vm1201, %v1642, %v1644
      %v1646 = vrot.slane %v1622, 1
      %v1647 = vsel %vm1201, %v1644, %v1646
      %v1648 = vrot.slane %v1623, 1
      %v1649 = vsel %vm1201, %v1646, %v1648
      %v1650 = vrot.slane %v1624, 1
      %v1651 = vsel %vm1201, %v1648, %v1650
      %v1652 = vrot.slane %v1625, 1
      %v1653 = vsel %vm1201, %v1650, %v1652
      %v1654 = vrot.slane %v1626, 1
      %v1655 = vsel %vm1201, %v1652, %v1654
      %v1656 = vrot.slane %v1627, 1
      %v1657 = vsel %vm1201, %v1654, %v1656
      %v1658 = vrot.slane %v1628, 1
      %v1659 = vsel %vm1201, %v1656, %v1658
      %v1660 = vrot.slane %v1629, 1
      %v1661 = vsel %vm1201, %v1658, %v1660
      %v1662 = vrot.slane %v1630, 1
      %v1663 = vsel %vm1201, %v1660, %v1662
      %v1664 = vrot.slane %v1631, 1
      %v1665 = vsel %vm1201, %v1662, %v1664
      %v1666 = vrot.slane %v1632, 1
      %v1667 = vsel %vm1201, %v1664, %v1666
      %v1668 = vrot.slane %v1633, 1
      %v1669 = vsel %vm1201, %v1666, %v1668
      %v1670 = vrot.slane %v1634, 1
      %v1671 = vsel %vm1201, %v1668, %v1670
      %v1673 = vsel %vm326, %v1637, 0
      %v1676 = vsel %vm326, %v1639, 0
      %v1679 = vsel %vm326, %v1641, 0
      %v1682 = vsel %vm326, %v1643, 0
      %v1685 = vsel %vm326, %v1645, 0
      %v1688 = vsel %vm326, %v1647, 0
      %v1691 = vsel %vm326, %v1649, 0
      %v1694 = vsel %vm326, %v1651, 0
      %v1697 = vsel %vm326, %v1653, 0
      %v1700 = vsel %vm326, %v1655, 0
      %v1703 = vsel %vm326, %v1657, 0
      %v1706 = vsel %vm326, %v1659, 0
      %v1709 = vsel %vm326, %v1661, 0
      %v1712 = vsel %vm326, %v1663, 0
      %v1715 = vsel %vm326, %v1665, 0
      %v1718 = vsel %vm326, %v1667, 0
      %v1721 = vsel %vm326, %v1669, 0
      %v1724 = vsel %vm326, %v1671, 0
      %v1727 = vand.u32 %v1541, %v384
      %1729 = vmatpush.bf16.msra.mxu0 0
      %1730 = vmatpush.bf16.msra.mxu0 0
      %1731 = vmatpush.bf16.msra.mxu0 0
      %1732 = vmatpush.bf16.msra.mxu0 0
      %1733 = vmatpush.bf16.msra.mxu0 0
      %1734 = vmatpush.bf16.msra.mxu0 0
      %1735 = vmatpush.bf16.msra.mxu0 0
      %1736 = vmatpush.bf16.msra.mxu0 %v1727
      %1737 = vmatmul.bf16.gmra.mxu0 %v1673
      %v1738 = vpop.f32.mrf.mxu0
      %v1739 = vadd.f32 0.0, %v1738
      %v1740 = vpop.f32.mrf.mxu0
      %v1741 = vadd.f32 0.0, %v1740
      %1742 = vmatmul.bf16.gmra.mxu0 %v1676
      %v1743 = vpop.f32.mrf.mxu0
      %v1744 = vadd.f32 0.0, %v1743
      %v1745 = vpop.f32.mrf.mxu0
      %v1746 = vadd.f32 0.0, %v1745
      %1747 = vmatmul.bf16.gmra.mxu0 %v1679
      %v1748 = vpop.f32.mrf.mxu0
      %v1749 = vadd.f32 0.0, %v1748
      %v1750 = vpop.f32.mrf.mxu0
      %v1751 = vadd.f32 0.0, %v1750
      %1752 = vmatmul.bf16.gmra.mxu0 %v1682
      %v1753 = vpop.f32.mrf.mxu0
      %v1754 = vadd.f32 0.0, %v1753
      %v1755 = vpop.f32.mrf.mxu0
      %v1756 = vadd.f32 0.0, %v1755
      %1757 = vmatmul.bf16.gmra.mxu0 %v1685
      %v1758 = vpop.f32.mrf.mxu0
      %v1759 = vadd.f32 0.0, %v1758
      %v1760 = vpop.f32.mrf.mxu0
      %v1761 = vadd.f32 0.0, %v1760
      %1762 = vmatmul.bf16.gmra.mxu0 %v1688
      %v1763 = vpop.f32.mrf.mxu0
      %v1764 = vadd.f32 0.0, %v1763
      %v1765 = vpop.f32.mrf.mxu0
      %v1766 = vadd.f32 0.0, %v1765
      %1767 = vmatmul.bf16.gmra.mxu0 %v1691
      %v1768 = vpop.f32.mrf.mxu0
      %v1769 = vadd.f32 0.0, %v1768
      %v1770 = vpop.f32.mrf.mxu0
      %v1771 = vadd.f32 0.0, %v1770
      %1772 = vmatmul.bf16.gmra.mxu0 %v1694
      %v1773 = vpop.f32.mrf.mxu0
      %v1774 = vadd.f32 0.0, %v1773
      %v1775 = vpop.f32.mrf.mxu0
      %v1776 = vadd.f32 0.0, %v1775
      %1777 = vmatmul.bf16.gmra.mxu0 %v1697
      %v1778 = vpop.f32.mrf.mxu0
      %v1779 = vadd.f32 0.0, %v1778
      %v1780 = vpop.f32.mrf.mxu0
      %v1781 = vadd.f32 0.0, %v1780
      %1782 = vmatmul.bf16.gmra.mxu0 %v1700
      %v1783 = vpop.f32.mrf.mxu0
      %v1784 = vadd.f32 0.0, %v1783
      %v1785 = vpop.f32.mrf.mxu0
      %v1786 = vadd.f32 0.0, %v1785
      %1787 = vmatmul.bf16.gmra.mxu0 %v1703
      %v1788 = vpop.f32.mrf.mxu0
      %v1789 = vadd.f32 0.0, %v1788
      %v1790 = vpop.f32.mrf.mxu0
      %v1791 = vadd.f32 0.0, %v1790
      %1792 = vmatmul.bf16.gmra.mxu0 %v1706
      %v1793 = vpop.f32.mrf.mxu0
      %v1794 = vadd.f32 0.0, %v1793
      %v1795 = vpop.f32.mrf.mxu0
      %v1796 = vadd.f32 0.0, %v1795
      %1797 = vmatmul.bf16.gmra.mxu0 %v1709
      %v1798 = vpop.f32.mrf.mxu0
      %v1799 = vadd.f32 0.0, %v1798
      %v1800 = vpop.f32.mrf.mxu0
      %v1801 = vadd.f32 0.0, %v1800
      %1802 = vmatmul.bf16.gmra.mxu0 %v1712
      %v1803 = vpop.f32.mrf.mxu0
      %v1804 = vadd.f32 0.0, %v1803
      %v1805 = vpop.f32.mrf.mxu0
      %v1806 = vadd.f32 0.0, %v1805
      %1807 = vmatmul.bf16.gmra.mxu0 %v1715
      %v1808 = vpop.f32.mrf.mxu0
      %v1809 = vadd.f32 0.0, %v1808
      %v1810 = vpop.f32.mrf.mxu0
      %v1811 = vadd.f32 0.0, %v1810
      %1812 = vmatmul.bf16.gmra.mxu0 %v1718
      %v1813 = vpop.f32.mrf.mxu0
      %v1814 = vadd.f32 0.0, %v1813
      %v1815 = vpop.f32.mrf.mxu0
      %v1816 = vadd.f32 0.0, %v1815
      %1817 = vmatmul.bf16.gmra.mxu0 %v1721
      %v1818 = vpop.f32.mrf.mxu0
      %v1819 = vadd.f32 0.0, %v1818
      %v1820 = vpop.f32.mrf.mxu0
      %v1821 = vadd.f32 0.0, %v1820
      %1822 = vmatmul.bf16.gmra.mxu0 %v1724
      %v1823 = vpop.f32.mrf.mxu0
      %v1824 = vadd.f32 0.0, %v1823
      %v1825 = vpop.f32.mrf.mxu0
      %v1826 = vadd.f32 0.0, %v1825
      %1827 = vdwg.mxu0
      %v1828 = vld [vmem:[#allocation2] sm:$0xff]
      %v1829 = vld [vmem:[#allocation2 + $0x8] sm:$0xff]
      %v1830 = vld [vmem:[#allocation2 + $0x10] sm:$0xff]
      %v1831 = vld [vmem:[#allocation2 + $0x18] sm:$0xff]
      %v1832 = vld [vmem:[#allocation2 + $0x20] sm:$0xff]
      %v1833 = vld [vmem:[#allocation2 + $0x28] sm:$0xff]
      %v1834 = vld [vmem:[#allocation2 + $0x30] sm:$0xff]
      %v1835 = vld [vmem:[#allocation2 + $0x38] sm:$0xff]
      %v1836 = vld [vmem:[#allocation2 + $0x40] sm:$0xff]
      %v1837 = vld [vmem:[#allocation2 + $0x48] sm:$0xff]
      %v1838 = vld [vmem:[#allocation2 + $0x50] sm:$0xff]
      %v1839 = vld [vmem:[#allocation2 + $0x58] sm:$0xff]
      %v1840 = vld [vmem:[#allocation2 + $0x60] sm:$0xff]
      %v1841 = vld [vmem:[#allocation2 + $0x68] sm:$0xff]
      %v1842 = vld [vmem:[#allocation2 + $0x70] sm:$0xff]
      %v1843 = vld [vmem:[#allocation2 + $0x78] sm:$0xff]
      %v1844 = vld [vmem:[#allocation2 + $0x80] sm:$0xff]
      %v1845 = vld [vmem:[#allocation2 + $0x88] sm:$0xff]
      %v1846 = vld [vmem:[#allocation2 + $0x90] sm:$0xff]
      %v1847 = vld [vmem:[#allocation2 + $0x98] sm:$0xff]
      %v1848 = vld [vmem:[#allocation2 + $0xa0] sm:$0xff]
      %v1849 = vld [vmem:[#allocation2 + $0xa8] sm:$0xff]
      %v1850 = vld [vmem:[#allocation2 + $0xb0] sm:$0xff]
      %v1851 = vld [vmem:[#allocation2 + $0xb8] sm:$0xff]
      %v1852 = vld [vmem:[#allocation2 + $0xc0] sm:$0xff]
      %v1853 = vld [vmem:[#allocation2 + $0xc8] sm:$0xff]
      %v1854 = vld [vmem:[#allocation2 + $0xd0] sm:$0xff]
      %v1855 = vld [vmem:[#allocation2 + $0xd8] sm:$0xff]
      %v1856 = vld [vmem:[#allocation2 + $0xe0] sm:$0xff]
      %v1857 = vld [vmem:[#allocation2 + $0xe8] sm:$0xff]
      %v1858 = vld [vmem:[#allocation2 + $0xf0] sm:$0xff]
      %v1859 = vld [vmem:[#allocation2 + $0xf8] sm:$0xff]
      %v1860 = vld [vmem:[#allocation2 + $0x100] sm:$0xff]
      %v1861 = vld [vmem:[#allocation2 + $0x108] sm:$0xff]
      %v1862 = vld [vmem:[#allocation2 + $0x110] sm:$0xff]
      %v1863 = vld [vmem:[#allocation2 + $0x118] sm:$0xff]
      %v1864 = vadd.f32 %v1828, %v1739
      %v1865 = vadd.f32 %v1829, %v1741
      %v1866 = vadd.f32 %v1830, %v1744
      %v1867 = vadd.f32 %v1831, %v1746
      %v1868 = vadd.f32 %v1832, %v1749
      %v1869 = vadd.f32 %v1833, %v1751
      %v1870 = vadd.f32 %v1834, %v1754
      %v1871 = vadd.f32 %v1835, %v1756
      %v1872 = vadd.f32 %v1836, %v1759
      %v1873 = vadd.f32 %v1837, %v1761
      %v1874 = vadd.f32 %v1838, %v1764
      %v1875 = vadd.f32 %v1839, %v1766
      %v1876 = vadd.f32 %v1840, %v1769
      %v1877 = vadd.f32 %v1841, %v1771
      %v1878 = vadd.f32 %v1842, %v1774
      %v1879 = vadd.f32 %v1843, %v1776
      %v1880 = vadd.f32 %v1844, %v1779
      %v1881 = vadd.f32 %v1845, %v1781
      %v1882 = vadd.f32 %v1846, %v1784
      %v1883 = vadd.f32 %v1847, %v1786
      %v1884 = vadd.f32 %v1848, %v1789
      %v1885 = vadd.f32 %v1849, %v1791
      %v1886 = vadd.f32 %v1850, %v1794
      %v1887 = vadd.f32 %v1851, %v1796
      %v1888 = vadd.f32 %v1852, %v1799
      %v1889 = vadd.f32 %v1853, %v1801
      %v1890 = vadd.f32 %v1854, %v1804
      %v1891 = vadd.f32 %v1855, %v1806
      %v1892 = vadd.f32 %v1856, %v1809
      %v1893 = vadd.f32 %v1857, %v1811
      %v1894 = vadd.f32 %v1858, %v1814
      %v1895 = vadd.f32 %v1859, %v1816
      %v1896 = vadd.f32 %v1860, %v1819
      %v1897 = vadd.f32 %v1861, %v1821
      %v1898 = vadd.f32 %v1862, %v1824
      %v1899 = vadd.f32 %v1863, %v1826
      %1900 = vst.msk [vmem:[#allocation2] sm:$0xff] %vm487, %v1864
      %1901 = vst.msk [vmem:[#allocation2 + $0x8] sm:$0xff] %vm487, %v1865
      %1902 = vst.msk [vmem:[#allocation2 + $0x10] sm:$0xff] %vm487, %v1866
      %1903 = vst.msk [vmem:[#allocation2 + $0x18] sm:$0xff] %vm487, %v1867
      %1904 = vst.msk [vmem:[#allocation2 + $0x20] sm:$0xff] %vm487, %v1868
      %1905 = vst.msk [vmem:[#allocation2 + $0x28] sm:$0xff] %vm487, %v1869
      %1906 = vst.msk [vmem:[#allocation2 + $0x30] sm:$0xff] %vm487, %v1870
      %1907 = vst.msk [vmem:[#allocation2 + $0x38] sm:$0xff] %vm487, %v1871
      %1908 = vst.msk [vmem:[#allocation2 + $0x40] sm:$0xff] %vm487, %v1872
      %1909 = vst.msk [vmem:[#allocation2 + $0x48] sm:$0xff] %vm487, %v1873
      %1910 = vst.msk [vmem:[#allocation2 + $0x50] sm:$0xff] %vm487, %v1874
      %1911 = vst.msk [vmem:[#allocation2 + $0x58] sm:$0xff] %vm487, %v1875
      %1912 = vst.msk [vmem:[#allocation2 + $0x60] sm:$0xff] %vm487, %v1876
      %1913 = vst.msk [vmem:[#allocation2 + $0x68] sm:$0xff] %vm487, %v1877
      %1914 = vst.msk [vmem:[#allocation2 + $0x70] sm:$0xff] %vm487, %v1878
      %1915 = vst.msk [vmem:[#allocation2 + $0x78] sm:$0xff] %vm487, %v1879
      %1916 = vst.msk [vmem:[#allocation2 + $0x80] sm:$0xff] %vm487, %v1880
      %1917 = vst.msk [vmem:[#allocation2 + $0x88] sm:$0xff] %vm487, %v1881
      %1918 = vst.msk [vmem:[#allocation2 + $0x90] sm:$0xff] %vm487, %v1882
      %1919 = vst.msk [vmem:[#allocation2 + $0x98] sm:$0xff] %vm487, %v1883
      %1920 = vst.msk [vmem:[#allocation2 + $0xa0] sm:$0xff] %vm487, %v1884
      %1921 = vst.msk [vmem:[#allocation2 + $0xa8] sm:$0xff] %vm487, %v1885
      %1922 = vst.msk [vmem:[#allocation2 + $0xb0] sm:$0xff] %vm487, %v1886
      %1923 = vst.msk [vmem:[#allocation2 + $0xb8] sm:$0xff] %vm487, %v1887
      %1924 = vst.msk [vmem:[#allocation2 + $0xc0] sm:$0xff] %vm487, %v1888
      %1925 = vst.msk [vmem:[#allocation2 + $0xc8] sm:$0xff] %vm487, %v1889
      %1926 = vst.msk [vmem:[#allocation2 + $0xd0] sm:$0xff] %vm487, %v1890
      %1927 = vst.msk [vmem:[#allocation2 + $0xd8] sm:$0xff] %vm487, %v1891
      %1928 = vst.msk [vmem:[#allocation2 + $0xe0] sm:$0xff] %vm487, %v1892
      %1929 = vst.msk [vmem:[#allocation2 + $0xe8] sm:$0xff] %vm487, %v1893
      %1930 = vst.msk [vmem:[#allocation2 + $0xf0] sm:$0xff] %vm487, %v1894
      %1931 = vst.msk [vmem:[#allocation2 + $0xf8] sm:$0xff] %vm487, %v1895
      %1932 = vst.msk [vmem:[#allocation2 + $0x100] sm:$0xff] %vm487, %v1896
      %1933 = vst.msk [vmem:[#allocation2 + $0x108] sm:$0xff] %vm487, %v1897
      %1934 = vst.msk [vmem:[#allocation2 + $0x110] sm:$0xff] %vm487, %v1898
      %1935 = vst.msk [vmem:[#allocation2 + $0x118] sm:$0xff] %vm487, %v1899
      %v1936 = vld [vmem:[%s192 + $0x8] sm:$0xe]
      %v1937 = vld [vmem:[%s192 + $0xc] sm:$0xf]
      %v1938 = vld [vmem:[%s192 + $0x10] sm:$0xf]
      %v1939 = vld [vmem:[%s192 + $0x14] sm:$0xf]
      %v1940 = vld [vmem:[%s192 + $0x18] sm:$0xf]
      %v1941 = vld [vmem:[%s192 + $0x1c] sm:$0xf]
      %v1942 = vld [vmem:[%s192 + $0x20] sm:$0xf]
      %v1943 = vld [vmem:[%s192 + $0x24] sm:$0xf]
      %v1944 = vld [vmem:[%s192 + $0x28] sm:$0xf]
      %v1945 = vld [vmem:[%s192 + $0x2c] sm:$0xf]
      %v1946 = vld [vmem:[%s192 + $0x30] sm:$0xf]
      %v1947 = vld [vmem:[%s192 + $0x34] sm:$0xf]
      %v1948 = vld [vmem:[%s192 + $0x38] sm:$0xf]
      %v1949 = vld [vmem:[%s192 + $0x3c] sm:$0xf]
      %v1950 = vld [vmem:[%s192 + $0x40] sm:$0xf]
      %v1951 = vld [vmem:[%s192 + $0x44] sm:$0xf]
      %v1952 = vld [vmem:[%s192 + $0x48] sm:$0xf]
      %v1953 = vld [vmem:[%s192 + $0x4c] sm:$0xf]
      %v1954 = vld [vmem:[%s192 + $0x50] sm:$0xf]
      %v1955 = vld [vmem:[%s192 + $0x54] sm:$0xf]
      %v1956 = vld [vmem:[%s192 + $0x58] sm:$0xf]
      %v1957 = vld [vmem:[%s192 + $0x5c] sm:$0xf]
      %v1958 = vld [vmem:[%s192 + $0x60] sm:$0xf]
      %v1959 = vld [vmem:[%s192 + $0x64] sm:$0xf]
      %v1960 = vld [vmem:[%s192 + $0x68] sm:$0xf]
      %v1961 = vld [vmem:[%s192 + $0x6c] sm:$0xf]
      %v1962 = vld [vmem:[%s192 + $0x70] sm:$0xf]
      %v1963 = vld [vmem:[%s192 + $0x74] sm:$0xf]
      %v1964 = vld [vmem:[%s192 + $0x78] sm:$0xf]
      %v1965 = vld [vmem:[%s192 + $0x7c] sm:$0xf]
      %v1966 = vld [vmem:[%s192 + $0x80] sm:$0xf]
      %v1967 = vld [vmem:[%s192 + $0x84] sm:$0xf]
      %v1968 = vld [vmem:[%s192 + $0x88] sm:$0xf]
      %v1969 = vld [vmem:[%s192 + $0x8c] sm:$0xf]
      %v1970 = vld [vmem:[%s192 + $0x90] sm:$0xf]
      %v1971 = vld [vmem:[%s192 + $0x94] sm:$0xf]
      %v1972 = vld [vmem:[%s192 + $0x98] sm:$0x3]
      %s1973 = scalar_lea.vmem %s1, 8
      %v1974 = vld [vmem:[%s1973] sm:$0x3]
      %v2012 = vunpack.c.l.b16 %v1936
      %v2013 = vunpack.c.l.b16 %v1937
      %v2014 = vunpack.c.l.b16 %v1938
      %v2015 = vunpack.c.l.b16 %v1939
      %v2016 = vunpack.c.l.b16 %v1940
      %v2017 = vunpack.c.l.b16 %v1941
      %v2018 = vunpack.c.l.b16 %v1942
      %v2019 = vunpack.c.l.b16 %v1943
      %v2020 = vunpack.c.l.b16 %v1944
      %v2021 = vunpack.c.l.b16 %v1945
      %v2022 = vunpack.c.l.b16 %v1946
      %v2023 = vunpack.c.l.b16 %v1947
      %v2024 = vunpack.c.l.b16 %v1948
      %v2025 = vunpack.c.l.b16 %v1949
      %v2026 = vunpack.c.l.b16 %v1950
      %v2027 = vunpack.c.l.b16 %v1951
      %v2028 = vunpack.c.l.b16 %v1952
      %v2029 = vunpack.c.l.b16 %v1953
      %v2030 = vunpack.c.l.b16 %v1954
      %v2031 = vunpack.c.l.b16 %v1955
      %v2032 = vunpack.c.l.b16 %v1956
      %v2033 = vunpack.c.l.b16 %v1957
      %v2034 = vunpack.c.l.b16 %v1958
      %v2035 = vunpack.c.l.b16 %v1959
      %v2036 = vunpack.c.l.b16 %v1960
      %v2037 = vunpack.c.l.b16 %v1961
      %v2038 = vunpack.c.l.b16 %v1962
      %v2039 = vunpack.c.l.b16 %v1963
      %v2040 = vunpack.c.l.b16 %v1964
      %v2041 = vunpack.c.l.b16 %v1965
      %v2042 = vunpack.c.l.b16 %v1966
      %v2043 = vunpack.c.l.b16 %v1967
      %v2044 = vunpack.c.l.b16 %v1968
      %v2045 = vunpack.c.l.b16 %v1969
      %v2046 = vunpack.c.l.b16 %v1970
      %v2047 = vunpack.c.l.b16 %v1971
      %v2048 = vunpack.c.l.b16 %v1972
      %v2049 = vpack.c.b16 %v2013, %v2012
      %v2050 = vpack.c.b16 %v2015, %v2014
      %v2051 = vpack.c.b16 %v2017, %v2016
      %v2052 = vpack.c.b16 %v2019, %v2018
      %v2053 = vpack.c.b16 %v2021, %v2020
      %v2054 = vpack.c.b16 %v2023, %v2022
      %v2055 = vpack.c.b16 %v2025, %v2024
      %v2056 = vpack.c.b16 %v2027, %v2026
      %v2057 = vpack.c.b16 %v2029, %v2028
      %v2058 = vpack.c.b16 %v2031, %v2030
      %v2059 = vpack.c.b16 %v2033, %v2032
      %v2060 = vpack.c.b16 %v2035, %v2034
      %v2061 = vpack.c.b16 %v2037, %v2036
      %v2062 = vpack.c.b16 %v2039, %v2038
      %v2063 = vpack.c.b16 %v2041, %v2040
      %v2064 = vpack.c.b16 %v2043, %v2042
      %v2065 = vpack.c.b16 %v2045, %v2044
      %v2066 = vpack.c.b16 %v2047, %v2046
      %v2067 = vpack.c.b16 %v2048, %v2048
      %vm2068 = vsmask.f32 6400
      %v2070 = vshrl.u32 %v2049, 16
      %v2072 = vrot.slane %v2070, 1
      %v2073 = vshll.u32 %v2049, 16
      %v2075 = vrot.slane %v2073, 2
      %v2076 = vor.u32 %v2072, %v2075
      %v2078 = vshrl.u32 %v2050, 16
      %v2080 = vrot.slane %v2078, 1
      %v2081 = vshll.u32 %v2050, 16
      %v2083 = vrot.slane %v2081, 2
      %v2084 = vor.u32 %v2080, %v2083
      %v2085 = vsel %vm2068, %v2076, %v2084
      %v2087 = vshrl.u32 %v2051, 16
      %v2089 = vrot.slane %v2087, 1
      %v2090 = vshll.u32 %v2051, 16
      %v2092 = vrot.slane %v2090, 2
      %v2093 = vor.u32 %v2089, %v2092
      %v2094 = vsel %vm2068, %v2084, %v2093
      %v2096 = vshrl.u32 %v2052, 16
      %v2098 = vrot.slane %v2096, 1
      %v2099 = vshll.u32 %v2052, 16
      %v2101 = vrot.slane %v2099, 2
      %v2102 = vor.u32 %v2098, %v2101
      %v2103 = vsel %vm2068, %v2093, %v2102
      %v2105 = vshrl.u32 %v2053, 16
      %v2107 = vrot.slane %v2105, 1
      %v2108 = vshll.u32 %v2053, 16
      %v2110 = vrot.slane %v2108, 2
      %v2111 = vor.u32 %v2107, %v2110
      %v2112 = vsel %vm2068, %v2102, %v2111
      %v2114 = vshrl.u32 %v2054, 16
      %v2116 = vrot.slane %v2114, 1
      %v2117 = vshll.u32 %v2054, 16
      %v2119 = vrot.slane %v2117, 2
      %v2120 = vor.u32 %v2116, %v2119
      %v2121 = vsel %vm2068, %v2111, %v2120
      %v2123 = vshrl.u32 %v2055, 16
      %v2125 = vrot.slane %v2123, 1
      %v2126 = vshll.u32 %v2055, 16
      %v2128 = vrot.slane %v2126, 2
      %v2129 = vor.u32 %v2125, %v2128
      %v2130 = vsel %vm2068, %v2120, %v2129
      %v2132 = vshrl.u32 %v2056, 16
      %v2134 = vrot.slane %v2132, 1
      %v2135 = vshll.u32 %v2056, 16
      %v2137 = vrot.slane %v2135, 2
      %v2138 = vor.u32 %v2134, %v2137
      %v2139 = vsel %vm2068, %v2129, %v2138
      %v2141 = vshrl.u32 %v2057, 16
      %v2143 = vrot.slane %v2141, 1
      %v2144 = vshll.u32 %v2057, 16
      %v2146 = vrot.slane %v2144, 2
      %v2147 = vor.u32 %v2143, %v2146
      %v2148 = vsel %vm2068, %v2138, %v2147
      %v2150 = vshrl.u32 %v2058, 16
      %v2152 = vrot.slane %v2150, 1
      %v2153 = vshll.u32 %v2058, 16
      %v2155 = vrot.slane %v2153, 2
      %v2156 = vor.u32 %v2152, %v2155
      %v2157 = vsel %vm2068, %v2147, %v2156
      %v2159 = vshrl.u32 %v2059, 16
      %v2161 = vrot.slane %v2159, 1
      %v2162 = vshll.u32 %v2059, 16
      %v2164 = vrot.slane %v2162, 2
      %v2165 = vor.u32 %v2161, %v2164
      %v2166 = vsel %vm2068, %v2156, %v2165
      %v2168 = vshrl.u32 %v2060, 16
      %v2170 = vrot.slane %v2168, 1
      %v2171 = vshll.u32 %v2060, 16
      %v2173 = vrot.slane %v2171, 2
      %v2174 = vor.u32 %v2170, %v2173
      %v2175 = vsel %vm2068, %v2165, %v2174
      %v2177 = vshrl.u32 %v2061, 16
      %v2179 = vrot.slane %v2177, 1
      %v2180 = vshll.u32 %v2061, 16
      %v2182 = vrot.slane %v2180, 2
      %v2183 = vor.u32 %v2179, %v2182
      %v2184 = vsel %vm2068, %v2174, %v2183
      %v2186 = vshrl.u32 %v2062, 16
      %v2188 = vrot.slane %v2186, 1
      %v2189 = vshll.u32 %v2062, 16
      %v2191 = vrot.slane %v2189, 2
      %v2192 = vor.u32 %v2188, %v2191
      %v2193 = vsel %vm2068, %v2183, %v2192
      %v2195 = vshrl.u32 %v2063, 16
      %v2197 = vrot.slane %v2195, 1
      %v2198 = vshll.u32 %v2063, 16
      %v2200 = vrot.slane %v2198, 2
      %v2201 = vor.u32 %v2197, %v2200
      %v2202 = vsel %vm2068, %v2192, %v2201
      %v2204 = vshrl.u32 %v2064, 16
      %v2206 = vrot.slane %v2204, 1
      %v2207 = vshll.u32 %v2064, 16
      %v2209 = vrot.slane %v2207, 2
      %v2210 = vor.u32 %v2206, %v2209
      %v2211 = vsel %vm2068, %v2201, %v2210
      %v2213 = vshrl.u32 %v2065, 16
      %v2215 = vrot.slane %v2213, 1
      %v2216 = vshll.u32 %v2065, 16
      %v2218 = vrot.slane %v2216, 2
      %v2219 = vor.u32 %v2215, %v2218
      %v2220 = vsel %vm2068, %v2210, %v2219
      %v2222 = vshrl.u32 %v2066, 16
      %v2224 = vrot.slane %v2222, 1
      %v2225 = vshll.u32 %v2066, 16
      %v2227 = vrot.slane %v2225, 2
      %v2228 = vor.u32 %v2224, %v2227
      %v2229 = vsel %vm2068, %v2219, %v2228
      %v2231 = vshrl.u32 %v2067, 16
      %v2233 = vrot.slane %v2231, 1
      %v2234 = vshll.u32 %v2067, 16
      %v2236 = vrot.slane %v2234, 2
      %v2237 = vor.u32 %v2233, %v2236
      %v2238 = vsel %vm2068, %v2228, %v2237
      %v2240 = vsel %vm326, %v2085, 0
      %v2243 = vsel %vm326, %v2094, 0
      %v2246 = vsel %vm326, %v2103, 0
      %v2249 = vsel %vm326, %v2112, 0
      %v2252 = vsel %vm326, %v2121, 0
      %v2255 = vsel %vm326, %v2130, 0
      %v2258 = vsel %vm326, %v2139, 0
      %v2261 = vsel %vm326, %v2148, 0
      %v2264 = vsel %vm326, %v2157, 0
      %v2267 = vsel %vm326, %v2166, 0
      %v2270 = vsel %vm326, %v2175, 0
      %v2273 = vsel %vm326, %v2184, 0
      %v2276 = vsel %vm326, %v2193, 0
      %v2279 = vsel %vm326, %v2202, 0
      %v2282 = vsel %vm326, %v2211, 0
      %v2285 = vsel %vm326, %v2220, 0
      %v2288 = vsel %vm326, %v2229, 0
      %v2291 = vsel %vm326, %v2238, 0
      %v2294 = vand.u32 %v1974, %v384
      %2296 = vmatpush.bf16.msra.mxu0 0
      %2297 = vmatpush.bf16.msra.mxu0 0
      %2298 = vmatpush.bf16.msra.mxu0 0
      %2299 = vmatpush.bf16.msra.mxu0 0
      %2300 = vmatpush.bf16.msra.mxu0 0
      %2301 = vmatpush.bf16.msra.mxu0 0
      %2302 = vmatpush.bf16.msra.mxu0 0
      %2303 = vmatpush.bf16.msra.mxu0 %v2294
      %2304 = vmatmul.bf16.gmra.mxu0 %v2240
      %v2305 = vpop.f32.mrf.mxu0
      %v2306 = vadd.f32 0.0, %v2305
      %v2307 = vpop.f32.mrf.mxu0
      %v2308 = vadd.f32 0.0, %v2307
      %2309 = vmatmul.bf16.gmra.mxu0 %v2243
      %v2310 = vpop.f32.mrf.mxu0
      %v2311 = vadd.f32 0.0, %v2310
      %v2312 = vpop.f32.mrf.mxu0
      %v2313 = vadd.f32 0.0, %v2312
      %2314 = vmatmul.bf16.gmra.mxu0 %v2246
      %v2315 = vpop.f32.mrf.mxu0
      %v2316 = vadd.f32 0.0, %v2315
      %v2317 = vpop.f32.mrf.mxu0
      %v2318 = vadd.f32 0.0, %v2317
      %2319 = vmatmul.bf16.gmra.mxu0 %v2249
      %v2320 = vpop.f32.mrf.mxu0
      %v2321 = vadd.f32 0.0, %v2320
      %v2322 = vpop.f32.mrf.mxu0
      %v2323 = vadd.f32 0.0, %v2322
      %2324 = vmatmul.bf16.gmra.mxu0 %v2252
      %v2325 = vpop.f32.mrf.mxu0
      %v2326 = vadd.f32 0.0, %v2325
      %v2327 = vpop.f32.mrf.mxu0
      %v2328 = vadd.f32 0.0, %v2327
      %2329 = vmatmul.bf16.gmra.mxu0 %v2255
      %v2330 = vpop.f32.mrf.mxu0
      %v2331 = vadd.f32 0.0, %v2330
      %v2332 = vpop.f32.mrf.mxu0
      %v2333 = vadd.f32 0.0, %v2332
      %2334 = vmatmul.bf16.gmra.mxu0 %v2258
      %v2335 = vpop.f32.mrf.mxu0
      %v2336 = vadd.f32 0.0, %v2335
      %v2337 = vpop.f32.mrf.mxu0
      %v2338 = vadd.f32 0.0, %v2337
      %2339 = vmatmul.bf16.gmra.mxu0 %v2261
      %v2340 = vpop.f32.mrf.mxu0
      %v2341 = vadd.f32 0.0, %v2340
      %v2342 = vpop.f32.mrf.mxu0
      %v2343 = vadd.f32 0.0, %v2342
      %2344 = vmatmul.bf16.gmra.mxu0 %v2264
      %v2345 = vpop.f32.mrf.mxu0
      %v2346 = vadd.f32 0.0, %v2345
      %v2347 = vpop.f32.mrf.mxu0
      %v2348 = vadd.f32 0.0, %v2347
      %2349 = vmatmul.bf16.gmra.mxu0 %v2267
      %v2350 = vpop.f32.mrf.mxu0
      %v2351 = vadd.f32 0.0, %v2350
      %v2352 = vpop.f32.mrf.mxu0
      %v2353 = vadd.f32 0.0, %v2352
      %2354 = vmatmul.bf16.gmra.mxu0 %v2270
      %v2355 = vpop.f32.mrf.mxu0
      %v2356 = vadd.f32 0.0, %v2355
      %v2357 = vpop.f32.mrf.mxu0
      %v2358 = vadd.f32 0.0, %v2357
      %2359 = vmatmul.bf16.gmra.mxu0 %v2273
      %v2360 = vpop.f32.mrf.mxu0
      %v2361 = vadd.f32 0.0, %v2360
      %v2362 = vpop.f32.mrf.mxu0
      %v2363 = vadd.f32 0.0, %v2362
      %2364 = vmatmul.bf16.gmra.mxu0 %v2276
      %v2365 = vpop.f32.mrf.mxu0
      %v2366 = vadd.f32 0.0, %v2365
      %v2367 = vpop.f32.mrf.mxu0
      %v2368 = vadd.f32 0.0, %v2367
      %2369 = vmatmul.bf16.gmra.mxu0 %v2279
      %v2370 = vpop.f32.mrf.mxu0
      %v2371 = vadd.f32 0.0, %v2370
      %v2372 = vpop.f32.mrf.mxu0
      %v2373 = vadd.f32 0.0, %v2372
      %2374 = vmatmul.bf16.gmra.mxu0 %v2282
      %v2375 = vpop.f32.mrf.mxu0
      %v2376 = vadd.f32 0.0, %v2375
      %v2377 = vpop.f32.mrf.mxu0
      %v2378 = vadd.f32 0.0, %v2377
      %2379 = vmatmul.bf16.gmra.mxu0 %v2285
      %v2380 = vpop.f32.mrf.mxu0
      %v2381 = vadd.f32 0.0, %v2380
      %v2382 = vpop.f32.mrf.mxu0
      %v2383 = vadd.f32 0.0, %v2382
      %2384 = vmatmul.bf16.gmra.mxu0 %v2288
      %v2385 = vpop.f32.mrf.mxu0
      %v2386 = vadd.f32 0.0, %v2385
      %v2387 = vpop.f32.mrf.mxu0
      %v2388 = vadd.f32 0.0, %v2387
      %2389 = vmatmul.bf16.gmra.mxu0 %v2291
      %v2390 = vpop.f32.mrf.mxu0
      %v2391 = vadd.f32 0.0, %v2390
      %v2392 = vpop.f32.mrf.mxu0
      %v2393 = vadd.f32 0.0, %v2392
      %2394 = vdwg.mxu0
      %v2395 = vld [vmem:[#allocation2] sm:$0xff]
      %v2396 = vld [vmem:[#allocation2 + $0x8] sm:$0xff]
      %v2397 = vld [vmem:[#allocation2 + $0x10] sm:$0xff]
      %v2398 = vld [vmem:[#allocation2 + $0x18] sm:$0xff]
      %v2399 = vld [vmem:[#allocation2 + $0x20] sm:$0xff]
      %v2400 = vld [vmem:[#allocation2 + $0x28] sm:$0xff]
      %v2401 = vld [vmem:[#allocation2 + $0x30] sm:$0xff]
      %v2402 = vld [vmem:[#allocation2 + $0x38] sm:$0xff]
      %v2403 = vld [vmem:[#allocation2 + $0x40] sm:$0xff]
      %v2404 = vld [vmem:[#allocation2 + $0x48] sm:$0xff]
      %v2405 = vld [vmem:[#allocation2 + $0x50] sm:$0xff]
      %v2406 = vld [vmem:[#allocation2 + $0x58] sm:$0xff]
      %v2407 = vld [vmem:[#allocation2 + $0x60] sm:$0xff]
      %v2408 = vld [vmem:[#allocation2 + $0x68] sm:$0xff]
      %v2409 = vld [vmem:[#allocation2 + $0x70] sm:$0xff]
      %v2410 = vld [vmem:[#allocation2 + $0x78] sm:$0xff]
      %v2411 = vld [vmem:[#allocation2 + $0x80] sm:$0xff]
      %v2412 = vld [vmem:[#allocation2 + $0x88] sm:$0xff]
      %v2413 = vld [vmem:[#allocation2 + $0x90] sm:$0xff]
      %v2414 = vld [vmem:[#allocation2 + $0x98] sm:$0xff]
      %v2415 = vld [vmem:[#allocation2 + $0xa0] sm:$0xff]
      %v2416 = vld [vmem:[#allocation2 + $0xa8] sm:$0xff]
      %v2417 = vld [vmem:[#allocation2 + $0xb0] sm:$0xff]
      %v2418 = vld [vmem:[#allocation2 + $0xb8] sm:$0xff]
      %v2419 = vld [vmem:[#allocation2 + $0xc0] sm:$0xff]
      %v2420 = vld [vmem:[#allocation2 + $0xc8] sm:$0xff]
      %v2421 = vld [vmem:[#allocation2 + $0xd0] sm:$0xff]
      %v2422 = vld [vmem:[#allocation2 + $0xd8] sm:$0xff]
      %v2423 = vld [vmem:[#allocation2 + $0xe0] sm:$0xff]
      %v2424 = vld [vmem:[#allocation2 + $0xe8] sm:$0xff]
      %v2425 = vld [vmem:[#allocation2 + $0xf0] sm:$0xff]
      %v2426 = vld [vmem:[#allocation2 + $0xf8] sm:$0xff]
      %v2427 = vld [vmem:[#allocation2 + $0x100] sm:$0xff]
      %v2428 = vld [vmem:[#allocation2 + $0x108] sm:$0xff]
      %v2429 = vld [vmem:[#allocation2 + $0x110] sm:$0xff]
      %v2430 = vld [vmem:[#allocation2 + $0x118] sm:$0xff]
      %v2431 = vadd.f32 %v2395, %v2306
      %v2432 = vadd.f32 %v2396, %v2308
      %v2433 = vadd.f32 %v2397, %v2311
      %v2434 = vadd.f32 %v2398, %v2313
      %v2435 = vadd.f32 %v2399, %v2316
      %v2436 = vadd.f32 %v2400, %v2318
      %v2437 = vadd.f32 %v2401, %v2321
      %v2438 = vadd.f32 %v2402, %v2323
      %v2439 = vadd.f32 %v2403, %v2326
      %v2440 = vadd.f32 %v2404, %v2328
      %v2441 = vadd.f32 %v2405, %v2331
      %v2442 = vadd.f32 %v2406, %v2333
      %v2443 = vadd.f32 %v2407, %v2336
      %v2444 = vadd.f32 %v2408, %v2338
      %v2445 = vadd.f32 %v2409, %v2341
      %v2446 = vadd.f32 %v2410, %v2343
      %v2447 = vadd.f32 %v2411, %v2346
      %v2448 = vadd.f32 %v2412, %v2348
      %v2449 = vadd.f32 %v2413, %v2351
      %v2450 = vadd.f32 %v2414, %v2353
      %v2451 = vadd.f32 %v2415, %v2356
      %v2452 = vadd.f32 %v2416, %v2358
      %v2453 = vadd.f32 %v2417, %v2361
      %v2454 = vadd.f32 %v2418, %v2363
      %v2455 = vadd.f32 %v2419, %v2366
      %v2456 = vadd.f32 %v2420, %v2368
      %v2457 = vadd.f32 %v2421, %v2371
      %v2458 = vadd.f32 %v2422, %v2373
      %v2459 = vadd.f32 %v2423, %v2376
      %v2460 = vadd.f32 %v2424, %v2378
      %v2461 = vadd.f32 %v2425, %v2381
      %v2462 = vadd.f32 %v2426, %v2383
      %v2463 = vadd.f32 %v2427, %v2386
      %v2464 = vadd.f32 %v2428, %v2388
      %v2465 = vadd.f32 %v2429, %v2391
      %v2466 = vadd.f32 %v2430, %v2393
      %2467 = vst.msk [vmem:[#allocation2] sm:$0xff] %vm487, %v2431
      %2468 = vst.msk [vmem:[#allocation2 + $0x8] sm:$0xff] %vm487, %v2432
      %2469 = vst.msk [vmem:[#allocation2 + $0x10] sm:$0xff] %vm487, %v2433
      %2470 = vst.msk [vmem:[#allocation2 + $0x18] sm:$0xff] %vm487, %v2434
      %2471 = vst.msk [vmem:[#allocation2 + $0x20] sm:$0xff] %vm487, %v2435
      %2472 = vst.msk [vmem:[#allocation2 + $0x28] sm:$0xff] %vm487, %v2436
      %2473 = vst.msk [vmem:[#allocation2 + $0x30] sm:$0xff] %vm487, %v2437
      %2474 = vst.msk [vmem:[#allocation2 + $0x38] sm:$0xff] %vm487, %v2438
      %2475 = vst.msk [vmem:[#allocation2 + $0x40] sm:$0xff] %vm487, %v2439
      %2476 = vst.msk [vmem:[#allocation2 + $0x48] sm:$0xff] %vm487, %v2440
      %2477 = vst.msk [vmem:[#allocation2 + $0x50] sm:$0xff] %vm487, %v2441
      %2478 = vst.msk [vmem:[#allocation2 + $0x58] sm:$0xff] %vm487, %v2442
      %2479 = vst.msk [vmem:[#allocation2 + $0x60] sm:$0xff] %vm487, %v2443
      %2480 = vst.msk [vmem:[#allocation2 + $0x68] sm:$0xff] %vm487, %v2444
      %2481 = vst.msk [vmem:[#allocation2 + $0x70] sm:$0xff] %vm487, %v2445
      %2482 = vst.msk [vmem:[#allocation2 + $0x78] sm:$0xff] %vm487, %v2446
      %2483 = vst.msk [vmem:[#allocation2 + $0x80] sm:$0xff] %vm487, %v2447
      %2484 = vst.msk [vmem:[#allocation2 + $0x88] sm:$0xff] %vm487, %v2448
      %2485 = vst.msk [vmem:[#allocation2 + $0x90] sm:$0xff] %vm487, %v2449
      %2486 = vst.msk [vmem:[#allocation2 + $0x98] sm:$0xff] %vm487, %v2450
      %2487 = vst.msk [vmem:[#allocation2 + $0xa0] sm:$0xff] %vm487, %v2451
      %2488 = vst.msk [vmem:[#allocation2 + $0xa8] sm:$0xff] %vm487, %v2452
      %2489 = vst.msk [vmem:[#allocation2 + $0xb0] sm:$0xff] %vm487, %v2453
      %2490 = vst.msk [vmem:[#allocation2 + $0xb8] sm:$0xff] %vm487, %v2454
      %2491 = vst.msk [vmem:[#allocation2 + $0xc0] sm:$0xff] %vm487, %v2455
      %2492 = vst.msk [vmem:[#allocation2 + $0xc8] sm:$0xff] %vm487, %v2456
      %2493 = vst.msk [vmem:[#allocation2 + $0xd0] sm:$0xff] %vm487, %v2457
      %2494 = vst.msk [vmem:[#allocation2 + $0xd8] sm:$0xff] %vm487, %v2458
      %2495 = vst.msk [vmem:[#allocation2 + $0xe0] sm:$0xff] %vm487, %v2459
      %2496 = vst.msk [vmem:[#allocation2 + $0xe8] sm:$0xff] %vm487, %v2460
      %2497 = vst.msk [vmem:[#allocation2 + $0xf0] sm:$0xff] %vm487, %v2461
      %2498 = vst.msk [vmem:[#allocation2 + $0xf8] sm:$0xff] %vm487, %v2462
      %2499 = vst.msk [vmem:[#allocation2 + $0x100] sm:$0xff] %vm487, %v2463
      %2500 = vst.msk [vmem:[#allocation2 + $0x108] sm:$0xff] %vm487, %v2464
      %2501 = vst.msk [vmem:[#allocation2 + $0x110] sm:$0xff] %vm487, %v2465
      %2502 = vst.msk [vmem:[#allocation2 + $0x118] sm:$0xff] %vm487, %v2466
      %v2503 = vld [vmem:[%s192 + $0x8] sm:$0xc]
      %v2504 = vld [vmem:[%s192 + $0xc] sm:$0xf]
      %v2505 = vld [vmem:[%s192 + $0x10] sm:$0xf]
      %v2506 = vld [vmem:[%s192 + $0x14] sm:$0xf]
      %v2507 = vld [vmem:[%s192 + $0x18] sm:$0xf]
      %v2508 = vld [vmem:[%s192 + $0x1c] sm:$0xf]
      %v2509 = vld [vmem:[%s192 + $0x20] sm:$0xf]
      %v2510 = vld [vmem:[%s192 + $0x24] sm:$0xf]
      %v2511 = vld [vmem:[%s192 + $0x28] sm:$0xf]
      %v2512 = vld [vmem:[%s192 + $0x2c] sm:$0xf]
      %v2513 = vld [vmem:[%s192 + $0x30] sm:$0xf]
      %v2514 = vld [vmem:[%s192 + $0x34] sm:$0xf]
      %v2515 = vld [vmem:[%s192 + $0x38] sm:$0xf]
      %v2516 = vld [vmem:[%s192 + $0x3c] sm:$0xf]
      %v2517 = vld [vmem:[%s192 + $0x40] sm:$0xf]
      %v2518 = vld [vmem:[%s192 + $0x44] sm:$0xf]
      %v2519 = vld [vmem:[%s192 + $0x48] sm:$0xf]
      %v2520 = vld [vmem:[%s192 + $0x4c] sm:$0xf]
      %v2521 = vld [vmem:[%s192 + $0x50] sm:$0xf]
      %v2522 = vld [vmem:[%s192 + $0x54] sm:$0xf]
      %v2523 = vld [vmem:[%s192 + $0x58] sm:$0xf]
      %v2524 = vld [vmem:[%s192 + $0x5c] sm:$0xf]
      %v2525 = vld [vmem:[%s192 + $0x60] sm:$0xf]
      %v2526 = vld [vmem:[%s192 + $0x64] sm:$0xf]
      %v2527 = vld [vmem:[%s192 + $0x68] sm:$0xf]
      %v2528 = vld [vmem:[%s192 + $0x6c] sm:$0xf]
      %v2529 = vld [vmem:[%s192 + $0x70] sm:$0xf]
      %v2530 = vld [vmem:[%s192 + $0x74] sm:$0xf]
      %v2531 = vld [vmem:[%s192 + $0x78] sm:$0xf]
      %v2532 = vld [vmem:[%s192 + $0x7c] sm:$0xf]
      %v2533 = vld [vmem:[%s192 + $0x80] sm:$0xf]
      %v2534 = vld [vmem:[%s192 + $0x84] sm:$0xf]
      %v2535 = vld [vmem:[%s192 + $0x88] sm:$0xf]
      %v2536 = vld [vmem:[%s192 + $0x8c] sm:$0xf]
      %v2537 = vld [vmem:[%s192 + $0x90] sm:$0xf]
      %v2538 = vld [vmem:[%s192 + $0x94] sm:$0xf]
      %v2539 = vld [vmem:[%s192 + $0x98] sm:$0x3]
      %s2540 = scalar_lea.vmem %s1, 10
      %v2541 = vld [vmem:[%s2540] sm:$0x3]
      %v2579 = vunpack.c.l.b16 %v2503
      %v2580 = vunpack.c.l.b16 %v2504
      %v2581 = vunpack.c.l.b16 %v2505
      %v2582 = vunpack.c.l.b16 %v2506
      %v2583 = vunpack.c.l.b16 %v2507
      %v2584 = vunpack.c.l.b16 %v2508
      %v2585 = vunpack.c.l.b16 %v2509
      %v2586 = vunpack.c.l.b16 %v2510
      %v2587 = vunpack.c.l.b16 %v2511
      %v2588 = vunpack.c.l.b16 %v2512
      %v2589 = vunpack.c.l.b16 %v2513
      %v2590 = vunpack.c.l.b16 %v2514
      %v2591 = vunpack.c.l.b16 %v2515
      %v2592 = vunpack.c.l.b16 %v2516
      %v2593 = vunpack.c.l.b16 %v2517
      %v2594 = vunpack.c.l.b16 %v2518
      %v2595 = vunpack.c.l.b16 %v2519
      %v2596 = vunpack.c.l.b16 %v2520
      %v2597 = vunpack.c.l.b16 %v2521
      %v2598 = vunpack.c.l.b16 %v2522
      %v2599 = vunpack.c.l.b16 %v2523
      %v2600 = vunpack.c.l.b16 %v2524
      %v2601 = vunpack.c.l.b16 %v2525
      %v2602 = vunpack.c.l.b16 %v2526
      %v2603 = vunpack.c.l.b16 %v2527
      %v2604 = vunpack.c.l.b16 %v2528
      %v2605 = vunpack.c.l.b16 %v2529
      %v2606 = vunpack.c.l.b16 %v2530
      %v2607 = vunpack.c.l.b16 %v2531
      %v2608 = vunpack.c.l.b16 %v2532
      %v2609 = vunpack.c.l.b16 %v2533
      %v2610 = vunpack.c.l.b16 %v2534
      %v2611 = vunpack.c.l.b16 %v2535
      %v2612 = vunpack.c.l.b16 %v2536
      %v2613 = vunpack.c.l.b16 %v2537
      %v2614 = vunpack.c.l.b16 %v2538
      %v2615 = vunpack.c.l.b16 %v2539
      %v2616 = vpack.c.b16 %v2580, %v2579
      %v2617 = vpack.c.b16 %v2582, %v2581
      %v2618 = vpack.c.b16 %v2584, %v2583
      %v2619 = vpack.c.b16 %v2586, %v2585
      %v2620 = vpack.c.b16 %v2588, %v2587
      %v2621 = vpack.c.b16 %v2590, %v2589
      %v2622 = vpack.c.b16 %v2592, %v2591
      %v2623 = vpack.c.b16 %v2594, %v2593
      %v2624 = vpack.c.b16 %v2596, %v2595
      %v2625 = vpack.c.b16 %v2598, %v2597
      %v2626 = vpack.c.b16 %v2600, %v2599
      %v2627 = vpack.c.b16 %v2602, %v2601
      %v2628 = vpack.c.b16 %v2604, %v2603
      %v2629 = vpack.c.b16 %v2606, %v2605
      %v2630 = vpack.c.b16 %v2608, %v2607
      %v2631 = vpack.c.b16 %v2610, %v2609
      %v2632 = vpack.c.b16 %v2612, %v2611
      %v2633 = vpack.c.b16 %v2614, %v2613
      %v2634 = vpack.c.b16 %v2615, %v2615
      %vm2635 = vcmask 1045504
      %v2636 = vrot.slane %v2616, 2
      %v2637 = vrot.slane %v2617, 2
      %v2638 = vsel %vm2635, %v2636, %v2637
      %v2639 = vrot.slane %v2618, 2
      %v2640 = vsel %vm2635, %v2637, %v2639
      %v2641 = vrot.slane %v2619, 2
      %v2642 = vsel %vm2635, %v2639, %v2641
      %v2643 = vrot.slane %v2620, 2
      %v2644 = vsel %vm2635, %v2641, %v2643
      %v2645 = vrot.slane %v2621, 2
      %v2646 = vsel %vm2635, %v2643, %v2645
      %v2647 = vrot.slane %v2622, 2
      %v2648 = vsel %vm2635, %v2645, %v2647
      %v2649 = vrot.slane %v2623, 2
      %v2650 = vsel %vm2635, %v2647, %v2649
      %v2651 = vrot.slane %v2624, 2
      %v2652 = vsel %vm2635, %v2649, %v2651
      %v2653 = vrot.slane %v2625, 2
      %v2654 = vsel %vm2635, %v2651, %v2653
      %v2655 = vrot.slane %v2626, 2
      %v2656 = vsel %vm2635, %v2653, %v2655
      %v2657 = vrot.slane %v2627, 2
      %v2658 = vsel %vm2635, %v2655, %v2657
      %v2659 = vrot.slane %v2628, 2
      %v2660 = vsel %vm2635, %v2657, %v2659
      %v2661 = vrot.slane %v2629, 2
      %v2662 = vsel %vm2635, %v2659, %v2661
      %v2663 = vrot.slane %v2630, 2
      %v2664 = vsel %vm2635, %v2661, %v2663
      %v2665 = vrot.slane %v2631, 2
      %v2666 = vsel %vm2635, %v2663, %v2665
      %v2667 = vrot.slane %v2632, 2
      %v2668 = vsel %vm2635, %v2665, %v2667
      %v2669 = vrot.slane %v2633, 2
      %v2670 = vsel %vm2635, %v2667, %v2669
      %v2671 = vrot.slane %v2634, 2
      %v2672 = vsel %vm2635, %v2669, %v2671
      %v2674 = vsel %vm326, %v2638, 0
      %v2677 = vsel %vm326, %v2640, 0
      %v2680 = vsel %vm326, %v2642, 0
      %v2683 = vsel %vm326, %v2644, 0
      %v2686 = vsel %vm326, %v2646, 0
      %v2689 = vsel %vm326, %v2648, 0
      %v2692 = vsel %vm326, %v2650, 0
      %v2695 = vsel %vm326, %v2652, 0
      %v2698 = vsel %vm326, %v2654, 0
      %v2701 = vsel %vm326, %v2656, 0
      %v2704 = vsel %vm326, %v2658, 0
      %v2707 = vsel %vm326, %v2660, 0
      %v2710 = vsel %vm326, %v2662, 0
      %v2713 = vsel %vm326, %v2664, 0
      %v2716 = vsel %vm326, %v2666, 0
      %v2719 = vsel %vm326, %v2668, 0
      %v2722 = vsel %vm326, %v2670, 0
      %v2725 = vsel %vm326, %v2672, 0
      %v2728 = vand.u32 %v2541, %v384
      %2730 = vmatpush.bf16.msra.mxu0 0
      %2731 = vmatpush.bf16.msra.mxu0 0
      %2732 = vmatpush.bf16.msra.mxu0 0
      %2733 = vmatpush.bf16.msra.mxu0 0
      %2734 = vmatpush.bf16.msra.mxu0 0
      %2735 = vmatpush.bf16.msra.mxu0 0
      %2736 = vmatpush.bf16.msra.mxu0 0
      %2737 = vmatpush.bf16.msra.mxu0 %v2728
      %2738 = vmatmul.bf16.gmra.mxu0 %v2674
      %v2739 = vpop.f32.mrf.mxu0
      %v2740 = vadd.f32 0.0, %v2739
      %v2741 = vpop.f32.mrf.mxu0
      %v2742 = vadd.f32 0.0, %v2741
      %2743 = vmatmul.bf16.gmra.mxu0 %v2677
      %v2744 = vpop.f32.mrf.mxu0
      %v2745 = vadd.f32 0.0, %v2744
      %v2746 = vpop.f32.mrf.mxu0
      %v2747 = vadd.f32 0.0, %v2746
      %2748 = vmatmul.bf16.gmra.mxu0 %v2680
      %v2749 = vpop.f32.mrf.mxu0
      %v2750 = vadd.f32 0.0, %v2749
      %v2751 = vpop.f32.mrf.mxu0
      %v2752 = vadd.f32 0.0, %v2751
      %2753 = vmatmul.bf16.gmra.mxu0 %v2683
      %v2754 = vpop.f32.mrf.mxu0
      %v2755 = vadd.f32 0.0, %v2754
      %v2756 = vpop.f32.mrf.mxu0
      %v2757 = vadd.f32 0.0, %v2756
      %2758 = vmatmul.bf16.gmra.mxu0 %v2686
      %v2759 = vpop.f32.mrf.mxu0
      %v2760 = vadd.f32 0.0, %v2759
      %v2761 = vpop.f32.mrf.mxu0
      %v2762 = vadd.f32 0.0, %v2761
      %2763 = vmatmul.bf16.gmra.mxu0 %v2689
      %v2764 = vpop.f32.mrf.mxu0
      %v2765 = vadd.f32 0.0, %v2764
      %v2766 = vpop.f32.mrf.mxu0
      %v2767 = vadd.f32 0.0, %v2766
      %2768 = vmatmul.bf16.gmra.mxu0 %v2692
      %v2769 = vpop.f32.mrf.mxu0
      %v2770 = vadd.f32 0.0, %v2769
      %v2771 = vpop.f32.mrf.mxu0
      %v2772 = vadd.f32 0.0, %v2771
      %2773 = vmatmul.bf16.gmra.mxu0 %v2695
      %v2774 = vpop.f32.mrf.mxu0
      %v2775 = vadd.f32 0.0, %v2774
      %v2776 = vpop.f32.mrf.mxu0
      %v2777 = vadd.f32 0.0, %v2776
      %2778 = vmatmul.bf16.gmra.mxu0 %v2698
      %v2779 = vpop.f32.mrf.mxu0
      %v2780 = vadd.f32 0.0, %v2779
      %v2781 = vpop.f32.mrf.mxu0
      %v2782 = vadd.f32 0.0, %v2781
      %2783 = vmatmul.bf16.gmra.mxu0 %v2701
      %v2784 = vpop.f32.mrf.mxu0
      %v2785 = vadd.f32 0.0, %v2784
      %v2786 = vpop.f32.mrf.mxu0
      %v2787 = vadd.f32 0.0, %v2786
      %2788 = vmatmul.bf16.gmra.mxu0 %v2704
      %v2789 = vpop.f32.mrf.mxu0
      %v2790 = vadd.f32 0.0, %v2789
      %v2791 = vpop.f32.mrf.mxu0
      %v2792 = vadd.f32 0.0, %v2791
      %2793 = vmatmul.bf16.gmra.mxu0 %v2707
      %v2794 = vpop.f32.mrf.mxu0
      %v2795 = vadd.f32 0.0, %v2794
      %v2796 = vpop.f32.mrf.mxu0
      %v2797 = vadd.f32 0.0, %v2796
      %2798 = vmatmul.bf16.gmra.mxu0 %v2710
      %v2799 = vpop.f32.mrf.mxu0
      %v2800 = vadd.f32 0.0, %v2799
      %v2801 = vpop.f32.mrf.mxu0
      %v2802 = vadd.f32 0.0, %v2801
      %2803 = vmatmul.bf16.gmra.mxu0 %v2713
      %v2804 = vpop.f32.mrf.mxu0
      %v2805 = vadd.f32 0.0, %v2804
      %v2806 = vpop.f32.mrf.mxu0
      %v2807 = vadd.f32 0.0, %v2806
      %2808 = vmatmul.bf16.gmra.mxu0 %v2716
      %v2809 = vpop.f32.mrf.mxu0
      %v2810 = vadd.f32 0.0, %v2809
      %v2811 = vpop.f32.mrf.mxu0
      %v2812 = vadd.f32 0.0, %v2811
      %2813 = vmatmul.bf16.gmra.mxu0 %v2719
      %v2814 = vpop.f32.mrf.mxu0
      %v2815 = vadd.f32 0.0, %v2814
      %v2816 = vpop.f32.mrf.mxu0
      %v2817 = vadd.f32 0.0, %v2816
      %2818 = vmatmul.bf16.gmra.mxu0 %v2722
      %v2819 = vpop.f32.mrf.mxu0
      %v2820 = vadd.f32 0.0, %v2819
      %v2821 = vpop.f32.mrf.mxu0
      %v2822 = vadd.f32 0.0, %v2821
      %2823 = vmatmul.bf16.gmra.mxu0 %v2725
      %v2824 = vpop.f32.mrf.mxu0
      %v2825 = vadd.f32 0.0, %v2824
      %v2826 = vpop.f32.mrf.mxu0
      %v2827 = vadd.f32 0.0, %v2826
      %2828 = vdwg.mxu0
      %v2829 = vld [vmem:[#allocation2] sm:$0xff]
      %v2830 = vld [vmem:[#allocation2 + $0x8] sm:$0xff]
      %v2831 = vld [vmem:[#allocation2 + $0x10] sm:$0xff]
      %v2832 = vld [vmem:[#allocation2 + $0x18] sm:$0xff]
      %v2833 = vld [vmem:[#allocation2 + $0x20] sm:$0xff]
      %v2834 = vld [vmem:[#allocation2 + $0x28] sm:$0xff]
      %v2835 = vld [vmem:[#allocation2 + $0x30] sm:$0xff]
      %v2836 = vld [vmem:[#allocation2 + $0x38] sm:$0xff]
      %v2837 = vld [vmem:[#allocation2 + $0x40] sm:$0xff]
      %v2838 = vld [vmem:[#allocation2 + $0x48] sm:$0xff]
      %v2839 = vld [vmem:[#allocation2 + $0x50] sm:$0xff]
      %v2840 = vld [vmem:[#allocation2 + $0x58] sm:$0xff]
      %v2841 = vld [vmem:[#allocation2 + $0x60] sm:$0xff]
      %v2842 = vld [vmem:[#allocation2 + $0x68] sm:$0xff]
      %v2843 = vld [vmem:[#allocation2 + $0x70] sm:$0xff]
      %v2844 = vld [vmem:[#allocation2 + $0x78] sm:$0xff]
      %v2845 = vld [vmem:[#allocation2 + $0x80] sm:$0xff]
      %v2846 = vld [vmem:[#allocation2 + $0x88] sm:$0xff]
      %v2847 = vld [vmem:[#allocation2 + $0x90] sm:$0xff]
      %v2848 = vld [vmem:[#allocation2 + $0x98] sm:$0xff]
      %v2849 = vld [vmem:[#allocation2 + $0xa0] sm:$0xff]
      %v2850 = vld [vmem:[#allocation2 + $0xa8] sm:$0xff]
      %v2851 = vld [vmem:[#allocation2 + $0xb0] sm:$0xff]
      %v2852 = vld [vmem:[#allocation2 + $0xb8] sm:$0xff]
      %v2853 = vld [vmem:[#allocation2 + $0xc0] sm:$0xff]
      %v2854 = vld [vmem:[#allocation2 + $0xc8] sm:$0xff]
      %v2855 = vld [vmem:[#allocation2 + $0xd0] sm:$0xff]
      %v2856 = vld [vmem:[#allocation2 + $0xd8] sm:$0xff]
      %v2857 = vld [vmem:[#allocation2 + $0xe0] sm:$0xff]
      %v2858 = vld [vmem:[#allocation2 + $0xe8] sm:$0xff]
      %v2859 = vld [vmem:[#allocation2 + $0xf0] sm:$0xff]
      %v2860 = vld [vmem:[#allocation2 + $0xf8] sm:$0xff]
      %v2861 = vld [vmem:[#allocation2 + $0x100] sm:$0xff]
      %v2862 = vld [vmem:[#allocation2 + $0x108] sm:$0xff]
      %v2863 = vld [vmem:[#allocation2 + $0x110] sm:$0xff]
      %v2864 = vld [vmem:[#allocation2 + $0x118] sm:$0xff]
      %v2865 = vadd.f32 %v2829, %v2740
      %v2866 = vadd.f32 %v2830, %v2742
      %v2867 = vadd.f32 %v2831, %v2745
      %v2868 = vadd.f32 %v2832, %v2747
      %v2869 = vadd.f32 %v2833, %v2750
      %v2870 = vadd.f32 %v2834, %v2752
      %v2871 = vadd.f32 %v2835, %v2755
      %v2872 = vadd.f32 %v2836, %v2757
      %v2873 = vadd.f32 %v2837, %v2760
      %v2874 = vadd.f32 %v2838, %v2762
      %v2875 = vadd.f32 %v2839, %v2765
      %v2876 = vadd.f32 %v2840, %v2767
      %v2877 = vadd.f32 %v2841, %v2770
      %v2878 = vadd.f32 %v2842, %v2772
      %v2879 = vadd.f32 %v2843, %v2775
      %v2880 = vadd.f32 %v2844, %v2777
      %v2881 = vadd.f32 %v2845, %v2780
      %v2882 = vadd.f32 %v2846, %v2782
      %v2883 = vadd.f32 %v2847, %v2785
      %v2884 = vadd.f32 %v2848, %v2787
      %v2885 = vadd.f32 %v2849, %v2790
      %v2886 = vadd.f32 %v2850, %v2792
      %v2887 = vadd.f32 %v2851, %v2795
      %v2888 = vadd.f32 %v2852, %v2797
      %v2889 = vadd.f32 %v2853, %v2800
      %v2890 = vadd.f32 %v2854, %v2802
      %v2891 = vadd.f32 %v2855, %v2805
      %v2892 = vadd.f32 %v2856, %v2807
      %v2893 = vadd.f32 %v2857, %v2810
      %v2894 = vadd.f32 %v2858, %v2812
      %v2895 = vadd.f32 %v2859, %v2815
      %v2896 = vadd.f32 %v2860, %v2817
      %v2897 = vadd.f32 %v2861, %v2820
      %v2898 = vadd.f32 %v2862, %v2822
      %v2899 = vadd.f32 %v2863, %v2825
      %v2900 = vadd.f32 %v2864, %v2827
      %2901 = vst.msk [vmem:[#allocation2] sm:$0xff] %vm487, %v2865
      %2902 = vst.msk [vmem:[#allocation2 + $0x8] sm:$0xff] %vm487, %v2866
      %2903 = vst.msk [vmem:[#allocation2 + $0x10] sm:$0xff] %vm487, %v2867
      %2904 = vst.msk [vmem:[#allocation2 + $0x18] sm:$0xff] %vm487, %v2868
      %2905 = vst.msk [vmem:[#allocation2 + $0x20] sm:$0xff] %vm487, %v2869
      %2906 = vst.msk [vmem:[#allocation2 + $0x28] sm:$0xff] %vm487, %v2870
      %2907 = vst.msk [vmem:[#allocation2 + $0x30] sm:$0xff] %vm487, %v2871
      %2908 = vst.msk [vmem:[#allocation2 + $0x38] sm:$0xff] %vm487, %v2872
      %2909 = vst.msk [vmem:[#allocation2 + $0x40] sm:$0xff] %vm487, %v2873
      %2910 = vst.msk [vmem:[#allocation2 + $0x48] sm:$0xff] %vm487, %v2874
      %2911 = vst.msk [vmem:[#allocation2 + $0x50] sm:$0xff] %vm487, %v2875
      %2912 = vst.msk [vmem:[#allocation2 + $0x58] sm:$0xff] %vm487, %v2876
      %2913 = vst.msk [vmem:[#allocation2 + $0x60] sm:$0xff] %vm487, %v2877
      %2914 = vst.msk [vmem:[#allocation2 + $0x68] sm:$0xff] %vm487, %v2878
      %2915 = vst.msk [vmem:[#allocation2 + $0x70] sm:$0xff] %vm487, %v2879
      %2916 = vst.msk [vmem:[#allocation2 + $0x78] sm:$0xff] %vm487, %v2880
      %2917 = vst.msk [vmem:[#allocation2 + $0x80] sm:$0xff] %vm487, %v2881
      %2918 = vst.msk [vmem:[#allocation2 + $0x88] sm:$0xff] %vm487, %v2882
      %2919 = vst.msk [vmem:[#allocation2 + $0x90] sm:$0xff] %vm487, %v2883
      %2920 = vst.msk [vmem:[#allocation2 + $0x98] sm:$0xff] %vm487, %v2884
      %2921 = vst.msk [vmem:[#allocation2 + $0xa0] sm:$0xff] %vm487, %v2885
      %2922 = vst.msk [vmem:[#allocation2 + $0xa8] sm:$0xff] %vm487, %v2886
      %2923 = vst.msk [vmem:[#allocation2 + $0xb0] sm:$0xff] %vm487, %v2887
      %2924 = vst.msk [vmem:[#allocation2 + $0xb8] sm:$0xff] %vm487, %v2888
      %2925 = vst.msk [vmem:[#allocation2 + $0xc0] sm:$0xff] %vm487, %v2889
      %2926 = vst.msk [vmem:[#allocation2 + $0xc8] sm:$0xff] %vm487, %v2890
      %2927 = vst.msk [vmem:[#allocation2 + $0xd0] sm:$0xff] %vm487, %v2891
      %2928 = vst.msk [vmem:[#allocation2 + $0xd8] sm:$0xff] %vm487, %v2892
      %2929 = vst.msk [vmem:[#allocation2 + $0xe0] sm:$0xff] %vm487, %v2893
      %2930 = vst.msk [vmem:[#allocation2 + $0xe8] sm:$0xff] %vm487, %v2894
      %2931 = vst.msk [vmem:[#allocation2 + $0xf0] sm:$0xff] %vm487, %v2895
      %2932 = vst.msk [vmem:[#allocation2 + $0xf8] sm:$0xff] %vm487, %v2896
      %2933 = vst.msk [vmem:[#allocation2 + $0x100] sm:$0xff] %vm487, %v2897
      %2934 = vst.msk [vmem:[#allocation2 + $0x108] sm:$0xff] %vm487, %v2898
      %2935 = vst.msk [vmem:[#allocation2 + $0x110] sm:$0xff] %vm487, %v2899
      %2936 = vst.msk [vmem:[#allocation2 + $0x118] sm:$0xff] %vm487, %v2900
      %v2937 = vld [vmem:[%s192 + $0x10] sm:$0xc]
      %v2938 = vld [vmem:[%s192 + $0x14] sm:$0xf]
      %v2939 = vld [vmem:[%s192 + $0x18] sm:$0xf]
      %v2940 = vld [vmem:[%s192 + $0x1c] sm:$0xf]
      %v2941 = vld [vmem:[%s192 + $0x20] sm:$0xf]
      %v2942 = vld [vmem:[%s192 + $0x24] sm:$0xf]
      %v2943 = vld [vmem:[%s192 + $0x28] sm:$0xf]
      %v2944 = vld [vmem:[%s192 + $0x2c] sm:$0xf]
      %v2945 = vld [vmem:[%s192 + $0x30] sm:$0xf]
      %v2946 = vld [vmem:[%s192 + $0x34] sm:$0xf]
      %v2947 = vld [vmem:[%s192 + $0x38] sm:$0xf]
      %v2948 = vld [vmem:[%s192 + $0x3c] sm:$0xf]
      %v2949 = vld [vmem:[%s192 + $0x40] sm:$0xf]
      %v2950 = vld [vmem:[%s192 + $0x44] sm:$0xf]
      %v2951 = vld [vmem:[%s192 + $0x48] sm:$0xf]
      %v2952 = vld [vmem:[%s192 + $0x4c] sm:$0xf]
      %v2953 = vld [vmem:[%s192 + $0x50] sm:$0xf]
      %v2954 = vld [vmem:[%s192 + $0x54] sm:$0xf]
      %v2955 = vld [vmem:[%s192 + $0x58] sm:$0xf]
      %v2956 = vld [vmem:[%s192 + $0x5c] sm:$0xf]
      %v2957 = vld [vmem:[%s192 + $0x60] sm:$0xf]
      %v2958 = vld [vmem:[%s192 + $0x64] sm:$0xf]
      %v2959 = vld [vmem:[%s192 + $0x68] sm:$0xf]
      %v2960 = vld [vmem:[%s192 + $0x6c] sm:$0xf]
      %v2961 = vld [vmem:[%s192 + $0x70] sm:$0xf]
      %v2962 = vld [vmem:[%s192 + $0x74] sm:$0xf]
      %v2963 = vld [vmem:[%s192 + $0x78] sm:$0xf]
      %v2964 = vld [vmem:[%s192 + $0x7c] sm:$0xf]
      %v2965 = vld [vmem:[%s192 + $0x80] sm:$0xf]
      %v2966 = vld [vmem:[%s192 + $0x84] sm:$0xf]
      %v2967 = vld [vmem:[%s192 + $0x88] sm:$0xf]
      %v2968 = vld [vmem:[%s192 + $0x8c] sm:$0xf]
      %v2969 = vld [vmem:[%s192 + $0x90] sm:$0xf]
      %v2970 = vld [vmem:[%s192 + $0x94] sm:$0xf]
      %v2971 = vld [vmem:[%s192 + $0x98] sm:$0xf]
      %v2972 = vld [vmem:[%s192 + $0x9c] sm:$0xf]
      %v2973 = vld [vmem:[%s192 + $0xa0] sm:$0x3]
      %s2974 = scalar_lea.vmem %s1, 12
      %v2975 = vld [vmem:[%s2974] sm:$0x3]
      %v3013 = vunpack.c.l.b16 %v2937
      %v3014 = vunpack.c.l.b16 %v2938
      %v3015 = vunpack.c.l.b16 %v2939
      %v3016 = vunpack.c.l.b16 %v2940
      %v3017 = vunpack.c.l.b16 %v2941
      %v3018 = vunpack.c.l.b16 %v2942
      %v3019 = vunpack.c.l.b16 %v2943
      %v3020 = vunpack.c.l.b16 %v2944
      %v3021 = vunpack.c.l.b16 %v2945
      %v3022 = vunpack.c.l.b16 %v2946
      %v3023 = vunpack.c.l.b16 %v2947
      %v3024 = vunpack.c.l.b16 %v2948
      %v3025 = vunpack.c.l.b16 %v2949
      %v3026 = vunpack.c.l.b16 %v2950
      %v3027 = vunpack.c.l.b16 %v2951
      %v3028 = vunpack.c.l.b16 %v2952
      %v3029 = vunpack.c.l.b16 %v2953
      %v3030 = vunpack.c.l.b16 %v2954
      %v3031 = vunpack.c.l.b16 %v2955
      %v3032 = vunpack.c.l.b16 %v2956
      %v3033 = vunpack.c.l.b16 %v2957
      %v3034 = vunpack.c.l.b16 %v2958
      %v3035 = vunpack.c.l.b16 %v2959
      %v3036 = vunpack.c.l.b16 %v2960
      %v3037 = vunpack.c.l.b16 %v2961
      %v3038 = vunpack.c.l.b16 %v2962
      %v3039 = vunpack.c.l.b16 %v2963
      %v3040 = vunpack.c.l.b16 %v2964
      %v3041 = vunpack.c.l.b16 %v2965
      %v3042 = vunpack.c.l.b16 %v2966
      %v3043 = vunpack.c.l.b16 %v2967
      %v3044 = vunpack.c.l.b16 %v2968
      %v3045 = vunpack.c.l.b16 %v2969
      %v3046 = vunpack.c.l.b16 %v2970
      %v3047 = vunpack.c.l.b16 %v2971
      %v3048 = vunpack.c.l.b16 %v2972
      %v3049 = vunpack.c.l.b16 %v2973
      %v3050 = vpack.c.b16 %v3014, %v3013
      %v3051 = vpack.c.b16 %v3016, %v3015
      %v3052 = vpack.c.b16 %v3018, %v3017
      %v3053 = vpack.c.b16 %v3020, %v3019
      %v3054 = vpack.c.b16 %v3022, %v3021
      %v3055 = vpack.c.b16 %v3024, %v3023
      %v3056 = vpack.c.b16 %v3026, %v3025
      %v3057 = vpack.c.b16 %v3028, %v3027
      %v3058 = vpack.c.b16 %v3030, %v3029
      %v3059 = vpack.c.b16 %v3032, %v3031
      %v3060 = vpack.c.b16 %v3034, %v3033
      %v3061 = vpack.c.b16 %v3036, %v3035
      %v3062 = vpack.c.b16 %v3038, %v3037
      %v3063 = vpack.c.b16 %v3040, %v3039
      %v3064 = vpack.c.b16 %v3042, %v3041
      %v3065 = vpack.c.b16 %v3044, %v3043
      %v3066 = vpack.c.b16 %v3046, %v3045
      %v3067 = vpack.c.b16 %v3048, %v3047
      %v3068 = vpack.c.b16 %v3049, %v3049
      %v3069 = vrot.slane %v3050, 2
      %v3070 = vrot.slane %v3051, 2
      %v3071 = vsel %vm2635, %v3069, %v3070
      %v3072 = vrot.slane %v3052, 2
      %v3073 = vsel %vm2635, %v3070, %v3072
      %v3074 = vrot.slane %v3053, 2
      %v3075 = vsel %vm2635, %v3072, %v3074
      %v3076 = vrot.slane %v3054, 2
      %v3077 = vsel %vm2635, %v3074, %v3076
      %v3078 = vrot.slane %v3055, 2
      %v3079 = vsel %vm2635, %v3076, %v3078
      %v3080 = vrot.slane %v3056, 2
      %v3081 = vsel %vm2635, %v3078, %v3080
      %v3082 = vrot.slane %v3057, 2
      %v3083 = vsel %vm2635, %v3080, %v3082
      %v3084 = vrot.slane %v3058, 2
      %v3085 = vsel %vm2635, %v3082, %v3084
      %v3086 = vrot.slane %v3059, 2
      %v3087 = vsel %vm2635, %v3084, %v3086
      %v3088 = vrot.slane %v3060, 2
      %v3089 = vsel %vm2635, %v3086, %v3088
      %v3090 = vrot.slane %v3061, 2
      %v3091 = vsel %vm2635, %v3088, %v3090
      %v3092 = vrot.slane %v3062, 2
      %v3093 = vsel %vm2635, %v3090, %v3092
      %v3094 = vrot.slane %v3063, 2
      %v3095 = vsel %vm2635, %v3092, %v3094
      %v3096 = vrot.slane %v3064, 2
      %v3097 = vsel %vm2635, %v3094, %v3096
      %v3098 = vrot.slane %v3065, 2
      %v3099 = vsel %vm2635, %v3096, %v3098
      %v3100 = vrot.slane %v3066, 2
      %v3101 = vsel %vm2635, %v3098, %v3100
      %v3102 = vrot.slane %v3067, 2
      %v3103 = vsel %vm2635, %v3100, %v3102
      %v3104 = vrot.slane %v3068, 2
      %v3105 = vsel %vm2635, %v3102, %v3104
      %v3107 = vsel %vm326, %v3071, 0
      %v3110 = vsel %vm326, %v3073, 0
      %v3113 = vsel %vm326, %v3075, 0
      %v3116 = vsel %vm326, %v3077, 0
      %v3119 = vsel %vm326, %v3079, 0
      %v3122 = vsel %vm326, %v3081, 0
      %v3125 = vsel %vm326, %v3083, 0
      %v3128 = vsel %vm326, %v3085, 0
      %v3131 = vsel %vm326, %v3087, 0
      %v3134 = vsel %vm326, %v3089, 0
      %v3137 = vsel %vm326, %v3091, 0
      %v3140 = vsel %vm326, %v3093, 0
      %v3143 = vsel %vm326, %v3095, 0
      %v3146 = vsel %vm326, %v3097, 0
      %v3149 = vsel %vm326, %v3099, 0
      %v3152 = vsel %vm326, %v3101, 0
      %v3155 = vsel %vm326, %v3103, 0
      %v3158 = vsel %vm326, %v3105, 0
      %v3161 = vand.u32 %v2975, %v384
      %3163 = vmatpush.bf16.msra.mxu0 0
      %3164 = vmatpush.bf16.msra.mxu0 0
      %3165 = vmatpush.bf16.msra.mxu0 0
      %3166 = vmatpush.bf16.msra.mxu0 0
      %3167 = vmatpush.bf16.msra.mxu0 0
      %3168 = vmatpush.bf16.msra.mxu0 0
      %3169 = vmatpush.bf16.msra.mxu0 0
      %3170 = vmatpush.bf16.msra.mxu0 %v3161
      %3171 = vmatmul.bf16.gmra.mxu0 %v3107
      %v3172 = vpop.f32.mrf.mxu0
      %v3173 = vadd.f32 0.0, %v3172
      %v3174 = vpop.f32.mrf.mxu0
      %v3175 = vadd.f32 0.0, %v3174
      %3176 = vmatmul.bf16.gmra.mxu0 %v3110
      %v3177 = vpop.f32.mrf.mxu0
      %v3178 = vadd.f32 0.0, %v3177
      %v3179 = vpop.f32.mrf.mxu0
      %v3180 = vadd.f32 0.0, %v3179
      %3181 = vmatmul.bf16.gmra.mxu0 %v3113
      %v3182 = vpop.f32.mrf.mxu0
      %v3183 = vadd.f32 0.0, %v3182
      %v3184 = vpop.f32.mrf.mxu0
      %v3185 = vadd.f32 0.0, %v3184
      %3186 = vmatmul.bf16.gmra.mxu0 %v3116
      %v3187 = vpop.f32.mrf.mxu0
      %v3188 = vadd.f32 0.0, %v3187
      %v3189 = vpop.f32.mrf.mxu0
      %v3190 = vadd.f32 0.0, %v3189
      %3191 = vmatmul.bf16.gmra.mxu0 %v3119
      %v3192 = vpop.f32.mrf.mxu0
      %v3193 = vadd.f32 0.0, %v3192
      %v3194 = vpop.f32.mrf.mxu0
      %v3195 = vadd.f32 0.0, %v3194
      %3196 = vmatmul.bf16.gmra.mxu0 %v3122
      %v3197 = vpop.f32.mrf.mxu0
      %v3198 = vadd.f32 0.0, %v3197
      %v3199 = vpop.f32.mrf.mxu0
      %v3200 = vadd.f32 0.0, %v3199
      %3201 = vmatmul.bf16.gmra.mxu0 %v3125
      %v3202 = vpop.f32.mrf.mxu0
      %v3203 = vadd.f32 0.0, %v3202
      %v3204 = vpop.f32.mrf.mxu0
      %v3205 = vadd.f32 0.0, %v3204
      %3206 = vmatmul.bf16.gmra.mxu0 %v3128
      %v3207 = vpop.f32.mrf.mxu0
      %v3208 = vadd.f32 0.0, %v3207
      %v3209 = vpop.f32.mrf.mxu0
      %v3210 = vadd.f32 0.0, %v3209
      %3211 = vmatmul.bf16.gmra.mxu0 %v3131
      %v3212 = vpop.f32.mrf.mxu0
      %v3213 = vadd.f32 0.0, %v3212
      %v3214 = vpop.f32.mrf.mxu0
      %v3215 = vadd.f32 0.0, %v3214
      %3216 = vmatmul.bf16.gmra.mxu0 %v3134
      %v3217 = vpop.f32.mrf.mxu0
      %v3218 = vadd.f32 0.0, %v3217
      %v3219 = vpop.f32.mrf.mxu0
      %v3220 = vadd.f32 0.0, %v3219
      %3221 = vmatmul.bf16.gmra.mxu0 %v3137
      %v3222 = vpop.f32.mrf.mxu0
      %v3223 = vadd.f32 0.0, %v3222
      %v3224 = vpop.f32.mrf.mxu0
      %v3225 = vadd.f32 0.0, %v3224
      %3226 = vmatmul.bf16.gmra.mxu0 %v3140
      %v3227 = vpop.f32.mrf.mxu0
      %v3228 = vadd.f32 0.0, %v3227
      %v3229 = vpop.f32.mrf.mxu0
      %v3230 = vadd.f32 0.0, %v3229
      %3231 = vmatmul.bf16.gmra.mxu0 %v3143
      %v3232 = vpop.f32.mrf.mxu0
      %v3233 = vadd.f32 0.0, %v3232
      %v3234 = vpop.f32.mrf.mxu0
      %v3235 = vadd.f32 0.0, %v3234
      %3236 = vmatmul.bf16.gmra.mxu0 %v3146
      %v3237 = vpop.f32.mrf.mxu0
      %v3238 = vadd.f32 0.0, %v3237
      %v3239 = vpop.f32.mrf.mxu0
      %v3240 = vadd.f32 0.0, %v3239
      %3241 = vmatmul.bf16.gmra.mxu0 %v3149
      %v3242 = vpop.f32.mrf.mxu0
      %v3243 = vadd.f32 0.0, %v3242
      %v3244 = vpop.f32.mrf.mxu0
      %v3245 = vadd.f32 0.0, %v3244
      %3246 = vmatmul.bf16.gmra.mxu0 %v3152
      %v3247 = vpop.f32.mrf.mxu0
      %v3248 = vadd.f32 0.0, %v3247
      %v3249 = vpop.f32.mrf.mxu0
      %v3250 = vadd.f32 0.0, %v3249
      %3251 = vmatmul.bf16.gmra.mxu0 %v3155
      %v3252 = vpop.f32.mrf.mxu0
      %v3253 = vadd.f32 0.0, %v3252
      %v3254 = vpop.f32.mrf.mxu0
      %v3255 = vadd.f32 0.0, %v3254
      %3256 = vmatmul.bf16.gmra.mxu0 %v3158
      %v3257 = vpop.f32.mrf.mxu0
      %v3258 = vadd.f32 0.0, %v3257
      %v3259 = vpop.f32.mrf.mxu0
      %v3260 = vadd.f32 0.0, %v3259
      %3261 = vdwg.mxu0
      %v3262 = vld [vmem:[#allocation2] sm:$0xff]
      %v3263 = vld [vmem:[#allocation2 + $0x8] sm:$0xff]
      %v3264 = vld [vmem:[#allocation2 + $0x10] sm:$0xff]
      %v3265 = vld [vmem:[#allocation2 + $0x18] sm:$0xff]
      %v3266 = vld [vmem:[#allocation2 + $0x20] sm:$0xff]
      %v3267 = vld [vmem:[#allocation2 + $0x28] sm:$0xff]
      %v3268 = vld [vmem:[#allocation2 + $0x30] sm:$0xff]
      %v3269 = vld [vmem:[#allocation2 + $0x38] sm:$0xff]
      %v3270 = vld [vmem:[#allocation2 + $0x40] sm:$0xff]
      %v3271 = vld [vmem:[#allocation2 + $0x48] sm:$0xff]
      %v3272 = vld [vmem:[#allocation2 + $0x50] sm:$0xff]
      %v3273 = vld [vmem:[#allocation2 + $0x58] sm:$0xff]
      %v3274 = vld [vmem:[#allocation2 + $0x60] sm:$0xff]
      %v3275 = vld [vmem:[#allocation2 + $0x68] sm:$0xff]
      %v3276 = vld [vmem:[#allocation2 + $0x70] sm:$0xff]
      %v3277 = vld [vmem:[#allocation2 + $0x78] sm:$0xff]
      %v3278 = vld [vmem:[#allocation2 + $0x80] sm:$0xff]
      %v3279 = vld [vmem:[#allocation2 + $0x88] sm:$0xff]
      %v3280 = vld [vmem:[#allocation2 + $0x90] sm:$0xff]
      %v3281 = vld [vmem:[#allocation2 + $0x98] sm:$0xff]
      %v3282 = vld [vmem:[#allocation2 + $0xa0] sm:$0xff]
      %v3283 = vld [vmem:[#allocation2 + $0xa8] sm:$0xff]
      %v3284 = vld [vmem:[#allocation2 + $0xb0] sm:$0xff]
      %v3285 = vld [vmem:[#allocation2 + $0xb8] sm:$0xff]
      %v3286 = vld [vmem:[#allocation2 + $0xc0] sm:$0xff]
      %v3287 = vld [vmem:[#allocation2 + $0xc8] sm:$0xff]
      %v3288 = vld [vmem:[#allocation2 + $0xd0] sm:$0xff]
      %v3289 = vld [vmem:[#allocation2 + $0xd8] sm:$0xff]
      %v3290 = vld [vmem:[#allocation2 + $0xe0] sm:$0xff]
      %v3291 = vld [vmem:[#allocation2 + $0xe8] sm:$0xff]
      %v3292 = vld [vmem:[#allocation2 + $0xf0] sm:$0xff]
      %v3293 = vld [vmem:[#allocation2 + $0xf8] sm:$0xff]
      %v3294 = vld [vmem:[#allocation2 + $0x100] sm:$0xff]
      %v3295 = vld [vmem:[#allocation2 + $0x108] sm:$0xff]
      %v3296 = vld [vmem:[#allocation2 + $0x110] sm:$0xff]
      %v3297 = vld [vmem:[#allocation2 + $0x118] sm:$0xff]
      %v3298 = vadd.f32 %v3262, %v3173
      %v3299 = vadd.f32 %v3263, %v3175
      %v3300 = vadd.f32 %v3264, %v3178
      %v3301 = vadd.f32 %v3265, %v3180
      %v3302 = vadd.f32 %v3266, %v3183
      %v3303 = vadd.f32 %v3267, %v3185
      %v3304 = vadd.f32 %v3268, %v3188
      %v3305 = vadd.f32 %v3269, %v3190
      %v3306 = vadd.f32 %v3270, %v3193
      %v3307 = vadd.f32 %v3271, %v3195
      %v3308 = vadd.f32 %v3272, %v3198
      %v3309 = vadd.f32 %v3273, %v3200
      %v3310 = vadd.f32 %v3274, %v3203
      %v3311 = vadd.f32 %v3275, %v3205
      %v3312 = vadd.f32 %v3276, %v3208
      %v3313 = vadd.f32 %v3277, %v3210
      %v3314 = vadd.f32 %v3278, %v3213
      %v3315 = vadd.f32 %v3279, %v3215
      %v3316 = vadd.f32 %v3280, %v3218
      %v3317 = vadd.f32 %v3281, %v3220
      %v3318 = vadd.f32 %v3282, %v3223
      %v3319 = vadd.f32 %v3283, %v3225
      %v3320 = vadd.f32 %v3284, %v3228
      %v3321 = vadd.f32 %v3285, %v3230
      %v3322 = vadd.f32 %v3286, %v3233
      %v3323 = vadd.f32 %v3287, %v3235
      %v3324 = vadd.f32 %v3288, %v3238
      %v3325 = vadd.f32 %v3289, %v3240
      %v3326 = vadd.f32 %v3290, %v3243
      %v3327 = vadd.f32 %v3291, %v3245
      %v3328 = vadd.f32 %v3292, %v3248
      %v3329 = vadd.f32 %v3293, %v3250
      %v3330 = vadd.f32 %v3294, %v3253
      %v3331 = vadd.f32 %v3295, %v3255
      %v3332 = vadd.f32 %v3296, %v3258
      %v3333 = vadd.f32 %v3297, %v3260
      %3334 = vst.msk [vmem:[#allocation2] sm:$0xff] %vm487, %v3298
      %3335 = vst.msk [vmem:[#allocation2 + $0x8] sm:$0xff] %vm487, %v3299
      %3336 = vst.msk [vmem:[#allocation2 + $0x10] sm:$0xff] %vm487, %v3300
      %3337 = vst.msk [vmem:[#allocation2 + $0x18] sm:$0xff] %vm487, %v3301
      %3338 = vst.msk [vmem:[#allocation2 + $0x20] sm:$0xff] %vm487, %v3302
      %3339 = vst.msk [vmem:[#allocation2 + $0x28] sm:$0xff] %vm487, %v3303
      %3340 = vst.msk [vmem:[#allocation2 + $0x30] sm:$0xff] %vm487, %v3304
      %3341 = vst.msk [vmem:[#allocation2 + $0x38] sm:$0xff] %vm487, %v3305
      %3342 = vst.msk [vmem:[#allocation2 + $0x40] sm:$0xff] %vm487, %v3306
      %3343 = vst.msk [vmem:[#allocation2 + $0x48] sm:$0xff] %vm487, %v3307
      %3344 = vst.msk [vmem:[#allocation2 + $0x50] sm:$0xff] %vm487, %v3308
      %3345 = vst.msk [vmem:[#allocation2 + $0x58] sm:$0xff] %vm487, %v3309
      %3346 = vst.msk [vmem:[#allocation2 + $0x60] sm:$0xff] %vm487, %v3310
      %3347 = vst.msk [vmem:[#allocation2 + $0x68] sm:$0xff] %vm487, %v3311
      %3348 = vst.msk [vmem:[#allocation2 + $0x70] sm:$0xff] %vm487, %v3312
      %3349 = vst.msk [vmem:[#allocation2 + $0x78] sm:$0xff] %vm487, %v3313
      %3350 = vst.msk [vmem:[#allocation2 + $0x80] sm:$0xff] %vm487, %v3314
      %3351 = vst.msk [vmem:[#allocation2 + $0x88] sm:$0xff] %vm487, %v3315
      %3352 = vst.msk [vmem:[#allocation2 + $0x90] sm:$0xff] %vm487, %v3316
      %3353 = vst.msk [vmem:[#allocation2 + $0x98] sm:$0xff] %vm487, %v3317
      %3354 = vst.msk [vmem:[#allocation2 + $0xa0] sm:$0xff] %vm487, %v3318
      %3355 = vst.msk [vmem:[#allocation2 + $0xa8] sm:$0xff] %vm487, %v3319
      %3356 = vst.msk [vmem:[#allocation2 + $0xb0] sm:$0xff] %vm487, %v3320
      %3357 = vst.msk [vmem:[#allocation2 + $0xb8] sm:$0xff] %vm487, %v3321
      %3358 = vst.msk [vmem:[#allocation2 + $0xc0] sm:$0xff] %vm487, %v3322
      %3359 = vst.msk [vmem:[#allocation2 + $0xc8] sm:$0xff] %vm487, %v3323
      %3360 = vst.msk [vmem:[#allocation2 + $0xd0] sm:$0xff] %vm487, %v3324
      %3361 = vst.msk [vmem:[#allocation2 + $0xd8] sm:$0xff] %vm487, %v3325
      %3362 = vst.msk [vmem:[#allocation2 + $0xe0] sm:$0xff] %vm487, %v3326
      %3363 = vst.msk [vmem:[#allocation2 + $0xe8] sm:$0xff] %vm487, %v3327
      %3364 = vst.msk [vmem:[#allocation2 + $0xf0] sm:$0xff] %vm487, %v3328
      %3365 = vst.msk [vmem:[#allocation2 + $0xf8] sm:$0xff] %vm487, %v3329
      %3366 = vst.msk [vmem:[#allocation2 + $0x100] sm:$0xff] %vm487, %v3330
      %3367 = vst.msk [vmem:[#allocation2 + $0x108] sm:$0xff] %vm487, %v3331
      %3368 = vst.msk [vmem:[#allocation2 + $0x110] sm:$0xff] %vm487, %v3332
      %3369 = vst.msk [vmem:[#allocation2 + $0x118] sm:$0xff] %vm487, %v3333
      %v3370 = vld [vmem:[%s192 + $0x10] sm:$0xc]
      %v3371 = vld [vmem:[%s192 + $0x14] sm:$0xf]
      %v3372 = vld [vmem:[%s192 + $0x18] sm:$0xf]
      %v3373 = vld [vmem:[%s192 + $0x1c] sm:$0xf]
      %v3374 = vld [vmem:[%s192 + $0x20] sm:$0xf]
      %v3375 = vld [vmem:[%s192 + $0x24] sm:$0xf]
      %v3376 = vld [vmem:[%s192 + $0x28] sm:$0xf]
      %v3377 = vld [vmem:[%s192 + $0x2c] sm:$0xf]
      %v3378 = vld [vmem:[%s192 + $0x30] sm:$0xf]
      %v3379 = vld [vmem:[%s192 + $0x34] sm:$0xf]
      %v3380 = vld [vmem:[%s192 + $0x38] sm:$0xf]
      %v3381 = vld [vmem:[%s192 + $0x3c] sm:$0xf]
      %v3382 = vld [vmem:[%s192 + $0x40] sm:$0xf]
      %v3383 = vld [vmem:[%s192 + $0x44] sm:$0xf]
      %v3384 = vld [vmem:[%s192 + $0x48] sm:$0xf]
      %v3385 = vld [vmem:[%s192 + $0x4c] sm:$0xf]
      %v3386 = vld [vmem:[%s192 + $0x50] sm:$0xf]
      %v3387 = vld [vmem:[%s192 + $0x54] sm:$0xf]
      %v3388 = vld [vmem:[%s192 + $0x58] sm:$0xf]
      %v3389 = vld [vmem:[%s192 + $0x5c] sm:$0xf]
      %v3390 = vld [vmem:[%s192 + $0x60] sm:$0xf]
      %v3391 = vld [vmem:[%s192 + $0x64] sm:$0xf]
      %v3392 = vld [vmem:[%s192 + $0x68] sm:$0xf]
      %v3393 = vld [vmem:[%s192 + $0x6c] sm:$0xf]
      %v3394 = vld [vmem:[%s192 + $0x70] sm:$0xf]
      %v3395 = vld [vmem:[%s192 + $0x74] sm:$0xf]
      %v3396 = vld [vmem:[%s192 + $0x78] sm:$0xf]
      %v3397 = vld [vmem:[%s192 + $0x7c] sm:$0xf]
      %v3398 = vld [vmem:[%s192 + $0x80] sm:$0xf]
      %v3399 = vld [vmem:[%s192 + $0x84] sm:$0xf]
      %v3400 = vld [vmem:[%s192 + $0x88] sm:$0xf]
      %v3401 = vld [vmem:[%s192 + $0x8c] sm:$0xf]
      %v3402 = vld [vmem:[%s192 + $0x90] sm:$0xf]
      %v3403 = vld [vmem:[%s192 + $0x94] sm:$0xf]
      %v3404 = vld [vmem:[%s192 + $0x98] sm:$0xf]
      %v3405 = vld [vmem:[%s192 + $0x9c] sm:$0xf]
      %v3406 = vld [vmem:[%s192 + $0xa0] sm:$0x7]
      %s3407 = scalar_lea.vmem %s1, 14
      %v3408 = vld [vmem:[%s3407] sm:$0x3]
      %v3446 = vunpack.c.l.b16 %v3370
      %v3447 = vunpack.c.l.b16 %v3371
      %v3448 = vunpack.c.l.b16 %v3372
      %v3449 = vunpack.c.l.b16 %v3373
      %v3450 = vunpack.c.l.b16 %v3374
      %v3451 = vunpack.c.l.b16 %v3375
      %v3452 = vunpack.c.l.b16 %v3376
      %v3453 = vunpack.c.l.b16 %v3377
      %v3454 = vunpack.c.l.b16 %v3378
      %v3455 = vunpack.c.l.b16 %v3379
      %v3456 = vunpack.c.l.b16 %v3380
      %v3457 = vunpack.c.l.b16 %v3381
      %v3458 = vunpack.c.l.b16 %v3382
      %v3459 = vunpack.c.l.b16 %v3383
      %v3460 = vunpack.c.l.b16 %v3384
      %v3461 = vunpack.c.l.b16 %v3385
      %v3462 = vunpack.c.l.b16 %v3386
      %v3463 = vunpack.c.l.b16 %v3387
      %v3464 = vunpack.c.l.b16 %v3388
      %v3465 = vunpack.c.l.b16 %v3389
      %v3466 = vunpack.c.l.b16 %v3390
      %v3467 = vunpack.c.l.b16 %v3391
      %v3468 = vunpack.c.l.b16 %v3392
      %v3469 = vunpack.c.l.b16 %v3393
      %v3470 = vunpack.c.l.b16 %v3394
      %v3471 = vunpack.c.l.b16 %v3395
      %v3472 = vunpack.c.l.b16 %v3396
      %v3473 = vunpack.c.l.b16 %v3397
      %v3474 = vunpack.c.l.b16 %v3398
      %v3475 = vunpack.c.l.b16 %v3399
      %v3476 = vunpack.c.l.b16 %v3400
      %v3477 = vunpack.c.l.b16 %v3401
      %v3478 = vunpack.c.l.b16 %v3402
      %v3479 = vunpack.c.l.b16 %v3403
      %v3480 = vunpack.c.l.b16 %v3404
      %v3481 = vunpack.c.l.b16 %v3405
      %v3482 = vunpack.c.l.b16 %v3406
      %v3483 = vpack.c.b16 %v3447, %v3446
      %v3484 = vpack.c.b16 %v3449, %v3448
      %v3485 = vpack.c.b16 %v3451, %v3450
      %v3486 = vpack.c.b16 %v3453, %v3452
      %v3487 = vpack.c.b16 %v3455, %v3454
      %v3488 = vpack.c.b16 %v3457, %v3456
      %v3489 = vpack.c.b16 %v3459, %v3458
      %v3490 = vpack.c.b16 %v3461, %v3460
      %v3491 = vpack.c.b16 %v3463, %v3462
      %v3492 = vpack.c.b16 %v3465, %v3464
      %v3493 = vpack.c.b16 %v3467, %v3466
      %v3494 = vpack.c.b16 %v3469, %v3468
      %v3495 = vpack.c.b16 %v3471, %v3470
      %v3496 = vpack.c.b16 %v3473, %v3472
      %v3497 = vpack.c.b16 %v3475, %v3474
      %v3498 = vpack.c.b16 %v3477, %v3476
      %v3499 = vpack.c.b16 %v3479, %v3478
      %v3500 = vpack.c.b16 %v3481, %v3480
      %v3501 = vpack.c.b16 %v3482, %v3482
      %vm3502 = vsmask.f32 5376
      %v3504 = vshrl.u32 %v3483, 16
      %v3506 = vrot.slane %v3504, 2
      %v3507 = vshll.u32 %v3483, 16
      %v3509 = vrot.slane %v3507, 3
      %v3510 = vor.u32 %v3506, %v3509
      %v3512 = vshrl.u32 %v3484, 16
      %v3514 = vrot.slane %v3512, 2
      %v3515 = vshll.u32 %v3484, 16
      %v3517 = vrot.slane %v3515, 3
      %v3518 = vor.u32 %v3514, %v3517
      %v3519 = vsel %vm3502, %v3510, %v3518
      %v3521 = vshrl.u32 %v3485, 16
      %v3523 = vrot.slane %v3521, 2
      %v3524 = vshll.u32 %v3485, 16
      %v3526 = vrot.slane %v3524, 3
      %v3527 = vor.u32 %v3523, %v3526
      %v3528 = vsel %vm3502, %v3518, %v3527
      %v3530 = vshrl.u32 %v3486, 16
      %v3532 = vrot.slane %v3530, 2
      %v3533 = vshll.u32 %v3486, 16
      %v3535 = vrot.slane %v3533, 3
      %v3536 = vor.u32 %v3532, %v3535
      %v3537 = vsel %vm3502, %v3527, %v3536
      %v3539 = vshrl.u32 %v3487, 16
      %v3541 = vrot.slane %v3539, 2
      %v3542 = vshll.u32 %v3487, 16
      %v3544 = vrot.slane %v3542, 3
      %v3545 = vor.u32 %v3541, %v3544
      %v3546 = vsel %vm3502, %v3536, %v3545
      %v3548 = vshrl.u32 %v3488, 16
      %v3550 = vrot.slane %v3548, 2
      %v3551 = vshll.u32 %v3488, 16
      %v3553 = vrot.slane %v3551, 3
      %v3554 = vor.u32 %v3550, %v3553
      %v3555 = vsel %vm3502, %v3545, %v3554
      %v3557 = vshrl.u32 %v3489, 16
      %v3559 = vrot.slane %v3557, 2
      %v3560 = vshll.u32 %v3489, 16
      %v3562 = vrot.slane %v3560, 3
      %v3563 = vor.u32 %v3559, %v3562
      %v3564 = vsel %vm3502, %v3554, %v3563
      %v3566 = vshrl.u32 %v3490, 16
      %v3568 = vrot.slane %v3566, 2
      %v3569 = vshll.u32 %v3490, 16
      %v3571 = vrot.slane %v3569, 3
      %v3572 = vor.u32 %v3568, %v3571
      %v3573 = vsel %vm3502, %v3563, %v3572
      %v3575 = vshrl.u32 %v3491, 16
      %v3577 = vrot.slane %v3575, 2
      %v3578 = vshll.u32 %v3491, 16
      %v3580 = vrot.slane %v3578, 3
      %v3581 = vor.u32 %v3577, %v3580
      %v3582 = vsel %vm3502, %v3572, %v3581
      %v3584 = vshrl.u32 %v3492, 16
      %v3586 = vrot.slane %v3584, 2
      %v3587 = vshll.u32 %v3492, 16
      %v3589 = vrot.slane %v3587, 3
      %v3590 = vor.u32 %v3586, %v3589
      %v3591 = vsel %vm3502, %v3581, %v3590
      %v3593 = vshrl.u32 %v3493, 16
      %v3595 = vrot.slane %v3593, 2
      %v3596 = vshll.u32 %v3493, 16
      %v3598 = vrot.slane %v3596, 3
      %v3599 = vor.u32 %v3595, %v3598
      %v3600 = vsel %vm3502, %v3590, %v3599
      %v3602 = vshrl.u32 %v3494, 16
      %v3604 = vrot.slane %v3602, 2
      %v3605 = vshll.u32 %v3494, 16
      %v3607 = vrot.slane %v3605, 3
      %v3608 = vor.u32 %v3604, %v3607
      %v3609 = vsel %vm3502, %v3599, %v3608
      %v3611 = vshrl.u32 %v3495, 16
      %v3613 = vrot.slane %v3611, 2
      %v3614 = vshll.u32 %v3495, 16
      %v3616 = vrot.slane %v3614, 3
      %v3617 = vor.u32 %v3613, %v3616
      %v3618 = vsel %vm3502, %v3608, %v3617
      %v3620 = vshrl.u32 %v3496, 16
      %v3622 = vrot.slane %v3620, 2
      %v3623 = vshll.u32 %v3496, 16
      %v3625 = vrot.slane %v3623, 3
      %v3626 = vor.u32 %v3622, %v3625
      %v3627 = vsel %vm3502, %v3617, %v3626
      %v3629 = vshrl.u32 %v3497, 16
      %v3631 = vrot.slane %v3629, 2
      %v3632 = vshll.u32 %v3497, 16
      %v3634 = vrot.slane %v3632, 3
      %v3635 = vor.u32 %v3631, %v3634
      %v3636 = vsel %vm3502, %v3626, %v3635
      %v3638 = vshrl.u32 %v3498, 16
      %v3640 = vrot.slane %v3638, 2
      %v3641 = vshll.u32 %v3498, 16
      %v3643 = vrot.slane %v3641, 3
      %v3644 = vor.u32 %v3640, %v3643
      %v3645 = vsel %vm3502, %v3635, %v3644
      %v3647 = vshrl.u32 %v3499, 16
      %v3649 = vrot.slane %v3647, 2
      %v3650 = vshll.u32 %v3499, 16
      %v3652 = vrot.slane %v3650, 3
      %v3653 = vor.u32 %v3649, %v3652
      %v3654 = vsel %vm3502, %v3644, %v3653
      %v3656 = vshrl.u32 %v3500, 16
      %v3658 = vrot.slane %v3656, 2
      %v3659 = vshll.u32 %v3500, 16
      %v3661 = vrot.slane %v3659, 3
      %v3662 = vor.u32 %v3658, %v3661
      %v3663 = vsel %vm3502, %v3653, %v3662
      %v3665 = vshrl.u32 %v3501, 16
      %v3667 = vrot.slane %v3665, 2
      %v3668 = vshll.u32 %v3501, 16
      %v3670 = vrot.slane %v3668, 3
      %v3671 = vor.u32 %v3667, %v3670
      %v3672 = vsel %vm3502, %v3662, %v3671
      %v3674 = vsel %vm326, %v3519, 0
      %v3677 = vsel %vm326, %v3528, 0
      %v3680 = vsel %vm326, %v3537, 0
      %v3683 = vsel %vm326, %v3546, 0
      %v3686 = vsel %vm326, %v3555, 0
      %v3689 = vsel %vm326, %v3564, 0
      %v3692 = vsel %vm326, %v3573, 0
      %v3695 = vsel %vm326, %v3582, 0
      %v3698 = vsel %vm326, %v3591, 0
      %v3701 = vsel %vm326, %v3600, 0
      %v3704 = vsel %vm326, %v3609, 0
      %v3707 = vsel %vm326, %v3618, 0
      %v3710 = vsel %vm326, %v3627, 0
      %v3713 = vsel %vm326, %v3636, 0
      %v3716 = vsel %vm326, %v3645, 0
      %v3719 = vsel %vm326, %v3654, 0
      %v3722 = vsel %vm326, %v3663, 0
      %v3725 = vsel %vm326, %v3672, 0
      %v3728 = vand.u32 %v3408, %v384
      %3730 = vmatpush.bf16.msra.mxu0 0
      %3731 = vmatpush.bf16.msra.mxu0 0
      %3732 = vmatpush.bf16.msra.mxu0 0
      %3733 = vmatpush.bf16.msra.mxu0 0
      %3734 = vmatpush.bf16.msra.mxu0 0
      %3735 = vmatpush.bf16.msra.mxu0 0
      %3736 = vmatpush.bf16.msra.mxu0 0
      %3737 = vmatpush.bf16.msra.mxu0 %v3728
      %3738 = vmatmul.bf16.gmra.mxu0 %v3674
      %v3739 = vpop.f32.mrf.mxu0
      %v3740 = vadd.f32 0.0, %v3739
      %v3741 = vpop.f32.mrf.mxu0
      %v3742 = vadd.f32 0.0, %v3741
      %3743 = vmatmul.bf16.gmra.mxu0 %v3677
      %v3744 = vpop.f32.mrf.mxu0
      %v3745 = vadd.f32 0.0, %v3744
      %v3746 = vpop.f32.mrf.mxu0
      %v3747 = vadd.f32 0.0, %v3746
      %3748 = vmatmul.bf16.gmra.mxu0 %v3680
      %v3749 = vpop.f32.mrf.mxu0
      %v3750 = vadd.f32 0.0, %v3749
      %v3751 = vpop.f32.mrf.mxu0
      %v3752 = vadd.f32 0.0, %v3751
      %3753 = vmatmul.bf16.gmra.mxu0 %v3683
      %v3754 = vpop.f32.mrf.mxu0
      %v3755 = vadd.f32 0.0, %v3754
      %v3756 = vpop.f32.mrf.mxu0
      %v3757 = vadd.f32 0.0, %v3756
      %3758 = vmatmul.bf16.gmra.mxu0 %v3686
      %v3759 = vpop.f32.mrf.mxu0
      %v3760 = vadd.f32 0.0, %v3759
      %v3761 = vpop.f32.mrf.mxu0
      %v3762 = vadd.f32 0.0, %v3761
      %3763 = vmatmul.bf16.gmra.mxu0 %v3689
      %v3764 = vpop.f32.mrf.mxu0
      %v3765 = vadd.f32 0.0, %v3764
      %v3766 = vpop.f32.mrf.mxu0
      %v3767 = vadd.f32 0.0, %v3766
      %3768 = vmatmul.bf16.gmra.mxu0 %v3692
      %v3769 = vpop.f32.mrf.mxu0
      %v3770 = vadd.f32 0.0, %v3769
      %v3771 = vpop.f32.mrf.mxu0
      %v3772 = vadd.f32 0.0, %v3771
      %3773 = vmatmul.bf16.gmra.mxu0 %v3695
      %v3774 = vpop.f32.mrf.mxu0
      %v3775 = vadd.f32 0.0, %v3774
      %v3776 = vpop.f32.mrf.mxu0
      %v3777 = vadd.f32 0.0, %v3776
      %3778 = vmatmul.bf16.gmra.mxu0 %v3698
      %v3779 = vpop.f32.mrf.mxu0
      %v3780 = vadd.f32 0.0, %v3779
      %v3781 = vpop.f32.mrf.mxu0
      %v3782 = vadd.f32 0.0, %v3781
      %3783 = vmatmul.bf16.gmra.mxu0 %v3701
      %v3784 = vpop.f32.mrf.mxu0
      %v3785 = vadd.f32 0.0, %v3784
      %v3786 = vpop.f32.mrf.mxu0
      %v3787 = vadd.f32 0.0, %v3786
      %3788 = vmatmul.bf16.gmra.mxu0 %v3704
      %v3789 = vpop.f32.mrf.mxu0
      %v3790 = vadd.f32 0.0, %v3789
      %v3791 = vpop.f32.mrf.mxu0
      %v3792 = vadd.f32 0.0, %v3791
      %3793 = vmatmul.bf16.gmra.mxu0 %v3707
      %v3794 = vpop.f32.mrf.mxu0
      %v3795 = vadd.f32 0.0, %v3794
      %v3796 = vpop.f32.mrf.mxu0
      %v3797 = vadd.f32 0.0, %v3796
      %3798 = vmatmul.bf16.gmra.mxu0 %v3710
      %v3799 = vpop.f32.mrf.mxu0
      %v3800 = vadd.f32 0.0, %v3799
      %v3801 = vpop.f32.mrf.mxu0
      %v3802 = vadd.f32 0.0, %v3801
      %3803 = vmatmul.bf16.gmra.mxu0 %v3713
      %v3804 = vpop.f32.mrf.mxu0
      %v3805 = vadd.f32 0.0, %v3804
      %v3806 = vpop.f32.mrf.mxu0
      %v3807 = vadd.f32 0.0, %v3806
      %3808 = vmatmul.bf16.gmra.mxu0 %v3716
      %v3809 = vpop.f32.mrf.mxu0
      %v3810 = vadd.f32 0.0, %v3809
      %v3811 = vpop.f32.mrf.mxu0
      %v3812 = vadd.f32 0.0, %v3811
      %3813 = vmatmul.bf16.gmra.mxu0 %v3719
      %v3814 = vpop.f32.mrf.mxu0
      %v3815 = vadd.f32 0.0, %v3814
      %v3816 = vpop.f32.mrf.mxu0
      %v3817 = vadd.f32 0.0, %v3816
      %3818 = vmatmul.bf16.gmra.mxu0 %v3722
      %v3819 = vpop.f32.mrf.mxu0
      %v3820 = vadd.f32 0.0, %v3819
      %v3821 = vpop.f32.mrf.mxu0
      %v3822 = vadd.f32 0.0, %v3821
      %3823 = vmatmul.bf16.gmra.mxu0 %v3725
      %v3824 = vpop.f32.mrf.mxu0
      %v3825 = vadd.f32 0.0, %v3824
      %v3826 = vpop.f32.mrf.mxu0
      %v3827 = vadd.f32 0.0, %v3826
      %3828 = vdwg.mxu0
      %v3829 = vld [vmem:[#allocation2] sm:$0xff]
      %v3830 = vld [vmem:[#allocation2 + $0x8] sm:$0xff]
      %v3831 = vld [vmem:[#allocation2 + $0x10] sm:$0xff]
      %v3832 = vld [vmem:[#allocation2 + $0x18] sm:$0xff]
      %v3833 = vld [vmem:[#allocation2 + $0x20] sm:$0xff]
      %v3834 = vld [vmem:[#allocation2 + $0x28] sm:$0xff]
      %v3835 = vld [vmem:[#allocation2 + $0x30] sm:$0xff]
      %v3836 = vld [vmem:[#allocation2 + $0x38] sm:$0xff]
      %v3837 = vld [vmem:[#allocation2 + $0x40] sm:$0xff]
      %v3838 = vld [vmem:[#allocation2 + $0x48] sm:$0xff]
      %v3839 = vld [vmem:[#allocation2 + $0x50] sm:$0xff]
      %v3840 = vld [vmem:[#allocation2 + $0x58] sm:$0xff]
      %v3841 = vld [vmem:[#allocation2 + $0x60] sm:$0xff]
      %v3842 = vld [vmem:[#allocation2 + $0x68] sm:$0xff]
      %v3843 = vld [vmem:[#allocation2 + $0x70] sm:$0xff]
      %v3844 = vld [vmem:[#allocation2 + $0x78] sm:$0xff]
      %v3845 = vld [vmem:[#allocation2 + $0x80] sm:$0xff]
      %v3846 = vld [vmem:[#allocation2 + $0x88] sm:$0xff]
      %v3847 = vld [vmem:[#allocation2 + $0x90] sm:$0xff]
      %v3848 = vld [vmem:[#allocation2 + $0x98] sm:$0xff]
      %v3849 = vld [vmem:[#allocation2 + $0xa0] sm:$0xff]
      %v3850 = vld [vmem:[#allocation2 + $0xa8] sm:$0xff]
      %v3851 = vld [vmem:[#allocation2 + $0xb0] sm:$0xff]
      %v3852 = vld [vmem:[#allocation2 + $0xb8] sm:$0xff]
      %v3853 = vld [vmem:[#allocation2 + $0xc0] sm:$0xff]
      %v3854 = vld [vmem:[#allocation2 + $0xc8] sm:$0xff]
      %v3855 = vld [vmem:[#allocation2 + $0xd0] sm:$0xff]
      %v3856 = vld [vmem:[#allocation2 + $0xd8] sm:$0xff]
      %v3857 = vld [vmem:[#allocation2 + $0xe0] sm:$0xff]
      %v3858 = vld [vmem:[#allocation2 + $0xe8] sm:$0xff]
      %v3859 = vld [vmem:[#allocation2 + $0xf0] sm:$0xff]
      %v3860 = vld [vmem:[#allocation2 + $0xf8] sm:$0xff]
      %v3861 = vld [vmem:[#allocation2 + $0x100] sm:$0xff]
      %v3862 = vld [vmem:[#allocation2 + $0x108] sm:$0xff]
      %v3863 = vld [vmem:[#allocation2 + $0x110] sm:$0xff]
      %v3864 = vld [vmem:[#allocation2 + $0x118] sm:$0xff]
      %v3865 = vadd.f32 %v3829, %v3740
      %v3866 = vadd.f32 %v3830, %v3742
      %v3867 = vadd.f32 %v3831, %v3745
      %v3868 = vadd.f32 %v3832, %v3747
      %v3869 = vadd.f32 %v3833, %v3750
      %v3870 = vadd.f32 %v3834, %v3752
      %v3871 = vadd.f32 %v3835, %v3755
      %v3872 = vadd.f32 %v3836, %v3757
      %v3873 = vadd.f32 %v3837, %v3760
      %v3874 = vadd.f32 %v3838, %v3762
      %v3875 = vadd.f32 %v3839, %v3765
      %v3876 = vadd.f32 %v3840, %v3767
      %v3877 = vadd.f32 %v3841, %v3770
      %v3878 = vadd.f32 %v3842, %v3772
      %v3879 = vadd.f32 %v3843, %v3775
      %v3880 = vadd.f32 %v3844, %v3777
      %v3881 = vadd.f32 %v3845, %v3780
      %v3882 = vadd.f32 %v3846, %v3782
      %v3883 = vadd.f32 %v3847, %v3785
      %v3884 = vadd.f32 %v3848, %v3787
      %v3885 = vadd.f32 %v3849, %v3790
      %v3886 = vadd.f32 %v3850, %v3792
      %v3887 = vadd.f32 %v3851, %v3795
      %v3888 = vadd.f32 %v3852, %v3797
      %v3889 = vadd.f32 %v3853, %v3800
      %v3890 = vadd.f32 %v3854, %v3802
      %v3891 = vadd.f32 %v3855, %v3805
      %v3892 = vadd.f32 %v3856, %v3807
      %v3893 = vadd.f32 %v3857, %v3810
      %v3894 = vadd.f32 %v3858, %v3812
      %v3895 = vadd.f32 %v3859, %v3815
      %v3896 = vadd.f32 %v3860, %v3817
      %v3897 = vadd.f32 %v3861, %v3820
      %v3898 = vadd.f32 %v3862, %v3822
      %v3899 = vadd.f32 %v3863, %v3825
      %v3900 = vadd.f32 %v3864, %v3827
      %3901 = vst.msk [vmem:[#allocation2] sm:$0xff] %vm487, %v3865
      %3902 = vst.msk [vmem:[#allocation2 + $0x8] sm:$0xff] %vm487, %v3866
      %3903 = vst.msk [vmem:[#allocation2 + $0x10] sm:$0xff] %vm487, %v3867
      %3904 = vst.msk [vmem:[#allocation2 + $0x18] sm:$0xff] %vm487, %v3868
      %3905 = vst.msk [vmem:[#allocation2 + $0x20] sm:$0xff] %vm487, %v3869
      %3906 = vst.msk [vmem:[#allocation2 + $0x28] sm:$0xff] %vm487, %v3870
      %3907 = vst.msk [vmem:[#allocation2 + $0x30] sm:$0xff] %vm487, %v3871
      %3908 = vst.msk [vmem:[#allocation2 + $0x38] sm:$0xff] %vm487, %v3872
      %3909 = vst.msk [vmem:[#allocation2 + $0x40] sm:$0xff] %vm487, %v3873
      %3910 = vst.msk [vmem:[#allocation2 + $0x48] sm:$0xff] %vm487, %v3874
      %3911 = vst.msk [vmem:[#allocation2 + $0x50] sm:$0xff] %vm487, %v3875
      %3912 = vst.msk [vmem:[#allocation2 + $0x58] sm:$0xff] %vm487, %v3876
      %3913 = vst.msk [vmem:[#allocation2 + $0x60] sm:$0xff] %vm487, %v3877
      %3914 = vst.msk [vmem:[#allocation2 + $0x68] sm:$0xff] %vm487, %v3878
      %3915 = vst.msk [vmem:[#allocation2 + $0x70] sm:$0xff] %vm487, %v3879
      %3916 = vst.msk [vmem:[#allocation2 + $0x78] sm:$0xff] %vm487, %v3880
      %3917 = vst.msk [vmem:[#allocation2 + $0x80] sm:$0xff] %vm487, %v3881
      %3918 = vst.msk [vmem:[#allocation2 + $0x88] sm:$0xff] %vm487, %v3882
      %3919 = vst.msk [vmem:[#allocation2 + $0x90] sm:$0xff] %vm487, %v3883
      %3920 = vst.msk [vmem:[#allocation2 + $0x98] sm:$0xff] %vm487, %v3884
      %3921 = vst.msk [vmem:[#allocation2 + $0xa0] sm:$0xff] %vm487, %v3885
      %3922 = vst.msk [vmem:[#allocation2 + $0xa8] sm:$0xff] %vm487, %v3886
      %3923 = vst.msk [vmem:[#allocation2 + $0xb0] sm:$0xff] %vm487, %v3887
      %3924 = vst.msk [vmem:[#allocation2 + $0xb8] sm:$0xff] %vm487, %v3888
      %3925 = vst.msk [vmem:[#allocation2 + $0xc0] sm:$0xff] %vm487, %v3889
      %3926 = vst.msk [vmem:[#allocation2 + $0xc8] sm:$0xff] %vm487, %v3890
      %3927 = vst.msk [vmem:[#allocation2 + $0xd0] sm:$0xff] %vm487, %v3891
      %3928 = vst.msk [vmem:[#allocation2 + $0xd8] sm:$0xff] %vm487, %v3892
      %3929 = vst.msk [vmem:[#allocation2 + $0xe0] sm:$0xff] %vm487, %v3893
      %3930 = vst.msk [vmem:[#allocation2 + $0xe8] sm:$0xff] %vm487, %v3894
      %3931 = vst.msk [vmem:[#allocation2 + $0xf0] sm:$0xff] %vm487, %v3895
      %3932 = vst.msk [vmem:[#allocation2 + $0xf8] sm:$0xff] %vm487, %v3896
      %3933 = vst.msk [vmem:[#allocation2 + $0x100] sm:$0xff] %vm487, %v3897
      %3934 = vst.msk [vmem:[#allocation2 + $0x108] sm:$0xff] %vm487, %v3898
      %3935 = vst.msk [vmem:[#allocation2 + $0x110] sm:$0xff] %vm487, %v3899
      %3936 = vst.msk [vmem:[#allocation2 + $0x118] sm:$0xff] %vm487, %v3900
      %v3937 = vld [vmem:[%s192 + $0x10] sm:$0x8]
      %v3938 = vld [vmem:[%s192 + $0x14] sm:$0xf]
      %v3939 = vld [vmem:[%s192 + $0x18] sm:$0xf]
      %v3940 = vld [vmem:[%s192 + $0x1c] sm:$0xf]
      %v3941 = vld [vmem:[%s192 + $0x20] sm:$0xf]
      %v3942 = vld [vmem:[%s192 + $0x24] sm:$0xf]
      %v3943 = vld [vmem:[%s192 + $0x28] sm:$0xf]
      %v3944 = vld [vmem:[%s192 + $0x2c] sm:$0xf]
      %v3945 = vld [vmem:[%s192 + $0x30] sm:$0xf]
      %v3946 = vld [vmem:[%s192 + $0x34] sm:$0xf]
      %v3947 = vld [vmem:[%s192 + $0x38] sm:$0xf]
      %v3948 = vld [vmem:[%s192 + $0x3c] sm:$0xf]
      %v3949 = vld [vmem:[%s192 + $0x40] sm:$0xf]
      %v3950 = vld [vmem:[%s192 + $0x44] sm:$0xf]
      %v3951 = vld [vmem:[%s192 + $0x48] sm:$0xf]
      %v3952 = vld [vmem:[%s192 + $0x4c] sm:$0xf]
      %v3953 = vld [vmem:[%s192 + $0x50] sm:$0xf]
      %v3954 = vld [vmem:[%s192 + $0x54] sm:$0xf]
      %v3955 = vld [vmem:[%s192 + $0x58] sm:$0xf]
      %v3956 = vld [vmem:[%s192 + $0x5c] sm:$0xf]
      %v3957 = vld [vmem:[%s192 + $0x60] sm:$0xf]
      %v3958 = vld [vmem:[%s192 + $0x64] sm:$0xf]
      %v3959 = vld [vmem:[%s192 + $0x68] sm:$0xf]
      %v3960 = vld [vmem:[%s192 + $0x6c] sm:$0xf]
      %v3961 = vld [vmem:[%s192 + $0x70] sm:$0xf]
      %v3962 = vld [vmem:[%s192 + $0x74] sm:$0xf]
      %v3963 = vld [vmem:[%s192 + $0x78] sm:$0xf]
      %v3964 = vld [vmem:[%s192 + $0x7c] sm:$0xf]
      %v3965 = vld [vmem:[%s192 + $0x80] sm:$0xf]
      %v3966 = vld [vmem:[%s192 + $0x84] sm:$0xf]
      %v3967 = vld [vmem:[%s192 + $0x88] sm:$0xf]
      %v3968 = vld [vmem:[%s192 + $0x8c] sm:$0xf]
      %v3969 = vld [vmem:[%s192 + $0x90] sm:$0xf]
      %v3970 = vld [vmem:[%s192 + $0x94] sm:$0xf]
      %v3971 = vld [vmem:[%s192 + $0x98] sm:$0xf]
      %v3972 = vld [vmem:[%s192 + $0x9c] sm:$0xf]
      %v3973 = vld [vmem:[%s192 + $0xa0] sm:$0x7]
      %s3974 = scalar_lea.vmem %s1, 16
      %v3975 = vld [vmem:[%s3974] sm:$0x3]
      %v4013 = vunpack.c.l.b16 %v3937
      %v4014 = vunpack.c.l.b16 %v3938
      %v4015 = vunpack.c.l.b16 %v3939
      %v4016 = vunpack.c.l.b16 %v3940
      %v4017 = vunpack.c.l.b16 %v3941
      %v4018 = vunpack.c.l.b16 %v3942
      %v4019 = vunpack.c.l.b16 %v3943
      %v4020 = vunpack.c.l.b16 %v3944
      %v4021 = vunpack.c.l.b16 %v3945
      %v4022 = vunpack.c.l.b16 %v3946
      %v4023 = vunpack.c.l.b16 %v3947
      %v4024 = vunpack.c.l.b16 %v3948
      %v4025 = vunpack.c.l.b16 %v3949
      %v4026 = vunpack.c.l.b16 %v3950
      %v4027 = vunpack.c.l.b16 %v3951
      %v4028 = vunpack.c.l.b16 %v3952
      %v4029 = vunpack.c.l.b16 %v3953
      %v4030 = vunpack.c.l.b16 %v3954
      %v4031 = vunpack.c.l.b16 %v3955
      %v4032 = vunpack.c.l.b16 %v3956
      %v4033 = vunpack.c.l.b16 %v3957
      %v4034 = vunpack.c.l.b16 %v3958
      %v4035 = vunpack.c.l.b16 %v3959
      %v4036 = vunpack.c.l.b16 %v3960
      %v4037 = vunpack.c.l.b16 %v3961
      %v4038 = vunpack.c.l.b16 %v3962
      %v4039 = vunpack.c.l.b16 %v3963
      %v4040 = vunpack.c.l.b16 %v3964
      %v4041 = vunpack.c.l.b16 %v3965
      %v4042 = vunpack.c.l.b16 %v3966
      %v4043 = vunpack.c.l.b16 %v3967
      %v4044 = vunpack.c.l.b16 %v3968
      %v4045 = vunpack.c.l.b16 %v3969
      %v4046 = vunpack.c.l.b16 %v3970
      %v4047 = vunpack.c.l.b16 %v3971
      %v4048 = vunpack.c.l.b16 %v3972
      %v4049 = vunpack.c.l.b16 %v3973
      %v4050 = vpack.c.b16 %v4014, %v4013
      %v4051 = vpack.c.b16 %v4016, %v4015
      %v4052 = vpack.c.b16 %v4018, %v4017
      %v4053 = vpack.c.b16 %v4020, %v4019
      %v4054 = vpack.c.b16 %v4022, %v4021
      %v4055 = vpack.c.b16 %v4024, %v4023
      %v4056 = vpack.c.b16 %v4026, %v4025
      %v4057 = vpack.c.b16 %v4028, %v4027
      %v4058 = vpack.c.b16 %v4030, %v4029
      %v4059 = vpack.c.b16 %v4032, %v4031
      %v4060 = vpack.c.b16 %v4034, %v4033
      %v4061 = vpack.c.b16 %v4036, %v4035
      %v4062 = vpack.c.b16 %v4038, %v4037
      %v4063 = vpack.c.b16 %v4040, %v4039
      %v4064 = vpack.c.b16 %v4042, %v4041
      %v4065 = vpack.c.b16 %v4044, %v4043
      %v4066 = vpack.c.b16 %v4046, %v4045
      %v4067 = vpack.c.b16 %v4048, %v4047
      %v4068 = vpack.c.b16 %v4049, %v4049
      %vm4069 = vcmask 1044480
      %v4070 = vrot.slane %v4050, 3
      %v4071 = vrot.slane %v4051, 3
      %v4072 = vsel %vm4069, %v4070, %v4071
      %v4073 = vrot.slane %v4052, 3
      %v4074 = vsel %vm4069, %v4071, %v4073
      %v4075 = vrot.slane %v4053, 3
      %v4076 = vsel %vm4069, %v4073, %v4075
      %v4077 = vrot.slane %v4054, 3
      %v4078 = vsel %vm4069, %v4075, %v4077
      %v4079 = vrot.slane %v4055, 3
      %v4080 = vsel %vm4069, %v4077, %v4079
      %v4081 = vrot.slane %v4056, 3
      %v4082 = vsel %vm4069, %v4079, %v4081
      %v4083 = vrot.slane %v4057, 3
      %v4084 = vsel %vm4069, %v4081, %v4083
      %v4085 = vrot.slane %v4058, 3
      %v4086 = vsel %vm4069, %v4083, %v4085
      %v4087 = vrot.slane %v4059, 3
      %v4088 = vsel %vm4069, %v4085, %v4087
      %v4089 = vrot.slane %v4060, 3
      %v4090 = vsel %vm4069, %v4087, %v4089
      %v4091 = vrot.slane %v4061, 3
      %v4092 = vsel %vm4069, %v4089, %v4091
      %v4093 = vrot.slane %v4062, 3
      %v4094 = vsel %vm4069, %v4091, %v4093
      %v4095 = vrot.slane %v4063, 3
      %v4096 = vsel %vm4069, %v4093, %v4095
      %v4097 = vrot.slane %v4064, 3
      %v4098 = vsel %vm4069, %v4095, %v4097
      %v4099 = vrot.slane %v4065, 3
      %v4100 = vsel %vm4069, %v4097, %v4099
      %v4101 = vrot.slane %v4066, 3
      %v4102 = vsel %vm4069, %v4099, %v4101
      %v4103 = vrot.slane %v4067, 3
      %v4104 = vsel %vm4069, %v4101, %v4103
      %v4105 = vrot.slane %v4068, 3
      %v4106 = vsel %vm4069, %v4103, %v4105
      %v4108 = vsel %vm326, %v4072, 0
      %v4111 = vsel %vm326, %v4074, 0
      %v4114 = vsel %vm326, %v4076, 0
      %v4117 = vsel %vm326, %v4078, 0
      %v4120 = vsel %vm326, %v4080, 0
      %v4123 = vsel %vm326, %v4082, 0
      %v4126 = vsel %vm326, %v4084, 0
      %v4129 = vsel %vm326, %v4086, 0
      %v4132 = vsel %vm326, %v4088, 0
      %v4135 = vsel %vm326, %v4090, 0
      %v4138 = vsel %vm326, %v4092, 0
      %v4141 = vsel %vm326, %v4094, 0
      %v4144 = vsel %vm326, %v4096, 0
      %v4147 = vsel %vm326, %v4098, 0
      %v4150 = vsel %vm326, %v4100, 0
      %v4153 = vsel %vm326, %v4102, 0
      %v4156 = vsel %vm326, %v4104, 0
      %v4159 = vsel %vm326, %v4106, 0
      %v4162 = vand.u32 %v3975, %v384
      %4164 = vmatpush.bf16.msra.mxu0 0
      %4165 = vmatpush.bf16.msra.mxu0 0
      %4166 = vmatpush.bf16.msra.mxu0 0
      %4167 = vmatpush.bf16.msra.mxu0 0
      %4168 = vmatpush.bf16.msra.mxu0 0
      %4169 = vmatpush.bf16.msra.mxu0 0
      %4170 = vmatpush.bf16.msra.mxu0 0
      %4171 = vmatpush.bf16.msra.mxu0 %v4162
      %4172 = vmatmul.bf16.gmra.mxu0 %v4108
      %v4173 = vpop.f32.mrf.mxu0
      %v4174 = vadd.f32 0.0, %v4173
      %v4175 = vpop.f32.mrf.mxu0
      %v4176 = vadd.f32 0.0, %v4175
      %4177 = vmatmul.bf16.gmra.mxu0 %v4111
      %v4178 = vpop.f32.mrf.mxu0
      %v4179 = vadd.f32 0.0, %v4178
      %v4180 = vpop.f32.mrf.mxu0
      %v4181 = vadd.f32 0.0, %v4180
      %4182 = vmatmul.bf16.gmra.mxu0 %v4114
      %v4183 = vpop.f32.mrf.mxu0
      %v4184 = vadd.f32 0.0, %v4183
      %v4185 = vpop.f32.mrf.mxu0
      %v4186 = vadd.f32 0.0, %v4185
      %4187 = vmatmul.bf16.gmra.mxu0 %v4117
      %v4188 = vpop.f32.mrf.mxu0
      %v4189 = vadd.f32 0.0, %v4188
      %v4190 = vpop.f32.mrf.mxu0
      %v4191 = vadd.f32 0.0, %v4190
      %4192 = vmatmul.bf16.gmra.mxu0 %v4120
      %v4193 = vpop.f32.mrf.mxu0
      %v4194 = vadd.f32 0.0, %v4193
      %v4195 = vpop.f32.mrf.mxu0
      %v4196 = vadd.f32 0.0, %v4195
      %4197 = vmatmul.bf16.gmra.mxu0 %v4123
      %v4198 = vpop.f32.mrf.mxu0
      %v4199 = vadd.f32 0.0, %v4198
      %v4200 = vpop.f32.mrf.mxu0
      %v4201 = vadd.f32 0.0, %v4200
      %4202 = vmatmul.bf16.gmra.mxu0 %v4126
      %v4203 = vpop.f32.mrf.mxu0
      %v4204 = vadd.f32 0.0, %v4203
      %v4205 = vpop.f32.mrf.mxu0
      %v4206 = vadd.f32 0.0, %v4205
      %4207 = vmatmul.bf16.gmra.mxu0 %v4129
      %v4208 = vpop.f32.mrf.mxu0
      %v4209 = vadd.f32 0.0, %v4208
      %v4210 = vpop.f32.mrf.mxu0
      %v4211 = vadd.f32 0.0, %v4210
      %4212 = vmatmul.bf16.gmra.mxu0 %v4132
      %v4213 = vpop.f32.mrf.mxu0
      %v4214 = vadd.f32 0.0, %v4213
      %v4215 = vpop.f32.mrf.mxu0
      %v4216 = vadd.f32 0.0, %v4215
      %4217 = vmatmul.bf16.gmra.mxu0 %v4135
      %v4218 = vpop.f32.mrf.mxu0
      %v4219 = vadd.f32 0.0, %v4218
      %v4220 = vpop.f32.mrf.mxu0
      %v4221 = vadd.f32 0.0, %v4220
      %4222 = vmatmul.bf16.gmra.mxu0 %v4138
      %v4223 = vpop.f32.mrf.mxu0
      %v4224 = vadd.f32 0.0, %v4223
      %v4225 = vpop.f32.mrf.mxu0
      %v4226 = vadd.f32 0.0, %v4225
      %4227 = vmatmul.bf16.gmra.mxu0 %v4141
      %v4228 = vpop.f32.mrf.mxu0
      %v4229 = vadd.f32 0.0, %v4228
      %v4230 = vpop.f32.mrf.mxu0
      %v4231 = vadd.f32 0.0, %v4230
      %4232 = vmatmul.bf16.gmra.mxu0 %v4144
      %v4233 = vpop.f32.mrf.mxu0
      %v4234 = vadd.f32 0.0, %v4233
      %v4235 = vpop.f32.mrf.mxu0
      %v4236 = vadd.f32 0.0, %v4235
      %4237 = vmatmul.bf16.gmra.mxu0 %v4147
      %v4238 = vpop.f32.mrf.mxu0
      %v4239 = vadd.f32 0.0, %v4238
      %v4240 = vpop.f32.mrf.mxu0
      %v4241 = vadd.f32 0.0, %v4240
      %4242 = vmatmul.bf16.gmra.mxu0 %v4150
      %v4243 = vpop.f32.mrf.mxu0
      %v4244 = vadd.f32 0.0, %v4243
      %v4245 = vpop.f32.mrf.mxu0
      %v4246 = vadd.f32 0.0, %v4245
      %4247 = vmatmul.bf16.gmra.mxu0 %v4153
      %v4248 = vpop.f32.mrf.mxu0
      %v4249 = vadd.f32 0.0, %v4248
      %v4250 = vpop.f32.mrf.mxu0
      %v4251 = vadd.f32 0.0, %v4250
      %4252 = vmatmul.bf16.gmra.mxu0 %v4156
      %v4253 = vpop.f32.mrf.mxu0
      %v4254 = vadd.f32 0.0, %v4253
      %v4255 = vpop.f32.mrf.mxu0
      %v4256 = vadd.f32 0.0, %v4255
      %4257 = vmatmul.bf16.gmra.mxu0 %v4159
      %v4258 = vpop.f32.mrf.mxu0
      %v4259 = vadd.f32 0.0, %v4258
      %v4260 = vpop.f32.mrf.mxu0
      %v4261 = vadd.f32 0.0, %v4260
      %4262 = vdwg.mxu0
      %v4263 = vld [vmem:[#allocation2] sm:$0xff]
      %v4264 = vld [vmem:[#allocation2 + $0x8] sm:$0xff]
      %v4265 = vld [vmem:[#allocation2 + $0x10] sm:$0xff]
      %v4266 = vld [vmem:[#allocation2 + $0x18] sm:$0xff]
      %v4267 = vld [vmem:[#allocation2 + $0x20] sm:$0xff]
      %v4268 = vld [vmem:[#allocation2 + $0x28] sm:$0xff]
      %v4269 = vld [vmem:[#allocation2 + $0x30] sm:$0xff]
      %v4270 = vld [vmem:[#allocation2 + $0x38] sm:$0xff]
      %v4271 = vld [vmem:[#allocation2 + $0x40] sm:$0xff]
      %v4272 = vld [vmem:[#allocation2 + $0x48] sm:$0xff]
      %v4273 = vld [vmem:[#allocation2 + $0x50] sm:$0xff]
      %v4274 = vld [vmem:[#allocation2 + $0x58] sm:$0xff]
      %v4275 = vld [vmem:[#allocation2 + $0x60] sm:$0xff]
      %v4276 = vld [vmem:[#allocation2 + $0x68] sm:$0xff]
      %v4277 = vld [vmem:[#allocation2 + $0x70] sm:$0xff]
      %v4278 = vld [vmem:[#allocation2 + $0x78] sm:$0xff]
      %v4279 = vld [vmem:[#allocation2 + $0x80] sm:$0xff]
      %v4280 = vld [vmem:[#allocation2 + $0x88] sm:$0xff]
      %v4281 = vld [vmem:[#allocation2 + $0x90] sm:$0xff]
      %v4282 = vld [vmem:[#allocation2 + $0x98] sm:$0xff]
      %v4283 = vld [vmem:[#allocation2 + $0xa0] sm:$0xff]
      %v4284 = vld [vmem:[#allocation2 + $0xa8] sm:$0xff]
      %v4285 = vld [vmem:[#allocation2 + $0xb0] sm:$0xff]
      %v4286 = vld [vmem:[#allocation2 + $0xb8] sm:$0xff]
      %v4287 = vld [vmem:[#allocation2 + $0xc0] sm:$0xff]
      %v4288 = vld [vmem:[#allocation2 + $0xc8] sm:$0xff]
      %v4289 = vld [vmem:[#allocation2 + $0xd0] sm:$0xff]
      %v4290 = vld [vmem:[#allocation2 + $0xd8] sm:$0xff]
      %v4291 = vld [vmem:[#allocation2 + $0xe0] sm:$0xff]
      %v4292 = vld [vmem:[#allocation2 + $0xe8] sm:$0xff]
      %v4293 = vld [vmem:[#allocation2 + $0xf0] sm:$0xff]
      %v4294 = vld [vmem:[#allocation2 + $0xf8] sm:$0xff]
      %v4295 = vld [vmem:[#allocation2 + $0x100] sm:$0xff]
      %v4296 = vld [vmem:[#allocation2 + $0x108] sm:$0xff]
      %v4297 = vld [vmem:[#allocation2 + $0x110] sm:$0xff]
      %v4298 = vld [vmem:[#allocation2 + $0x118] sm:$0xff]
      %v4299 = vadd.f32 %v4263, %v4174
      %v4300 = vadd.f32 %v4264, %v4176
      %v4301 = vadd.f32 %v4265, %v4179
      %v4302 = vadd.f32 %v4266, %v4181
      %v4303 = vadd.f32 %v4267, %v4184
      %v4304 = vadd.f32 %v4268, %v4186
      %v4305 = vadd.f32 %v4269, %v4189
      %v4306 = vadd.f32 %v4270, %v4191
      %v4307 = vadd.f32 %v4271, %v4194
      %v4308 = vadd.f32 %v4272, %v4196
      %v4309 = vadd.f32 %v4273, %v4199
      %v4310 = vadd.f32 %v4274, %v4201
      %v4311 = vadd.f32 %v4275, %v4204
      %v4312 = vadd.f32 %v4276, %v4206
      %v4313 = vadd.f32 %v4277, %v4209
      %v4314 = vadd.f32 %v4278, %v4211
      %v4315 = vadd.f32 %v4279, %v4214
      %v4316 = vadd.f32 %v4280, %v4216
      %v4317 = vadd.f32 %v4281, %v4219
      %v4318 = vadd.f32 %v4282, %v4221
      %v4319 = vadd.f32 %v4283, %v4224
      %v4320 = vadd.f32 %v4284, %v4226
      %v4321 = vadd.f32 %v4285, %v4229
      %v4322 = vadd.f32 %v4286, %v4231
      %v4323 = vadd.f32 %v4287, %v4234
      %v4324 = vadd.f32 %v4288, %v4236
      %v4325 = vadd.f32 %v4289, %v4239
      %v4326 = vadd.f32 %v4290, %v4241
      %v4327 = vadd.f32 %v4291, %v4244
      %v4328 = vadd.f32 %v4292, %v4246
      %v4329 = vadd.f32 %v4293, %v4249
      %v4330 = vadd.f32 %v4294, %v4251
      %v4331 = vadd.f32 %v4295, %v4254
      %v4332 = vadd.f32 %v4296, %v4256
      %v4333 = vadd.f32 %v4297, %v4259
      %v4334 = vadd.f32 %v4298, %v4261
      %4335 = vst.msk [vmem:[#allocation2] sm:$0xff] %vm487, %v4299
      %4336 = vst.msk [vmem:[#allocation2 + $0x8] sm:$0xff] %vm487, %v4300
      %4337 = vst.msk [vmem:[#allocation2 + $0x10] sm:$0xff] %vm487, %v4301
      %4338 = vst.msk [vmem:[#allocation2 + $0x18] sm:$0xff] %vm487, %v4302
      %4339 = vst.msk [vmem:[#allocation2 + $0x20] sm:$0xff] %vm487, %v4303
      %4340 = vst.msk [vmem:[#allocation2 + $0x28] sm:$0xff] %vm487, %v4304
      %4341 = vst.msk [vmem:[#allocation2 + $0x30] sm:$0xff] %vm487, %v4305
      %4342 = vst.msk [vmem:[#allocation2 + $0x38] sm:$0xff] %vm487, %v4306
      %4343 = vst.msk [vmem:[#allocation2 + $0x40] sm:$0xff] %vm487, %v4307
      %4344 = vst.msk [vmem:[#allocation2 + $0x48] sm:$0xff] %vm487, %v4308
      %4345 = vst.msk [vmem:[#allocation2 + $0x50] sm:$0xff] %vm487, %v4309
      %4346 = vst.msk [vmem:[#allocation2 + $0x58] sm:$0xff] %vm487, %v4310
      %4347 = vst.msk [vmem:[#allocation2 + $0x60] sm:$0xff] %vm487, %v4311
      %4348 = vst.msk [vmem:[#allocation2 + $0x68] sm:$0xff] %vm487, %v4312
      %4349 = vst.msk [vmem:[#allocation2 + $0x70] sm:$0xff] %vm487, %v4313
      %4350 = vst.msk [vmem:[#allocation2 + $0x78] sm:$0xff] %vm487, %v4314
      %4351 = vst.msk [vmem:[#allocation2 + $0x80] sm:$0xff] %vm487, %v4315
      %4352 = vst.msk [vmem:[#allocation2 + $0x88] sm:$0xff] %vm487, %v4316
      %4353 = vst.msk [vmem:[#allocation2 + $0x90] sm:$0xff] %vm487, %v4317
      %4354 = vst.msk [vmem:[#allocation2 + $0x98] sm:$0xff] %vm487, %v4318
      %4355 = vst.msk [vmem:[#allocation2 + $0xa0] sm:$0xff] %vm487, %v4319
      %4356 = vst.msk [vmem:[#allocation2 + $0xa8] sm:$0xff] %vm487, %v4320
      %4357 = vst.msk [vmem:[#allocation2 + $0xb0] sm:$0xff] %vm487, %v4321
      %4358 = vst.msk [vmem:[#allocation2 + $0xb8] sm:$0xff] %vm487, %v4322
      %4359 = vst.msk [vmem:[#allocation2 + $0xc0] sm:$0xff] %vm487, %v4323
      %4360 = vst.msk [vmem:[#allocation2 + $0xc8] sm:$0xff] %vm487, %v4324
      %4361 = vst.msk [vmem:[#allocation2 + $0xd0] sm:$0xff] %vm487, %v4325
      %4362 = vst.msk [vmem:[#allocation2 + $0xd8] sm:$0xff] %vm487, %v4326
      %4363 = vst.msk [vmem:[#allocation2 + $0xe0] sm:$0xff] %vm487, %v4327
      %4364 = vst.msk [vmem:[#allocation2 + $0xe8] sm:$0xff] %vm487, %v4328
      %4365 = vst.msk [vmem:[#allocation2 + $0xf0] sm:$0xff] %vm487, %v4329
      %4366 = vst.msk [vmem:[#allocation2 + $0xf8] sm:$0xff] %vm487, %v4330
      %4367 = vst.msk [vmem:[#allocation2 + $0x100] sm:$0xff] %vm487, %v4331
      %4368 = vst.msk [vmem:[#allocation2 + $0x108] sm:$0xff] %vm487, %v4332
      %4369 = vst.msk [vmem:[#allocation2 + $0x110] sm:$0xff] %vm487, %v4333
      %4370 = vst.msk [vmem:[#allocation2 + $0x118] sm:$0xff] %vm487, %v4334
      %v4371 = vld [vmem:[#allocation2] sm:$0xff]
      %v4372 = vld [vmem:[#allocation2 + $0x8] sm:$0xff]
      %v4373 = vld [vmem:[#allocation2 + $0x10] sm:$0xff]
      %v4374 = vld [vmem:[#allocation2 + $0x18] sm:$0xff]
      %v4375 = vld [vmem:[#allocation2 + $0x20] sm:$0xff]
      %v4376 = vld [vmem:[#allocation2 + $0x28] sm:$0xff]
      %v4377 = vld [vmem:[#allocation2 + $0x30] sm:$0xff]
      %v4378 = vld [vmem:[#allocation2 + $0x38] sm:$0xff]
      %v4379 = vld [vmem:[#allocation2 + $0x40] sm:$0xff]
      %v4380 = vld [vmem:[#allocation2 + $0x48] sm:$0xff]
      %v4381 = vld [vmem:[#allocation2 + $0x50] sm:$0xff]
      %v4382 = vld [vmem:[#allocation2 + $0x58] sm:$0xff]
      %v4383 = vld [vmem:[#allocation2 + $0x60] sm:$0xff]
      %v4384 = vld [vmem:[#allocation2 + $0x68] sm:$0xff]
      %v4385 = vld [vmem:[#allocation2 + $0x70] sm:$0xff]
      %v4386 = vld [vmem:[#allocation2 + $0x78] sm:$0xff]
      %v4387 = vld [vmem:[#allocation2 + $0x80] sm:$0xff]
      %v4388 = vld [vmem:[#allocation2 + $0x88] sm:$0xff]
      %v4389 = vld [vmem:[#allocation2 + $0x90] sm:$0xff]
      %v4390 = vld [vmem:[#allocation2 + $0x98] sm:$0xff]
      %v4391 = vld [vmem:[#allocation2 + $0xa0] sm:$0xff]
      %v4392 = vld [vmem:[#allocation2 + $0xa8] sm:$0xff]
      %v4393 = vld [vmem:[#allocation2 + $0xb0] sm:$0xff]
      %v4394 = vld [vmem:[#allocation2 + $0xb8] sm:$0xff]
      %v4395 = vld [vmem:[#allocation2 + $0xc0] sm:$0xff]
      %v4396 = vld [vmem:[#allocation2 + $0xc8] sm:$0xff]
      %v4397 = vld [vmem:[#allocation2 + $0xd0] sm:$0xff]
      %v4398 = vld [vmem:[#allocation2 + $0xd8] sm:$0xff]
      %v4399 = vld [vmem:[#allocation2 + $0xe0] sm:$0xff]
      %v4400 = vld [vmem:[#allocation2 + $0xe8] sm:$0xff]
      %v4401 = vld [vmem:[#allocation2 + $0xf0] sm:$0xff]
      %v4402 = vld [vmem:[#allocation2 + $0xf8] sm:$0xff]
      %v4403 = vld [vmem:[#allocation2 + $0x100] sm:$0xff]
      %v4404 = vld [vmem:[#allocation2 + $0x108] sm:$0xff]
      %v4405 = vld [vmem:[#allocation2 + $0x110] sm:$0xff]
      %v4406 = vld [vmem:[#allocation2 + $0x118] sm:$0xff]
      %v4407 = vld [vmem:[%s2] sm:$0x1]
      %v4409 = vperm.slane %v4407, 0
      %v4411 = vmul.f32 %v4371, %v4409
      %v4412 = vmul.f32 %v4372, %v4409
      %v4413 = vmul.f32 %v4373, %v4409
      %v4414 = vmul.f32 %v4374, %v4409
      %v4415 = vmul.f32 %v4375, %v4409
      %v4416 = vmul.f32 %v4376, %v4409
      %v4417 = vmul.f32 %v4377, %v4409
      %v4418 = vmul.f32 %v4378, %v4409
      %v4419 = vmul.f32 %v4379, %v4409
      %v4420 = vmul.f32 %v4380, %v4409
      %v4421 = vmul.f32 %v4381, %v4409
      %v4422 = vmul.f32 %v4382, %v4409
      %v4423 = vmul.f32 %v4383, %v4409
      %v4424 = vmul.f32 %v4384, %v4409
      %v4425 = vmul.f32 %v4385, %v4409
      %v4426 = vmul.f32 %v4386, %v4409
      %v4427 = vmul.f32 %v4387, %v4409
      %v4428 = vmul.f32 %v4388, %v4409
      %v4429 = vmul.f32 %v4389, %v4409
      %v4430 = vmul.f32 %v4390, %v4409
      %v4431 = vmul.f32 %v4391, %v4409
      %v4432 = vmul.f32 %v4392, %v4409
      %v4433 = vmul.f32 %v4393, %v4409
      %v4434 = vmul.f32 %v4394, %v4409
      %v4435 = vmul.f32 %v4395, %v4409
      %v4436 = vmul.f32 %v4396, %v4409
      %v4437 = vmul.f32 %v4397, %v4409
      %v4438 = vmul.f32 %v4398, %v4409
      %v4439 = vmul.f32 %v4399, %v4409
      %v4440 = vmul.f32 %v4400, %v4409
      %v4441 = vmul.f32 %v4401, %v4409
      %v4442 = vmul.f32 %v4402, %v4409
      %v4443 = vmul.f32 %v4403, %v4409
      %v4444 = vmul.f32 %v4404, %v4409
      %v4445 = vmul.f32 %v4405, %v4409
      %v4446 = vmul.f32 %v4406, %v4409
      %v4447 = vld [vmem:[%s3] sm:$0x1]
      %v4449 = vperm.slane %v4447, 0
      %v4451 = vadd.f32 %v4411, %v4449
      %v4452 = vadd.f32 %v4412, %v4449
      %v4453 = vadd.f32 %v4413, %v4449
      %v4454 = vadd.f32 %v4414, %v4449
      %v4455 = vadd.f32 %v4415, %v4449
      %v4456 = vadd.f32 %v4416, %v4449
      %v4457 = vadd.f32 %v4417, %v4449
      %v4458 = vadd.f32 %v4418, %v4449
      %v4459 = vadd.f32 %v4419, %v4449
      %v4460 = vadd.f32 %v4420, %v4449
      %v4461 = vadd.f32 %v4421, %v4449
      %v4462 = vadd.f32 %v4422, %v4449
      %v4463 = vadd.f32 %v4423, %v4449
      %v4464 = vadd.f32 %v4424, %v4449
      %v4465 = vadd.f32 %v4425, %v4449
      %v4466 = vadd.f32 %v4426, %v4449
      %v4467 = vadd.f32 %v4427, %v4449
      %v4468 = vadd.f32 %v4428, %v4449
      %v4469 = vadd.f32 %v4429, %v4449
      %v4470 = vadd.f32 %v4430, %v4449
      %v4471 = vadd.f32 %v4431, %v4449
      %v4472 = vadd.f32 %v4432, %v4449
      %v4473 = vadd.f32 %v4433, %v4449
      %v4474 = vadd.f32 %v4434, %v4449
      %v4475 = vadd.f32 %v4435, %v4449
      %v4476 = vadd.f32 %v4436, %v4449
      %v4477 = vadd.f32 %v4437, %v4449
      %v4478 = vadd.f32 %v4438, %v4449
      %v4479 = vadd.f32 %v4439, %v4449
      %v4480 = vadd.f32 %v4440, %v4449
      %v4481 = vadd.f32 %v4441, %v4449
      %v4482 = vadd.f32 %v4442, %v4449
      %v4483 = vadd.f32 %v4443, %v4449
      %v4484 = vadd.f32 %v4444, %v4449
      %v4485 = vadd.f32 %v4445, %v4449
      %v4486 = vadd.f32 %v4446, %v4449
      %v4487 = vmax.f32 %v4451, 0.0
      %v4488 = vmax.f32 %v4452, 0.0
      %v4489 = vmax.f32 %v4453, 0.0
      %v4490 = vmax.f32 %v4454, 0.0
      %v4491 = vmax.f32 %v4455, 0.0
      %v4492 = vmax.f32 %v4456, 0.0
      %v4493 = vmax.f32 %v4457, 0.0
      %v4494 = vmax.f32 %v4458, 0.0
      %v4495 = vmax.f32 %v4459, 0.0
      %v4496 = vmax.f32 %v4460, 0.0
      %v4497 = vmax.f32 %v4461, 0.0
      %v4498 = vmax.f32 %v4462, 0.0
      %v4499 = vmax.f32 %v4463, 0.0
      %v4500 = vmax.f32 %v4464, 0.0
      %v4501 = vmax.f32 %v4465, 0.0
      %v4502 = vmax.f32 %v4466, 0.0
      %v4503 = vmax.f32 %v4467, 0.0
      %v4504 = vmax.f32 %v4468, 0.0
      %v4505 = vmax.f32 %v4469, 0.0
      %v4506 = vmax.f32 %v4470, 0.0
      %v4507 = vmax.f32 %v4471, 0.0
      %v4508 = vmax.f32 %v4472, 0.0
      %v4509 = vmax.f32 %v4473, 0.0
      %v4510 = vmax.f32 %v4474, 0.0
      %v4511 = vmax.f32 %v4475, 0.0
      %v4512 = vmax.f32 %v4476, 0.0
      %v4513 = vmax.f32 %v4477, 0.0
      %v4514 = vmax.f32 %v4478, 0.0
      %v4515 = vmax.f32 %v4479, 0.0
      %v4516 = vmax.f32 %v4480, 0.0
      %v4517 = vmax.f32 %v4481, 0.0
      %v4518 = vmax.f32 %v4482, 0.0
      %v4519 = vmax.f32 %v4483, 0.0
      %v4520 = vmax.f32 %v4484, 0.0
      %v4521 = vmax.f32 %v4485, 0.0
      %v4522 = vmax.f32 %v4486, 0.0
      %4523 = vst.msk [vmem:[#allocation2] sm:$0xff] %vm487, %v4487
      %4524 = vst.msk [vmem:[#allocation2 + $0x8] sm:$0xff] %vm487, %v4488
      %4525 = vst.msk [vmem:[#allocation2 + $0x10] sm:$0xff] %vm487, %v4489
      %4526 = vst.msk [vmem:[#allocation2 + $0x18] sm:$0xff] %vm487, %v4490
      %4527 = vst.msk [vmem:[#allocation2 + $0x20] sm:$0xff] %vm487, %v4491
      %4528 = vst.msk [vmem:[#allocation2 + $0x28] sm:$0xff] %vm487, %v4492
      %4529 = vst.msk [vmem:[#allocation2 + $0x30] sm:$0xff] %vm487, %v4493
      %4530 = vst.msk [vmem:[#allocation2 + $0x38] sm:$0xff] %vm487, %v4494
      %4531 = vst.msk [vmem:[#allocation2 + $0x40] sm:$0xff] %vm487, %v4495
      %4532 = vst.msk [vmem:[#allocation2 + $0x48] sm:$0xff] %vm487, %v4496
      %4533 = vst.msk [vmem:[#allocation2 + $0x50] sm:$0xff] %vm487, %v4497
      %4534 = vst.msk [vmem:[#allocation2 + $0x58] sm:$0xff] %vm487, %v4498
      %4535 = vst.msk [vmem:[#allocation2 + $0x60] sm:$0xff] %vm487, %v4499
      %4536 = vst.msk [vmem:[#allocation2 + $0x68] sm:$0xff] %vm487, %v4500
      %4537 = vst.msk [vmem:[#allocation2 + $0x70] sm:$0xff] %vm487, %v4501
      %4538 = vst.msk [vmem:[#allocation2 + $0x78] sm:$0xff] %vm487, %v4502
      %4539 = vst.msk [vmem:[#allocation2 + $0x80] sm:$0xff] %vm487, %v4503
      %4540 = vst.msk [vmem:[#allocation2 + $0x88] sm:$0xff] %vm487, %v4504
      %4541 = vst.msk [vmem:[#allocation2 + $0x90] sm:$0xff] %vm487, %v4505
      %4542 = vst.msk [vmem:[#allocation2 + $0x98] sm:$0xff] %vm487, %v4506
      %4543 = vst.msk [vmem:[#allocation2 + $0xa0] sm:$0xff] %vm487, %v4507
      %4544 = vst.msk [vmem:[#allocation2 + $0xa8] sm:$0xff] %vm487, %v4508
      %4545 = vst.msk [vmem:[#allocation2 + $0xb0] sm:$0xff] %vm487, %v4509
      %4546 = vst.msk [vmem:[#allocation2 + $0xb8] sm:$0xff] %vm487, %v4510
      %4547 = vst.msk [vmem:[#allocation2 + $0xc0] sm:$0xff] %vm487, %v4511
      %4548 = vst.msk [vmem:[#allocation2 + $0xc8] sm:$0xff] %vm487, %v4512
      %4549 = vst.msk [vmem:[#allocation2 + $0xd0] sm:$0xff] %vm487, %v4513
      %4550 = vst.msk [vmem:[#allocation2 + $0xd8] sm:$0xff] %vm487, %v4514
      %4551 = vst.msk [vmem:[#allocation2 + $0xe0] sm:$0xff] %vm487, %v4515
      %4552 = vst.msk [vmem:[#allocation2 + $0xe8] sm:$0xff] %vm487, %v4516
      %4553 = vst.msk [vmem:[#allocation2 + $0xf0] sm:$0xff] %vm487, %v4517
      %4554 = vst.msk [vmem:[#allocation2 + $0xf8] sm:$0xff] %vm487, %v4518
      %4555 = vst.msk [vmem:[#allocation2 + $0x100] sm:$0xff] %vm487, %v4519
      %4556 = vst.msk [vmem:[#allocation2 + $0x108] sm:$0xff] %vm487, %v4520
      %4557 = vst.msk [vmem:[#allocation2 + $0x110] sm:$0xff] %vm487, %v4521
      %4558 = vst.msk [vmem:[#allocation2 + $0x118] sm:$0xff] %vm487, %v4522
      %v4559 = vld [vmem:[#allocation2] ss:$2 sm:$0xff]
      %s4560 = scalar_lea.vmem [#allocation2], 1
      %v4561 = vld [vmem:[%s4560] ss:$2 sm:$0xff]
      %s4562 = scalar_lea.vmem [#allocation2], 18
      %v4563 = vld [vmem:[%s4562] ss:$2 sm:$0xff]
      %s4564 = scalar_lea.vmem [#allocation2], 19
      %v4565 = vld [vmem:[%s4564] ss:$2 sm:$0xff]
      %v4566 = vmax.f32 %v4559, %v4561
      %v4567 = vmax.f32 %v4563, %v4565
      %v4568 = vmax.f32 %v4566, %v4567
      %v4569 = vpack.c.bf16 %v4568, %v4568
      %vm4570 = vcmask 519168
      %4571 = vst.msk [vmem:[%s197] sm:$0xf] %vm4570, %v4569
      %s4572 = scalar_lea.vmem [#allocation2], 36
      %v4573 = vld [vmem:[%s4572] ss:$2 sm:$0xff]
      %s4574 = scalar_lea.vmem [#allocation2], 37
      %v4575 = vld [vmem:[%s4574] ss:$2 sm:$0xff]
      %s4576 = scalar_lea.vmem [#allocation2], 54
      %v4577 = vld [vmem:[%s4576] ss:$2 sm:$0xff]
      %s4578 = scalar_lea.vmem [#allocation2], 55
      %v4579 = vld [vmem:[%s4578] ss:$2 sm:$0xff]
      %v4580 = vmax.f32 %v4573, %v4575
      %v4581 = vmax.f32 %v4577, %v4579
      %v4582 = vmax.f32 %v4580, %v4581
      %v4583 = vpack.c.bf16 %v4582, %v4582
      %s4584 = scalar_lea.vmem %s197, 4
      %4585 = vst.msk [vmem:[%s4584] sm:$0xf] %vm4570, %v4583
      %s4586 = scalar_lea.vmem [#allocation2], 72
      %v4587 = vld [vmem:[%s4586] ss:$2 sm:$0xff]
      %s4588 = scalar_lea.vmem [#allocation2], 73
      %v4589 = vld [vmem:[%s4588] ss:$2 sm:$0xff]
      %s4590 = scalar_lea.vmem [#allocation2], 90
      %v4591 = vld [vmem:[%s4590] ss:$2 sm:$0xff]
      %s4592 = scalar_lea.vmem [#allocation2], 91
      %v4593 = vld [vmem:[%s4592] ss:$2 sm:$0xff]
      %v4594 = vmax.f32 %v4587, %v4589
      %v4595 = vmax.f32 %v4591, %v4593
      %v4596 = vmax.f32 %v4594, %v4595
      %v4597 = vpack.c.bf16 %v4596, %v4596
      %s4598 = scalar_lea.vmem %s197, 8
      %4599 = vst.msk [vmem:[%s4598] sm:$0xf] %vm4570, %v4597
      %s4600 = scalar_lea.vmem [#allocation2], 108
      %v4601 = vld [vmem:[%s4600] ss:$2 sm:$0xff]
      %s4602 = scalar_lea.vmem [#allocation2], 109
      %v4603 = vld [vmem:[%s4602] ss:$2 sm:$0xff]
      %s4604 = scalar_lea.vmem [#allocation2], 126
      %v4605 = vld [vmem:[%s4604] ss:$2 sm:$0xff]
      %s4606 = scalar_lea.vmem [#allocation2], 127
      %v4607 = vld [vmem:[%s4606] ss:$2 sm:$0xff]
      %v4608 = vmax.f32 %v4601, %v4603
      %v4609 = vmax.f32 %v4605, %v4607
      %v4610 = vmax.f32 %v4608, %v4609
      %v4611 = vpack.c.bf16 %v4610, %v4610
      %s4612 = scalar_lea.vmem %s197, 12
      %4613 = vst.msk [vmem:[%s4612] sm:$0xf] %vm4570, %v4611
      %s4614 = scalar_lea.vmem [#allocation2], 144
      %v4615 = vld [vmem:[%s4614] ss:$2 sm:$0xff]
      %s4616 = scalar_lea.vmem [#allocation2], 145
      %v4617 = vld [vmem:[%s4616] ss:$2 sm:$0xff]
      %s4618 = scalar_lea.vmem [#allocation2], 162
      %v4619 = vld [vmem:[%s4618] ss:$2 sm:$0xff]
      %s4620 = scalar_lea.vmem [#allocation2], 163
      %v4621 = vld [vmem:[%s4620] ss:$2 sm:$0xff]
      %v4622 = vmax.f32 %v4615, %v4617
      %v4623 = vmax.f32 %v4619, %v4621
      %v4624 = vmax.f32 %v4622, %v4623
      %v4625 = vpack.c.bf16 %v4624, %v4624
      %s4626 = scalar_lea.vmem %s197, 16
      %4627 = vst.msk [vmem:[%s4626] sm:$0xf] %vm4570, %v4625
      %s4628 = scalar_lea.vmem [#allocation2], 180
      %v4629 = vld [vmem:[%s4628] ss:$2 sm:$0xff]
      %s4630 = scalar_lea.vmem [#allocation2], 181
      %v4631 = vld [vmem:[%s4630] ss:$2 sm:$0xff]
      %s4632 = scalar_lea.vmem [#allocation2], 198
      %v4633 = vld [vmem:[%s4632] ss:$2 sm:$0xff]
      %s4634 = scalar_lea.vmem [#allocation2], 199
      %v4635 = vld [vmem:[%s4634] ss:$2 sm:$0xff]
      %v4636 = vmax.f32 %v4629, %v4631
      %v4637 = vmax.f32 %v4633, %v4635
      %v4638 = vmax.f32 %v4636, %v4637
      %v4639 = vpack.c.bf16 %v4638, %v4638
      %s4640 = scalar_lea.vmem %s197, 20
      %4641 = vst.msk [vmem:[%s4640] sm:$0xf] %vm4570, %v4639
      %s4642 = scalar_lea.vmem [#allocation2], 216
      %v4643 = vld [vmem:[%s4642] ss:$2 sm:$0xff]
      %s4644 = scalar_lea.vmem [#allocation2], 217
      %v4645 = vld [vmem:[%s4644] ss:$2 sm:$0xff]
      %s4646 = scalar_lea.vmem [#allocation2], 234
      %v4647 = vld [vmem:[%s4646] ss:$2 sm:$0xff]
      %s4648 = scalar_lea.vmem [#allocation2], 235
      %v4649 = vld [vmem:[%s4648] ss:$2 sm:$0xff]
      %v4650 = vmax.f32 %v4643, %v4645
      %v4651 = vmax.f32 %v4647, %v4649
      %v4652 = vmax.f32 %v4650, %v4651
      %v4653 = vpack.c.bf16 %v4652, %v4652
      %s4654 = scalar_lea.vmem %s197, 24
      %4655 = vst.msk [vmem:[%s4654] sm:$0xf] %vm4570, %v4653
      %s4656 = scalar_lea.vmem [#allocation2], 252
      %v4657 = vld [vmem:[%s4656] ss:$2 sm:$0xff]
      %s4658 = scalar_lea.vmem [#allocation2], 253
      %v4659 = vld [vmem:[%s4658] ss:$2 sm:$0xff]
      %s4660 = scalar_lea.vmem [#allocation2], 270
      %v4661 = vld [vmem:[%s4660] ss:$2 sm:$0xff]
      %s4662 = scalar_lea.vmem [#allocation2], 271
      %v4663 = vld [vmem:[%s4662] ss:$2 sm:$0xff]
      %v4664 = vmax.f32 %v4657, %v4659
      %v4665 = vmax.f32 %v4661, %v4663
      %v4666 = vmax.f32 %v4664, %v4665
      %v4667 = vpack.c.bf16 %v4666, %v4666
      %s4668 = scalar_lea.vmem %s197, 28
      %4669 = vst.msk [vmem:[%s4668] sm:$0xf] %vm4570, %v4667
      %p4670 = scmp.lt.s32.totalorder %s15, 1
      %s4671 = scalar_select %p4670, %s15, 1
      %s4672 = smul.addr %s4671, 8
      %s4673 = smul.addr %s4672, 4
      %s4674 = scalar_lea.vmem %s4, %s4673
      // Predicated region
      $region37: #{upper_forward.4} parent=35 // pred_check
        %p4675 = pneg %p122
      $region38: #{upper_forward.4} parent=35 // pred_check_branch
        %4677 = sbr.rel (%p4675) target = $region40
      $region39: #{upper_forward.4} parent=35 // pred_region
        _
      $region40: #{upper_forward.4} parent=35 // pred_fallthru
        _
    $region36: #{upper_forward.4} parent=5 // pred_fallthru
      _
    %p4678 = scmp.le.s32.totalorder 2, %s10
    // Predicated region
    $region41: #{upper_forward.4} parent=5 // pred_check
      %p4679 = pneg %p4678
    $region42: #{upper_forward.4} parent=5 // pred_check_branch
      %4681 = sbr.rel (%p4679) target = $region44
    $region43: #{upper_forward.4} parent=5 // pred_region
      %s4682 = ssub.s32 %s10, 2
      // Predicated region
      $region45: #{upper_forward.4} parent=43 // pred_check
        %p4683 = pneg %p128
      $region46: #{upper_forward.4} parent=43 // pred_check_branch
        %4685 = sbr.rel (%p4683) target = $region48
      $region47: #{upper_forward.4} parent=43 // pred_region
        %p4686 = scmp.lt.s32.totalorder %s16, 1
        %s4687 = scalar_select %p4686, %s16, 1
        %s4688 = smul.addr %s4687, 8
        %s4689 = smul.addr %s4688, 4
        %s4690 = scalar_lea.vmem %s4, %s4689
      $region48: #{upper_forward.4} parent=43 // pred_fallthru
        _
    $region44: #{upper_forward.4} parent=5 // pred_fallthru
      _
  $region6: #{upper_forward.4} parent=0 // loop_footer
    %s14 = sadd.s32 1, %s10
  $region7: #{upper_forward.4} parent=0 // loop_footer_branch
    %9 = sbr.rel target = $region3
  $region8: #{upper_forward.4} parent=0 // loop_exit
    _

</llo_original>
